<compile_context>
chip_gen: v7x
topology: tpu7x:2x2x1
jax: 0.10.0
libtpu: 0.0.40
codegen_flags: <defaults>
</compile_context>

<pallas_src>
import functools

import jax
import jax.numpy as jnp
from jax.experimental import pallas as pl
from jax.experimental.pallas import tpu as pltpu

NUM_CLASSES = 16
IN_PLANES = 512          # Conv2d(512, NUM_CLASSES, 3, padding=1)
NEG_SLOPE = 0.01         # nn.LeakyReLU default
BN_EPS = 1e-5            # nn.BatchNorm2d default


# --------------------------------------------------------------------------- #
# Pass 1: 3x3 conv (padding=1) + per-sample per-channel sum / sum-of-squares. #
# --------------------------------------------------------------------------- #
def conv_stats_kernel(xp_ref, w_ref, y_ref, s_ref, ss_ref):
    """One batch sample per grid step.

    xp_ref : (1, H+2, W+2, Cin)      zero-padded input, channels-last (Cin=512 lane-dense)
    w_ref  : (3, 3, Cin, NUM_CLASSES)
    y_ref  : (1, NUM_CLASSES, H*W)   conv output, spatial on lanes (lane-dense stores)
    s_ref  : (1, NUM_CLASSES, 1)     per-sample channel sums
    ss_ref : (1, NUM_CLASSES, 1)     per-sample channel sums of squares
    """
    _, hp, wp, cin = xp_ref.shape
    h, w = hp - 2, wp - 2
    hw = h * w

    # 3x3 conv as 9 tap matmuls; K = Cin = 512 per tap already saturates the MXU
    # contraction depth, so accumulating 9 taps is cheaper than materializing im2col.
    acc = jnp.zeros((hw, NUM_CLASSES), dtype=jnp.float32)
    for dy in range(3):
        for dx in range(3):
            patch = xp_ref[:, dy:dy + h, dx:dx + w, :].reshape(hw, cin)
            acc = acc + jnp.dot(patch, w_ref[dy, dx],
                                preferred_element_type=jnp.float32)
    # NOTE: the conv bias is intentionally omitted -- it is exactly cancelled by the
    # training-mode BatchNorm mean subtraction that follows (bit-compatible result).

    yt = acc.T                                             # (NUM_CLASSES, H*W), lane-dense
    y_ref[0] = yt
    s_ref[0] = jnp.sum(yt, axis=1, keepdims=True)          # XLU lane reductions
    ss_ref[0] = jnp.sum(yt * yt, axis=1, keepdims=True)


# --------------------------------------------------------------------------- #
# Pass 2: BatchNorm (training stats) + LeakyReLU + AdaptiveAvgPool2d(1).       #
# --------------------------------------------------------------------------- #
def bn_pool_kernel(y_ref, s_ref, ss_ref, gamma_ref, beta_ref, out_ref, *,
                   inv_count, inv_hw):
    """One batch sample per grid step.

    y_ref     : (1, NUM_CLASSES, H*W)
    s_ref     : (N, NUM_CLASSES, 1)   per-sample sums (full array, tiny)
    ss_ref    : (N, NUM_CLASSES, 1)   per-sample sums of squares
    gamma_ref : (NUM_CLASSES, 1)
    beta_ref  : (NUM_CLASSES, 1)
    out_ref   : (1, NUM_CLASSES, 1)   pooled output
    """
    s = jnp.sum(s_ref[...], axis=0)                # (NUM_CLASSES, 1) global sums
    ss = jnp.sum(ss_ref[...], axis=0)
    mean = s * inv_count
    var = ss * inv_count - mean * mean             # biased batch variance
    inv_std = jax.lax.rsqrt(var + BN_EPS)          # EUP
    scale = gamma_ref[...] * inv_std               # BN folded into one scale/shift
    shift = beta_ref[...] - mean * scale

    z = y_ref[0] * scale + shift                   # (NUM_CLASSES, H*W)
    z = jnp.where(z > 0, z, NEG_SLOPE * z)         # LeakyReLU(0.01)
    out_ref[0] = jnp.sum(z, axis=1, keepdims=True) * inv_hw   # adaptive avg pool -> (C,1)


# --------------------------------------------------------------------------- #
# Wrapper                                                                      #
# --------------------------------------------------------------------------- #
def pred_ratios_forward(x_nchw, params):
    """x_nchw: (N, 512, H, W). Returns (N, NUM_CLASSES, 1, 1) float32."""
    n, cin, h, w = x_nchw.shape
    hw = h * w
    hp, wp = h + 2, w + 2

    # Layout glue: NCHW -> NHWC (channels on lanes for the K=512 matmuls) + zero pad.
    x = jnp.transpose(x_nchw, (0, 2, 3, 1)).astype(jnp.float32)
    xp = jnp.pad(x, ((0, 0), (1, 1), (1, 1), (0, 0)))
    wk = params["w"].astype(jnp.float32)           # (3, 3, Cin, NUM_CLASSES)

    y, s, ss = pl.pallas_call(
        conv_stats_kernel,
        out_shape=(jax.ShapeDtypeStruct((n, NUM_CLASSES, hw), jnp.float32),
                   jax.ShapeDtypeStruct((n, NUM_CLASSES, 1), jnp.float32),
                   jax.ShapeDtypeStruct((n, NUM_CLASSES, 1), jnp.float32)),
        grid=(n,),
        in_specs=[pl.BlockSpec((1, hp, wp, cin), lambda i: (i, 0, 0, 0)),
                  pl.BlockSpec((3, 3, cin, NUM_CLASSES), lambda i: (0, 0, 0, 0))],
        out_specs=(pl.BlockSpec((1, NUM_CLASSES, hw), lambda i: (i, 0, 0)),
                   pl.BlockSpec((1, NUM_CLASSES, 1), lambda i: (i, 0, 0)),
                   pl.BlockSpec((1, NUM_CLASSES, 1), lambda i: (i, 0, 0))),
        compiler_params=pltpu.CompilerParams(
            dimension_semantics=("parallel",),
            vmem_limit_bytes=48 * 1024 * 1024),
    )(xp, wk)

    gamma = params["gamma"].astype(jnp.float32).reshape(NUM_CLASSES, 1)
    beta = params["beta"].astype(jnp.float32).reshape(NUM_CLASSES, 1)

    kernel2 = functools.partial(bn_pool_kernel,
                                inv_count=1.0 / float(n * hw),
                                inv_hw=1.0 / float(hw))
    out = pl.pallas_call(
        kernel2,
        out_shape=jax.ShapeDtypeStruct((n, NUM_CLASSES, 1), jnp.float32),
        grid=(n,),
        in_specs=[pl.BlockSpec((1, NUM_CLASSES, hw), lambda i: (i, 0, 0)),
                  pl.BlockSpec((n, NUM_CLASSES, 1), lambda i: (0, 0, 0)),
                  pl.BlockSpec((n, NUM_CLASSES, 1), lambda i: (0, 0, 0)),
                  pl.BlockSpec((NUM_CLASSES, 1), lambda i: (0, 0)),
                  pl.BlockSpec((NUM_CLASSES, 1), lambda i: (0, 0))],
        out_specs=pl.BlockSpec((1, NUM_CLASSES, 1), lambda i: (i, 0, 0)),
        compiler_params=pltpu.CompilerParams(dimension_semantics=("parallel",)),
    )(y, s, ss, gamma, beta)

    return out.reshape(n, NUM_CLASSES, 1, 1)


def init_params(key):
    # PyTorch-like conv init scale; BN affine init gamma=1, beta=0.
    fan_in = 9 * IN_PLANES
    bound = (1.0 / fan_in) ** 0.5
    w = jax.random.uniform(key, (3, 3, IN_PLANES, NUM_CLASSES), jnp.float32,
                           minval=-bound, maxval=bound)
    gamma = jnp.ones((NUM_CLASSES,), jnp.float32)
    beta = jnp.zeros((NUM_CLASSES,), jnp.float32)
    return dict(w=w, gamma=gamma, beta=beta)


def pred_ratios_reference(x_nchw, params):
    """Pure-JAX reference of the PyTorch forward (training-mode BN)."""
    y = jax.lax.conv_general_dilated(
        x_nchw.astype(jnp.float32), params["w"].astype(jnp.float32),
        window_strides=(1, 1), padding=((1, 1), (1, 1)),
        dimension_numbers=("NCHW", "HWIO", "NCHW"),
        precision=jax.lax.Precision.HIGHEST)
    mu = jnp.mean(y, axis=(0, 2, 3), keepdims=True)
    var = jnp.mean((y - mu) ** 2, axis=(0, 2, 3), keepdims=True)
    z = (y - mu) * jax.lax.rsqrt(var + BN_EPS)
    z = z * params["gamma"].reshape(1, -1, 1, 1) + params["beta"].reshape(1, -1, 1, 1)
    z = jnp.where(z > 0, z, NEG_SLOPE * z)
    return jnp.mean(z, axis=(2, 3), keepdims=True)


if __name__ == "__main__":
    key = jax.random.PRNGKey(0)
    kx, kp = jax.random.split(key)

    N, H, W = 2, 16, 16                      # Cin is fixed to 512 by the module
    x = jax.random.normal(kx, (N, IN_PLANES, H, W), jnp.float32)
    params = init_params(kp)

    out = jax.jit(pred_ratios_forward)(x, params)
    jax.block_until_ready(out)

    assert out.shape == (N, NUM_CLASSES, 1, 1)
    assert bool(jnp.all(jnp.isfinite(out)))

    ref = pred_ratios_reference(x, params)
    err = float(jnp.max(jnp.abs(out - ref)))
    assert err < 1e-2, f"mismatch vs reference: max abs err {err}"

    print("KERNEL_OK")
</pallas_src>

<mosaic_0001>
module attributes {stable_mosaic.version = 11 : i64} {
  func.func @conv_stats_kernel(%arg0: i32, %arg1: memref<1x18x18x512xf32, #tpu.memory_space<vmem>>, %arg2: memref<3x3x512x16xf32, #tpu.memory_space<vmem>>, %arg3: memref<1x16x256xf32, #tpu.memory_space<vmem>>, %arg4: memref<1x16x1xf32, #tpu.memory_space<vmem>>, %arg5: memref<1x16x1xf32, #tpu.memory_space<vmem>>) attributes {dimension_semantics = [#tpu.dimension_semantics<parallel>], iteration_bounds = array<i64: 2>, scalar_prefetch = 0 : i64, scratch_operands = 0 : i64, tpu.core_type = #tpu.core_type<tc>, window_params = [{transform_indices = @transform_0, window_bounds = array<i64: 1, 18, 18, 512>}, {pipeline_mode = #tpu.pipeline_mode<synchronous>, transform_indices = @transform_1, window_bounds = array<i64: 3, 3, 512, 16>}, {transform_indices = @transform_2, window_bounds = array<i64: 1, 16, 256>}, {transform_indices = @transform_3, window_bounds = array<i64: 1, 16, 1>}, {transform_indices = @transform_4, window_bounds = array<i64: 1, 16, 1>}]} {
    %cst = arith.constant 0.000000e+00 : f32
    %0 = vector.broadcast %cst : f32 to vector<256x16xf32>
    %c0 = arith.constant 0 : index
    %c0_0 = arith.constant 0 : index
    %c0_1 = arith.constant 0 : index
    %c0_2 = arith.constant 0 : index
    %1 = vector.load %arg1[%c0, %c0_0, %c0_1, %c0_2] : memref<1x18x18x512xf32, #tpu.memory_space<vmem>>, vector<1x16x16x512xf32>
    %2 = vector.shape_cast %1 : vector<1x16x16x512xf32> to vector<256x512xf32>
    %c0_3 = arith.constant 0 : index
    %c0_4 = arith.constant 0 : index
    %c0_5 = arith.constant 0 : index
    %c0_6 = arith.constant 0 : index
    %3 = vector.load %arg2[%c0_3, %c0_4, %c0_5, %c0_6] : memref<3x3x512x16xf32, #tpu.memory_space<vmem>>, vector<1x1x512x16xf32>
    %4 = vector.shape_cast %3 : vector<1x1x512x16xf32> to vector<512x16xf32>
    %cst_7 = arith.constant dense<0.000000e+00> : vector<256x16xf32>
    %5 = tpu.matmul %2, %4, %cst_7 {dimension_numbers = #tpu.dot_dimension_numbers<[1], [0], [0], [1], [0, 0, 1, 1], [], []>} : vector<256x512xf32>, vector<512x16xf32>, vector<256x16xf32> -> vector<256x16xf32>
    %6 = arith.addf %0, %5 : vector<256x16xf32>
    %c0_8 = arith.constant 0 : index
    %c0_9 = arith.constant 0 : index
    %c1 = arith.constant 1 : index
    %c0_10 = arith.constant 0 : index
    %7 = vector.load %arg1[%c0_8, %c0_9, %c1, %c0_10] : memref<1x18x18x512xf32, #tpu.memory_space<vmem>>, vector<1x16x16x512xf32>
    %8 = vector.shape_cast %7 : vector<1x16x16x512xf32> to vector<256x512xf32>
    %c0_11 = arith.constant 0 : index
    %c1_12 = arith.constant 1 : index
    %c0_13 = arith.constant 0 : index
    %c0_14 = arith.constant 0 : index
    %9 = vector.load %arg2[%c0_11, %c1_12, %c0_13, %c0_14] : memref<3x3x512x16xf32, #tpu.memory_space<vmem>>, vector<1x1x512x16xf32>
    %10 = vector.shape_cast %9 : vector<1x1x512x16xf32> to vector<512x16xf32>
    %cst_15 = arith.constant dense<0.000000e+00> : vector<256x16xf32>
    %11 = tpu.matmul %8, %10, %cst_15 {dimension_numbers = #tpu.dot_dimension_numbers<[1], [0], [0], [1], [0, 0, 1, 1], [], []>} : vector<256x512xf32>, vector<512x16xf32>, vector<256x16xf32> -> vector<256x16xf32>
    %12 = arith.addf %6, %11 : vector<256x16xf32>
    %c0_16 = arith.constant 0 : index
    %c0_17 = arith.constant 0 : index
    %c2 = arith.constant 2 : index
    %c0_18 = arith.constant 0 : index
    %13 = vector.load %arg1[%c0_16, %c0_17, %c2, %c0_18] : memref<1x18x18x512xf32, #tpu.memory_space<vmem>>, vector<1x16x16x512xf32>
    %14 = vector.shape_cast %13 : vector<1x16x16x512xf32> to vector<256x512xf32>
    %c0_19 = arith.constant 0 : index
    %c2_20 = arith.constant 2 : index
    %c0_21 = arith.constant 0 : index
    %c0_22 = arith.constant 0 : index
    %15 = vector.load %arg2[%c0_19, %c2_20, %c0_21, %c0_22] : memref<3x3x512x16xf32, #tpu.memory_space<vmem>>, vector<1x1x512x16xf32>
    %16 = vector.shape_cast %15 : vector<1x1x512x16xf32> to vector<512x16xf32>
    %cst_23 = arith.constant dense<0.000000e+00> : vector<256x16xf32>
    %17 = tpu.matmul %14, %16, %cst_23 {dimension_numbers = #tpu.dot_dimension_numbers<[1], [0], [0], [1], [0, 0, 1, 1], [], []>} : vector<256x512xf32>, vector<512x16xf32>, vector<256x16xf32> -> vector<256x16xf32>
    %18 = arith.addf %12, %17 : vector<256x16xf32>
    %c0_24 = arith.constant 0 : index
    %c1_25 = arith.constant 1 : index
    %c0_26 = arith.constant 0 : index
    %c0_27 = arith.constant 0 : index
    %19 = vector.load %arg1[%c0_24, %c1_25, %c0_26, %c0_27] : memref<1x18x18x512xf32, #tpu.memory_space<vmem>>, vector<1x16x16x512xf32>
    %20 = vector.shape_cast %19 : vector<1x16x16x512xf32> to vector<256x512xf32>
    %c1_28 = arith.constant 1 : index
    %c0_29 = arith.constant 0 : index
    %c0_30 = arith.constant 0 : index
    %c0_31 = arith.constant 0 : index
    %21 = vector.load %arg2[%c1_28, %c0_29, %c0_30, %c0_31] : memref<3x3x512x16xf32, #tpu.memory_space<vmem>>, vector<1x1x512x16xf32>
    %22 = vector.shape_cast %21 : vector<1x1x512x16xf32> to vector<512x16xf32>
    %cst_32 = arith.constant dense<0.000000e+00> : vector<256x16xf32>
    %23 = tpu.matmul %20, %22, %cst_32 {dimension_numbers = #tpu.dot_dimension_numbers<[1], [0], [0], [1], [0, 0, 1, 1], [], []>} : vector<256x512xf32>, vector<512x16xf32>, vector<256x16xf32> -> vector<256x16xf32>
    %24 = arith.addf %18, %23 : vector<256x16xf32>
    %c0_33 = arith.constant 0 : index
    %c1_34 = arith.constant 1 : index
    %c1_35 = arith.constant 1 : index
    %c0_36 = arith.constant 0 : index
    %25 = vector.load %arg1[%c0_33, %c1_34, %c1_35, %c0_36] : memref<1x18x18x512xf32, #tpu.memory_space<vmem>>, vector<1x16x16x512xf32>
    %26 = vector.shape_cast %25 : vector<1x16x16x512xf32> to vector<256x512xf32>
    %c1_37 = arith.constant 1 : index
    %c1_38 = arith.constant 1 : index
    %c0_39 = arith.constant 0 : index
    %c0_40 = arith.constant 0 : index
    %27 = vector.load %arg2[%c1_37, %c1_38, %c0_39, %c0_40] : memref<3x3x512x16xf32, #tpu.memory_space<vmem>>, vector<1x1x512x16xf32>
    %28 = vector.shape_cast %27 : vector<1x1x512x16xf32> to vector<512x16xf32>
    %cst_41 = arith.constant dense<0.000000e+00> : vector<256x16xf32>
    %29 = tpu.matmul %26, %28, %cst_41 {dimension_numbers = #tpu.dot_dimension_numbers<[1], [0], [0], [1], [0, 0, 1, 1], [], []>} : vector<256x512xf32>, vector<512x16xf32>, vector<256x16xf32> -> vector<256x16xf32>
    %30 = arith.addf %24, %29 : vector<256x16xf32>
    %c0_42 = arith.constant 0 : index
    %c1_43 = arith.constant 1 : index
    %c2_44 = arith.constant 2 : index
    %c0_45 = arith.constant 0 : index
    %31 = vector.load %arg1[%c0_42, %c1_43, %c2_44, %c0_45] : memref<1x18x18x512xf32, #tpu.memory_space<vmem>>, vector<1x16x16x512xf32>
    %32 = vector.shape_cast %31 : vector<1x16x16x512xf32> to vector<256x512xf32>
    %c1_46 = arith.constant 1 : index
    %c2_47 = arith.constant 2 : index
    %c0_48 = arith.constant 0 : index
    %c0_49 = arith.constant 0 : index
    %33 = vector.load %arg2[%c1_46, %c2_47, %c0_48, %c0_49] : memref<3x3x512x16xf32, #tpu.memory_space<vmem>>, vector<1x1x512x16xf32>
    %34 = vector.shape_cast %33 : vector<1x1x512x16xf32> to vector<512x16xf32>
    %cst_50 = arith.constant dense<0.000000e+00> : vector<256x16xf32>
    %35 = tpu.matmul %32, %34, %cst_50 {dimension_numbers = #tpu.dot_dimension_numbers<[1], [0], [0], [1], [0, 0, 1, 1], [], []>} : vector<256x512xf32>, vector<512x16xf32>, vector<256x16xf32> -> vector<256x16xf32>
    %36 = arith.addf %30, %35 : vector<256x16xf32>
    %c0_51 = arith.constant 0 : index
    %c2_52 = arith.constant 2 : index
    %c0_53 = arith.constant 0 : index
    %c0_54 = arith.constant 0 : index
    %37 = vector.load %arg1[%c0_51, %c2_52, %c0_53, %c0_54] : memref<1x18x18x512xf32, #tpu.memory_space<vmem>>, vector<1x16x16x512xf32>
    %38 = vector.shape_cast %37 : vector<1x16x16x512xf32> to vector<256x512xf32>
    %c2_55 = arith.constant 2 : index
    %c0_56 = arith.constant 0 : index
    %c0_57 = arith.constant 0 : index
    %c0_58 = arith.constant 0 : index
    %39 = vector.load %arg2[%c2_55, %c0_56, %c0_57, %c0_58] : memref<3x3x512x16xf32, #tpu.memory_space<vmem>>, vector<1x1x512x16xf32>
    %40 = vector.shape_cast %39 : vector<1x1x512x16xf32> to vector<512x16xf32>
    %cst_59 = arith.constant dense<0.000000e+00> : vector<256x16xf32>
    %41 = tpu.matmul %38, %40, %cst_59 {dimension_numbers = #tpu.dot_dimension_numbers<[1], [0], [0], [1], [0, 0, 1, 1], [], []>} : vector<256x512xf32>, vector<512x16xf32>, vector<256x16xf32> -> vector<256x16xf32>
    %42 = arith.addf %36, %41 : vector<256x16xf32>
    %c0_60 = arith.constant 0 : index
    %c2_61 = arith.constant 2 : index
    %c1_62 = arith.constant 1 : index
    %c0_63 = arith.constant 0 : index
    %43 = vector.load %arg1[%c0_60, %c2_61, %c1_62, %c0_63] : memref<1x18x18x512xf32, #tpu.memory_space<vmem>>, vector<1x16x16x512xf32>
    %44 = vector.shape_cast %43 : vector<1x16x16x512xf32> to vector<256x512xf32>
    %c2_64 = arith.constant 2 : index
    %c1_65 = arith.constant 1 : index
    %c0_66 = arith.constant 0 : index
    %c0_67 = arith.constant 0 : index
    %45 = vector.load %arg2[%c2_64, %c1_65, %c0_66, %c0_67] : memref<3x3x512x16xf32, #tpu.memory_space<vmem>>, vector<1x1x512x16xf32>
    %46 = vector.shape_cast %45 : vector<1x1x512x16xf32> to vector<512x16xf32>
    %cst_68 = arith.constant dense<0.000000e+00> : vector<256x16xf32>
    %47 = tpu.matmul %44, %46, %cst_68 {dimension_numbers = #tpu.dot_dimension_numbers<[1], [0], [0], [1], [0, 0, 1, 1], [], []>} : vector<256x512xf32>, vector<512x16xf32>, vector<256x16xf32> -> vector<256x16xf32>
    %48 = arith.addf %42, %47 : vector<256x16xf32>
    %c0_69 = arith.constant 0 : index
    %c2_70 = arith.constant 2 : index
    %c2_71 = arith.constant 2 : index
    %c0_72 = arith.constant 0 : index
    %49 = vector.load %arg1[%c0_69, %c2_70, %c2_71, %c0_72] : memref<1x18x18x512xf32, #tpu.memory_space<vmem>>, vector<1x16x16x512xf32>
    %50 = vector.shape_cast %49 : vector<1x16x16x512xf32> to vector<256x512xf32>
    %c2_73 = arith.constant 2 : index
    %c2_74 = arith.constant 2 : index
    %c0_75 = arith.constant 0 : index
    %c0_76 = arith.constant 0 : index
    %51 = vector.load %arg2[%c2_73, %c2_74, %c0_75, %c0_76] : memref<3x3x512x16xf32, #tpu.memory_space<vmem>>, vector<1x1x512x16xf32>
    %52 = vector.shape_cast %51 : vector<1x1x512x16xf32> to vector<512x16xf32>
    %cst_77 = arith.constant dense<0.000000e+00> : vector<256x16xf32>
    %53 = tpu.matmul %50, %52, %cst_77 {dimension_numbers = #tpu.dot_dimension_numbers<[1], [0], [0], [1], [0, 0, 1, 1], [], []>} : vector<256x512xf32>, vector<512x16xf32>, vector<256x16xf32> -> vector<256x16xf32>
    %54 = arith.addf %48, %53 : vector<256x16xf32>
    %55 = tpu.transpose %54, [1, 0] : vector<256x16xf32> -> vector<16x256xf32>
    %c0_78 = arith.constant 0 : index
    %c0_79 = arith.constant 0 : index
    %c0_80 = arith.constant 0 : index
    %56 = vector.load %arg3[%c0_78, %c0_79, %c0_80] : memref<1x16x256xf32, #tpu.memory_space<vmem>>, vector<1x16x256xf32>
    %57 = vector.shape_cast %56 : vector<1x16x256xf32> to vector<16x256xf32>
    %58 = vector.shape_cast %55 : vector<16x256xf32> to vector<1x16x256xf32>
    tpu.vector_store %arg3[%c0_78, %c0_79, %c0_80], %58 {strides = array<i32>} : memref<1x16x256xf32, #tpu.memory_space<vmem>>, vector<1x16x256xf32>,
    %cst_81 = arith.constant dense<0.000000e+00> : vector<16xf32>
    %59 = vector.multi_reduction <add>, %55, %cst_81 [1] : vector<16x256xf32> to vector<16xf32>
    %60 = vector.shape_cast %59 : vector<16xf32> to vector<16x1xf32>
    %c0_82 = arith.constant 0 : index
    %c0_83 = arith.constant 0 : index
    %c0_84 = arith.constant 0 : index
    %61 = vector.load %arg4[%c0_82, %c0_83, %c0_84] : memref<1x16x1xf32, #tpu.memory_space<vmem>>, vector<1x16x1xf32>
    %62 = vector.shape_cast %61 : vector<1x16x1xf32> to vector<16x1xf32>
    %63 = vector.shape_cast %60 : vector<16x1xf32> to vector<1x16x1xf32>
    tpu.vector_store %arg4[%c0_82, %c0_83, %c0_84], %63 {strides = array<i32>} : memref<1x16x1xf32, #tpu.memory_space<vmem>>, vector<1x16x1xf32>,
    %64 = arith.mulf %55, %55 : vector<16x256xf32>
    %cst_85 = arith.constant dense<0.000000e+00> : vector<16xf32>
    %65 = vector.multi_reduction <add>, %64, %cst_85 [1] : vector<16x256xf32> to vector<16xf32>
    %66 = vector.shape_cast %65 : vector<16xf32> to vector<16x1xf32>
    %c0_86 = arith.constant 0 : index
    %c0_87 = arith.constant 0 : index
    %c0_88 = arith.constant 0 : index
    %67 = vector.load %arg5[%c0_86, %c0_87, %c0_88] : memref<1x16x1xf32, #tpu.memory_space<vmem>>, vector<1x16x1xf32>
    %68 = vector.shape_cast %67 : vector<1x16x1xf32> to vector<16x1xf32>
    %69 = vector.shape_cast %66 : vector<16x1xf32> to vector<1x16x1xf32>
    tpu.vector_store %arg5[%c0_86, %c0_87, %c0_88], %69 {strides = array<i32>} : memref<1x16x1xf32, #tpu.memory_space<vmem>>, vector<1x16x1xf32>,
    return
  }
  func.func @transform_0(%arg0: i32) -> (i32, i32, i32, i32) {
    %c0_i32 = arith.constant 0 : i32
    %c0_i32_0 = arith.constant 0 : i32
    %c0_i32_1 = arith.constant 0 : i32
    %c0_i32_2 = arith.constant 0 : i32
    return %arg0, %c0_i32, %c0_i32_0, %c0_i32_1 : i32, i32, i32, i32
  }
  func.func @transform_1(%arg0: i32) -> (i32, i32, i32, i32) {
    %c0_i32 = arith.constant 0 : i32
    %c0_i32_0 = arith.constant 0 : i32
    %c0_i32_1 = arith.constant 0 : i32
    %c0_i32_2 = arith.constant 0 : i32
    %c0_i32_3 = arith.constant 0 : i32
    return %c0_i32, %c0_i32_0, %c0_i32_1, %c0_i32_2 : i32, i32, i32, i32
  }
  func.func @transform_2(%arg0: i32) -> (i32, i32, i32) {
    %c0_i32 = arith.constant 0 : i32
    %c0_i32_0 = arith.constant 0 : i32
    %c0_i32_1 = arith.constant 0 : i32
    return %arg0, %c0_i32, %c0_i32_0 : i32, i32, i32
  }
  func.func @transform_3(%arg0: i32) -> (i32, i32, i32) {
    %c0_i32 = arith.constant 0 : i32
    %c0_i32_0 = arith.constant 0 : i32
    %c0_i32_1 = arith.constant 0 : i32
    return %arg0, %c0_i32, %c0_i32_0 : i32, i32, i32
  }
  func.func @transform_4(%arg0: i32) -> (i32, i32, i32) {
    %c0_i32 = arith.constant 0 : i32
    %c0_i32_0 = arith.constant 0 : i32
    %c0_i32_1 = arith.constant 0 : i32
    return %arg0, %c0_i32, %c0_i32_0 : i32, i32, i32
  }
}

module attributes {stable_mosaic.version = 11 : i64} {
  func.func @bn_pool_kernel(%arg0: i32, %arg1: memref<1x16x256xf32, #tpu.memory_space<vmem>>, %arg2: memref<2x16x1xf32, #tpu.memory_space<vmem>>, %arg3: memref<2x16x1xf32, #tpu.memory_space<vmem>>, %arg4: memref<16x1xf32, #tpu.memory_space<vmem>>, %arg5: memref<16x1xf32, #tpu.memory_space<vmem>>, %arg6: memref<1x16x1xf32, #tpu.memory_space<vmem>>) attributes {dimension_semantics = [#tpu.dimension_semantics<parallel>], iteration_bounds = array<i64: 2>, scalar_prefetch = 0 : i64, scratch_operands = 0 : i64, tpu.core_type = #tpu.core_type<tc>, window_params = [{transform_indices = @transform_0, window_bounds = array<i64: 1, 16, 256>}, {pipeline_mode = #tpu.pipeline_mode<synchronous>, transform_indices = @transform_1, window_bounds = array<i64: 2, 16, 1>}, {pipeline_mode = #tpu.pipeline_mode<synchronous>, transform_indices = @transform_2, window_bounds = array<i64: 2, 16, 1>}, {pipeline_mode = #tpu.pipeline_mode<synchronous>, transform_indices = @transform_3, window_bounds = array<i64: 16, 1>}, {pipeline_mode = #tpu.pipeline_mode<synchronous>, transform_indices = @transform_4, window_bounds = array<i64: 16, 1>}, {transform_indices = @transform_5, window_bounds = array<i64: 1, 16, 1>}]} {
    %c0 = arith.constant 0 : index
    %c0_0 = arith.constant 0 : index
    %c0_1 = arith.constant 0 : index
    %0 = vector.load %arg2[%c0, %c0_0, %c0_1] : memref<2x16x1xf32, #tpu.memory_space<vmem>>, vector<2x16x1xf32>
    %cst = arith.constant dense<0.000000e+00> : vector<16x1xf32>
    %1 = vector.multi_reduction <add>, %0, %cst [0] : vector<2x16x1xf32> to vector<16x1xf32>
    %c0_2 = arith.constant 0 : index
    %c0_3 = arith.constant 0 : index
    %c0_4 = arith.constant 0 : index
    %2 = vector.load %arg3[%c0_2, %c0_3, %c0_4] : memref<2x16x1xf32, #tpu.memory_space<vmem>>, vector<2x16x1xf32>
    %cst_5 = arith.constant dense<0.000000e+00> : vector<16x1xf32>
    %3 = vector.multi_reduction <add>, %2, %cst_5 [0] : vector<2x16x1xf32> to vector<16x1xf32>
    %cst_6 = arith.constant 0.001953125 : f32
    %4 = vector.broadcast %cst_6 : f32 to vector<16x1xf32>
    %5 = arith.mulf %1, %4 : vector<16x1xf32>
    %cst_7 = arith.constant 0.001953125 : f32
    %6 = vector.broadcast %cst_7 : f32 to vector<16x1xf32>
    %7 = arith.mulf %3, %6 : vector<16x1xf32>
    %8 = arith.mulf %5, %5 : vector<16x1xf32>
    %9 = arith.subf %7, %8 : vector<16x1xf32>
    %cst_8 = arith.constant 9.99999974E-6 : f32
    %10 = vector.broadcast %cst_8 : f32 to vector<16x1xf32>
    %11 = arith.addf %9, %10 : vector<16x1xf32>
    %12 = math.rsqrt %11 : vector<16x1xf32>
    %c0_9 = arith.constant 0 : index
    %c0_10 = arith.constant 0 : index
    %13 = vector.load %arg4[%c0_9, %c0_10] : memref<16x1xf32, #tpu.memory_space<vmem>>, vector<16x1xf32>
    %14 = arith.mulf %13, %12 : vector<16x1xf32>
    %c0_11 = arith.constant 0 : index
    %c0_12 = arith.constant 0 : index
    %15 = vector.load %arg5[%c0_11, %c0_12] : memref<16x1xf32, #tpu.memory_space<vmem>>, vector<16x1xf32>
    %16 = arith.mulf %5, %14 : vector<16x1xf32>
    %17 = arith.subf %15, %16 : vector<16x1xf32>
    %c0_13 = arith.constant 0 : index
    %c0_14 = arith.constant 0 : index
    %c0_15 = arith.constant 0 : index
    %18 = vector.load %arg1[%c0_13, %c0_14, %c0_15] : memref<1x16x256xf32, #tpu.memory_space<vmem>>, vector<1x16x256xf32>
    %19 = vector.shape_cast %18 : vector<1x16x256xf32> to vector<16x256xf32>
    %20 = vector.broadcast %14 : vector<16x1xf32> to vector<16x256xf32>
    %21 = arith.mulf %19, %20 : vector<16x256xf32>
    %22 = vector.broadcast %17 : vector<16x1xf32> to vector<16x256xf32>
    %23 = arith.addf %21, %22 : vector<16x256xf32>
    %cst_16 = arith.constant 0.000000e+00 : f32
    %24 = vector.broadcast %cst_16 : f32 to vector<16x256xf32>
    %25 = arith.cmpf ogt, %23, %24 : vector<16x256xf32>
    %cst_17 = arith.constant 0.00999999977 : f32
    %26 = vector.broadcast %cst_17 : f32 to vector<16x256xf32>
    %27 = arith.mulf %26, %23 : vector<16x256xf32>
    %28 = arith.select %25, %23, %27 : vector<16x256xi1>, vector<16x256xf32>
    %cst_18 = arith.constant dense<0.000000e+00> : vector<16xf32>
    %29 = vector.multi_reduction <add>, %28, %cst_18 [1] : vector<16x256xf32> to vector<16xf32>
    %30 = vector.shape_cast %29 : vector<16xf32> to vector<16x1xf32>
    %cst_19 = arith.constant 3.906250e-03 : f32
    %31 = vector.broadcast %cst_19 : f32 to vector<16x1xf32>
    %32 = arith.mulf %30, %31 : vector<16x1xf32>
    %c0_20 = arith.constant 0 : index
    %c0_21 = arith.constant 0 : index
    %c0_22 = arith.constant 0 : index
    %33 = vector.load %arg6[%c0_20, %c0_21, %c0_22] : memref<1x16x1xf32, #tpu.memory_space<vmem>>, vector<1x16x1xf32>
    %34 = vector.shape_cast %33 : vector<1x16x1xf32> to vector<16x1xf32>
    %35 = vector.shape_cast %32 : vector<16x1xf32> to vector<1x16x1xf32>
    tpu.vector_store %arg6[%c0_20, %c0_21, %c0_22], %35 {strides = array<i32>} : memref<1x16x1xf32, #tpu.memory_space<vmem>>, vector<1x16x1xf32>,
    return
  }
  func.func @transform_0(%arg0: i32) -> (i32, i32, i32) {
    %c0_i32 = arith.constant 0 : i32
    %c0_i32_0 = arith.constant 0 : i32
    %c0_i32_1 = arith.constant 0 : i32
    return %arg0, %c0_i32, %c0_i32_0 : i32, i32, i32
  }
  func.func @transform_1(%arg0: i32) -> (i32, i32, i32) {
    %c0_i32 = arith.constant 0 : i32
    %c0_i32_0 = arith.constant 0 : i32
    %c0_i32_1 = arith.constant 0 : i32
    %c0_i32_2 = arith.constant 0 : i32
    return %c0_i32, %c0_i32_0, %c0_i32_1 : i32, i32, i32
  }
  func.func @transform_2(%arg0: i32) -> (i32, i32, i32) {
    %c0_i32 = arith.constant 0 : i32
    %c0_i32_0 = arith.constant 0 : i32
    %c0_i32_1 = arith.constant 0 : i32
    %c0_i32_2 = arith.constant 0 : i32
    return %c0_i32, %c0_i32_0, %c0_i32_1 : i32, i32, i32
  }
  func.func @transform_3(%arg0: i32) -> (i32, i32) {
    %c0_i32 = arith.constant 0 : i32
    %c0_i32_0 = arith.constant 0 : i32
    %c0_i32_1 = arith.constant 0 : i32
    return %c0_i32, %c0_i32_0 : i32, i32
  }
  func.func @transform_4(%arg0: i32) -> (i32, i32) {
    %c0_i32 = arith.constant 0 : i32
    %c0_i32_0 = arith.constant 0 : i32
    %c0_i32_1 = arith.constant 0 : i32
    return %c0_i32, %c0_i32_0 : i32, i32
  }
  func.func @transform_5(%arg0: i32) -> (i32, i32, i32) {
    %c0_i32 = arith.constant 0 : i32
    %c0_i32_0 = arith.constant 0 : i32
    %c0_i32_1 = arith.constant 0 : i32
    return %arg0, %c0_i32, %c0_i32_0 : i32, i32, i32
  }
}

</mosaic_0001>

<llo_original>
// kernel: pred_ratios_forward.3
$region0: #{pred_ratios_forward.3}
  #allocation0 [shape = 'u32[]', space=smem, size = 0x4, offset = 0x4, fixed_abs, tag = 'smem constant byte address 0x4 - core index']
  #allocation1 [shape = 'u32[144,128]{1,0:T(1,128)}', space=vmem, size = 0x12000, scoped, tag = 'internal scratch']
  %s0 = inlined_call_operand.vmem [shape: f32[2,16,256], index: 0, kind: input, shape index: {}]
  %s1 = inlined_call_operand.vmem [shape: f32[2,16,1], index: 1, kind: input, shape index: {}]
  %s2 = inlined_call_operand.vmem [shape: f32[2,16,1], index: 2, kind: input, shape index: {}]
  %s3 = inlined_call_operand.vmem [shape: f32[16,1], index: 3, kind: input, shape index: {}]
  %s4 = inlined_call_operand.vmem [shape: f32[16,1], index: 4, kind: input, shape index: {}]
  %s5 = inlined_call_operand.vmem [shape: f32[2,16,1], index: 5, kind: output, shape index: {}]
  %s6 = sld [smem:[#allocation0]]
  $region53: #{pred_ratios_forward.3} parent=0
    _
  %s8 = ssub.s32 1, %s6
  %s9 = scalar_select 0, %s8, %s6
  loop: start=0, step=1, limit=4
  $region2: #{pred_ratios_forward.3} parent=0 // loop_pre_header
    _
  $region3: #{pred_ratios_forward.3} parent=0 // loop_header
    %s11 = sphi 0, %s15
    %p12 = scmp.ge.s32.totalorder %s11, 4
    %s21 = sphi 0, %s23
    %s24 = sphi 0, %s21
    %s25 = sphi 0, %s24
    %s41 = sphi 0, %s25
    %s45 = sphi 0, %s45
    %s47 = sphi 0, %s45
    %s48 = sphi 0, %s47
    %s62 = sphi 0, %s48
    %s66 = sphi 0, %s66
    %s68 = sphi 0, %s66
    %s69 = sphi 0, %s68
    %s83 = sphi 0, %s69
    %s87 = sphi 0, %s87
    %s89 = sphi 0, %s87
    %s90 = sphi 0, %s89
    %s104 = sphi 0, %s90
    %s108 = sphi 0, %s108
    %s110 = sphi 0, %s108
    %s111 = sphi 0, %s110
    %s125 = sphi 0, %s111
    %s131 = sphi 0, %s133
    %s134 = sphi 0, %s131
    %s135 = sphi 0, %s134
    %s151 = sphi 0, %s135
  $region4: #{pred_ratios_forward.3} parent=0 // loop_header_branch
    %14 = sbr.rel (%p12) target = $region8
  $region5: #{pred_ratios_forward.3} parent=0 // loop_body
    %s16 = ssub.s32 %s11, 1
    %s17 = ssub.s32 %s11, 2
    %s18 = sadd.s32 %s11, 1
    %s19 = ssub.s32 %s11, %s18
    %p20 = scmp.eq.s32.totalorder %s19, 0
    %s22 = sadd.s32 %s21, 1
    %s23 = scalar_select %p20, %s21, %s22
    %p26 = pneg %p20
    %p27 = scmp.eq.s32.totalorder %s11, 1
    %p28 = por %p26, %p27
    %p29 = scmp.ne.s32.totalorder %s21, %s24
    %p30 = scmp.eq.s32.totalorder %s11, 0
    %p31 = por %p29, %p30
    %p32 = scmp.ne.s32.totalorder %s21, %s24
    %p33 = scmp.eq.s32.totalorder %s16, 1
    %p34 = por %p32, %p33
    %p35 = scmp.ne.s32.totalorder %s24, %s25
    %p36 = scmp.eq.s32.totalorder %s16, 0
    %p37 = por %p35, %p36
    %p38 = scmp.ne.s32.totalorder %s24, %s25
    %p39 = scmp.eq.s32.totalorder %s17, 1
    %p40 = por %p38, %p39
    %p42 = scmp.ne.s32.totalorder %s25, %s41
    %p43 = scmp.eq.s32.totalorder %s17, 0
    %p44 = por %p42, %p43
    %s46 = sadd.s32 %s45, 1
    %p49 = scmp.eq.s32.totalorder %s11, 1
    %p50 = scmp.ne.s32.totalorder %s45, %s47
    %p51 = scmp.eq.s32.totalorder %s11, 0
    %p52 = por %p50, %p51
    %p53 = scmp.ne.s32.totalorder %s45, %s47
    %p54 = scmp.eq.s32.totalorder %s16, 1
    %p55 = por %p53, %p54
    %p56 = scmp.ne.s32.totalorder %s47, %s48
    %p57 = scmp.eq.s32.totalorder %s16, 0
    %p58 = por %p56, %p57
    %p59 = scmp.ne.s32.totalorder %s47, %s48
    %p60 = scmp.eq.s32.totalorder %s17, 1
    %p61 = por %p59, %p60
    %p63 = scmp.ne.s32.totalorder %s48, %s62
    %p64 = scmp.eq.s32.totalorder %s17, 0
    %p65 = por %p63, %p64
    %s67 = sadd.s32 %s66, 1
    %p70 = scmp.eq.s32.totalorder %s11, 1
    %p71 = scmp.ne.s32.totalorder %s66, %s68
    %p72 = scmp.eq.s32.totalorder %s11, 0
    %p73 = por %p71, %p72
    %p74 = scmp.ne.s32.totalorder %s66, %s68
    %p75 = scmp.eq.s32.totalorder %s16, 1
    %p76 = por %p74, %p75
    %p77 = scmp.ne.s32.totalorder %s68, %s69
    %p78 = scmp.eq.s32.totalorder %s16, 0
    %p79 = por %p77, %p78
    %p80 = scmp.ne.s32.totalorder %s68, %s69
    %p81 = scmp.eq.s32.totalorder %s17, 1
    %p82 = por %p80, %p81
    %p84 = scmp.ne.s32.totalorder %s69, %s83
    %p85 = scmp.eq.s32.totalorder %s17, 0
    %p86 = por %p84, %p85
    %s88 = sadd.s32 %s87, 1
    %p91 = scmp.eq.s32.totalorder %s11, 1
    %p92 = scmp.ne.s32.totalorder %s87, %s89
    %p93 = scmp.eq.s32.totalorder %s11, 0
    %p94 = por %p92, %p93
    %p95 = scmp.ne.s32.totalorder %s87, %s89
    %p96 = scmp.eq.s32.totalorder %s16, 1
    %p97 = por %p95, %p96
    %p98 = scmp.ne.s32.totalorder %s89, %s90
    %p99 = scmp.eq.s32.totalorder %s16, 0
    %p100 = por %p98, %p99
    %p101 = scmp.ne.s32.totalorder %s89, %s90
    %p102 = scmp.eq.s32.totalorder %s17, 1
    %p103 = por %p101, %p102
    %p105 = scmp.ne.s32.totalorder %s90, %s104
    %p106 = scmp.eq.s32.totalorder %s17, 0
    %p107 = por %p105, %p106
    %s109 = sadd.s32 %s108, 1
    %p112 = scmp.eq.s32.totalorder %s11, 1
    %p113 = scmp.ne.s32.totalorder %s108, %s110
    %p114 = scmp.eq.s32.totalorder %s11, 0
    %p115 = por %p113, %p114
    %p116 = scmp.ne.s32.totalorder %s108, %s110
    %p117 = scmp.eq.s32.totalorder %s16, 1
    %p118 = por %p116, %p117
    %p119 = scmp.ne.s32.totalorder %s110, %s111
    %p120 = scmp.eq.s32.totalorder %s16, 0
    %p121 = por %p119, %p120
    %p122 = scmp.ne.s32.totalorder %s110, %s111
    %p123 = scmp.eq.s32.totalorder %s17, 1
    %p124 = por %p122, %p123
    %p126 = scmp.ne.s32.totalorder %s111, %s125
    %p127 = scmp.eq.s32.totalorder %s17, 0
    %p128 = por %p126, %p127
    %s129 = ssub.s32 %s11, %s18
    %p130 = scmp.eq.s32.totalorder %s129, 0
    %s132 = sadd.s32 %s131, 1
    %s133 = scalar_select %p130, %s131, %s132
    %p136 = pneg %p130
    %p137 = scmp.eq.s32.totalorder %s11, 1
    %p138 = por %p136, %p137
    %p139 = scmp.ne.s32.totalorder %s131, %s134
    %p140 = scmp.eq.s32.totalorder %s11, 0
    %p141 = por %p139, %p140
    %p142 = scmp.ne.s32.totalorder %s131, %s134
    %p143 = scmp.eq.s32.totalorder %s16, 1
    %p144 = por %p142, %p143
    %p145 = scmp.ne.s32.totalorder %s134, %s135
    %p146 = scmp.eq.s32.totalorder %s16, 0
    %p147 = por %p145, %p146
    %p148 = scmp.ne.s32.totalorder %s134, %s135
    %p149 = scmp.eq.s32.totalorder %s17, 1
    %p150 = por %p148, %p149
    %p152 = scmp.ne.s32.totalorder %s135, %s151
    %p153 = scmp.eq.s32.totalorder %s17, 0
    %p154 = por %p152, %p153
    %p155 = scmp.le.s32.totalorder 1, %s11
    %p156 = scmp.lt.s32.totalorder %s11, 3
    %p157 = pnand %p155, %p156
    %p158 = pneg %p157
    // Predicated region
    $region9: #{pred_ratios_forward.3} parent=5 // pred_check
      _
    $region10: #{pred_ratios_forward.3} parent=5 // pred_check_branch
      %160 = sbr.rel (%p157) target = $region12
    $region11: #{pred_ratios_forward.3} parent=5 // pred_region
      %s161 = ssub.s32 %s11, 1
      // Predicated region
      $region13: #{pred_ratios_forward.3} parent=11 // pred_check
        %p162 = pneg %p58
      $region14: #{pred_ratios_forward.3} parent=11 // pred_check_branch
        %164 = sbr.rel (%p162) target = $region16
      $region15: #{pred_ratios_forward.3} parent=11 // pred_region
        _
      $region16: #{pred_ratios_forward.3} parent=11 // pred_fallthru
        _
      // Predicated region
      $region17: #{pred_ratios_forward.3} parent=11 // pred_check
        %p165 = pneg %p79
      $region18: #{pred_ratios_forward.3} parent=11 // pred_check_branch
        %167 = sbr.rel (%p165) target = $region20
      $region19: #{pred_ratios_forward.3} parent=11 // pred_region
        _
      $region20: #{pred_ratios_forward.3} parent=11 // pred_fallthru
        _
      // Predicated region
      $region21: #{pred_ratios_forward.3} parent=11 // pred_check
        %p168 = pneg %p100
      $region22: #{pred_ratios_forward.3} parent=11 // pred_check_branch
        %170 = sbr.rel (%p168) target = $region24
      $region23: #{pred_ratios_forward.3} parent=11 // pred_region
        _
      $region24: #{pred_ratios_forward.3} parent=11 // pred_fallthru
        _
      // Predicated region
      $region25: #{pred_ratios_forward.3} parent=11 // pred_check
        %p171 = pneg %p121
      $region26: #{pred_ratios_forward.3} parent=11 // pred_check_branch
        %173 = sbr.rel (%p171) target = $region28
      $region27: #{pred_ratios_forward.3} parent=11 // pred_region
        _
      $region28: #{pred_ratios_forward.3} parent=11 // pred_fallthru
        _
    $region12: #{pred_ratios_forward.3} parent=5 // pred_fallthru
      _
    %p174 = scmp.lt.s32.totalorder %s11, 2
    // Predicated region
    $region29: #{pred_ratios_forward.3} parent=5 // pred_check
      %p175 = pneg %p174
    $region30: #{pred_ratios_forward.3} parent=5 // pred_check_branch
      %177 = sbr.rel (%p175) target = $region32
    $region31: #{pred_ratios_forward.3} parent=5 // pred_region
      // Predicated region
      $region33: #{pred_ratios_forward.3} parent=31 // pred_check
        %p178 = pneg %p31
      $region34: #{pred_ratios_forward.3} parent=31 // pred_check_branch
        %180 = sbr.rel (%p178) target = $region36
      $region35: #{pred_ratios_forward.3} parent=31 // pred_region
        %p181 = scmp.lt.s32.totalorder %s11, 1
        %s182 = scalar_select %p181, %s11, 1
        %s183 = smul.addr %s182, 4
        %s184 = smul.addr %s183, 8
        %s185 = scalar_lea.vmem %s0, %s184
      $region36: #{pred_ratios_forward.3} parent=31 // pred_fallthru
        _
    $region32: #{pred_ratios_forward.3} parent=5 // pred_fallthru
      _
    %p186 = scmp.le.s32.totalorder 1, %s11
    %p187 = scmp.lt.s32.totalorder %s11, 3
    %p188 = pnand %p186, %p187
    %p189 = pneg %p188
    // Predicated region
    $region37: #{pred_ratios_forward.3} parent=5 // pred_check
      _
    $region38: #{pred_ratios_forward.3} parent=5 // pred_check_branch
      %191 = sbr.rel (%p188) target = $region40
    $region39: #{pred_ratios_forward.3} parent=5 // pred_region
      %s192 = ssub.s32 %s11, 1
      %p193 = scmp.lt.s32.totalorder %s16, 1
      %s194 = scalar_select %p193, %s16, 1
      %s195 = smul.addr %s194, 4
      %s196 = smul.addr %s195, 8
      %s197 = scalar_lea.vmem %s0, %s196
      %p198 = pneg %p37
      %p199 = pneg %p34
      %p200 = pneg %p58
      %p201 = pneg %p55
      %p202 = pneg %p79
      %p203 = pneg %p76
      %p204 = pneg %p100
      %p205 = pneg %p97
      %p206 = pneg %p121
      %p207 = pneg %p118
      %p208 = pneg %p147
      %p209 = pneg %p144
      %p210 = scmp.lt.s32.totalorder %s16, 1
      %s211 = scalar_select %p210, %s16, 1
      %s212 = smul.addr %s211, 2
      %s213 = smul.addr %s212, 8
      %s214 = scalar_lea.vmem %s5, %s213
      %p215 = scmp.lt.s32.totalorder %s16, 1
      %s216 = scalar_select %p215, %s16, 1
      %s217 = smul.addr %s216, 4
      %s218 = smul.addr %s217, 8
      %s219 = scalar_lea.vmem %s0, %s218
      %p220 = scmp.lt.s32.totalorder %s16, 1
      %s221 = scalar_select %p220, %s16, 1
      %s222 = smul.addr %s221, 2
      %s223 = smul.addr %s222, 8
      %s224 = scalar_lea.vmem %s5, %s223
      %v225 = vld [vmem:[%s1] sm:$0xff]
      %v226 = vld [vmem:[%s1 + $0x8] sm:$0xff]
      %v227 = vld [vmem:[%s1 + $0x10] sm:$0xff]
      %v228 = vld [vmem:[%s1 + $0x18] sm:$0xff]
      %vm229 = vcmask 7168
      %v230 = vsel %vm229, %v225, 0.0
      %v231 = vsel %vm229, %v227, 0.0
      %v232 = vadd.f32 %v230, %v231
      %v233 = vsel %vm229, %v226, 0.0
      %v234 = vsel %vm229, %v228, 0.0
      %v235 = vadd.f32 %v233, %v234
      %v236 = vld [vmem:[%s2] sm:$0xff]
      %v237 = vld [vmem:[%s2 + $0x8] sm:$0xff]
      %v238 = vld [vmem:[%s2 + $0x10] sm:$0xff]
      %v239 = vld [vmem:[%s2 + $0x18] sm:$0xff]
      %v240 = vsel %vm229, %v236, 0.0
      %v241 = vsel %vm229, %v238, 0.0
      %v242 = vadd.f32 %v240, %v241
      %v243 = vsel %vm229, %v237, 0.0
      %v244 = vsel %vm229, %v239, 0.0
      %v245 = vadd.f32 %v243, %v244
      %v246 = vmul.f32 %v232, 0.001953125
      %v247 = vmul.f32 %v235, 0.001953125
      %v248 = vmul.f32 %v242, 0.001953125
      %v249 = vmul.f32 %v245, 0.001953125
      %v250 = vmul.f32 %v246, %v246
      %v251 = vmul.f32 %v247, %v247
      %v252 = vsub.f32 %v248, %v250
      %v253 = vsub.f32 %v249, %v251
      %v254 = vadd.f32 %v252, 1e-05
      %v255 = vadd.f32 %v253, 1e-05
      %v256 = vrsqrt.pop %v254
      %v257 = vrsqrt.pop %v255
      %v258 = vld [vmem:[%s3] sm:$0xff]
      %v259 = vld [vmem:[%s3 + $0x8] sm:$0xff]
      %v260 = vmul.f32 %v258, %v256
      %v261 = vmul.f32 %v259, %v257
      %v262 = vld [vmem:[%s4] sm:$0xff]
      %v263 = vld [vmem:[%s4 + $0x8] sm:$0xff]
      %v264 = vmul.f32 %v246, %v260
      %v265 = vmul.f32 %v247, %v261
      %v266 = vsub.f32 %v262, %v264
      %v267 = vsub.f32 %v263, %v265
      %v268 = vld [vmem:[%s219] sm:$0xff]
      %v269 = vld [vmem:[%s219 + $0x8] sm:$0xff]
      %v270 = vld [vmem:[%s219 + $0x10] sm:$0xff]
      %v271 = vld [vmem:[%s219 + $0x18] sm:$0xff]
      %273 = vset.pattern.permute.xlu0 0
      %274 = vperm.xlu0 %273, %v260
      %v275 = vpop.permute.xlu0 %274
      %278 = vset.pattern.permute.xlu0 0
      %279 = vperm.xlu0 %278, %v261
      %v280 = vpop.permute.xlu0 %279
      %v282 = vmul.f32 %v268, %v275
      %v283 = vmul.f32 %v269, %v275
      %v284 = vmul.f32 %v270, %v280
      %v285 = vmul.f32 %v271, %v280
      %287 = vset.pattern.permute.xlu0 0
      %288 = vperm.xlu0 %287, %v266
      %v289 = vpop.permute.xlu0 %288
      %292 = vset.pattern.permute.xlu0 0
      %293 = vperm.xlu0 %292, %v267
      %v294 = vpop.permute.xlu0 %293
      %v296 = vadd.f32 %v282, %v289
      %v297 = vadd.f32 %v283, %v289
      %v298 = vadd.f32 %v284, %v294
      %v299 = vadd.f32 %v285, %v294
      %vm300 = vcmp.gt.f32.partialorder %v296, 0.0
      %vm301 = vcmp.gt.f32.partialorder %v297, 0.0
      %vm302 = vcmp.gt.f32.partialorder %v298, 0.0
      %vm303 = vcmp.gt.f32.partialorder %v299, 0.0
      %v304 = vmul.f32 %v296, 0.01
      %v305 = vmul.f32 %v297, 0.01
      %v306 = vmul.f32 %v298, 0.01
      %v307 = vmul.f32 %v299, 0.01
      %v308 = vsel %vm300, %v296, %v304
      %v309 = vsel %vm301, %v297, %v305
      %v310 = vsel %vm302, %v298, %v306
      %v311 = vsel %vm303, %v299, %v307
      %v312 = vadd.f32 %v308, %v309
      %313 = vadd.xlane.f32.xlu0 %v312
      %v314 = vpop.xlane.xlu0 %313
      %v315 = vadd.f32 %v310, %v311
      %316 = vadd.xlane.f32.xlu0 %v315
      %v317 = vpop.xlane.xlu0 %316
      %v318 = vmul.f32 %v314, 0.00390625
      %v319 = vmul.f32 %v317, 0.00390625
      %320 = vst.msk [vmem:[%s224] sm:$0xff] %vm229, %v318
      %321 = vst.msk [vmem:[%s224 + $0x8] sm:$0xff] %vm229, %v319
      %p322 = scmp.lt.s32.totalorder %s16, 1
      %s323 = scalar_select %p322, %s16, 1
      %s324 = smul.addr %s323, 2
      %s325 = smul.addr %s324, 8
      %s326 = scalar_lea.vmem %s5, %s325
      // Predicated region
      $region41: #{pred_ratios_forward.3} parent=39 // pred_check
        %p327 = pneg %p144
      $region42: #{pred_ratios_forward.3} parent=39 // pred_check_branch
        %329 = sbr.rel (%p327) target = $region44
      $region43: #{pred_ratios_forward.3} parent=39 // pred_region
        _
      $region44: #{pred_ratios_forward.3} parent=39 // pred_fallthru
        _
    $region40: #{pred_ratios_forward.3} parent=5 // pred_fallthru
      _
    %p330 = scmp.le.s32.totalorder 2, %s11
    // Predicated region
    $region45: #{pred_ratios_forward.3} parent=5 // pred_check
      %p331 = pneg %p330
    $region46: #{pred_ratios_forward.3} parent=5 // pred_check_branch
      %333 = sbr.rel (%p331) target = $region48
    $region47: #{pred_ratios_forward.3} parent=5 // pred_region
      %s334 = ssub.s32 %s11, 2
      // Predicated region
      $region49: #{pred_ratios_forward.3} parent=47 // pred_check
        %p335 = pneg %p150
      $region50: #{pred_ratios_forward.3} parent=47 // pred_check_branch
        %337 = sbr.rel (%p335) target = $region52
      $region51: #{pred_ratios_forward.3} parent=47 // pred_region
        %p338 = scmp.lt.s32.totalorder %s17, 1
        %s339 = scalar_select %p338, %s17, 1
        %s340 = smul.addr %s339, 2
        %s341 = smul.addr %s340, 8
        %s342 = scalar_lea.vmem %s5, %s341
      $region52: #{pred_ratios_forward.3} parent=47 // pred_fallthru
        _
    $region48: #{pred_ratios_forward.3} parent=5 // pred_fallthru
      _
  $region6: #{pred_ratios_forward.3} parent=0 // loop_footer
    %s15 = sadd.s32 1, %s11
  $region7: #{pred_ratios_forward.3} parent=0 // loop_footer_branch
    %10 = sbr.rel target = $region3
  $region8: #{pred_ratios_forward.3} parent=0 // loop_exit
    _

// kernel: pred_ratios_forward.2
$region0: #{pred_ratios_forward.2}
  #allocation0 [shape = 'u32[]', space=smem, size = 0x4, offset = 0x4, fixed_abs, tag = 'smem constant byte address 0x4 - core index']
  #allocation1 [shape = 'u32[144,128]{1,0:T(1,128)}', space=vmem, size = 0x12000, scoped, tag = 'internal scratch']
  %s0 = inlined_call_operand.vmem [shape: f32[2,18,18,512], index: 0, kind: input, shape index: {}]
  %s1 = inlined_call_operand.vmem [shape: f32[3,3,512,16], index: 1, kind: input, shape index: {}]
  %s2 = inlined_call_operand.vmem [shape: f32[2,16,256], index: 2, kind: output, shape index: {0}]
  %s3 = inlined_call_operand.vmem [shape: f32[2,16,1], index: 3, kind: output, shape index: {1}]
  %s4 = inlined_call_operand.vmem [shape: f32[2,16,1], index: 4, kind: output, shape index: {2}]
  %5 = xla_tuple %s2, %s3, %s4
  %s6 = sld [smem:[#allocation0]]
  $region57: #{pred_ratios_forward.2} parent=0
    _
  %s8 = ssub.s32 1, %s6
  %s9 = scalar_select 0, %s8, %s6
  loop: start=0, step=1, limit=4
  $region2: #{pred_ratios_forward.2} parent=0 // loop_pre_header
    _
  $region3: #{pred_ratios_forward.2} parent=0 // loop_header
    %s11 = sphi 0, %s15
    %p12 = scmp.ge.s32.totalorder %s11, 4
    %s21 = sphi 0, %s23
    %s24 = sphi 0, %s21
    %s25 = sphi 0, %s24
    %s41 = sphi 0, %s25
    %s45 = sphi 0, %s45
    %s47 = sphi 0, %s45
    %s48 = sphi 0, %s47
    %s62 = sphi 0, %s48
    %s68 = sphi 0, %s70
    %s71 = sphi 0, %s68
    %s72 = sphi 0, %s71
    %s88 = sphi 0, %s72
    %s94 = sphi 0, %s96
    %s97 = sphi 0, %s94
    %s98 = sphi 0, %s97
    %s114 = sphi 0, %s98
    %s120 = sphi 0, %s122
    %s123 = sphi 0, %s120
    %s124 = sphi 0, %s123
    %s140 = sphi 0, %s124
  $region4: #{pred_ratios_forward.2} parent=0 // loop_header_branch
    %14 = sbr.rel (%p12) target = $region8
  $region5: #{pred_ratios_forward.2} parent=0 // loop_body
    %s16 = ssub.s32 %s11, 1
    %s17 = ssub.s32 %s11, 2
    %s18 = sadd.s32 %s11, 1
    %s19 = ssub.s32 %s11, %s18
    %p20 = scmp.eq.s32.totalorder %s19, 0
    %s22 = sadd.s32 %s21, 1
    %s23 = scalar_select %p20, %s21, %s22
    %p26 = pneg %p20
    %p27 = scmp.eq.s32.totalorder %s11, 1
    %p28 = por %p26, %p27
    %p29 = scmp.ne.s32.totalorder %s21, %s24
    %p30 = scmp.eq.s32.totalorder %s11, 0
    %p31 = por %p29, %p30
    %p32 = scmp.ne.s32.totalorder %s21, %s24
    %p33 = scmp.eq.s32.totalorder %s16, 1
    %p34 = por %p32, %p33
    %p35 = scmp.ne.s32.totalorder %s24, %s25
    %p36 = scmp.eq.s32.totalorder %s16, 0
    %p37 = por %p35, %p36
    %p38 = scmp.ne.s32.totalorder %s24, %s25
    %p39 = scmp.eq.s32.totalorder %s17, 1
    %p40 = por %p38, %p39
    %p42 = scmp.ne.s32.totalorder %s25, %s41
    %p43 = scmp.eq.s32.totalorder %s17, 0
    %p44 = por %p42, %p43
    %s46 = sadd.s32 %s45, 1
    %p49 = scmp.eq.s32.totalorder %s11, 1
    %p50 = scmp.ne.s32.totalorder %s45, %s47
    %p51 = scmp.eq.s32.totalorder %s11, 0
    %p52 = por %p50, %p51
    %p53 = scmp.ne.s32.totalorder %s45, %s47
    %p54 = scmp.eq.s32.totalorder %s16, 1
    %p55 = por %p53, %p54
    %p56 = scmp.ne.s32.totalorder %s47, %s48
    %p57 = scmp.eq.s32.totalorder %s16, 0
    %p58 = por %p56, %p57
    %p59 = scmp.ne.s32.totalorder %s47, %s48
    %p60 = scmp.eq.s32.totalorder %s17, 1
    %p61 = por %p59, %p60
    %p63 = scmp.ne.s32.totalorder %s48, %s62
    %p64 = scmp.eq.s32.totalorder %s17, 0
    %p65 = por %p63, %p64
    %s66 = ssub.s32 %s11, %s18
    %p67 = scmp.eq.s32.totalorder %s66, 0
    %s69 = sadd.s32 %s68, 1
    %s70 = scalar_select %p67, %s68, %s69
    %p73 = pneg %p67
    %p74 = scmp.eq.s32.totalorder %s11, 1
    %p75 = por %p73, %p74
    %p76 = scmp.ne.s32.totalorder %s68, %s71
    %p77 = scmp.eq.s32.totalorder %s11, 0
    %p78 = por %p76, %p77
    %p79 = scmp.ne.s32.totalorder %s68, %s71
    %p80 = scmp.eq.s32.totalorder %s16, 1
    %p81 = por %p79, %p80
    %p82 = scmp.ne.s32.totalorder %s71, %s72
    %p83 = scmp.eq.s32.totalorder %s16, 0
    %p84 = por %p82, %p83
    %p85 = scmp.ne.s32.totalorder %s71, %s72
    %p86 = scmp.eq.s32.totalorder %s17, 1
    %p87 = por %p85, %p86
    %p89 = scmp.ne.s32.totalorder %s72, %s88
    %p90 = scmp.eq.s32.totalorder %s17, 0
    %p91 = por %p89, %p90
    %s92 = ssub.s32 %s11, %s18
    %p93 = scmp.eq.s32.totalorder %s92, 0
    %s95 = sadd.s32 %s94, 1
    %s96 = scalar_select %p93, %s94, %s95
    %p99 = pneg %p93
    %p100 = scmp.eq.s32.totalorder %s11, 1
    %p101 = por %p99, %p100
    %p102 = scmp.ne.s32.totalorder %s94, %s97
    %p103 = scmp.eq.s32.totalorder %s11, 0
    %p104 = por %p102, %p103
    %p105 = scmp.ne.s32.totalorder %s94, %s97
    %p106 = scmp.eq.s32.totalorder %s16, 1
    %p107 = por %p105, %p106
    %p108 = scmp.ne.s32.totalorder %s97, %s98
    %p109 = scmp.eq.s32.totalorder %s16, 0
    %p110 = por %p108, %p109
    %p111 = scmp.ne.s32.totalorder %s97, %s98
    %p112 = scmp.eq.s32.totalorder %s17, 1
    %p113 = por %p111, %p112
    %p115 = scmp.ne.s32.totalorder %s98, %s114
    %p116 = scmp.eq.s32.totalorder %s17, 0
    %p117 = por %p115, %p116
    %s118 = ssub.s32 %s11, %s18
    %p119 = scmp.eq.s32.totalorder %s118, 0
    %s121 = sadd.s32 %s120, 1
    %s122 = scalar_select %p119, %s120, %s121
    %p125 = pneg %p119
    %p126 = scmp.eq.s32.totalorder %s11, 1
    %p127 = por %p125, %p126
    %p128 = scmp.ne.s32.totalorder %s120, %s123
    %p129 = scmp.eq.s32.totalorder %s11, 0
    %p130 = por %p128, %p129
    %p131 = scmp.ne.s32.totalorder %s120, %s123
    %p132 = scmp.eq.s32.totalorder %s16, 1
    %p133 = por %p131, %p132
    %p134 = scmp.ne.s32.totalorder %s123, %s124
    %p135 = scmp.eq.s32.totalorder %s16, 0
    %p136 = por %p134, %p135
    %p137 = scmp.ne.s32.totalorder %s123, %s124
    %p138 = scmp.eq.s32.totalorder %s17, 1
    %p139 = por %p137, %p138
    %p141 = scmp.ne.s32.totalorder %s124, %s140
    %p142 = scmp.eq.s32.totalorder %s17, 0
    %p143 = por %p141, %p142
    %p144 = scmp.le.s32.totalorder 1, %s11
    %p145 = scmp.lt.s32.totalorder %s11, 3
    %p146 = pnand %p144, %p145
    %p147 = pneg %p146
    // Predicated region
    $region9: #{pred_ratios_forward.2} parent=5 // pred_check
      _
    $region10: #{pred_ratios_forward.2} parent=5 // pred_check_branch
      %149 = sbr.rel (%p146) target = $region12
    $region11: #{pred_ratios_forward.2} parent=5 // pred_region
      %s150 = ssub.s32 %s11, 1
      // Predicated region
      $region13: #{pred_ratios_forward.2} parent=11 // pred_check
        %p151 = pneg %p58
      $region14: #{pred_ratios_forward.2} parent=11 // pred_check_branch
        %153 = sbr.rel (%p151) target = $region16
      $region15: #{pred_ratios_forward.2} parent=11 // pred_region
        _
      $region16: #{pred_ratios_forward.2} parent=11 // pred_fallthru
        _
    $region12: #{pred_ratios_forward.2} parent=5 // pred_fallthru
      _
    %p154 = scmp.lt.s32.totalorder %s11, 2
    // Predicated region
    $region17: #{pred_ratios_forward.2} parent=5 // pred_check
      %p155 = pneg %p154
    $region18: #{pred_ratios_forward.2} parent=5 // pred_check_branch
      %157 = sbr.rel (%p155) target = $region20
    $region19: #{pred_ratios_forward.2} parent=5 // pred_region
      // Predicated region
      $region21: #{pred_ratios_forward.2} parent=19 // pred_check
        %p158 = pneg %p31
      $region22: #{pred_ratios_forward.2} parent=19 // pred_check_branch
        %160 = sbr.rel (%p158) target = $region24
      $region23: #{pred_ratios_forward.2} parent=19 // pred_region
        %p161 = scmp.lt.s32.totalorder %s11, 1
        %s162 = scalar_select %p161, %s11, 1
        %s163 = smul.addr %s162, 216
        %s164 = smul.addr %s163, 8
        %s165 = scalar_lea.vmem %s0, %s164
      $region24: #{pred_ratios_forward.2} parent=19 // pred_fallthru
        _
    $region20: #{pred_ratios_forward.2} parent=5 // pred_fallthru
      _
    %p166 = scmp.le.s32.totalorder 1, %s11
    %p167 = scmp.lt.s32.totalorder %s11, 3
    %p168 = pnand %p166, %p167
    %p169 = pneg %p168
    // Predicated region
    $region25: #{pred_ratios_forward.2} parent=5 // pred_check
      _
    $region26: #{pred_ratios_forward.2} parent=5 // pred_check_branch
      %171 = sbr.rel (%p168) target = $region28
    $region27: #{pred_ratios_forward.2} parent=5 // pred_region
      %s172 = ssub.s32 %s11, 1
      %p173 = scmp.lt.s32.totalorder %s16, 1
      %s174 = scalar_select %p173, %s16, 1
      %s175 = smul.addr %s174, 216
      %s176 = smul.addr %s175, 8
      %s177 = scalar_lea.vmem %s0, %s176
      %p178 = pneg %p37
      %p179 = pneg %p34
      %p180 = pneg %p58
      %p181 = pneg %p55
      %p182 = pneg %p84
      %p183 = pneg %p81
      %p184 = scmp.lt.s32.totalorder %s16, 1
      %s185 = scalar_select %p184, %s16, 1
      %s186 = smul.addr %s185, 4
      %s187 = smul.addr %s186, 8
      %s188 = scalar_lea.vmem %s2, %s187
      %p189 = pneg %p110
      %p190 = pneg %p107
      %p191 = scmp.lt.s32.totalorder %s16, 1
      %s192 = scalar_select %p191, %s16, 1
      %s193 = smul.addr %s192, 2
      %s194 = smul.addr %s193, 8
      %s195 = scalar_lea.vmem %s3, %s194
      %p196 = pneg %p136
      %p197 = pneg %p133
      %p198 = scmp.lt.s32.totalorder %s16, 1
      %s199 = scalar_select %p198, %s16, 1
      %s200 = smul.addr %s199, 2
      %s201 = smul.addr %s200, 8
      %s202 = scalar_lea.vmem %s4, %s201
      %p203 = scmp.lt.s32.totalorder %s16, 1
      %s204 = scalar_select %p203, %s16, 1
      %s205 = smul.addr %s204, 216
      %s206 = smul.addr %s205, 8
      %s207 = scalar_lea.vmem %s0, %s206
      %p208 = scmp.lt.s32.totalorder %s16, 1
      %s209 = scalar_select %p208, %s16, 1
      %s210 = smul.addr %s209, 4
      %s211 = smul.addr %s210, 8
      %s212 = scalar_lea.vmem %s2, %s211
      %p213 = scmp.lt.s32.totalorder %s16, 1
      %s214 = scalar_select %p213, %s16, 1
      %s215 = smul.addr %s214, 2
      %s216 = smul.addr %s215, 8
      %s217 = scalar_lea.vmem %s3, %s216
      %p218 = scmp.lt.s32.totalorder %s16, 1
      %s219 = scalar_select %p218, %s16, 1
      %s220 = smul.addr %s219, 2
      %s221 = smul.addr %s220, 8
      %s222 = scalar_lea.vmem %s4, %s221
      %v223 = vld [vmem:[%s207] sm:$0xff]
      %v224 = vld [vmem:[%s207 + $0x8] sm:$0xff]
      %v225 = vld [vmem:[%s207 + $0x10] sm:$0xff]
      %v226 = vld [vmem:[%s207 + $0x18] sm:$0xff]
      %v227 = vld [vmem:[%s207 + $0x20] sm:$0xff]
      %v228 = vld [vmem:[%s207 + $0x28] sm:$0xff]
      %v229 = vld [vmem:[%s207 + $0x30] sm:$0xff]
      %v230 = vld [vmem:[%s207 + $0x38] sm:$0xff]
      %v231 = vld [vmem:[%s207 + $0x60] sm:$0xff]
      %v232 = vld [vmem:[%s207 + $0x68] sm:$0xff]
      %v233 = vld [vmem:[%s207 + $0x70] sm:$0xff]
      %v234 = vld [vmem:[%s207 + $0x78] sm:$0xff]
      %v235 = vld [vmem:[%s207 + $0x80] sm:$0xff]
      %v236 = vld [vmem:[%s207 + $0x88] sm:$0xff]
      %v237 = vld [vmem:[%s207 + $0x90] sm:$0xff]
      %v238 = vld [vmem:[%s207 + $0x98] sm:$0xff]
      %v239 = vld [vmem:[%s207 + $0xc0] sm:$0xff]
      %v240 = vld [vmem:[%s207 + $0xc8] sm:$0xff]
      %v241 = vld [vmem:[%s207 + $0xd0] sm:$0xff]
      %v242 = vld [vmem:[%s207 + $0xd8] sm:$0xff]
      %v243 = vld [vmem:[%s207 + $0xe0] sm:$0xff]
      %v244 = vld [vmem:[%s207 + $0xe8] sm:$0xff]
      %v245 = vld [vmem:[%s207 + $0xf0] sm:$0xff]
      %v246 = vld [vmem:[%s207 + $0xf8] sm:$0xff]
      %v247 = vld [vmem:[%s207 + $0x120] sm:$0xff]
      %v248 = vld [vmem:[%s207 + $0x128] sm:$0xff]
      %v249 = vld [vmem:[%s207 + $0x130] sm:$0xff]
      %v250 = vld [vmem:[%s207 + $0x138] sm:$0xff]
      %v251 = vld [vmem:[%s207 + $0x140] sm:$0xff]
      %v252 = vld [vmem:[%s207 + $0x148] sm:$0xff]
      %v253 = vld [vmem:[%s207 + $0x150] sm:$0xff]
      %v254 = vld [vmem:[%s207 + $0x158] sm:$0xff]
      %v255 = vld [vmem:[%s207 + $0x180] sm:$0xff]
      %v256 = vld [vmem:[%s207 + $0x188] sm:$0xff]
      %v257 = vld [vmem:[%s207 + $0x190] sm:$0xff]
      %v258 = vld [vmem:[%s207 + $0x198] sm:$0xff]
      %v259 = vld [vmem:[%s207 + $0x1a0] sm:$0xff]
      %v260 = vld [vmem:[%s207 + $0x1a8] sm:$0xff]
      %v261 = vld [vmem:[%s207 + $0x1b0] sm:$0xff]
      %v262 = vld [vmem:[%s207 + $0x1b8] sm:$0xff]
      %v263 = vld [vmem:[%s207 + $0x1e0] sm:$0xff]
      %v264 = vld [vmem:[%s207 + $0x1e8] sm:$0xff]
      %v265 = vld [vmem:[%s207 + $0x1f0] sm:$0xff]
      %v266 = vld [vmem:[%s207 + $0x1f8] sm:$0xff]
      %v267 = vld [vmem:[%s207 + $0x200] sm:$0xff]
      %v268 = vld [vmem:[%s207 + $0x208] sm:$0xff]
      %v269 = vld [vmem:[%s207 + $0x210] sm:$0xff]
      %v270 = vld [vmem:[%s207 + $0x218] sm:$0xff]
      %v271 = vld [vmem:[%s207 + $0x240] sm:$0xff]
      %v272 = vld [vmem:[%s207 + $0x248] sm:$0xff]
      %v273 = vld [vmem:[%s207 + $0x250] sm:$0xff]
      %v274 = vld [vmem:[%s207 + $0x258] sm:$0xff]
      %v275 = vld [vmem:[%s207 + $0x260] sm:$0xff]
      %v276 = vld [vmem:[%s207 + $0x268] sm:$0xff]
      %v277 = vld [vmem:[%s207 + $0x270] sm:$0xff]
      %v278 = vld [vmem:[%s207 + $0x278] sm:$0xff]
      %v279 = vld [vmem:[%s207 + $0x2a0] sm:$0xff]
      %v280 = vld [vmem:[%s207 + $0x2a8] sm:$0xff]
      %v281 = vld [vmem:[%s207 + $0x2b0] sm:$0xff]
      %v282 = vld [vmem:[%s207 + $0x2b8] sm:$0xff]
      %v283 = vld [vmem:[%s207 + $0x2c0] sm:$0xff]
      %v284 = vld [vmem:[%s207 + $0x2c8] sm:$0xff]
      %v285 = vld [vmem:[%s207 + $0x2d0] sm:$0xff]
      %v286 = vld [vmem:[%s207 + $0x2d8] sm:$0xff]
      %v287 = vld [vmem:[%s207 + $0x300] sm:$0xff]
      %v288 = vld [vmem:[%s207 + $0x308] sm:$0xff]
      %v289 = vld [vmem:[%s207 + $0x310] sm:$0xff]
      %v290 = vld [vmem:[%s207 + $0x318] sm:$0xff]
      %v291 = vld [vmem:[%s207 + $0x320] sm:$0xff]
      %v292 = vld [vmem:[%s207 + $0x328] sm:$0xff]
      %v293 = vld [vmem:[%s207 + $0x330] sm:$0xff]
      %v294 = vld [vmem:[%s207 + $0x338] sm:$0xff]
      %v295 = vld [vmem:[%s207 + $0x360] sm:$0xff]
      %v296 = vld [vmem:[%s207 + $0x368] sm:$0xff]
      %v297 = vld [vmem:[%s207 + $0x370] sm:$0xff]
      %v298 = vld [vmem:[%s207 + $0x378] sm:$0xff]
      %v299 = vld [vmem:[%s207 + $0x380] sm:$0xff]
      %v300 = vld [vmem:[%s207 + $0x388] sm:$0xff]
      %v301 = vld [vmem:[%s207 + $0x390] sm:$0xff]
      %v302 = vld [vmem:[%s207 + $0x398] sm:$0xff]
      %v303 = vld [vmem:[%s207 + $0x3c0] sm:$0xff]
      %v304 = vld [vmem:[%s207 + $0x3c8] sm:$0xff]
      %v305 = vld [vmem:[%s207 + $0x3d0] sm:$0xff]
      %v306 = vld [vmem:[%s207 + $0x3d8] sm:$0xff]
      %v307 = vld [vmem:[%s207 + $0x3e0] sm:$0xff]
      %v308 = vld [vmem:[%s207 + $0x3e8] sm:$0xff]
      %v309 = vld [vmem:[%s207 + $0x3f0] sm:$0xff]
      %v310 = vld [vmem:[%s207 + $0x3f8] sm:$0xff]
      %v311 = vld [vmem:[%s207 + $0x420] sm:$0xff]
      %v312 = vld [vmem:[%s207 + $0x428] sm:$0xff]
      %v313 = vld [vmem:[%s207 + $0x430] sm:$0xff]
      %v314 = vld [vmem:[%s207 + $0x438] sm:$0xff]
      %v315 = vld [vmem:[%s207 + $0x440] sm:$0xff]
      %v316 = vld [vmem:[%s207 + $0x448] sm:$0xff]
      %v317 = vld [vmem:[%s207 + $0x450] sm:$0xff]
      %v318 = vld [vmem:[%s207 + $0x458] sm:$0xff]
      %v319 = vld [vmem:[%s207 + $0x480] sm:$0xff]
      %v320 = vld [vmem:[%s207 + $0x488] sm:$0xff]
      %v321 = vld [vmem:[%s207 + $0x490] sm:$0xff]
      %v322 = vld [vmem:[%s207 + $0x498] sm:$0xff]
      %v323 = vld [vmem:[%s207 + $0x4a0] sm:$0xff]
      %v324 = vld [vmem:[%s207 + $0x4a8] sm:$0xff]
      %v325 = vld [vmem:[%s207 + $0x4b0] sm:$0xff]
      %v326 = vld [vmem:[%s207 + $0x4b8] sm:$0xff]
      %v327 = vld [vmem:[%s207 + $0x4e0] sm:$0xff]
      %v328 = vld [vmem:[%s207 + $0x4e8] sm:$0xff]
      %v329 = vld [vmem:[%s207 + $0x4f0] sm:$0xff]
      %v330 = vld [vmem:[%s207 + $0x4f8] sm:$0xff]
      %v331 = vld [vmem:[%s207 + $0x500] sm:$0xff]
      %v332 = vld [vmem:[%s207 + $0x508] sm:$0xff]
      %v333 = vld [vmem:[%s207 + $0x510] sm:$0xff]
      %v334 = vld [vmem:[%s207 + $0x518] sm:$0xff]
      %v335 = vld [vmem:[%s207 + $0x540] sm:$0xff]
      %v336 = vld [vmem:[%s207 + $0x548] sm:$0xff]
      %v337 = vld [vmem:[%s207 + $0x550] sm:$0xff]
      %v338 = vld [vmem:[%s207 + $0x558] sm:$0xff]
      %v339 = vld [vmem:[%s207 + $0x560] sm:$0xff]
      %v340 = vld [vmem:[%s207 + $0x568] sm:$0xff]
      %v341 = vld [vmem:[%s207 + $0x570] sm:$0xff]
      %v342 = vld [vmem:[%s207 + $0x578] sm:$0xff]
      %v343 = vld [vmem:[%s207 + $0x5a0] sm:$0xff]
      %v344 = vld [vmem:[%s207 + $0x5a8] sm:$0xff]
      %v345 = vld [vmem:[%s207 + $0x5b0] sm:$0xff]
      %v346 = vld [vmem:[%s207 + $0x5b8] sm:$0xff]
      %v347 = vld [vmem:[%s207 + $0x5c0] sm:$0xff]
      %v348 = vld [vmem:[%s207 + $0x5c8] sm:$0xff]
      %v349 = vld [vmem:[%s207 + $0x5d0] sm:$0xff]
      %v350 = vld [vmem:[%s207 + $0x5d8] sm:$0xff]
      %v351 = vld [vmem:[%s1] sm:$0xff]
      %v352 = vld [vmem:[%s1 + $0x8] sm:$0xff]
      %v353 = vld [vmem:[%s1 + $0x10] sm:$0xff]
      %v354 = vld [vmem:[%s1 + $0x18] sm:$0xff]
      %v355 = vld [vmem:[%s1 + $0x20] sm:$0xff]
      %v356 = vld [vmem:[%s1 + $0x28] sm:$0xff]
      %v357 = vld [vmem:[%s1 + $0x30] sm:$0xff]
      %v358 = vld [vmem:[%s1 + $0x38] sm:$0xff]
      %v359 = vld [vmem:[%s1 + $0x40] sm:$0xff]
      %v360 = vld [vmem:[%s1 + $0x48] sm:$0xff]
      %v361 = vld [vmem:[%s1 + $0x50] sm:$0xff]
      %v362 = vld [vmem:[%s1 + $0x58] sm:$0xff]
      %v363 = vld [vmem:[%s1 + $0x60] sm:$0xff]
      %v364 = vld [vmem:[%s1 + $0x68] sm:$0xff]
      %v365 = vld [vmem:[%s1 + $0x70] sm:$0xff]
      %v366 = vld [vmem:[%s1 + $0x78] sm:$0xff]
      %v367 = vld [vmem:[%s1 + $0x80] sm:$0xff]
      %v368 = vld [vmem:[%s1 + $0x88] sm:$0xff]
      %v369 = vld [vmem:[%s1 + $0x90] sm:$0xff]
      %v370 = vld [vmem:[%s1 + $0x98] sm:$0xff]
      %v371 = vld [vmem:[%s1 + $0xa0] sm:$0xff]
      %v372 = vld [vmem:[%s1 + $0xa8] sm:$0xff]
      %v373 = vld [vmem:[%s1 + $0xb0] sm:$0xff]
      %v374 = vld [vmem:[%s1 + $0xb8] sm:$0xff]
      %v375 = vld [vmem:[%s1 + $0xc0] sm:$0xff]
      %v376 = vld [vmem:[%s1 + $0xc8] sm:$0xff]
      %v377 = vld [vmem:[%s1 + $0xd0] sm:$0xff]
      %v378 = vld [vmem:[%s1 + $0xd8] sm:$0xff]
      %v379 = vld [vmem:[%s1 + $0xe0] sm:$0xff]
      %v380 = vld [vmem:[%s1 + $0xe8] sm:$0xff]
      %v381 = vld [vmem:[%s1 + $0xf0] sm:$0xff]
      %v382 = vld [vmem:[%s1 + $0xf8] sm:$0xff]
      %v383 = vld [vmem:[%s1 + $0x100] sm:$0xff]
      %v384 = vld [vmem:[%s1 + $0x108] sm:$0xff]
      %v385 = vld [vmem:[%s1 + $0x110] sm:$0xff]
      %v386 = vld [vmem:[%s1 + $0x118] sm:$0xff]
      %v387 = vld [vmem:[%s1 + $0x120] sm:$0xff]
      %v388 = vld [vmem:[%s1 + $0x128] sm:$0xff]
      %v389 = vld [vmem:[%s1 + $0x130] sm:$0xff]
      %v390 = vld [vmem:[%s1 + $0x138] sm:$0xff]
      %v391 = vld [vmem:[%s1 + $0x140] sm:$0xff]
      %v392 = vld [vmem:[%s1 + $0x148] sm:$0xff]
      %v393 = vld [vmem:[%s1 + $0x150] sm:$0xff]
      %v394 = vld [vmem:[%s1 + $0x158] sm:$0xff]
      %v395 = vld [vmem:[%s1 + $0x160] sm:$0xff]
      %v396 = vld [vmem:[%s1 + $0x168] sm:$0xff]
      %v397 = vld [vmem:[%s1 + $0x170] sm:$0xff]
      %v398 = vld [vmem:[%s1 + $0x178] sm:$0xff]
      %v399 = vld [vmem:[%s1 + $0x180] sm:$0xff]
      %v400 = vld [vmem:[%s1 + $0x188] sm:$0xff]
      %v401 = vld [vmem:[%s1 + $0x190] sm:$0xff]
      %v402 = vld [vmem:[%s1 + $0x198] sm:$0xff]
      %v403 = vld [vmem:[%s1 + $0x1a0] sm:$0xff]
      %v404 = vld [vmem:[%s1 + $0x1a8] sm:$0xff]
      %v405 = vld [vmem:[%s1 + $0x1b0] sm:$0xff]
      %v406 = vld [vmem:[%s1 + $0x1b8] sm:$0xff]
      %v407 = vld [vmem:[%s1 + $0x1c0] sm:$0xff]
      %v408 = vld [vmem:[%s1 + $0x1c8] sm:$0xff]
      %v409 = vld [vmem:[%s1 + $0x1d0] sm:$0xff]
      %v410 = vld [vmem:[%s1 + $0x1d8] sm:$0xff]
      %v411 = vld [vmem:[%s1 + $0x1e0] sm:$0xff]
      %v412 = vld [vmem:[%s1 + $0x1e8] sm:$0xff]
      %v413 = vld [vmem:[%s1 + $0x1f0] sm:$0xff]
      %v414 = vld [vmem:[%s1 + $0x1f8] sm:$0xff]
      %v415 = vld [vmem:[%s207] sm:$0xfe]
      %v416 = vld [vmem:[%s207 + $0x8] sm:$0xfe]
      %v417 = vld [vmem:[%s207 + $0x10] sm:$0xfe]
      %v418 = vld [vmem:[%s207 + $0x18] sm:$0xfe]
      %v419 = vld [vmem:[%s207 + $0x40] sm:$0x1]
      %v420 = vld [vmem:[%s207 + $0x48] sm:$0x1]
      %v421 = vld [vmem:[%s207 + $0x50] sm:$0x1]
      %v422 = vld [vmem:[%s207 + $0x58] sm:$0x1]
      %v423 = vld [vmem:[%s207 + $0x60] sm:$0xfe]
      %v424 = vld [vmem:[%s207 + $0x68] sm:$0xfe]
      %v425 = vld [vmem:[%s207 + $0x70] sm:$0xfe]
      %v426 = vld [vmem:[%s207 + $0x78] sm:$0xfe]
      %v427 = vld [vmem:[%s207 + $0xa0] sm:$0x1]
      %v428 = vld [vmem:[%s207 + $0xa8] sm:$0x1]
      %v429 = vld [vmem:[%s207 + $0xb0] sm:$0x1]
      %v430 = vld [vmem:[%s207 + $0xb8] sm:$0x1]
      %v431 = vld [vmem:[%s207 + $0xc0] sm:$0xfe]
      %v432 = vld [vmem:[%s207 + $0xc8] sm:$0xfe]
      %v433 = vld [vmem:[%s207 + $0xd0] sm:$0xfe]
      %v434 = vld [vmem:[%s207 + $0xd8] sm:$0xfe]
      %v435 = vld [vmem:[%s207 + $0x100] sm:$0x1]
      %v436 = vld [vmem:[%s207 + $0x108] sm:$0x1]
      %v437 = vld [vmem:[%s207 + $0x110] sm:$0x1]
      %v438 = vld [vmem:[%s207 + $0x118] sm:$0x1]
      %v439 = vld [vmem:[%s207 + $0x120] sm:$0xfe]
      %v440 = vld [vmem:[%s207 + $0x128] sm:$0xfe]
      %v441 = vld [vmem:[%s207 + $0x130] sm:$0xfe]
      %v442 = vld [vmem:[%s207 + $0x138] sm:$0xfe]
      %v443 = vld [vmem:[%s207 + $0x160] sm:$0x1]
      %v444 = vld [vmem:[%s207 + $0x168] sm:$0x1]
      %v445 = vld [vmem:[%s207 + $0x170] sm:$0x1]
      %v446 = vld [vmem:[%s207 + $0x178] sm:$0x1]
      %v447 = vld [vmem:[%s207 + $0x180] sm:$0xfe]
      %v448 = vld [vmem:[%s207 + $0x188] sm:$0xfe]
      %v449 = vld [vmem:[%s207 + $0x190] sm:$0xfe]
      %v450 = vld [vmem:[%s207 + $0x198] sm:$0xfe]
      %v451 = vld [vmem:[%s207 + $0x1c0] sm:$0x1]
      %v452 = vld [vmem:[%s207 + $0x1c8] sm:$0x1]
      %v453 = vld [vmem:[%s207 + $0x1d0] sm:$0x1]
      %v454 = vld [vmem:[%s207 + $0x1d8] sm:$0x1]
      %v455 = vld [vmem:[%s207 + $0x1e0] sm:$0xfe]
      %v456 = vld [vmem:[%s207 + $0x1e8] sm:$0xfe]
      %v457 = vld [vmem:[%s207 + $0x1f0] sm:$0xfe]
      %v458 = vld [vmem:[%s207 + $0x1f8] sm:$0xfe]
      %v459 = vld [vmem:[%s207 + $0x220] sm:$0x1]
      %v460 = vld [vmem:[%s207 + $0x228] sm:$0x1]
      %v461 = vld [vmem:[%s207 + $0x230] sm:$0x1]
      %v462 = vld [vmem:[%s207 + $0x238] sm:$0x1]
      %v463 = vld [vmem:[%s207 + $0x240] sm:$0xfe]
      %v464 = vld [vmem:[%s207 + $0x248] sm:$0xfe]
      %v465 = vld [vmem:[%s207 + $0x250] sm:$0xfe]
      %v466 = vld [vmem:[%s207 + $0x258] sm:$0xfe]
      %v467 = vld [vmem:[%s207 + $0x280] sm:$0x1]
      %v468 = vld [vmem:[%s207 + $0x288] sm:$0x1]
      %v469 = vld [vmem:[%s207 + $0x290] sm:$0x1]
      %v470 = vld [vmem:[%s207 + $0x298] sm:$0x1]
      %v471 = vld [vmem:[%s207 + $0x2a0] sm:$0xfe]
      %v472 = vld [vmem:[%s207 + $0x2a8] sm:$0xfe]
      %v473 = vld [vmem:[%s207 + $0x2b0] sm:$0xfe]
      %v474 = vld [vmem:[%s207 + $0x2b8] sm:$0xfe]
      %v475 = vld [vmem:[%s207 + $0x2e0] sm:$0x1]
      %v476 = vld [vmem:[%s207 + $0x2e8] sm:$0x1]
      %v477 = vld [vmem:[%s207 + $0x2f0] sm:$0x1]
      %v478 = vld [vmem:[%s207 + $0x2f8] sm:$0x1]
      %v479 = vld [vmem:[%s207 + $0x300] sm:$0xfe]
      %v480 = vld [vmem:[%s207 + $0x308] sm:$0xfe]
      %v481 = vld [vmem:[%s207 + $0x310] sm:$0xfe]
      %v482 = vld [vmem:[%s207 + $0x318] sm:$0xfe]
      %v483 = vld [vmem:[%s207 + $0x340] sm:$0x1]
      %v484 = vld [vmem:[%s207 + $0x348] sm:$0x1]
      %v485 = vld [vmem:[%s207 + $0x350] sm:$0x1]
      %v486 = vld [vmem:[%s207 + $0x358] sm:$0x1]
      %v487 = vld [vmem:[%s207 + $0x360] sm:$0xfe]
      %v488 = vld [vmem:[%s207 + $0x368] sm:$0xfe]
      %v489 = vld [vmem:[%s207 + $0x370] sm:$0xfe]
      %v490 = vld [vmem:[%s207 + $0x378] sm:$0xfe]
      %v491 = vld [vmem:[%s207 + $0x3a0] sm:$0x1]
      %v492 = vld [vmem:[%s207 + $0x3a8] sm:$0x1]
      %v493 = vld [vmem:[%s207 + $0x3b0] sm:$0x1]
      %v494 = vld [vmem:[%s207 + $0x3b8] sm:$0x1]
      %v495 = vld [vmem:[%s207 + $0x3c0] sm:$0xfe]
      %v496 = vld [vmem:[%s207 + $0x3c8] sm:$0xfe]
      %v497 = vld [vmem:[%s207 + $0x3d0] sm:$0xfe]
      %v498 = vld [vmem:[%s207 + $0x3d8] sm:$0xfe]
      %v499 = vld [vmem:[%s207 + $0x400] sm:$0x1]
      %v500 = vld [vmem:[%s207 + $0x408] sm:$0x1]
      %v501 = vld [vmem:[%s207 + $0x410] sm:$0x1]
      %v502 = vld [vmem:[%s207 + $0x418] sm:$0x1]
      %v503 = vld [vmem:[%s207 + $0x420] sm:$0xfe]
      %v504 = vld [vmem:[%s207 + $0x428] sm:$0xfe]
      %v505 = vld [vmem:[%s207 + $0x430] sm:$0xfe]
      %v506 = vld [vmem:[%s207 + $0x438] sm:$0xfe]
      %v507 = vld [vmem:[%s207 + $0x460] sm:$0x1]
      %v508 = vld [vmem:[%s207 + $0x468] sm:$0x1]
      %v509 = vld [vmem:[%s207 + $0x470] sm:$0x1]
      %v510 = vld [vmem:[%s207 + $0x478] sm:$0x1]
      %v511 = vld [vmem:[%s207 + $0x480] sm:$0xfe]
      %v512 = vld [vmem:[%s207 + $0x488] sm:$0xfe]
      %v513 = vld [vmem:[%s207 + $0x490] sm:$0xfe]
      %v514 = vld [vmem:[%s207 + $0x498] sm:$0xfe]
      %v515 = vld [vmem:[%s207 + $0x4c0] sm:$0x1]
      %v516 = vld [vmem:[%s207 + $0x4c8] sm:$0x1]
      %v517 = vld [vmem:[%s207 + $0x4d0] sm:$0x1]
      %v518 = vld [vmem:[%s207 + $0x4d8] sm:$0x1]
      %v519 = vld [vmem:[%s207 + $0x4e0] sm:$0xfe]
      %v520 = vld [vmem:[%s207 + $0x4e8] sm:$0xfe]
      %v521 = vld [vmem:[%s207 + $0x4f0] sm:$0xfe]
      %v522 = vld [vmem:[%s207 + $0x4f8] sm:$0xfe]
      %v523 = vld [vmem:[%s207 + $0x520] sm:$0x1]
      %v524 = vld [vmem:[%s207 + $0x528] sm:$0x1]
      %v525 = vld [vmem:[%s207 + $0x530] sm:$0x1]
      %v526 = vld [vmem:[%s207 + $0x538] sm:$0x1]
      %v527 = vld [vmem:[%s207 + $0x540] sm:$0xfe]
      %v528 = vld [vmem:[%s207 + $0x548] sm:$0xfe]
      %v529 = vld [vmem:[%s207 + $0x550] sm:$0xfe]
      %v530 = vld [vmem:[%s207 + $0x558] sm:$0xfe]
      %v531 = vld [vmem:[%s207 + $0x580] sm:$0x1]
      %v532 = vld [vmem:[%s207 + $0x588] sm:$0x1]
      %v533 = vld [vmem:[%s207 + $0x590] sm:$0x1]
      %v534 = vld [vmem:[%s207 + $0x598] sm:$0x1]
      %v535 = vld [vmem:[%s207 + $0x5a0] sm:$0xfe]
      %v536 = vld [vmem:[%s207 + $0x5a8] sm:$0xfe]
      %v537 = vld [vmem:[%s207 + $0x5b0] sm:$0xfe]
      %v538 = vld [vmem:[%s207 + $0x5b8] sm:$0xfe]
      %v539 = vld [vmem:[%s207 + $0x5e0] sm:$0x1]
      %v540 = vld [vmem:[%s207 + $0x5e8] sm:$0x1]
      %v541 = vld [vmem:[%s207 + $0x5f0] sm:$0x1]
      %v542 = vld [vmem:[%s207 + $0x5f8] sm:$0x1]
      %vm735 = vcmask 1046528
      %v736 = vrot.slane %v415, 1
      %v737 = vrot.slane %v227, 1
      %v738 = vsel %vm735, %v736, %v737
      %v739 = vrot.slane %v416, 1
      %v740 = vrot.slane %v228, 1
      %v741 = vsel %vm735, %v739, %v740
      %v742 = vrot.slane %v417, 1
      %v743 = vrot.slane %v229, 1
      %v744 = vsel %vm735, %v742, %v743
      %v745 = vrot.slane %v418, 1
      %v746 = vrot.slane %v230, 1
      %v747 = vsel %vm735, %v745, %v746
      %v748 = vrot.slane %v419, 1
      %v749 = vsel %vm735, %v737, %v748
      %v750 = vrot.slane %v420, 1
      %v751 = vsel %vm735, %v740, %v750
      %v752 = vrot.slane %v421, 1
      %v753 = vsel %vm735, %v743, %v752
      %v754 = vrot.slane %v422, 1
      %v755 = vsel %vm735, %v746, %v754
      %v756 = vrot.slane %v423, 1
      %v757 = vrot.slane %v235, 1
      %v758 = vsel %vm735, %v756, %v757
      %v759 = vrot.slane %v424, 1
      %v760 = vrot.slane %v236, 1
      %v761 = vsel %vm735, %v759, %v760
      %v762 = vrot.slane %v425, 1
      %v763 = vrot.slane %v237, 1
      %v764 = vsel %vm735, %v762, %v763
      %v765 = vrot.slane %v426, 1
      %v766 = vrot.slane %v238, 1
      %v767 = vsel %vm735, %v765, %v766
      %v768 = vrot.slane %v427, 1
      %v769 = vsel %vm735, %v757, %v768
      %v770 = vrot.slane %v428, 1
      %v771 = vsel %vm735, %v760, %v770
      %v772 = vrot.slane %v429, 1
      %v773 = vsel %vm735, %v763, %v772
      %v774 = vrot.slane %v430, 1
      %v775 = vsel %vm735, %v766, %v774
      %v776 = vrot.slane %v431, 1
      %v777 = vrot.slane %v243, 1
      %v778 = vsel %vm735, %v776, %v777
      %v779 = vrot.slane %v432, 1
      %v780 = vrot.slane %v244, 1
      %v781 = vsel %vm735, %v779, %v780
      %v782 = vrot.slane %v433, 1
      %v783 = vrot.slane %v245, 1
      %v784 = vsel %vm735, %v782, %v783
      %v785 = vrot.slane %v434, 1
      %v786 = vrot.slane %v246, 1
      %v787 = vsel %vm735, %v785, %v786
      %v788 = vrot.slane %v435, 1
      %v789 = vsel %vm735, %v777, %v788
      %v790 = vrot.slane %v436, 1
      %v791 = vsel %vm735, %v780, %v790
      %v792 = vrot.slane %v437, 1
      %v793 = vsel %vm735, %v783, %v792
      %v794 = vrot.slane %v438, 1
      %v795 = vsel %vm735, %v786, %v794
      %v796 = vrot.slane %v439, 1
      %v797 = vrot.slane %v251, 1
      %v798 = vsel %vm735, %v796, %v797
      %v799 = vrot.slane %v440, 1
      %v800 = vrot.slane %v252, 1
      %v801 = vsel %vm735, %v799, %v800
      %v802 = vrot.slane %v441, 1
      %v803 = vrot.slane %v253, 1
      %v804 = vsel %vm735, %v802, %v803
      %v805 = vrot.slane %v442, 1
      %v806 = vrot.slane %v254, 1
      %v807 = vsel %vm735, %v805, %v806
      %v808 = vrot.slane %v443, 1
      %v809 = vsel %vm735, %v797, %v808
      %v810 = vrot.slane %v444, 1
      %v811 = vsel %vm735, %v800, %v810
      %v812 = vrot.slane %v445, 1
      %v813 = vsel %vm735, %v803, %v812
      %v814 = vrot.slane %v446, 1
      %v815 = vsel %vm735, %v806, %v814
      %v816 = vrot.slane %v447, 1
      %v817 = vrot.slane %v259, 1
      %v818 = vsel %vm735, %v816, %v817
      %v819 = vrot.slane %v448, 1
      %v820 = vrot.slane %v260, 1
      %v821 = vsel %vm735, %v819, %v820
      %v822 = vrot.slane %v449, 1
      %v823 = vrot.slane %v261, 1
      %v824 = vsel %vm735, %v822, %v823
      %v825 = vrot.slane %v450, 1
      %v826 = vrot.slane %v262, 1
      %v827 = vsel %vm735, %v825, %v826
      %v828 = vrot.slane %v451, 1
      %v829 = vsel %vm735, %v817, %v828
      %v830 = vrot.slane %v452, 1
      %v831 = vsel %vm735, %v820, %v830
      %v832 = vrot.slane %v453, 1
      %v833 = vsel %vm735, %v823, %v832
      %v834 = vrot.slane %v454, 1
      %v835 = vsel %vm735, %v826, %v834
      %v836 = vrot.slane %v455, 1
      %v837 = vrot.slane %v267, 1
      %v838 = vsel %vm735, %v836, %v837
      %v839 = vrot.slane %v456, 1
      %v840 = vrot.slane %v268, 1
      %v841 = vsel %vm735, %v839, %v840
      %v842 = vrot.slane %v457, 1
      %v843 = vrot.slane %v269, 1
      %v844 = vsel %vm735, %v842, %v843
      %v845 = vrot.slane %v458, 1
      %v846 = vrot.slane %v270, 1
      %v847 = vsel %vm735, %v845, %v846
      %v848 = vrot.slane %v459, 1
      %v849 = vsel %vm735, %v837, %v848
      %v850 = vrot.slane %v460, 1
      %v851 = vsel %vm735, %v840, %v850
      %v852 = vrot.slane %v461, 1
      %v853 = vsel %vm735, %v843, %v852
      %v854 = vrot.slane %v462, 1
      %v855 = vsel %vm735, %v846, %v854
      %v856 = vrot.slane %v463, 1
      %v857 = vrot.slane %v275, 1
      %v858 = vsel %vm735, %v856, %v857
      %v859 = vrot.slane %v464, 1
      %v860 = vrot.slane %v276, 1
      %v861 = vsel %vm735, %v859, %v860
      %v862 = vrot.slane %v465, 1
      %v863 = vrot.slane %v277, 1
      %v864 = vsel %vm735, %v862, %v863
      %v865 = vrot.slane %v466, 1
      %v866 = vrot.slane %v278, 1
      %v867 = vsel %vm735, %v865, %v866
      %v868 = vrot.slane %v467, 1
      %v869 = vsel %vm735, %v857, %v868
      %v870 = vrot.slane %v468, 1
      %v871 = vsel %vm735, %v860, %v870
      %v872 = vrot.slane %v469, 1
      %v873 = vsel %vm735, %v863, %v872
      %v874 = vrot.slane %v470, 1
      %v875 = vsel %vm735, %v866, %v874
      %v876 = vrot.slane %v471, 1
      %v877 = vrot.slane %v283, 1
      %v878 = vsel %vm735, %v876, %v877
      %v879 = vrot.slane %v472, 1
      %v880 = vrot.slane %v284, 1
      %v881 = vsel %vm735, %v879, %v880
      %v882 = vrot.slane %v473, 1
      %v883 = vrot.slane %v285, 1
      %v884 = vsel %vm735, %v882, %v883
      %v885 = vrot.slane %v474, 1
      %v886 = vrot.slane %v286, 1
      %v887 = vsel %vm735, %v885, %v886
      %v888 = vrot.slane %v475, 1
      %v889 = vsel %vm735, %v877, %v888
      %v890 = vrot.slane %v476, 1
      %v891 = vsel %vm735, %v880, %v890
      %v892 = vrot.slane %v477, 1
      %v893 = vsel %vm735, %v883, %v892
      %v894 = vrot.slane %v478, 1
      %v895 = vsel %vm735, %v886, %v894
      %v896 = vrot.slane %v479, 1
      %v897 = vrot.slane %v291, 1
      %v898 = vsel %vm735, %v896, %v897
      %v899 = vrot.slane %v480, 1
      %v900 = vrot.slane %v292, 1
      %v901 = vsel %vm735, %v899, %v900
      %v902 = vrot.slane %v481, 1
      %v903 = vrot.slane %v293, 1
      %v904 = vsel %vm735, %v902, %v903
      %v905 = vrot.slane %v482, 1
      %v906 = vrot.slane %v294, 1
      %v907 = vsel %vm735, %v905, %v906
      %v908 = vrot.slane %v483, 1
      %v909 = vsel %vm735, %v897, %v908
      %v910 = vrot.slane %v484, 1
      %v911 = vsel %vm735, %v900, %v910
      %v912 = vrot.slane %v485, 1
      %v913 = vsel %vm735, %v903, %v912
      %v914 = vrot.slane %v486, 1
      %v915 = vsel %vm735, %v906, %v914
      %v916 = vrot.slane %v487, 1
      %v917 = vrot.slane %v299, 1
      %v918 = vsel %vm735, %v916, %v917
      %v919 = vrot.slane %v488, 1
      %v920 = vrot.slane %v300, 1
      %v921 = vsel %vm735, %v919, %v920
      %v922 = vrot.slane %v489, 1
      %v923 = vrot.slane %v301, 1
      %v924 = vsel %vm735, %v922, %v923
      %v925 = vrot.slane %v490, 1
      %v926 = vrot.slane %v302, 1
      %v927 = vsel %vm735, %v925, %v926
      %v928 = vrot.slane %v491, 1
      %v929 = vsel %vm735, %v917, %v928
      %v930 = vrot.slane %v492, 1
      %v931 = vsel %vm735, %v920, %v930
      %v932 = vrot.slane %v493, 1
      %v933 = vsel %vm735, %v923, %v932
      %v934 = vrot.slane %v494, 1
      %v935 = vsel %vm735, %v926, %v934
      %v936 = vrot.slane %v495, 1
      %v937 = vrot.slane %v307, 1
      %v938 = vsel %vm735, %v936, %v937
      %v939 = vrot.slane %v496, 1
      %v940 = vrot.slane %v308, 1
      %v941 = vsel %vm735, %v939, %v940
      %v942 = vrot.slane %v497, 1
      %v943 = vrot.slane %v309, 1
      %v944 = vsel %vm735, %v942, %v943
      %v945 = vrot.slane %v498, 1
      %v946 = vrot.slane %v310, 1
      %v947 = vsel %vm735, %v945, %v946
      %v948 = vrot.slane %v499, 1
      %v949 = vsel %vm735, %v937, %v948
      %v950 = vrot.slane %v500, 1
      %v951 = vsel %vm735, %v940, %v950
      %v952 = vrot.slane %v501, 1
      %v953 = vsel %vm735, %v943, %v952
      %v954 = vrot.slane %v502, 1
      %v955 = vsel %vm735, %v946, %v954
      %v956 = vrot.slane %v503, 1
      %v957 = vrot.slane %v315, 1
      %v958 = vsel %vm735, %v956, %v957
      %v959 = vrot.slane %v504, 1
      %v960 = vrot.slane %v316, 1
      %v961 = vsel %vm735, %v959, %v960
      %v962 = vrot.slane %v505, 1
      %v963 = vrot.slane %v317, 1
      %v964 = vsel %vm735, %v962, %v963
      %v965 = vrot.slane %v506, 1
      %v966 = vrot.slane %v318, 1
      %v967 = vsel %vm735, %v965, %v966
      %v968 = vrot.slane %v507, 1
      %v969 = vsel %vm735, %v957, %v968
      %v970 = vrot.slane %v508, 1
      %v971 = vsel %vm735, %v960, %v970
      %v972 = vrot.slane %v509, 1
      %v973 = vsel %vm735, %v963, %v972
      %v974 = vrot.slane %v510, 1
      %v975 = vsel %vm735, %v966, %v974
      %v976 = vrot.slane %v511, 1
      %v977 = vrot.slane %v323, 1
      %v978 = vsel %vm735, %v976, %v977
      %v979 = vrot.slane %v512, 1
      %v980 = vrot.slane %v324, 1
      %v981 = vsel %vm735, %v979, %v980
      %v982 = vrot.slane %v513, 1
      %v983 = vrot.slane %v325, 1
      %v984 = vsel %vm735, %v982, %v983
      %v985 = vrot.slane %v514, 1
      %v986 = vrot.slane %v326, 1
      %v987 = vsel %vm735, %v985, %v986
      %v988 = vrot.slane %v515, 1
      %v989 = vsel %vm735, %v977, %v988
      %v990 = vrot.slane %v516, 1
      %v991 = vsel %vm735, %v980, %v990
      %v992 = vrot.slane %v517, 1
      %v993 = vsel %vm735, %v983, %v992
      %v994 = vrot.slane %v518, 1
      %v995 = vsel %vm735, %v986, %v994
      %v996 = vrot.slane %v519, 1
      %v997 = vrot.slane %v331, 1
      %v998 = vsel %vm735, %v996, %v997
      %v999 = vrot.slane %v520, 1
      %v1000 = vrot.slane %v332, 1
      %v1001 = vsel %vm735, %v999, %v1000
      %v1002 = vrot.slane %v521, 1
      %v1003 = vrot.slane %v333, 1
      %v1004 = vsel %vm735, %v1002, %v1003
      %v1005 = vrot.slane %v522, 1
      %v1006 = vrot.slane %v334, 1
      %v1007 = vsel %vm735, %v1005, %v1006
      %v1008 = vrot.slane %v523, 1
      %v1009 = vsel %vm735, %v997, %v1008
      %v1010 = vrot.slane %v524, 1
      %v1011 = vsel %vm735, %v1000, %v1010
      %v1012 = vrot.slane %v525, 1
      %v1013 = vsel %vm735, %v1003, %v1012
      %v1014 = vrot.slane %v526, 1
      %v1015 = vsel %vm735, %v1006, %v1014
      %v1016 = vrot.slane %v527, 1
      %v1017 = vrot.slane %v339, 1
      %v1018 = vsel %vm735, %v1016, %v1017
      %v1019 = vrot.slane %v528, 1
      %v1020 = vrot.slane %v340, 1
      %v1021 = vsel %vm735, %v1019, %v1020
      %v1022 = vrot.slane %v529, 1
      %v1023 = vrot.slane %v341, 1
      %v1024 = vsel %vm735, %v1022, %v1023
      %v1025 = vrot.slane %v530, 1
      %v1026 = vrot.slane %v342, 1
      %v1027 = vsel %vm735, %v1025, %v1026
      %v1028 = vrot.slane %v531, 1
      %v1029 = vsel %vm735, %v1017, %v1028
      %v1030 = vrot.slane %v532, 1
      %v1031 = vsel %vm735, %v1020, %v1030
      %v1032 = vrot.slane %v533, 1
      %v1033 = vsel %vm735, %v1023, %v1032
      %v1034 = vrot.slane %v534, 1
      %v1035 = vsel %vm735, %v1026, %v1034
      %v1036 = vrot.slane %v535, 1
      %v1037 = vrot.slane %v347, 1
      %v1038 = vsel %vm735, %v1036, %v1037
      %v1039 = vrot.slane %v536, 1
      %v1040 = vrot.slane %v348, 1
      %v1041 = vsel %vm735, %v1039, %v1040
      %v1042 = vrot.slane %v537, 1
      %v1043 = vrot.slane %v349, 1
      %v1044 = vsel %vm735, %v1042, %v1043
      %v1045 = vrot.slane %v538, 1
      %v1046 = vrot.slane %v350, 1
      %v1047 = vsel %vm735, %v1045, %v1046
      %v1048 = vrot.slane %v539, 1
      %v1049 = vsel %vm735, %v1037, %v1048
      %v1050 = vrot.slane %v540, 1
      %v1051 = vsel %vm735, %v1040, %v1050
      %v1052 = vrot.slane %v541, 1
      %v1053 = vsel %vm735, %v1043, %v1052
      %v1054 = vrot.slane %v542, 1
      %v1055 = vsel %vm735, %v1046, %v1054
      %s1184 = scalar_lea.vmem %s1, 512
      %v1185 = vld [vmem:[%s1184] sm:$0xff]
      %v1186 = vld [vmem:[%s1184 + $0x8] sm:$0xff]
      %v1187 = vld [vmem:[%s1184 + $0x10] sm:$0xff]
      %v1188 = vld [vmem:[%s1184 + $0x18] sm:$0xff]
      %v1189 = vld [vmem:[%s1184 + $0x20] sm:$0xff]
      %v1190 = vld [vmem:[%s1184 + $0x28] sm:$0xff]
      %v1191 = vld [vmem:[%s1184 + $0x30] sm:$0xff]
      %v1192 = vld [vmem:[%s1184 + $0x38] sm:$0xff]
      %v1193 = vld [vmem:[%s1184 + $0x40] sm:$0xff]
      %v1194 = vld [vmem:[%s1184 + $0x48] sm:$0xff]
      %v1195 = vld [vmem:[%s1184 + $0x50] sm:$0xff]
      %v1196 = vld [vmem:[%s1184 + $0x58] sm:$0xff]
      %v1197 = vld [vmem:[%s1184 + $0x60] sm:$0xff]
      %v1198 = vld [vmem:[%s1184 + $0x68] sm:$0xff]
      %v1199 = vld [vmem:[%s1184 + $0x70] sm:$0xff]
      %v1200 = vld [vmem:[%s1184 + $0x78] sm:$0xff]
      %v1201 = vld [vmem:[%s1184 + $0x80] sm:$0xff]
      %v1202 = vld [vmem:[%s1184 + $0x88] sm:$0xff]
      %v1203 = vld [vmem:[%s1184 + $0x90] sm:$0xff]
      %v1204 = vld [vmem:[%s1184 + $0x98] sm:$0xff]
      %v1205 = vld [vmem:[%s1184 + $0xa0] sm:$0xff]
      %v1206 = vld [vmem:[%s1184 + $0xa8] sm:$0xff]
      %v1207 = vld [vmem:[%s1184 + $0xb0] sm:$0xff]
      %v1208 = vld [vmem:[%s1184 + $0xb8] sm:$0xff]
      %v1209 = vld [vmem:[%s1184 + $0xc0] sm:$0xff]
      %v1210 = vld [vmem:[%s1184 + $0xc8] sm:$0xff]
      %v1211 = vld [vmem:[%s1184 + $0xd0] sm:$0xff]
      %v1212 = vld [vmem:[%s1184 + $0xd8] sm:$0xff]
      %v1213 = vld [vmem:[%s1184 + $0xe0] sm:$0xff]
      %v1214 = vld [vmem:[%s1184 + $0xe8] sm:$0xff]
      %v1215 = vld [vmem:[%s1184 + $0xf0] sm:$0xff]
      %v1216 = vld [vmem:[%s1184 + $0xf8] sm:$0xff]
      %v1217 = vld [vmem:[%s1184 + $0x100] sm:$0xff]
      %v1218 = vld [vmem:[%s1184 + $0x108] sm:$0xff]
      %v1219 = vld [vmem:[%s1184 + $0x110] sm:$0xff]
      %v1220 = vld [vmem:[%s1184 + $0x118] sm:$0xff]
      %v1221 = vld [vmem:[%s1184 + $0x120] sm:$0xff]
      %v1222 = vld [vmem:[%s1184 + $0x128] sm:$0xff]
      %v1223 = vld [vmem:[%s1184 + $0x130] sm:$0xff]
      %v1224 = vld [vmem:[%s1184 + $0x138] sm:$0xff]
      %v1225 = vld [vmem:[%s1184 + $0x140] sm:$0xff]
      %v1226 = vld [vmem:[%s1184 + $0x148] sm:$0xff]
      %v1227 = vld [vmem:[%s1184 + $0x150] sm:$0xff]
      %v1228 = vld [vmem:[%s1184 + $0x158] sm:$0xff]
      %v1229 = vld [vmem:[%s1184 + $0x160] sm:$0xff]
      %v1230 = vld [vmem:[%s1184 + $0x168] sm:$0xff]
      %v1231 = vld [vmem:[%s1184 + $0x170] sm:$0xff]
      %v1232 = vld [vmem:[%s1184 + $0x178] sm:$0xff]
      %v1233 = vld [vmem:[%s1184 + $0x180] sm:$0xff]
      %v1234 = vld [vmem:[%s1184 + $0x188] sm:$0xff]
      %v1235 = vld [vmem:[%s1184 + $0x190] sm:$0xff]
      %v1236 = vld [vmem:[%s1184 + $0x198] sm:$0xff]
      %v1237 = vld [vmem:[%s1184 + $0x1a0] sm:$0xff]
      %v1238 = vld [vmem:[%s1184 + $0x1a8] sm:$0xff]
      %v1239 = vld [vmem:[%s1184 + $0x1b0] sm:$0xff]
      %v1240 = vld [vmem:[%s1184 + $0x1b8] sm:$0xff]
      %v1241 = vld [vmem:[%s1184 + $0x1c0] sm:$0xff]
      %v1242 = vld [vmem:[%s1184 + $0x1c8] sm:$0xff]
      %v1243 = vld [vmem:[%s1184 + $0x1d0] sm:$0xff]
      %v1244 = vld [vmem:[%s1184 + $0x1d8] sm:$0xff]
      %v1245 = vld [vmem:[%s1184 + $0x1e0] sm:$0xff]
      %v1246 = vld [vmem:[%s1184 + $0x1e8] sm:$0xff]
      %v1247 = vld [vmem:[%s1184 + $0x1f0] sm:$0xff]
      %v1248 = vld [vmem:[%s1184 + $0x1f8] sm:$0xff]
      %1249 = vmatprep.subr.mxu0 0.0
      %1250 = vmatpush1.msra.mxu0 %v1185
      %1251 = vmatprep.subr.mxu0 0.0
      %1252 = vmatpush1.msra.mxu0 %v1186
      %1253 = vmatprep.subr.mxu0 0.0
      %1254 = vmatpush1.msra.mxu0 %v1187
      %1255 = vmatprep.subr.mxu0 0.0
      %1256 = vmatpush1.msra.mxu0 %v1188
      %1257 = vmatprep.subr.mxu0 0.0
      %1258 = vmatpush1.msra.mxu0 %v1189
      %1259 = vmatprep.subr.mxu0 0.0
      %1260 = vmatpush1.msra.mxu0 %v1190
      %1261 = vmatprep.subr.mxu0 0.0
      %1262 = vmatpush1.msra.mxu0 %v1191
      %1263 = vmatprep.subr.mxu0 0.0
      %1264 = vmatpush1.msra.mxu0 %v1192
      %1265 = vmatprep.subr.mxu0 0.0
      %1266 = vmatpush1.msra.mxu0 %v1193
      %1267 = vmatprep.subr.mxu0 0.0
      %1268 = vmatpush1.msra.mxu0 %v1194
      %1269 = vmatprep.subr.mxu0 0.0
      %1270 = vmatpush1.msra.mxu0 %v1195
      %1271 = vmatprep.subr.mxu0 0.0
      %1272 = vmatpush1.msra.mxu0 %v1196
      %1273 = vmatprep.subr.mxu0 0.0
      %1274 = vmatpush1.msra.mxu0 %v1197
      %1275 = vmatprep.subr.mxu0 0.0
      %1276 = vmatpush1.msra.mxu0 %v1198
      %1277 = vmatprep.subr.mxu0 0.0
      %1278 = vmatpush1.msra.mxu0 %v1199
      %1279 = vmatprep.subr.mxu0 0.0
      %1280 = vmatpush1.msra.mxu0 %v1200
      %1281 = vmatprep.subr.mxu0 0.0
      %1282 = vmatpush1.msra.mxu0 %v1201
      %1283 = vmatprep.subr.mxu0 0.0
      %1284 = vmatpush1.msra.mxu0 %v1202
      %1285 = vmatprep.subr.mxu0 0.0
      %1286 = vmatpush1.msra.mxu0 %v1203
      %1287 = vmatprep.subr.mxu0 0.0
      %1288 = vmatpush1.msra.mxu0 %v1204
      %1289 = vmatprep.subr.mxu0 0.0
      %1290 = vmatpush1.msra.mxu0 %v1205
      %1291 = vmatprep.subr.mxu0 0.0
      %1292 = vmatpush1.msra.mxu0 %v1206
      %1293 = vmatprep.subr.mxu0 0.0
      %1294 = vmatpush1.msra.mxu0 %v1207
      %1295 = vmatprep.subr.mxu0 0.0
      %1296 = vmatpush1.msra.mxu0 %v1208
      %1297 = vmatprep.subr.mxu0 0.0
      %1298 = vmatpush1.msra.mxu0 %v1209
      %1299 = vmatprep.subr.mxu0 0.0
      %1300 = vmatpush1.msra.mxu0 %v1210
      %1301 = vmatprep.subr.mxu0 0.0
      %1302 = vmatpush1.msra.mxu0 %v1211
      %1303 = vmatprep.subr.mxu0 0.0
      %1304 = vmatpush1.msra.mxu0 %v1212
      %1305 = vmatprep.subr.mxu0 0.0
      %1306 = vmatpush1.msra.mxu0 %v1213
      %1307 = vmatprep.subr.mxu0 0.0
      %1308 = vmatpush1.msra.mxu0 %v1214
      %1309 = vmatprep.subr.mxu0 0.0
      %1310 = vmatpush1.msra.mxu0 %v1215
      %1311 = vmatprep.subr.mxu0 0.0
      %1312 = vmatpush1.msra.mxu0 %v1216
      %1313 = vmatprep.mubr.f32.mxu0 %v741
      %1314 = vmatmul.mubr.f32.gmra.mrb[0].mxu0 %v738
      %v1315 = vpop.f32.mrb[0].mxu0
      %v1316 = vadd.f32 0.0, %v1315
      %v1317 = vpop.f32.mrb[0].mxu0
      %1318 = vmatprep.mubr.f32.mxu0 %v751
      %1319 = vmatmul.mubr.f32.gmra.mrb[0].mxu0 %v749
      %v1320 = vpop.f32.mrb[0].mxu0
      %v1321 = vadd.f32 0.0, %v1320
      %v1322 = vpop.f32.mrb[0].mxu0
      %1323 = vmatprep.mubr.f32.mxu0 %v761
      %1324 = vmatmul.mubr.f32.gmra.mrb[0].mxu0 %v758
      %v1325 = vpop.f32.mrb[0].mxu0
      %v1326 = vadd.f32 0.0, %v1325
      %v1327 = vpop.f32.mrb[0].mxu0
      %1328 = vmatprep.mubr.f32.mxu0 %v771
      %1329 = vmatmul.mubr.f32.gmra.mrb[0].mxu0 %v769
      %v1330 = vpop.f32.mrb[0].mxu0
      %v1331 = vadd.f32 0.0, %v1330
      %v1332 = vpop.f32.mrb[0].mxu0
      %1333 = vmatprep.mubr.f32.mxu0 %v781
      %1334 = vmatmul.mubr.f32.gmra.mrb[0].mxu0 %v778
      %v1335 = vpop.f32.mrb[0].mxu0
      %v1336 = vadd.f32 0.0, %v1335
      %v1337 = vpop.f32.mrb[0].mxu0
      %1338 = vmatprep.mubr.f32.mxu0 %v791
      %1339 = vmatmul.mubr.f32.gmra.mrb[0].mxu0 %v789
      %v1340 = vpop.f32.mrb[0].mxu0
      %v1341 = vadd.f32 0.0, %v1340
      %v1342 = vpop.f32.mrb[0].mxu0
      %1343 = vmatprep.mubr.f32.mxu0 %v801
      %1344 = vmatmul.mubr.f32.gmra.mrb[0].mxu0 %v798
      %v1345 = vpop.f32.mrb[0].mxu0
      %v1346 = vadd.f32 0.0, %v1345
      %v1347 = vpop.f32.mrb[0].mxu0
      %1348 = vmatprep.mubr.f32.mxu0 %v811
      %1349 = vmatmul.mubr.f32.gmra.mrb[0].mxu0 %v809
      %v1350 = vpop.f32.mrb[0].mxu0
      %v1351 = vadd.f32 0.0, %v1350
      %v1352 = vpop.f32.mrb[0].mxu0
      %1353 = vmatprep.mubr.f32.mxu0 %v821
      %1354 = vmatmul.mubr.f32.gmra.mrb[0].mxu0 %v818
      %v1355 = vpop.f32.mrb[0].mxu0
      %v1356 = vadd.f32 0.0, %v1355
      %v1357 = vpop.f32.mrb[0].mxu0
      %1358 = vmatprep.mubr.f32.mxu0 %v831
      %1359 = vmatmul.mubr.f32.gmra.mrb[0].mxu0 %v829
      %v1360 = vpop.f32.mrb[0].mxu0
      %v1361 = vadd.f32 0.0, %v1360
      %v1362 = vpop.f32.mrb[0].mxu0
      %1363 = vmatprep.mubr.f32.mxu0 %v841
      %1364 = vmatmul.mubr.f32.gmra.mrb[0].mxu0 %v838
      %v1365 = vpop.f32.mrb[0].mxu0
      %v1366 = vadd.f32 0.0, %v1365
      %v1367 = vpop.f32.mrb[0].mxu0
      %1368 = vmatprep.mubr.f32.mxu0 %v851
      %1369 = vmatmul.mubr.f32.gmra.mrb[0].mxu0 %v849
      %v1370 = vpop.f32.mrb[0].mxu0
      %v1371 = vadd.f32 0.0, %v1370
      %v1372 = vpop.f32.mrb[0].mxu0
      %1373 = vmatprep.mubr.f32.mxu0 %v861
      %1374 = vmatmul.mubr.f32.gmra.mrb[0].mxu0 %v858
      %v1375 = vpop.f32.mrb[0].mxu0
      %v1376 = vadd.f32 0.0, %v1375
      %v1377 = vpop.f32.mrb[0].mxu0
      %1378 = vmatprep.mubr.f32.mxu0 %v871
      %1379 = vmatmul.mubr.f32.gmra.mrb[0].mxu0 %v869
      %v1380 = vpop.f32.mrb[0].mxu0
      %v1381 = vadd.f32 0.0, %v1380
      %v1382 = vpop.f32.mrb[0].mxu0
      %1383 = vmatprep.mubr.f32.mxu0 %v881
      %1384 = vmatmul.mubr.f32.gmra.mrb[0].mxu0 %v878
      %v1385 = vpop.f32.mrb[0].mxu0
      %v1386 = vadd.f32 0.0, %v1385
      %v1387 = vpop.f32.mrb[0].mxu0
      %1388 = vmatprep.mubr.f32.mxu0 %v891
      %1389 = vmatmul.mubr.f32.gmra.mrb[0].mxu0 %v889
      %v1390 = vpop.f32.mrb[0].mxu0
      %v1391 = vadd.f32 0.0, %v1390
      %v1392 = vpop.f32.mrb[0].mxu0
      %1393 = vmatprep.mubr.f32.mxu0 %v901
      %1394 = vmatmul.mubr.f32.gmra.mrb[0].mxu0 %v898
      %v1395 = vpop.f32.mrb[0].mxu0
      %v1396 = vadd.f32 0.0, %v1395
      %v1397 = vpop.f32.mrb[0].mxu0
      %1398 = vmatprep.mubr.f32.mxu0 %v911
      %1399 = vmatmul.mubr.f32.gmra.mrb[0].mxu0 %v909
      %v1400 = vpop.f32.mrb[0].mxu0
      %v1401 = vadd.f32 0.0, %v1400
      %v1402 = vpop.f32.mrb[0].mxu0
      %1403 = vmatprep.mubr.f32.mxu0 %v921
      %1404 = vmatmul.mubr.f32.gmra.mrb[0].mxu0 %v918
      %v1405 = vpop.f32.mrb[0].mxu0
      %v1406 = vadd.f32 0.0, %v1405
      %v1407 = vpop.f32.mrb[0].mxu0
      %1408 = vmatprep.mubr.f32.mxu0 %v931
      %1409 = vmatmul.mubr.f32.gmra.mrb[0].mxu0 %v929
      %v1410 = vpop.f32.mrb[0].mxu0
      %v1411 = vadd.f32 0.0, %v1410
      %v1412 = vpop.f32.mrb[0].mxu0
      %1413 = vmatprep.mubr.f32.mxu0 %v941
      %1414 = vmatmul.mubr.f32.gmra.mrb[0].mxu0 %v938
      %v1415 = vpop.f32.mrb[0].mxu0
      %v1416 = vadd.f32 0.0, %v1415
      %v1417 = vpop.f32.mrb[0].mxu0
      %1418 = vmatprep.mubr.f32.mxu0 %v951
      %1419 = vmatmul.mubr.f32.gmra.mrb[0].mxu0 %v949
      %v1420 = vpop.f32.mrb[0].mxu0
      %v1421 = vadd.f32 0.0, %v1420
      %v1422 = vpop.f32.mrb[0].mxu0
      %1423 = vmatprep.mubr.f32.mxu0 %v961
      %1424 = vmatmul.mubr.f32.gmra.mrb[0].mxu0 %v958
      %v1425 = vpop.f32.mrb[0].mxu0
      %v1426 = vadd.f32 0.0, %v1425
      %v1427 = vpop.f32.mrb[0].mxu0
      %1428 = vmatprep.mubr.f32.mxu0 %v971
      %1429 = vmatmul.mubr.f32.gmra.mrb[0].mxu0 %v969
      %v1430 = vpop.f32.mrb[0].mxu0
      %v1431 = vadd.f32 0.0, %v1430
      %v1432 = vpop.f32.mrb[0].mxu0
      %1433 = vmatprep.mubr.f32.mxu0 %v981
      %1434 = vmatmul.mubr.f32.gmra.mrb[0].mxu0 %v978
      %v1435 = vpop.f32.mrb[0].mxu0
      %v1436 = vadd.f32 0.0, %v1435
      %v1437 = vpop.f32.mrb[0].mxu0
      %1438 = vmatprep.mubr.f32.mxu0 %v991
      %1439 = vmatmul.mubr.f32.gmra.mrb[0].mxu0 %v989
      %v1440 = vpop.f32.mrb[0].mxu0
      %v1441 = vadd.f32 0.0, %v1440
      %v1442 = vpop.f32.mrb[0].mxu0
      %1443 = vmatprep.mubr.f32.mxu0 %v1001
      %1444 = vmatmul.mubr.f32.gmra.mrb[0].mxu0 %v998
      %v1445 = vpop.f32.mrb[0].mxu0
      %v1446 = vadd.f32 0.0, %v1445
      %v1447 = vpop.f32.mrb[0].mxu0
      %1448 = vmatprep.mubr.f32.mxu0 %v1011
      %1449 = vmatmul.mubr.f32.gmra.mrb[0].mxu0 %v1009
      %v1450 = vpop.f32.mrb[0].mxu0
      %v1451 = vadd.f32 0.0, %v1450
      %v1452 = vpop.f32.mrb[0].mxu0
      %1453 = vmatprep.mubr.f32.mxu0 %v1021
      %1454 = vmatmul.mubr.f32.gmra.mrb[0].mxu0 %v1018
      %v1455 = vpop.f32.mrb[0].mxu0
      %v1456 = vadd.f32 0.0, %v1455
      %v1457 = vpop.f32.mrb[0].mxu0
      %1458 = vmatprep.mubr.f32.mxu0 %v1031
      %1459 = vmatmul.mubr.f32.gmra.mrb[0].mxu0 %v1029
      %v1460 = vpop.f32.mrb[0].mxu0
      %v1461 = vadd.f32 0.0, %v1460
      %v1462 = vpop.f32.mrb[0].mxu0
      %1463 = vmatprep.mubr.f32.mxu0 %v1041
      %1464 = vmatmul.mubr.f32.gmra.mrb[0].mxu0 %v1038
      %v1465 = vpop.f32.mrb[0].mxu0
      %v1466 = vadd.f32 0.0, %v1465
      %v1467 = vpop.f32.mrb[0].mxu0
      %1468 = vmatprep.mubr.f32.mxu0 %v1051
      %1469 = vmatmul.mubr.f32.gmra.mrb[0].mxu0 %v1049
      %v1470 = vpop.f32.mrb[0].mxu0
      %v1471 = vadd.f32 0.0, %v1470
      %v1472 = vpop.f32.mrb[0].mxu0
      %1473 = vdwg.mxu0
      %1474 = vmatprep.subr.mxu0 0.0
      %1475 = vmatpush1.msra.mxu0 %v1217
      %1476 = vmatprep.subr.mxu0 0.0
      %1477 = vmatpush1.msra.mxu0 %v1218
      %1478 = vmatprep.subr.mxu0 0.0
      %1479 = vmatpush1.msra.mxu0 %v1219
      %1480 = vmatprep.subr.mxu0 0.0
      %1481 = vmatpush1.msra.mxu0 %v1220
      %1482 = vmatprep.subr.mxu0 0.0
      %1483 = vmatpush1.msra.mxu0 %v1221
      %1484 = vmatprep.subr.mxu0 0.0
      %1485 = vmatpush1.msra.mxu0 %v1222
      %1486 = vmatprep.subr.mxu0 0.0
      %1487 = vmatpush1.msra.mxu0 %v1223
      %1488 = vmatprep.subr.mxu0 0.0
      %1489 = vmatpush1.msra.mxu0 %v1224
      %1490 = vmatprep.subr.mxu0 0.0
      %1491 = vmatpush1.msra.mxu0 %v1225
      %1492 = vmatprep.subr.mxu0 0.0
      %1493 = vmatpush1.msra.mxu0 %v1226
      %1494 = vmatprep.subr.mxu0 0.0
      %1495 = vmatpush1.msra.mxu0 %v1227
      %1496 = vmatprep.subr.mxu0 0.0
      %1497 = vmatpush1.msra.mxu0 %v1228
      %1498 = vmatprep.subr.mxu0 0.0
      %1499 = vmatpush1.msra.mxu0 %v1229
      %1500 = vmatprep.subr.mxu0 0.0
      %1501 = vmatpush1.msra.mxu0 %v1230
      %1502 = vmatprep.subr.mxu0 0.0
      %1503 = vmatpush1.msra.mxu0 %v1231
      %1504 = vmatprep.subr.mxu0 0.0
      %1505 = vmatpush1.msra.mxu0 %v1232
      %1506 = vmatprep.subr.mxu0 0.0
      %1507 = vmatpush1.msra.mxu0 %v1233
      %1508 = vmatprep.subr.mxu0 0.0
      %1509 = vmatpush1.msra.mxu0 %v1234
      %1510 = vmatprep.subr.mxu0 0.0
      %1511 = vmatpush1.msra.mxu0 %v1235
      %1512 = vmatprep.subr.mxu0 0.0
      %1513 = vmatpush1.msra.mxu0 %v1236
      %1514 = vmatprep.subr.mxu0 0.0
      %1515 = vmatpush1.msra.mxu0 %v1237
      %1516 = vmatprep.subr.mxu0 0.0
      %1517 = vmatpush1.msra.mxu0 %v1238
      %1518 = vmatprep.subr.mxu0 0.0
      %1519 = vmatpush1.msra.mxu0 %v1239
      %1520 = vmatprep.subr.mxu0 0.0
      %1521 = vmatpush1.msra.mxu0 %v1240
      %1522 = vmatprep.subr.mxu0 0.0
      %1523 = vmatpush1.msra.mxu0 %v1241
      %1524 = vmatprep.subr.mxu0 0.0
      %1525 = vmatpush1.msra.mxu0 %v1242
      %1526 = vmatprep.subr.mxu0 0.0
      %1527 = vmatpush1.msra.mxu0 %v1243
      %1528 = vmatprep.subr.mxu0 0.0
      %1529 = vmatpush1.msra.mxu0 %v1244
      %1530 = vmatprep.subr.mxu0 0.0
      %1531 = vmatpush1.msra.mxu0 %v1245
      %1532 = vmatprep.subr.mxu0 0.0
      %1533 = vmatpush1.msra.mxu0 %v1246
      %1534 = vmatprep.subr.mxu0 0.0
      %1535 = vmatpush1.msra.mxu0 %v1247
      %1536 = vmatprep.subr.mxu0 0.0
      %1537 = vmatpush1.msra.mxu0 %v1248
      %1538 = vmatprep.mubr.f32.mxu0 %v747
      %1539 = vmatmul.mubr.f32.gmra.mrb[0].mxu0 %v744
      %v1540 = vpop.f32.mrb[0].mxu0
      %v1541 = vadd.f32 %v1316, %v1540
      %v1542 = vpop.f32.mrb[0].mxu0
      %1543 = vmatprep.mubr.f32.mxu0 %v755
      %1544 = vmatmul.mubr.f32.gmra.mrb[0].mxu0 %v753
      %v1545 = vpop.f32.mrb[0].mxu0
      %v1546 = vadd.f32 %v1321, %v1545
      %v1547 = vpop.f32.mrb[0].mxu0
      %1548 = vmatprep.mubr.f32.mxu0 %v767
      %1549 = vmatmul.mubr.f32.gmra.mrb[0].mxu0 %v764
      %v1550 = vpop.f32.mrb[0].mxu0
      %v1551 = vadd.f32 %v1326, %v1550
      %v1552 = vpop.f32.mrb[0].mxu0
      %1553 = vmatprep.mubr.f32.mxu0 %v775
      %1554 = vmatmul.mubr.f32.gmra.mrb[0].mxu0 %v773
      %v1555 = vpop.f32.mrb[0].mxu0
      %v1556 = vadd.f32 %v1331, %v1555
      %v1557 = vpop.f32.mrb[0].mxu0
      %1558 = vmatprep.mubr.f32.mxu0 %v787
      %1559 = vmatmul.mubr.f32.gmra.mrb[0].mxu0 %v784
      %v1560 = vpop.f32.mrb[0].mxu0
      %v1561 = vadd.f32 %v1336, %v1560
      %v1562 = vpop.f32.mrb[0].mxu0
      %1563 = vmatprep.mubr.f32.mxu0 %v795
      %1564 = vmatmul.mubr.f32.gmra.mrb[0].mxu0 %v793
      %v1565 = vpop.f32.mrb[0].mxu0
      %v1566 = vadd.f32 %v1341, %v1565
      %v1567 = vpop.f32.mrb[0].mxu0
      %1568 = vmatprep.mubr.f32.mxu0 %v807
      %1569 = vmatmul.mubr.f32.gmra.mrb[0].mxu0 %v804
      %v1570 = vpop.f32.mrb[0].mxu0
      %v1571 = vadd.f32 %v1346, %v1570
      %v1572 = vpop.f32.mrb[0].mxu0
      %1573 = vmatprep.mubr.f32.mxu0 %v815
      %1574 = vmatmul.mubr.f32.gmra.mrb[0].mxu0 %v813
      %v1575 = vpop.f32.mrb[0].mxu0
      %v1576 = vadd.f32 %v1351, %v1575
      %v1577 = vpop.f32.mrb[0].mxu0
      %1578 = vmatprep.mubr.f32.mxu0 %v827
      %1579 = vmatmul.mubr.f32.gmra.mrb[0].mxu0 %v824
      %v1580 = vpop.f32.mrb[0].mxu0
      %v1581 = vadd.f32 %v1356, %v1580
      %v1582 = vpop.f32.mrb[0].mxu0
      %1583 = vmatprep.mubr.f32.mxu0 %v835
      %1584 = vmatmul.mubr.f32.gmra.mrb[0].mxu0 %v833
      %v1585 = vpop.f32.mrb[0].mxu0
      %v1586 = vadd.f32 %v1361, %v1585
      %v1587 = vpop.f32.mrb[0].mxu0
      %1588 = vmatprep.mubr.f32.mxu0 %v847
      %1589 = vmatmul.mubr.f32.gmra.mrb[0].mxu0 %v844
      %v1590 = vpop.f32.mrb[0].mxu0
      %v1591 = vadd.f32 %v1366, %v1590
      %v1592 = vpop.f32.mrb[0].mxu0
      %1593 = vmatprep.mubr.f32.mxu0 %v855
      %1594 = vmatmul.mubr.f32.gmra.mrb[0].mxu0 %v853
      %v1595 = vpop.f32.mrb[0].mxu0
      %v1596 = vadd.f32 %v1371, %v1595
      %v1597 = vpop.f32.mrb[0].mxu0
      %1598 = vmatprep.mubr.f32.mxu0 %v867
      %1599 = vmatmul.mubr.f32.gmra.mrb[0].mxu0 %v864
      %v1600 = vpop.f32.mrb[0].mxu0
      %v1601 = vadd.f32 %v1376, %v1600
      %v1602 = vpop.f32.mrb[0].mxu0
      %1603 = vmatprep.mubr.f32.mxu0 %v875
      %1604 = vmatmul.mubr.f32.gmra.mrb[0].mxu0 %v873
      %v1605 = vpop.f32.mrb[0].mxu0
      %v1606 = vadd.f32 %v1381, %v1605
      %v1607 = vpop.f32.mrb[0].mxu0
      %1608 = vmatprep.mubr.f32.mxu0 %v887
      %1609 = vmatmul.mubr.f32.gmra.mrb[0].mxu0 %v884
      %v1610 = vpop.f32.mrb[0].mxu0
      %v1611 = vadd.f32 %v1386, %v1610
      %v1612 = vpop.f32.mrb[0].mxu0
      %1613 = vmatprep.mubr.f32.mxu0 %v895
      %1614 = vmatmul.mubr.f32.gmra.mrb[0].mxu0 %v893
      %v1615 = vpop.f32.mrb[0].mxu0
      %v1616 = vadd.f32 %v1391, %v1615
      %v1617 = vpop.f32.mrb[0].mxu0
      %1618 = vmatprep.mubr.f32.mxu0 %v907
      %1619 = vmatmul.mubr.f32.gmra.mrb[0].mxu0 %v904
      %v1620 = vpop.f32.mrb[0].mxu0
      %v1621 = vadd.f32 %v1396, %v1620
      %v1622 = vpop.f32.mrb[0].mxu0
      %1623 = vmatprep.mubr.f32.mxu0 %v915
      %1624 = vmatmul.mubr.f32.gmra.mrb[0].mxu0 %v913
      %v1625 = vpop.f32.mrb[0].mxu0
      %v1626 = vadd.f32 %v1401, %v1625
      %v1627 = vpop.f32.mrb[0].mxu0
      %1628 = vmatprep.mubr.f32.mxu0 %v927
      %1629 = vmatmul.mubr.f32.gmra.mrb[0].mxu0 %v924
      %v1630 = vpop.f32.mrb[0].mxu0
      %v1631 = vadd.f32 %v1406, %v1630
      %v1632 = vpop.f32.mrb[0].mxu0
      %1633 = vmatprep.mubr.f32.mxu0 %v935
      %1634 = vmatmul.mubr.f32.gmra.mrb[0].mxu0 %v933
      %v1635 = vpop.f32.mrb[0].mxu0
      %v1636 = vadd.f32 %v1411, %v1635
      %v1637 = vpop.f32.mrb[0].mxu0
      %1638 = vmatprep.mubr.f32.mxu0 %v947
      %1639 = vmatmul.mubr.f32.gmra.mrb[0].mxu0 %v944
      %v1640 = vpop.f32.mrb[0].mxu0
      %v1641 = vadd.f32 %v1416, %v1640
      %v1642 = vpop.f32.mrb[0].mxu0
      %1643 = vmatprep.mubr.f32.mxu0 %v955
      %1644 = vmatmul.mubr.f32.gmra.mrb[0].mxu0 %v953
      %v1645 = vpop.f32.mrb[0].mxu0
      %v1646 = vadd.f32 %v1421, %v1645
      %v1647 = vpop.f32.mrb[0].mxu0
      %1648 = vmatprep.mubr.f32.mxu0 %v967
      %1649 = vmatmul.mubr.f32.gmra.mrb[0].mxu0 %v964
      %v1650 = vpop.f32.mrb[0].mxu0
      %v1651 = vadd.f32 %v1426, %v1650
      %v1652 = vpop.f32.mrb[0].mxu0
      %1653 = vmatprep.mubr.f32.mxu0 %v975
      %1654 = vmatmul.mubr.f32.gmra.mrb[0].mxu0 %v973
      %v1655 = vpop.f32.mrb[0].mxu0
      %v1656 = vadd.f32 %v1431, %v1655
      %v1657 = vpop.f32.mrb[0].mxu0
      %1658 = vmatprep.mubr.f32.mxu0 %v987
      %1659 = vmatmul.mubr.f32.gmra.mrb[0].mxu0 %v984
      %v1660 = vpop.f32.mrb[0].mxu0
      %v1661 = vadd.f32 %v1436, %v1660
      %v1662 = vpop.f32.mrb[0].mxu0
      %1663 = vmatprep.mubr.f32.mxu0 %v995
      %1664 = vmatmul.mubr.f32.gmra.mrb[0].mxu0 %v993
      %v1665 = vpop.f32.mrb[0].mxu0
      %v1666 = vadd.f32 %v1441, %v1665
      %v1667 = vpop.f32.mrb[0].mxu0
      %1668 = vmatprep.mubr.f32.mxu0 %v1007
      %1669 = vmatmul.mubr.f32.gmra.mrb[0].mxu0 %v1004
      %v1670 = vpop.f32.mrb[0].mxu0
      %v1671 = vadd.f32 %v1446, %v1670
      %v1672 = vpop.f32.mrb[0].mxu0
      %1673 = vmatprep.mubr.f32.mxu0 %v1015
      %1674 = vmatmul.mubr.f32.gmra.mrb[0].mxu0 %v1013
      %v1675 = vpop.f32.mrb[0].mxu0
      %v1676 = vadd.f32 %v1451, %v1675
      %v1677 = vpop.f32.mrb[0].mxu0
      %1678 = vmatprep.mubr.f32.mxu0 %v1027
      %1679 = vmatmul.mubr.f32.gmra.mrb[0].mxu0 %v1024
      %v1680 = vpop.f32.mrb[0].mxu0
      %v1681 = vadd.f32 %v1456, %v1680
      %v1682 = vpop.f32.mrb[0].mxu0
      %1683 = vmatprep.mubr.f32.mxu0 %v1035
      %1684 = vmatmul.mubr.f32.gmra.mrb[0].mxu0 %v1033
      %v1685 = vpop.f32.mrb[0].mxu0
      %v1686 = vadd.f32 %v1461, %v1685
      %v1687 = vpop.f32.mrb[0].mxu0
      %1688 = vmatprep.mubr.f32.mxu0 %v1047
      %1689 = vmatmul.mubr.f32.gmra.mrb[0].mxu0 %v1044
      %v1690 = vpop.f32.mrb[0].mxu0
      %v1691 = vadd.f32 %v1466, %v1690
      %v1692 = vpop.f32.mrb[0].mxu0
      %1693 = vmatprep.mubr.f32.mxu0 %v1055
      %1694 = vmatmul.mubr.f32.gmra.mrb[0].mxu0 %v1053
      %v1695 = vpop.f32.mrb[0].mxu0
      %v1696 = vadd.f32 %v1471, %v1695
      %v1697 = vpop.f32.mrb[0].mxu0
      %1698 = vdwg.mxu0
      %1699 = vmatprep.subr.mxu0 0.0
      %1700 = vmatpush1.msra.mxu0 %v351
      %1701 = vmatprep.subr.mxu0 0.0
      %1702 = vmatpush1.msra.mxu0 %v352
      %1703 = vmatprep.subr.mxu0 0.0
      %1704 = vmatpush1.msra.mxu0 %v353
      %1705 = vmatprep.subr.mxu0 0.0
      %1706 = vmatpush1.msra.mxu0 %v354
      %1707 = vmatprep.subr.mxu0 0.0
      %1708 = vmatpush1.msra.mxu0 %v355
      %1709 = vmatprep.subr.mxu0 0.0
      %1710 = vmatpush1.msra.mxu0 %v356
      %1711 = vmatprep.subr.mxu0 0.0
      %1712 = vmatpush1.msra.mxu0 %v357
      %1713 = vmatprep.subr.mxu0 0.0
      %1714 = vmatpush1.msra.mxu0 %v358
      %1715 = vmatprep.subr.mxu0 0.0
      %1716 = vmatpush1.msra.mxu0 %v359
      %1717 = vmatprep.subr.mxu0 0.0
      %1718 = vmatpush1.msra.mxu0 %v360
      %1719 = vmatprep.subr.mxu0 0.0
      %1720 = vmatpush1.msra.mxu0 %v361
      %1721 = vmatprep.subr.mxu0 0.0
      %1722 = vmatpush1.msra.mxu0 %v362
      %1723 = vmatprep.subr.mxu0 0.0
      %1724 = vmatpush1.msra.mxu0 %v363
      %1725 = vmatprep.subr.mxu0 0.0
      %1726 = vmatpush1.msra.mxu0 %v364
      %1727 = vmatprep.subr.mxu0 0.0
      %1728 = vmatpush1.msra.mxu0 %v365
      %1729 = vmatprep.subr.mxu0 0.0
      %1730 = vmatpush1.msra.mxu0 %v366
      %1731 = vmatprep.subr.mxu0 0.0
      %1732 = vmatpush1.msra.mxu0 %v367
      %1733 = vmatprep.subr.mxu0 0.0
      %1734 = vmatpush1.msra.mxu0 %v368
      %1735 = vmatprep.subr.mxu0 0.0
      %1736 = vmatpush1.msra.mxu0 %v369
      %1737 = vmatprep.subr.mxu0 0.0
      %1738 = vmatpush1.msra.mxu0 %v370
      %1739 = vmatprep.subr.mxu0 0.0
      %1740 = vmatpush1.msra.mxu0 %v371
      %1741 = vmatprep.subr.mxu0 0.0
      %1742 = vmatpush1.msra.mxu0 %v372
      %1743 = vmatprep.subr.mxu0 0.0
      %1744 = vmatpush1.msra.mxu0 %v373
      %1745 = vmatprep.subr.mxu0 0.0
      %1746 = vmatpush1.msra.mxu0 %v374
      %1747 = vmatprep.subr.mxu0 0.0
      %1748 = vmatpush1.msra.mxu0 %v375
      %1749 = vmatprep.subr.mxu0 0.0
      %1750 = vmatpush1.msra.mxu0 %v376
      %1751 = vmatprep.subr.mxu0 0.0
      %1752 = vmatpush1.msra.mxu0 %v377
      %1753 = vmatprep.subr.mxu0 0.0
      %1754 = vmatpush1.msra.mxu0 %v378
      %1755 = vmatprep.subr.mxu0 0.0
      %1756 = vmatpush1.msra.mxu0 %v379
      %1757 = vmatprep.subr.mxu0 0.0
      %1758 = vmatpush1.msra.mxu0 %v380
      %1759 = vmatprep.subr.mxu0 0.0
      %1760 = vmatpush1.msra.mxu0 %v381
      %1761 = vmatprep.subr.mxu0 0.0
      %1762 = vmatpush1.msra.mxu0 %v382
      %1763 = vmatprep.mubr.f32.mxu0 %v224
      %1764 = vmatmul.mubr.f32.gmra.mrb[0].mxu0 %v223
      %v1765 = vpop.f32.mrb[0].mxu0
      %v1766 = vadd.f32 %v1541, %v1765
      %v1767 = vpop.f32.mrb[0].mxu0
      %1768 = vmatprep.mubr.f32.mxu0 %v228
      %1769 = vmatmul.mubr.f32.gmra.mrb[0].mxu0 %v227
      %v1770 = vpop.f32.mrb[0].mxu0
      %v1771 = vadd.f32 %v1546, %v1770
      %v1772 = vpop.f32.mrb[0].mxu0
      %1773 = vmatprep.mubr.f32.mxu0 %v232
      %1774 = vmatmul.mubr.f32.gmra.mrb[0].mxu0 %v231
      %v1775 = vpop.f32.mrb[0].mxu0
      %v1776 = vadd.f32 %v1551, %v1775
      %v1777 = vpop.f32.mrb[0].mxu0
      %1778 = vmatprep.mubr.f32.mxu0 %v236
      %1779 = vmatmul.mubr.f32.gmra.mrb[0].mxu0 %v235
      %v1780 = vpop.f32.mrb[0].mxu0
      %v1781 = vadd.f32 %v1556, %v1780
      %v1782 = vpop.f32.mrb[0].mxu0
      %1783 = vmatprep.mubr.f32.mxu0 %v240
      %1784 = vmatmul.mubr.f32.gmra.mrb[0].mxu0 %v239
      %v1785 = vpop.f32.mrb[0].mxu0
      %v1786 = vadd.f32 %v1561, %v1785
      %v1787 = vpop.f32.mrb[0].mxu0
      %1788 = vmatprep.mubr.f32.mxu0 %v244
      %1789 = vmatmul.mubr.f32.gmra.mrb[0].mxu0 %v243
      %v1790 = vpop.f32.mrb[0].mxu0
      %v1791 = vadd.f32 %v1566, %v1790
      %v1792 = vpop.f32.mrb[0].mxu0
      %1793 = vmatprep.mubr.f32.mxu0 %v248
      %1794 = vmatmul.mubr.f32.gmra.mrb[0].mxu0 %v247
      %v1795 = vpop.f32.mrb[0].mxu0
      %v1796 = vadd.f32 %v1571, %v1795
      %v1797 = vpop.f32.mrb[0].mxu0
      %1798 = vmatprep.mubr.f32.mxu0 %v252
      %1799 = vmatmul.mubr.f32.gmra.mrb[0].mxu0 %v251
      %v1800 = vpop.f32.mrb[0].mxu0
      %v1801 = vadd.f32 %v1576, %v1800
      %v1802 = vpop.f32.mrb[0].mxu0
      %1803 = vmatprep.mubr.f32.mxu0 %v256
      %1804 = vmatmul.mubr.f32.gmra.mrb[0].mxu0 %v255
      %v1805 = vpop.f32.mrb[0].mxu0
      %v1806 = vadd.f32 %v1581, %v1805
      %v1807 = vpop.f32.mrb[0].mxu0
      %1808 = vmatprep.mubr.f32.mxu0 %v260
      %1809 = vmatmul.mubr.f32.gmra.mrb[0].mxu0 %v259
      %v1810 = vpop.f32.mrb[0].mxu0
      %v1811 = vadd.f32 %v1586, %v1810
      %v1812 = vpop.f32.mrb[0].mxu0
      %1813 = vmatprep.mubr.f32.mxu0 %v264
      %1814 = vmatmul.mubr.f32.gmra.mrb[0].mxu0 %v263
      %v1815 = vpop.f32.mrb[0].mxu0
      %v1816 = vadd.f32 %v1591, %v1815
      %v1817 = vpop.f32.mrb[0].mxu0
      %1818 = vmatprep.mubr.f32.mxu0 %v268
      %1819 = vmatmul.mubr.f32.gmra.mrb[0].mxu0 %v267
      %v1820 = vpop.f32.mrb[0].mxu0
      %v1821 = vadd.f32 %v1596, %v1820
      %v1822 = vpop.f32.mrb[0].mxu0
      %1823 = vmatprep.mubr.f32.mxu0 %v272
      %1824 = vmatmul.mubr.f32.gmra.mrb[0].mxu0 %v271
      %v1825 = vpop.f32.mrb[0].mxu0
      %v1826 = vadd.f32 %v1601, %v1825
      %v1827 = vpop.f32.mrb[0].mxu0
      %1828 = vmatprep.mubr.f32.mxu0 %v276
      %1829 = vmatmul.mubr.f32.gmra.mrb[0].mxu0 %v275
      %v1830 = vpop.f32.mrb[0].mxu0
      %v1831 = vadd.f32 %v1606, %v1830
      %v1832 = vpop.f32.mrb[0].mxu0
      %1833 = vmatprep.mubr.f32.mxu0 %v280
      %1834 = vmatmul.mubr.f32.gmra.mrb[0].mxu0 %v279
      %v1835 = vpop.f32.mrb[0].mxu0
      %v1836 = vadd.f32 %v1611, %v1835
      %v1837 = vpop.f32.mrb[0].mxu0
      %1838 = vmatprep.mubr.f32.mxu0 %v284
      %1839 = vmatmul.mubr.f32.gmra.mrb[0].mxu0 %v283
      %v1840 = vpop.f32.mrb[0].mxu0
      %v1841 = vadd.f32 %v1616, %v1840
      %v1842 = vpop.f32.mrb[0].mxu0
      %1843 = vmatprep.mubr.f32.mxu0 %v288
      %1844 = vmatmul.mubr.f32.gmra.mrb[0].mxu0 %v287
      %v1845 = vpop.f32.mrb[0].mxu0
      %v1846 = vadd.f32 %v1621, %v1845
      %v1847 = vpop.f32.mrb[0].mxu0
      %1848 = vmatprep.mubr.f32.mxu0 %v292
      %1849 = vmatmul.mubr.f32.gmra.mrb[0].mxu0 %v291
      %v1850 = vpop.f32.mrb[0].mxu0
      %v1851 = vadd.f32 %v1626, %v1850
      %v1852 = vpop.f32.mrb[0].mxu0
      %1853 = vmatprep.mubr.f32.mxu0 %v296
      %1854 = vmatmul.mubr.f32.gmra.mrb[0].mxu0 %v295
      %v1855 = vpop.f32.mrb[0].mxu0
      %v1856 = vadd.f32 %v1631, %v1855
      %v1857 = vpop.f32.mrb[0].mxu0
      %1858 = vmatprep.mubr.f32.mxu0 %v300
      %1859 = vmatmul.mubr.f32.gmra.mrb[0].mxu0 %v299
      %v1860 = vpop.f32.mrb[0].mxu0
      %v1861 = vadd.f32 %v1636, %v1860
      %v1862 = vpop.f32.mrb[0].mxu0
      %1863 = vmatprep.mubr.f32.mxu0 %v304
      %1864 = vmatmul.mubr.f32.gmra.mrb[0].mxu0 %v303
      %v1865 = vpop.f32.mrb[0].mxu0
      %v1866 = vadd.f32 %v1641, %v1865
      %v1867 = vpop.f32.mrb[0].mxu0
      %1868 = vmatprep.mubr.f32.mxu0 %v308
      %1869 = vmatmul.mubr.f32.gmra.mrb[0].mxu0 %v307
      %v1870 = vpop.f32.mrb[0].mxu0
      %v1871 = vadd.f32 %v1646, %v1870
      %v1872 = vpop.f32.mrb[0].mxu0
      %1873 = vmatprep.mubr.f32.mxu0 %v312
      %1874 = vmatmul.mubr.f32.gmra.mrb[0].mxu0 %v311
      %v1875 = vpop.f32.mrb[0].mxu0
      %v1876 = vadd.f32 %v1651, %v1875
      %v1877 = vpop.f32.mrb[0].mxu0
      %1878 = vmatprep.mubr.f32.mxu0 %v316
      %1879 = vmatmul.mubr.f32.gmra.mrb[0].mxu0 %v315
      %v1880 = vpop.f32.mrb[0].mxu0
      %v1881 = vadd.f32 %v1656, %v1880
      %v1882 = vpop.f32.mrb[0].mxu0
      %1883 = vmatprep.mubr.f32.mxu0 %v320
      %1884 = vmatmul.mubr.f32.gmra.mrb[0].mxu0 %v319
      %v1885 = vpop.f32.mrb[0].mxu0
      %v1886 = vadd.f32 %v1661, %v1885
      %v1887 = vpop.f32.mrb[0].mxu0
      %1888 = vmatprep.mubr.f32.mxu0 %v324
      %1889 = vmatmul.mubr.f32.gmra.mrb[0].mxu0 %v323
      %v1890 = vpop.f32.mrb[0].mxu0
      %v1891 = vadd.f32 %v1666, %v1890
      %v1892 = vpop.f32.mrb[0].mxu0
      %1893 = vmatprep.mubr.f32.mxu0 %v328
      %1894 = vmatmul.mubr.f32.gmra.mrb[0].mxu0 %v327
      %v1895 = vpop.f32.mrb[0].mxu0
      %v1896 = vadd.f32 %v1671, %v1895
      %v1897 = vpop.f32.mrb[0].mxu0
      %1898 = vmatprep.mubr.f32.mxu0 %v332
      %1899 = vmatmul.mubr.f32.gmra.mrb[0].mxu0 %v331
      %v1900 = vpop.f32.mrb[0].mxu0
      %v1901 = vadd.f32 %v1676, %v1900
      %v1902 = vpop.f32.mrb[0].mxu0
      %1903 = vmatprep.mubr.f32.mxu0 %v336
      %1904 = vmatmul.mubr.f32.gmra.mrb[0].mxu0 %v335
      %v1905 = vpop.f32.mrb[0].mxu0
      %v1906 = vadd.f32 %v1681, %v1905
      %v1907 = vpop.f32.mrb[0].mxu0
      %1908 = vmatprep.mubr.f32.mxu0 %v340
      %1909 = vmatmul.mubr.f32.gmra.mrb[0].mxu0 %v339
      %v1910 = vpop.f32.mrb[0].mxu0
      %v1911 = vadd.f32 %v1686, %v1910
      %v1912 = vpop.f32.mrb[0].mxu0
      %1913 = vmatprep.mubr.f32.mxu0 %v344
      %1914 = vmatmul.mubr.f32.gmra.mrb[0].mxu0 %v343
      %v1915 = vpop.f32.mrb[0].mxu0
      %v1916 = vadd.f32 %v1691, %v1915
      %v1917 = vpop.f32.mrb[0].mxu0
      %1918 = vmatprep.mubr.f32.mxu0 %v348
      %1919 = vmatmul.mubr.f32.gmra.mrb[0].mxu0 %v347
      %v1920 = vpop.f32.mrb[0].mxu0
      %v1921 = vadd.f32 %v1696, %v1920
      %v1922 = vpop.f32.mrb[0].mxu0
      %1923 = vdwg.mxu0
      %1924 = vmatprep.subr.mxu0 0.0
      %1925 = vmatpush1.msra.mxu0 %v383
      %1926 = vmatprep.subr.mxu0 0.0
      %1927 = vmatpush1.msra.mxu0 %v384
      %1928 = vmatprep.subr.mxu0 0.0
      %1929 = vmatpush1.msra.mxu0 %v385
      %1930 = vmatprep.subr.mxu0 0.0
      %1931 = vmatpush1.msra.mxu0 %v386
      %1932 = vmatprep.subr.mxu0 0.0
      %1933 = vmatpush1.msra.mxu0 %v387
      %1934 = vmatprep.subr.mxu0 0.0
      %1935 = vmatpush1.msra.mxu0 %v388
      %1936 = vmatprep.subr.mxu0 0.0
      %1937 = vmatpush1.msra.mxu0 %v389
      %1938 = vmatprep.subr.mxu0 0.0
      %1939 = vmatpush1.msra.mxu0 %v390
      %1940 = vmatprep.subr.mxu0 0.0
      %1941 = vmatpush1.msra.mxu0 %v391
      %1942 = vmatprep.subr.mxu0 0.0
      %1943 = vmatpush1.msra.mxu0 %v392
      %1944 = vmatprep.subr.mxu0 0.0
      %1945 = vmatpush1.msra.mxu0 %v393
      %1946 = vmatprep.subr.mxu0 0.0
      %1947 = vmatpush1.msra.mxu0 %v394
      %1948 = vmatprep.subr.mxu0 0.0
      %1949 = vmatpush1.msra.mxu0 %v395
      %1950 = vmatprep.subr.mxu0 0.0
      %1951 = vmatpush1.msra.mxu0 %v396
      %1952 = vmatprep.subr.mxu0 0.0
      %1953 = vmatpush1.msra.mxu0 %v397
      %1954 = vmatprep.subr.mxu0 0.0
      %1955 = vmatpush1.msra.mxu0 %v398
      %1956 = vmatprep.subr.mxu0 0.0
      %1957 = vmatpush1.msra.mxu0 %v399
      %1958 = vmatprep.subr.mxu0 0.0
      %1959 = vmatpush1.msra.mxu0 %v400
      %1960 = vmatprep.subr.mxu0 0.0
      %1961 = vmatpush1.msra.mxu0 %v401
      %1962 = vmatprep.subr.mxu0 0.0
      %1963 = vmatpush1.msra.mxu0 %v402
      %1964 = vmatprep.subr.mxu0 0.0
      %1965 = vmatpush1.msra.mxu0 %v403
      %1966 = vmatprep.subr.mxu0 0.0
      %1967 = vmatpush1.msra.mxu0 %v404
      %1968 = vmatprep.subr.mxu0 0.0
      %1969 = vmatpush1.msra.mxu0 %v405
      %1970 = vmatprep.subr.mxu0 0.0
      %1971 = vmatpush1.msra.mxu0 %v406
      %1972 = vmatprep.subr.mxu0 0.0
      %1973 = vmatpush1.msra.mxu0 %v407
      %1974 = vmatprep.subr.mxu0 0.0
      %1975 = vmatpush1.msra.mxu0 %v408
      %1976 = vmatprep.subr.mxu0 0.0
      %1977 = vmatpush1.msra.mxu0 %v409
      %1978 = vmatprep.subr.mxu0 0.0
      %1979 = vmatpush1.msra.mxu0 %v410
      %1980 = vmatprep.subr.mxu0 0.0
      %1981 = vmatpush1.msra.mxu0 %v411
      %1982 = vmatprep.subr.mxu0 0.0
      %1983 = vmatpush1.msra.mxu0 %v412
      %1984 = vmatprep.subr.mxu0 0.0
      %1985 = vmatpush1.msra.mxu0 %v413
      %1986 = vmatprep.subr.mxu0 0.0
      %1987 = vmatpush1.msra.mxu0 %v414
      %1988 = vmatprep.mubr.f32.mxu0 %v226
      %1989 = vmatmul.mubr.f32.gmra.mrb[0].mxu0 %v225
      %v1990 = vpop.f32.mrb[0].mxu0
      %v1991 = vadd.f32 %v1766, %v1990
      %v1992 = vpop.f32.mrb[0].mxu0
      %1993 = vmatprep.mubr.f32.mxu0 %v230
      %1994 = vmatmul.mubr.f32.gmra.mrb[0].mxu0 %v229
      %v1995 = vpop.f32.mrb[0].mxu0
      %v1996 = vadd.f32 %v1771, %v1995
      %v1997 = vpop.f32.mrb[0].mxu0
      %1998 = vmatprep.mubr.f32.mxu0 %v234
      %1999 = vmatmul.mubr.f32.gmra.mrb[0].mxu0 %v233
      %v2000 = vpop.f32.mrb[0].mxu0
      %v2001 = vadd.f32 %v1776, %v2000
      %v2002 = vpop.f32.mrb[0].mxu0
      %2003 = vmatprep.mubr.f32.mxu0 %v238
      %2004 = vmatmul.mubr.f32.gmra.mrb[0].mxu0 %v237
      %v2005 = vpop.f32.mrb[0].mxu0
      %v2006 = vadd.f32 %v1781, %v2005
      %v2007 = vpop.f32.mrb[0].mxu0
      %2008 = vmatprep.mubr.f32.mxu0 %v242
      %2009 = vmatmul.mubr.f32.gmra.mrb[0].mxu0 %v241
      %v2010 = vpop.f32.mrb[0].mxu0
      %v2011 = vadd.f32 %v1786, %v2010
      %v2012 = vpop.f32.mrb[0].mxu0
      %2013 = vmatprep.mubr.f32.mxu0 %v246
      %2014 = vmatmul.mubr.f32.gmra.mrb[0].mxu0 %v245
      %v2015 = vpop.f32.mrb[0].mxu0
      %v2016 = vadd.f32 %v1791, %v2015
      %v2017 = vpop.f32.mrb[0].mxu0
      %2018 = vmatprep.mubr.f32.mxu0 %v250
      %2019 = vmatmul.mubr.f32.gmra.mrb[0].mxu0 %v249
      %v2020 = vpop.f32.mrb[0].mxu0
      %v2021 = vadd.f32 %v1796, %v2020
      %v2022 = vpop.f32.mrb[0].mxu0
      %2023 = vmatprep.mubr.f32.mxu0 %v254
      %2024 = vmatmul.mubr.f32.gmra.mrb[0].mxu0 %v253
      %v2025 = vpop.f32.mrb[0].mxu0
      %v2026 = vadd.f32 %v1801, %v2025
      %v2027 = vpop.f32.mrb[0].mxu0
      %2028 = vmatprep.mubr.f32.mxu0 %v258
      %2029 = vmatmul.mubr.f32.gmra.mrb[0].mxu0 %v257
      %v2030 = vpop.f32.mrb[0].mxu0
      %v2031 = vadd.f32 %v1806, %v2030
      %v2032 = vpop.f32.mrb[0].mxu0
      %2033 = vmatprep.mubr.f32.mxu0 %v262
      %2034 = vmatmul.mubr.f32.gmra.mrb[0].mxu0 %v261
      %v2035 = vpop.f32.mrb[0].mxu0
      %v2036 = vadd.f32 %v1811, %v2035
      %v2037 = vpop.f32.mrb[0].mxu0
      %2038 = vmatprep.mubr.f32.mxu0 %v266
      %2039 = vmatmul.mubr.f32.gmra.mrb[0].mxu0 %v265
      %v2040 = vpop.f32.mrb[0].mxu0
      %v2041 = vadd.f32 %v1816, %v2040
      %v2042 = vpop.f32.mrb[0].mxu0
      %2043 = vmatprep.mubr.f32.mxu0 %v270
      %2044 = vmatmul.mubr.f32.gmra.mrb[0].mxu0 %v269
      %v2045 = vpop.f32.mrb[0].mxu0
      %v2046 = vadd.f32 %v1821, %v2045
      %v2047 = vpop.f32.mrb[0].mxu0
      %2048 = vmatprep.mubr.f32.mxu0 %v274
      %2049 = vmatmul.mubr.f32.gmra.mrb[0].mxu0 %v273
      %v2050 = vpop.f32.mrb[0].mxu0
      %v2051 = vadd.f32 %v1826, %v2050
      %v2052 = vpop.f32.mrb[0].mxu0
      %2053 = vmatprep.mubr.f32.mxu0 %v278
      %2054 = vmatmul.mubr.f32.gmra.mrb[0].mxu0 %v277
      %v2055 = vpop.f32.mrb[0].mxu0
      %v2056 = vadd.f32 %v1831, %v2055
      %v2057 = vpop.f32.mrb[0].mxu0
      %2058 = vmatprep.mubr.f32.mxu0 %v282
      %2059 = vmatmul.mubr.f32.gmra.mrb[0].mxu0 %v281
      %v2060 = vpop.f32.mrb[0].mxu0
      %v2061 = vadd.f32 %v1836, %v2060
      %v2062 = vpop.f32.mrb[0].mxu0
      %2063 = vmatprep.mubr.f32.mxu0 %v286
      %2064 = vmatmul.mubr.f32.gmra.mrb[0].mxu0 %v285
      %v2065 = vpop.f32.mrb[0].mxu0
      %v2066 = vadd.f32 %v1841, %v2065
      %v2067 = vpop.f32.mrb[0].mxu0
      %2068 = vmatprep.mubr.f32.mxu0 %v290
      %2069 = vmatmul.mubr.f32.gmra.mrb[0].mxu0 %v289
      %v2070 = vpop.f32.mrb[0].mxu0
      %v2071 = vadd.f32 %v1846, %v2070
      %v2072 = vpop.f32.mrb[0].mxu0
      %2073 = vmatprep.mubr.f32.mxu0 %v294
      %2074 = vmatmul.mubr.f32.gmra.mrb[0].mxu0 %v293
      %v2075 = vpop.f32.mrb[0].mxu0
      %v2076 = vadd.f32 %v1851, %v2075
      %v2077 = vpop.f32.mrb[0].mxu0
      %2078 = vmatprep.mubr.f32.mxu0 %v298
      %2079 = vmatmul.mubr.f32.gmra.mrb[0].mxu0 %v297
      %v2080 = vpop.f32.mrb[0].mxu0
      %v2081 = vadd.f32 %v1856, %v2080
      %v2082 = vpop.f32.mrb[0].mxu0
      %2083 = vmatprep.mubr.f32.mxu0 %v302
      %2084 = vmatmul.mubr.f32.gmra.mrb[0].mxu0 %v301
      %v2085 = vpop.f32.mrb[0].mxu0
      %v2086 = vadd.f32 %v1861, %v2085
      %v2087 = vpop.f32.mrb[0].mxu0
      %2088 = vmatprep.mubr.f32.mxu0 %v306
      %2089 = vmatmul.mubr.f32.gmra.mrb[0].mxu0 %v305
      %v2090 = vpop.f32.mrb[0].mxu0
      %v2091 = vadd.f32 %v1866, %v2090
      %v2092 = vpop.f32.mrb[0].mxu0
      %2093 = vmatprep.mubr.f32.mxu0 %v310
      %2094 = vmatmul.mubr.f32.gmra.mrb[0].mxu0 %v309
      %v2095 = vpop.f32.mrb[0].mxu0
      %v2096 = vadd.f32 %v1871, %v2095
      %v2097 = vpop.f32.mrb[0].mxu0
      %2098 = vmatprep.mubr.f32.mxu0 %v314
      %2099 = vmatmul.mubr.f32.gmra.mrb[0].mxu0 %v313
      %v2100 = vpop.f32.mrb[0].mxu0
      %v2101 = vadd.f32 %v1876, %v2100
      %v2102 = vpop.f32.mrb[0].mxu0
      %2103 = vmatprep.mubr.f32.mxu0 %v318
      %2104 = vmatmul.mubr.f32.gmra.mrb[0].mxu0 %v317
      %v2105 = vpop.f32.mrb[0].mxu0
      %v2106 = vadd.f32 %v1881, %v2105
      %v2107 = vpop.f32.mrb[0].mxu0
      %2108 = vmatprep.mubr.f32.mxu0 %v322
      %2109 = vmatmul.mubr.f32.gmra.mrb[0].mxu0 %v321
      %v2110 = vpop.f32.mrb[0].mxu0
      %v2111 = vadd.f32 %v1886, %v2110
      %v2112 = vpop.f32.mrb[0].mxu0
      %2113 = vmatprep.mubr.f32.mxu0 %v326
      %2114 = vmatmul.mubr.f32.gmra.mrb[0].mxu0 %v325
      %v2115 = vpop.f32.mrb[0].mxu0
      %v2116 = vadd.f32 %v1891, %v2115
      %v2117 = vpop.f32.mrb[0].mxu0
      %2118 = vmatprep.mubr.f32.mxu0 %v330
      %2119 = vmatmul.mubr.f32.gmra.mrb[0].mxu0 %v329
      %v2120 = vpop.f32.mrb[0].mxu0
      %v2121 = vadd.f32 %v1896, %v2120
      %v2122 = vpop.f32.mrb[0].mxu0
      %2123 = vmatprep.mubr.f32.mxu0 %v334
      %2124 = vmatmul.mubr.f32.gmra.mrb[0].mxu0 %v333
      %v2125 = vpop.f32.mrb[0].mxu0
      %v2126 = vadd.f32 %v1901, %v2125
      %v2127 = vpop.f32.mrb[0].mxu0
      %2128 = vmatprep.mubr.f32.mxu0 %v338
      %2129 = vmatmul.mubr.f32.gmra.mrb[0].mxu0 %v337
      %v2130 = vpop.f32.mrb[0].mxu0
      %v2131 = vadd.f32 %v1906, %v2130
      %v2132 = vpop.f32.mrb[0].mxu0
      %2133 = vmatprep.mubr.f32.mxu0 %v342
      %2134 = vmatmul.mubr.f32.gmra.mrb[0].mxu0 %v341
      %v2135 = vpop.f32.mrb[0].mxu0
      %v2136 = vadd.f32 %v1911, %v2135
      %v2137 = vpop.f32.mrb[0].mxu0
      %2138 = vmatprep.mubr.f32.mxu0 %v346
      %2139 = vmatmul.mubr.f32.gmra.mrb[0].mxu0 %v345
      %v2140 = vpop.f32.mrb[0].mxu0
      %v2141 = vadd.f32 %v1916, %v2140
      %v2142 = vpop.f32.mrb[0].mxu0
      %2143 = vmatprep.mubr.f32.mxu0 %v350
      %2144 = vmatmul.mubr.f32.gmra.mrb[0].mxu0 %v349
      %v2145 = vpop.f32.mrb[0].mxu0
      %v2146 = vadd.f32 %v1921, %v2145
      %v2147 = vpop.f32.mrb[0].mxu0
      %2148 = vdwg.mxu0
      %v2149 = vld [vmem:[%s207] sm:$0xfc]
      %v2150 = vld [vmem:[%s207 + $0x8] sm:$0xfc]
      %v2151 = vld [vmem:[%s207 + $0x10] sm:$0xfc]
      %v2152 = vld [vmem:[%s207 + $0x18] sm:$0xfc]
      %v2153 = vld [vmem:[%s207 + $0x40] sm:$0x3]
      %v2154 = vld [vmem:[%s207 + $0x48] sm:$0x3]
      %v2155 = vld [vmem:[%s207 + $0x50] sm:$0x3]
      %v2156 = vld [vmem:[%s207 + $0x58] sm:$0x3]
      %v2157 = vld [vmem:[%s207 + $0x60] sm:$0xfc]
      %v2158 = vld [vmem:[%s207 + $0x68] sm:$0xfc]
      %v2159 = vld [vmem:[%s207 + $0x70] sm:$0xfc]
      %v2160 = vld [vmem:[%s207 + $0x78] sm:$0xfc]
      %v2161 = vld [vmem:[%s207 + $0xa0] sm:$0x3]
      %v2162 = vld [vmem:[%s207 + $0xa8] sm:$0x3]
      %v2163 = vld [vmem:[%s207 + $0xb0] sm:$0x3]
      %v2164 = vld [vmem:[%s207 + $0xb8] sm:$0x3]
      %v2165 = vld [vmem:[%s207 + $0xc0] sm:$0xfc]
      %v2166 = vld [vmem:[%s207 + $0xc8] sm:$0xfc]
      %v2167 = vld [vmem:[%s207 + $0xd0] sm:$0xfc]
      %v2168 = vld [vmem:[%s207 + $0xd8] sm:$0xfc]
      %v2169 = vld [vmem:[%s207 + $0x100] sm:$0x3]
      %v2170 = vld [vmem:[%s207 + $0x108] sm:$0x3]
      %v2171 = vld [vmem:[%s207 + $0x110] sm:$0x3]
      %v2172 = vld [vmem:[%s207 + $0x118] sm:$0x3]
      %v2173 = vld [vmem:[%s207 + $0x120] sm:$0xfc]
      %v2174 = vld [vmem:[%s207 + $0x128] sm:$0xfc]
      %v2175 = vld [vmem:[%s207 + $0x130] sm:$0xfc]
      %v2176 = vld [vmem:[%s207 + $0x138] sm:$0xfc]
      %v2177 = vld [vmem:[%s207 + $0x160] sm:$0x3]
      %v2178 = vld [vmem:[%s207 + $0x168] sm:$0x3]
      %v2179 = vld [vmem:[%s207 + $0x170] sm:$0x3]
      %v2180 = vld [vmem:[%s207 + $0x178] sm:$0x3]
      %v2181 = vld [vmem:[%s207 + $0x180] sm:$0xfc]
      %v2182 = vld [vmem:[%s207 + $0x188] sm:$0xfc]
      %v2183 = vld [vmem:[%s207 + $0x190] sm:$0xfc]
      %v2184 = vld [vmem:[%s207 + $0x198] sm:$0xfc]
      %v2185 = vld [vmem:[%s207 + $0x1c0] sm:$0x3]
      %v2186 = vld [vmem:[%s207 + $0x1c8] sm:$0x3]
      %v2187 = vld [vmem:[%s207 + $0x1d0] sm:$0x3]
      %v2188 = vld [vmem:[%s207 + $0x1d8] sm:$0x3]
      %v2189 = vld [vmem:[%s207 + $0x1e0] sm:$0xfc]
      %v2190 = vld [vmem:[%s207 + $0x1e8] sm:$0xfc]
      %v2191 = vld [vmem:[%s207 + $0x1f0] sm:$0xfc]
      %v2192 = vld [vmem:[%s207 + $0x1f8] sm:$0xfc]
      %v2193 = vld [vmem:[%s207 + $0x220] sm:$0x3]
      %v2194 = vld [vmem:[%s207 + $0x228] sm:$0x3]
      %v2195 = vld [vmem:[%s207 + $0x230] sm:$0x3]
      %v2196 = vld [vmem:[%s207 + $0x238] sm:$0x3]
      %v2197 = vld [vmem:[%s207 + $0x240] sm:$0xfc]
      %v2198 = vld [vmem:[%s207 + $0x248] sm:$0xfc]
      %v2199 = vld [vmem:[%s207 + $0x250] sm:$0xfc]
      %v2200 = vld [vmem:[%s207 + $0x258] sm:$0xfc]
      %v2201 = vld [vmem:[%s207 + $0x280] sm:$0x3]
      %v2202 = vld [vmem:[%s207 + $0x288] sm:$0x3]
      %v2203 = vld [vmem:[%s207 + $0x290] sm:$0x3]
      %v2204 = vld [vmem:[%s207 + $0x298] sm:$0x3]
      %v2205 = vld [vmem:[%s207 + $0x2a0] sm:$0xfc]
      %v2206 = vld [vmem:[%s207 + $0x2a8] sm:$0xfc]
      %v2207 = vld [vmem:[%s207 + $0x2b0] sm:$0xfc]
      %v2208 = vld [vmem:[%s207 + $0x2b8] sm:$0xfc]
      %v2209 = vld [vmem:[%s207 + $0x2e0] sm:$0x3]
      %v2210 = vld [vmem:[%s207 + $0x2e8] sm:$0x3]
      %v2211 = vld [vmem:[%s207 + $0x2f0] sm:$0x3]
      %v2212 = vld [vmem:[%s207 + $0x2f8] sm:$0x3]
      %v2213 = vld [vmem:[%s207 + $0x300] sm:$0xfc]
      %v2214 = vld [vmem:[%s207 + $0x308] sm:$0xfc]
      %v2215 = vld [vmem:[%s207 + $0x310] sm:$0xfc]
      %v2216 = vld [vmem:[%s207 + $0x318] sm:$0xfc]
      %v2217 = vld [vmem:[%s207 + $0x340] sm:$0x3]
      %v2218 = vld [vmem:[%s207 + $0x348] sm:$0x3]
      %v2219 = vld [vmem:[%s207 + $0x350] sm:$0x3]
      %v2220 = vld [vmem:[%s207 + $0x358] sm:$0x3]
      %v2221 = vld [vmem:[%s207 + $0x360] sm:$0xfc]
      %v2222 = vld [vmem:[%s207 + $0x368] sm:$0xfc]
      %v2223 = vld [vmem:[%s207 + $0x370] sm:$0xfc]
      %v2224 = vld [vmem:[%s207 + $0x378] sm:$0xfc]
      %v2225 = vld [vmem:[%s207 + $0x3a0] sm:$0x3]
      %v2226 = vld [vmem:[%s207 + $0x3a8] sm:$0x3]
      %v2227 = vld [vmem:[%s207 + $0x3b0] sm:$0x3]
      %v2228 = vld [vmem:[%s207 + $0x3b8] sm:$0x3]
      %v2229 = vld [vmem:[%s207 + $0x3c0] sm:$0xfc]
      %v2230 = vld [vmem:[%s207 + $0x3c8] sm:$0xfc]
      %v2231 = vld [vmem:[%s207 + $0x3d0] sm:$0xfc]
      %v2232 = vld [vmem:[%s207 + $0x3d8] sm:$0xfc]
      %v2233 = vld [vmem:[%s207 + $0x400] sm:$0x3]
      %v2234 = vld [vmem:[%s207 + $0x408] sm:$0x3]
      %v2235 = vld [vmem:[%s207 + $0x410] sm:$0x3]
      %v2236 = vld [vmem:[%s207 + $0x418] sm:$0x3]
      %v2237 = vld [vmem:[%s207 + $0x420] sm:$0xfc]
      %v2238 = vld [vmem:[%s207 + $0x428] sm:$0xfc]
      %v2239 = vld [vmem:[%s207 + $0x430] sm:$0xfc]
      %v2240 = vld [vmem:[%s207 + $0x438] sm:$0xfc]
      %v2241 = vld [vmem:[%s207 + $0x460] sm:$0x3]
      %v2242 = vld [vmem:[%s207 + $0x468] sm:$0x3]
      %v2243 = vld [vmem:[%s207 + $0x470] sm:$0x3]
      %v2244 = vld [vmem:[%s207 + $0x478] sm:$0x3]
      %v2245 = vld [vmem:[%s207 + $0x480] sm:$0xfc]
      %v2246 = vld [vmem:[%s207 + $0x488] sm:$0xfc]
      %v2247 = vld [vmem:[%s207 + $0x490] sm:$0xfc]
      %v2248 = vld [vmem:[%s207 + $0x498] sm:$0xfc]
      %v2249 = vld [vmem:[%s207 + $0x4c0] sm:$0x3]
      %v2250 = vld [vmem:[%s207 + $0x4c8] sm:$0x3]
      %v2251 = vld [vmem:[%s207 + $0x4d0] sm:$0x3]
      %v2252 = vld [vmem:[%s207 + $0x4d8] sm:$0x3]
      %v2253 = vld [vmem:[%s207 + $0x4e0] sm:$0xfc]
      %v2254 = vld [vmem:[%s207 + $0x4e8] sm:$0xfc]
      %v2255 = vld [vmem:[%s207 + $0x4f0] sm:$0xfc]
      %v2256 = vld [vmem:[%s207 + $0x4f8] sm:$0xfc]
      %v2257 = vld [vmem:[%s207 + $0x520] sm:$0x3]
      %v2258 = vld [vmem:[%s207 + $0x528] sm:$0x3]
      %v2259 = vld [vmem:[%s207 + $0x530] sm:$0x3]
      %v2260 = vld [vmem:[%s207 + $0x538] sm:$0x3]
      %v2261 = vld [vmem:[%s207 + $0x540] sm:$0xfc]
      %v2262 = vld [vmem:[%s207 + $0x548] sm:$0xfc]
      %v2263 = vld [vmem:[%s207 + $0x550] sm:$0xfc]
      %v2264 = vld [vmem:[%s207 + $0x558] sm:$0xfc]
      %v2265 = vld [vmem:[%s207 + $0x580] sm:$0x3]
      %v2266 = vld [vmem:[%s207 + $0x588] sm:$0x3]
      %v2267 = vld [vmem:[%s207 + $0x590] sm:$0x3]
      %v2268 = vld [vmem:[%s207 + $0x598] sm:$0x3]
      %v2269 = vld [vmem:[%s207 + $0x5a0] sm:$0xfc]
      %v2270 = vld [vmem:[%s207 + $0x5a8] sm:$0xfc]
      %v2271 = vld [vmem:[%s207 + $0x5b0] sm:$0xfc]
      %v2272 = vld [vmem:[%s207 + $0x5b8] sm:$0xfc]
      %v2273 = vld [vmem:[%s207 + $0x5e0] sm:$0x3]
      %v2274 = vld [vmem:[%s207 + $0x5e8] sm:$0x3]
      %v2275 = vld [vmem:[%s207 + $0x5f0] sm:$0x3]
      %v2276 = vld [vmem:[%s207 + $0x5f8] sm:$0x3]
      %vm2405 = vcmask 1045504
      %v2406 = vrot.slane %v2149, 2
      %v2407 = vrot.slane %v227, 2
      %v2408 = vsel %vm2405, %v2406, %v2407
      %v2409 = vrot.slane %v2150, 2
      %v2410 = vrot.slane %v228, 2
      %v2411 = vsel %vm2405, %v2409, %v2410
      %v2412 = vrot.slane %v2151, 2
      %v2413 = vrot.slane %v229, 2
      %v2414 = vsel %vm2405, %v2412, %v2413
      %v2415 = vrot.slane %v2152, 2
      %v2416 = vrot.slane %v230, 2
      %v2417 = vsel %vm2405, %v2415, %v2416
      %v2418 = vrot.slane %v2153, 2
      %v2419 = vsel %vm2405, %v2407, %v2418
      %v2420 = vrot.slane %v2154, 2
      %v2421 = vsel %vm2405, %v2410, %v2420
      %v2422 = vrot.slane %v2155, 2
      %v2423 = vsel %vm2405, %v2413, %v2422
      %v2424 = vrot.slane %v2156, 2
      %v2425 = vsel %vm2405, %v2416, %v2424
      %v2426 = vrot.slane %v2157, 2
      %v2427 = vrot.slane %v235, 2
      %v2428 = vsel %vm2405, %v2426, %v2427
      %v2429 = vrot.slane %v2158, 2
      %v2430 = vrot.slane %v236, 2
      %v2431 = vsel %vm2405, %v2429, %v2430
      %v2432 = vrot.slane %v2159, 2
      %v2433 = vrot.slane %v237, 2
      %v2434 = vsel %vm2405, %v2432, %v2433
      %v2435 = vrot.slane %v2160, 2
      %v2436 = vrot.slane %v238, 2
      %v2437 = vsel %vm2405, %v2435, %v2436
      %v2438 = vrot.slane %v2161, 2
      %v2439 = vsel %vm2405, %v2427, %v2438
      %v2440 = vrot.slane %v2162, 2
      %v2441 = vsel %vm2405, %v2430, %v2440
      %v2442 = vrot.slane %v2163, 2
      %v2443 = vsel %vm2405, %v2433, %v2442
      %v2444 = vrot.slane %v2164, 2
      %v2445 = vsel %vm2405, %v2436, %v2444
      %v2446 = vrot.slane %v2165, 2
      %v2447 = vrot.slane %v243, 2
      %v2448 = vsel %vm2405, %v2446, %v2447
      %v2449 = vrot.slane %v2166, 2
      %v2450 = vrot.slane %v244, 2
      %v2451 = vsel %vm2405, %v2449, %v2450
      %v2452 = vrot.slane %v2167, 2
      %v2453 = vrot.slane %v245, 2
      %v2454 = vsel %vm2405, %v2452, %v2453
      %v2455 = vrot.slane %v2168, 2
      %v2456 = vrot.slane %v246, 2
      %v2457 = vsel %vm2405, %v2455, %v2456
      %v2458 = vrot.slane %v2169, 2
      %v2459 = vsel %vm2405, %v2447, %v2458
      %v2460 = vrot.slane %v2170, 2
      %v2461 = vsel %vm2405, %v2450, %v2460
      %v2462 = vrot.slane %v2171, 2
      %v2463 = vsel %vm2405, %v2453, %v2462
      %v2464 = vrot.slane %v2172, 2
      %v2465 = vsel %vm2405, %v2456, %v2464
      %v2466 = vrot.slane %v2173, 2
      %v2467 = vrot.slane %v251, 2
      %v2468 = vsel %vm2405, %v2466, %v2467
      %v2469 = vrot.slane %v2174, 2
      %v2470 = vrot.slane %v252, 2
      %v2471 = vsel %vm2405, %v2469, %v2470
      %v2472 = vrot.slane %v2175, 2
      %v2473 = vrot.slane %v253, 2
      %v2474 = vsel %vm2405, %v2472, %v2473
      %v2475 = vrot.slane %v2176, 2
      %v2476 = vrot.slane %v254, 2
      %v2477 = vsel %vm2405, %v2475, %v2476
      %v2478 = vrot.slane %v2177, 2
      %v2479 = vsel %vm2405, %v2467, %v2478
      %v2480 = vrot.slane %v2178, 2
      %v2481 = vsel %vm2405, %v2470, %v2480
      %v2482 = vrot.slane %v2179, 2
      %v2483 = vsel %vm2405, %v2473, %v2482
      %v2484 = vrot.slane %v2180, 2
      %v2485 = vsel %vm2405, %v2476, %v2484
      %v2486 = vrot.slane %v2181, 2
      %v2487 = vrot.slane %v259, 2
      %v2488 = vsel %vm2405, %v2486, %v2487
      %v2489 = vrot.slane %v2182, 2
      %v2490 = vrot.slane %v260, 2
      %v2491 = vsel %vm2405, %v2489, %v2490
      %v2492 = vrot.slane %v2183, 2
      %v2493 = vrot.slane %v261, 2
      %v2494 = vsel %vm2405, %v2492, %v2493
      %v2495 = vrot.slane %v2184, 2
      %v2496 = vrot.slane %v262, 2
      %v2497 = vsel %vm2405, %v2495, %v2496
      %v2498 = vrot.slane %v2185, 2
      %v2499 = vsel %vm2405, %v2487, %v2498
      %v2500 = vrot.slane %v2186, 2
      %v2501 = vsel %vm2405, %v2490, %v2500
      %v2502 = vrot.slane %v2187, 2
      %v2503 = vsel %vm2405, %v2493, %v2502
      %v2504 = vrot.slane %v2188, 2
      %v2505 = vsel %vm2405, %v2496, %v2504
      %v2506 = vrot.slane %v2189, 2
      %v2507 = vrot.slane %v267, 2
      %v2508 = vsel %vm2405, %v2506, %v2507
      %v2509 = vrot.slane %v2190, 2
      %v2510 = vrot.slane %v268, 2
      %v2511 = vsel %vm2405, %v2509, %v2510
      %v2512 = vrot.slane %v2191, 2
      %v2513 = vrot.slane %v269, 2
      %v2514 = vsel %vm2405, %v2512, %v2513
      %v2515 = vrot.slane %v2192, 2
      %v2516 = vrot.slane %v270, 2
      %v2517 = vsel %vm2405, %v2515, %v2516
      %v2518 = vrot.slane %v2193, 2
      %v2519 = vsel %vm2405, %v2507, %v2518
      %v2520 = vrot.slane %v2194, 2
      %v2521 = vsel %vm2405, %v2510, %v2520
      %v2522 = vrot.slane %v2195, 2
      %v2523 = vsel %vm2405, %v2513, %v2522
      %v2524 = vrot.slane %v2196, 2
      %v2525 = vsel %vm2405, %v2516, %v2524
      %v2526 = vrot.slane %v2197, 2
      %v2527 = vrot.slane %v275, 2
      %v2528 = vsel %vm2405, %v2526, %v2527
      %v2529 = vrot.slane %v2198, 2
      %v2530 = vrot.slane %v276, 2
      %v2531 = vsel %vm2405, %v2529, %v2530
      %v2532 = vrot.slane %v2199, 2
      %v2533 = vrot.slane %v277, 2
      %v2534 = vsel %vm2405, %v2532, %v2533
      %v2535 = vrot.slane %v2200, 2
      %v2536 = vrot.slane %v278, 2
      %v2537 = vsel %vm2405, %v2535, %v2536
      %v2538 = vrot.slane %v2201, 2
      %v2539 = vsel %vm2405, %v2527, %v2538
      %v2540 = vrot.slane %v2202, 2
      %v2541 = vsel %vm2405, %v2530, %v2540
      %v2542 = vrot.slane %v2203, 2
      %v2543 = vsel %vm2405, %v2533, %v2542
      %v2544 = vrot.slane %v2204, 2
      %v2545 = vsel %vm2405, %v2536, %v2544
      %v2546 = vrot.slane %v2205, 2
      %v2547 = vrot.slane %v283, 2
      %v2548 = vsel %vm2405, %v2546, %v2547
      %v2549 = vrot.slane %v2206, 2
      %v2550 = vrot.slane %v284, 2
      %v2551 = vsel %vm2405, %v2549, %v2550
      %v2552 = vrot.slane %v2207, 2
      %v2553 = vrot.slane %v285, 2
      %v2554 = vsel %vm2405, %v2552, %v2553
      %v2555 = vrot.slane %v2208, 2
      %v2556 = vrot.slane %v286, 2
      %v2557 = vsel %vm2405, %v2555, %v2556
      %v2558 = vrot.slane %v2209, 2
      %v2559 = vsel %vm2405, %v2547, %v2558
      %v2560 = vrot.slane %v2210, 2
      %v2561 = vsel %vm2405, %v2550, %v2560
      %v2562 = vrot.slane %v2211, 2
      %v2563 = vsel %vm2405, %v2553, %v2562
      %v2564 = vrot.slane %v2212, 2
      %v2565 = vsel %vm2405, %v2556, %v2564
      %v2566 = vrot.slane %v2213, 2
      %v2567 = vrot.slane %v291, 2
      %v2568 = vsel %vm2405, %v2566, %v2567
      %v2569 = vrot.slane %v2214, 2
      %v2570 = vrot.slane %v292, 2
      %v2571 = vsel %vm2405, %v2569, %v2570
      %v2572 = vrot.slane %v2215, 2
      %v2573 = vrot.slane %v293, 2
      %v2574 = vsel %vm2405, %v2572, %v2573
      %v2575 = vrot.slane %v2216, 2
      %v2576 = vrot.slane %v294, 2
      %v2577 = vsel %vm2405, %v2575, %v2576
      %v2578 = vrot.slane %v2217, 2
      %v2579 = vsel %vm2405, %v2567, %v2578
      %v2580 = vrot.slane %v2218, 2
      %v2581 = vsel %vm2405, %v2570, %v2580
      %v2582 = vrot.slane %v2219, 2
      %v2583 = vsel %vm2405, %v2573, %v2582
      %v2584 = vrot.slane %v2220, 2
      %v2585 = vsel %vm2405, %v2576, %v2584
      %v2586 = vrot.slane %v2221, 2
      %v2587 = vrot.slane %v299, 2
      %v2588 = vsel %vm2405, %v2586, %v2587
      %v2589 = vrot.slane %v2222, 2
      %v2590 = vrot.slane %v300, 2
      %v2591 = vsel %vm2405, %v2589, %v2590
      %v2592 = vrot.slane %v2223, 2
      %v2593 = vrot.slane %v301, 2
      %v2594 = vsel %vm2405, %v2592, %v2593
      %v2595 = vrot.slane %v2224, 2
      %v2596 = vrot.slane %v302, 2
      %v2597 = vsel %vm2405, %v2595, %v2596
      %v2598 = vrot.slane %v2225, 2
      %v2599 = vsel %vm2405, %v2587, %v2598
      %v2600 = vrot.slane %v2226, 2
      %v2601 = vsel %vm2405, %v2590, %v2600
      %v2602 = vrot.slane %v2227, 2
      %v2603 = vsel %vm2405, %v2593, %v2602
      %v2604 = vrot.slane %v2228, 2
      %v2605 = vsel %vm2405, %v2596, %v2604
      %v2606 = vrot.slane %v2229, 2
      %v2607 = vrot.slane %v307, 2
      %v2608 = vsel %vm2405, %v2606, %v2607
      %v2609 = vrot.slane %v2230, 2
      %v2610 = vrot.slane %v308, 2
      %v2611 = vsel %vm2405, %v2609, %v2610
      %v2612 = vrot.slane %v2231, 2
      %v2613 = vrot.slane %v309, 2
      %v2614 = vsel %vm2405, %v2612, %v2613
      %v2615 = vrot.slane %v2232, 2
      %v2616 = vrot.slane %v310, 2
      %v2617 = vsel %vm2405, %v2615, %v2616
      %v2618 = vrot.slane %v2233, 2
      %v2619 = vsel %vm2405, %v2607, %v2618
      %v2620 = vrot.slane %v2234, 2
      %v2621 = vsel %vm2405, %v2610, %v2620
      %v2622 = vrot.slane %v2235, 2
      %v2623 = vsel %vm2405, %v2613, %v2622
      %v2624 = vrot.slane %v2236, 2
      %v2625 = vsel %vm2405, %v2616, %v2624
      %v2626 = vrot.slane %v2237, 2
      %v2627 = vrot.slane %v315, 2
      %v2628 = vsel %vm2405, %v2626, %v2627
      %v2629 = vrot.slane %v2238, 2
      %v2630 = vrot.slane %v316, 2
      %v2631 = vsel %vm2405, %v2629, %v2630
      %v2632 = vrot.slane %v2239, 2
      %v2633 = vrot.slane %v317, 2
      %v2634 = vsel %vm2405, %v2632, %v2633
      %v2635 = vrot.slane %v2240, 2
      %v2636 = vrot.slane %v318, 2
      %v2637 = vsel %vm2405, %v2635, %v2636
      %v2638 = vrot.slane %v2241, 2
      %v2639 = vsel %vm2405, %v2627, %v2638
      %v2640 = vrot.slane %v2242, 2
      %v2641 = vsel %vm2405, %v2630, %v2640
      %v2642 = vrot.slane %v2243, 2
      %v2643 = vsel %vm2405, %v2633, %v2642
      %v2644 = vrot.slane %v2244, 2
      %v2645 = vsel %vm2405, %v2636, %v2644
      %v2646 = vrot.slane %v2245, 2
      %v2647 = vrot.slane %v323, 2
      %v2648 = vsel %vm2405, %v2646, %v2647
      %v2649 = vrot.slane %v2246, 2
      %v2650 = vrot.slane %v324, 2
      %v2651 = vsel %vm2405, %v2649, %v2650
      %v2652 = vrot.slane %v2247, 2
      %v2653 = vrot.slane %v325, 2
      %v2654 = vsel %vm2405, %v2652, %v2653
      %v2655 = vrot.slane %v2248, 2
      %v2656 = vrot.slane %v326, 2
      %v2657 = vsel %vm2405, %v2655, %v2656
      %v2658 = vrot.slane %v2249, 2
      %v2659 = vsel %vm2405, %v2647, %v2658
      %v2660 = vrot.slane %v2250, 2
      %v2661 = vsel %vm2405, %v2650, %v2660
      %v2662 = vrot.slane %v2251, 2
      %v2663 = vsel %vm2405, %v2653, %v2662
      %v2664 = vrot.slane %v2252, 2
      %v2665 = vsel %vm2405, %v2656, %v2664
      %v2666 = vrot.slane %v2253, 2
      %v2667 = vrot.slane %v331, 2
      %v2668 = vsel %vm2405, %v2666, %v2667
      %v2669 = vrot.slane %v2254, 2
      %v2670 = vrot.slane %v332, 2
      %v2671 = vsel %vm2405, %v2669, %v2670
      %v2672 = vrot.slane %v2255, 2
      %v2673 = vrot.slane %v333, 2
      %v2674 = vsel %vm2405, %v2672, %v2673
      %v2675 = vrot.slane %v2256, 2
      %v2676 = vrot.slane %v334, 2
      %v2677 = vsel %vm2405, %v2675, %v2676
      %v2678 = vrot.slane %v2257, 2
      %v2679 = vsel %vm2405, %v2667, %v2678
      %v2680 = vrot.slane %v2258, 2
      %v2681 = vsel %vm2405, %v2670, %v2680
      %v2682 = vrot.slane %v2259, 2
      %v2683 = vsel %vm2405, %v2673, %v2682
      %v2684 = vrot.slane %v2260, 2
      %v2685 = vsel %vm2405, %v2676, %v2684
      %v2686 = vrot.slane %v2261, 2
      %v2687 = vrot.slane %v339, 2
      %v2688 = vsel %vm2405, %v2686, %v2687
      %v2689 = vrot.slane %v2262, 2
      %v2690 = vrot.slane %v340, 2
      %v2691 = vsel %vm2405, %v2689, %v2690
      %v2692 = vrot.slane %v2263, 2
      %v2693 = vrot.slane %v341, 2
      %v2694 = vsel %vm2405, %v2692, %v2693
      %v2695 = vrot.slane %v2264, 2
      %v2696 = vrot.slane %v342, 2
      %v2697 = vsel %vm2405, %v2695, %v2696
      %v2698 = vrot.slane %v2265, 2
      %v2699 = vsel %vm2405, %v2687, %v2698
      %v2700 = vrot.slane %v2266, 2
      %v2701 = vsel %vm2405, %v2690, %v2700
      %v2702 = vrot.slane %v2267, 2
      %v2703 = vsel %vm2405, %v2693, %v2702
      %v2704 = vrot.slane %v2268, 2
      %v2705 = vsel %vm2405, %v2696, %v2704
      %v2706 = vrot.slane %v2269, 2
      %v2707 = vrot.slane %v347, 2
      %v2708 = vsel %vm2405, %v2706, %v2707
      %v2709 = vrot.slane %v2270, 2
      %v2710 = vrot.slane %v348, 2
      %v2711 = vsel %vm2405, %v2709, %v2710
      %v2712 = vrot.slane %v2271, 2
      %v2713 = vrot.slane %v349, 2
      %v2714 = vsel %vm2405, %v2712, %v2713
      %v2715 = vrot.slane %v2272, 2
      %v2716 = vrot.slane %v350, 2
      %v2717 = vsel %vm2405, %v2715, %v2716
      %v2718 = vrot.slane %v2273, 2
      %v2719 = vsel %vm2405, %v2707, %v2718
      %v2720 = vrot.slane %v2274, 2
      %v2721 = vsel %vm2405, %v2710, %v2720
      %v2722 = vrot.slane %v2275, 2
      %v2723 = vsel %vm2405, %v2713, %v2722
      %v2724 = vrot.slane %v2276, 2
      %v2725 = vsel %vm2405, %v2716, %v2724
      %s2854 = scalar_lea.vmem %s1, 1024
      %v2855 = vld [vmem:[%s2854] sm:$0xff]
      %v2856 = vld [vmem:[%s2854 + $0x8] sm:$0xff]
      %v2857 = vld [vmem:[%s2854 + $0x10] sm:$0xff]
      %v2858 = vld [vmem:[%s2854 + $0x18] sm:$0xff]
      %v2859 = vld [vmem:[%s2854 + $0x20] sm:$0xff]
      %v2860 = vld [vmem:[%s2854 + $0x28] sm:$0xff]
      %v2861 = vld [vmem:[%s2854 + $0x30] sm:$0xff]
      %v2862 = vld [vmem:[%s2854 + $0x38] sm:$0xff]
      %v2863 = vld [vmem:[%s2854 + $0x40] sm:$0xff]
      %v2864 = vld [vmem:[%s2854 + $0x48] sm:$0xff]
      %v2865 = vld [vmem:[%s2854 + $0x50] sm:$0xff]
      %v2866 = vld [vmem:[%s2854 + $0x58] sm:$0xff]
      %v2867 = vld [vmem:[%s2854 + $0x60] sm:$0xff]
      %v2868 = vld [vmem:[%s2854 + $0x68] sm:$0xff]
      %v2869 = vld [vmem:[%s2854 + $0x70] sm:$0xff]
      %v2870 = vld [vmem:[%s2854 + $0x78] sm:$0xff]
      %v2871 = vld [vmem:[%s2854 + $0x80] sm:$0xff]
      %v2872 = vld [vmem:[%s2854 + $0x88] sm:$0xff]
      %v2873 = vld [vmem:[%s2854 + $0x90] sm:$0xff]
      %v2874 = vld [vmem:[%s2854 + $0x98] sm:$0xff]
      %v2875 = vld [vmem:[%s2854 + $0xa0] sm:$0xff]
      %v2876 = vld [vmem:[%s2854 + $0xa8] sm:$0xff]
      %v2877 = vld [vmem:[%s2854 + $0xb0] sm:$0xff]
      %v2878 = vld [vmem:[%s2854 + $0xb8] sm:$0xff]
      %v2879 = vld [vmem:[%s2854 + $0xc0] sm:$0xff]
      %v2880 = vld [vmem:[%s2854 + $0xc8] sm:$0xff]
      %v2881 = vld [vmem:[%s2854 + $0xd0] sm:$0xff]
      %v2882 = vld [vmem:[%s2854 + $0xd8] sm:$0xff]
      %v2883 = vld [vmem:[%s2854 + $0xe0] sm:$0xff]
      %v2884 = vld [vmem:[%s2854 + $0xe8] sm:$0xff]
      %v2885 = vld [vmem:[%s2854 + $0xf0] sm:$0xff]
      %v2886 = vld [vmem:[%s2854 + $0xf8] sm:$0xff]
      %v2887 = vld [vmem:[%s2854 + $0x100] sm:$0xff]
      %v2888 = vld [vmem:[%s2854 + $0x108] sm:$0xff]
      %v2889 = vld [vmem:[%s2854 + $0x110] sm:$0xff]
      %v2890 = vld [vmem:[%s2854 + $0x118] sm:$0xff]
      %v2891 = vld [vmem:[%s2854 + $0x120] sm:$0xff]
      %v2892 = vld [vmem:[%s2854 + $0x128] sm:$0xff]
      %v2893 = vld [vmem:[%s2854 + $0x130] sm:$0xff]
      %v2894 = vld [vmem:[%s2854 + $0x138] sm:$0xff]
      %v2895 = vld [vmem:[%s2854 + $0x140] sm:$0xff]
      %v2896 = vld [vmem:[%s2854 + $0x148] sm:$0xff]
      %v2897 = vld [vmem:[%s2854 + $0x150] sm:$0xff]
      %v2898 = vld [vmem:[%s2854 + $0x158] sm:$0xff]
      %v2899 = vld [vmem:[%s2854 + $0x160] sm:$0xff]
      %v2900 = vld [vmem:[%s2854 + $0x168] sm:$0xff]
      %v2901 = vld [vmem:[%s2854 + $0x170] sm:$0xff]
      %v2902 = vld [vmem:[%s2854 + $0x178] sm:$0xff]
      %v2903 = vld [vmem:[%s2854 + $0x180] sm:$0xff]
      %v2904 = vld [vmem:[%s2854 + $0x188] sm:$0xff]
      %v2905 = vld [vmem:[%s2854 + $0x190] sm:$0xff]
      %v2906 = vld [vmem:[%s2854 + $0x198] sm:$0xff]
      %v2907 = vld [vmem:[%s2854 + $0x1a0] sm:$0xff]
      %v2908 = vld [vmem:[%s2854 + $0x1a8] sm:$0xff]
      %v2909 = vld [vmem:[%s2854 + $0x1b0] sm:$0xff]
      %v2910 = vld [vmem:[%s2854 + $0x1b8] sm:$0xff]
      %v2911 = vld [vmem:[%s2854 + $0x1c0] sm:$0xff]
      %v2912 = vld [vmem:[%s2854 + $0x1c8] sm:$0xff]
      %v2913 = vld [vmem:[%s2854 + $0x1d0] sm:$0xff]
      %v2914 = vld [vmem:[%s2854 + $0x1d8] sm:$0xff]
      %v2915 = vld [vmem:[%s2854 + $0x1e0] sm:$0xff]
      %v2916 = vld [vmem:[%s2854 + $0x1e8] sm:$0xff]
      %v2917 = vld [vmem:[%s2854 + $0x1f0] sm:$0xff]
      %v2918 = vld [vmem:[%s2854 + $0x1f8] sm:$0xff]
      %2919 = vmatprep.subr.mxu0 0.0
      %2920 = vmatpush1.msra.mxu0 %v2855
      %2921 = vmatprep.subr.mxu0 0.0
      %2922 = vmatpush1.msra.mxu0 %v2856
      %2923 = vmatprep.subr.mxu0 0.0
      %2924 = vmatpush1.msra.mxu0 %v2857
      %2925 = vmatprep.subr.mxu0 0.0
      %2926 = vmatpush1.msra.mxu0 %v2858
      %2927 = vmatprep.subr.mxu0 0.0
      %2928 = vmatpush1.msra.mxu0 %v2859
      %2929 = vmatprep.subr.mxu0 0.0
      %2930 = vmatpush1.msra.mxu0 %v2860
      %2931 = vmatprep.subr.mxu0 0.0
      %2932 = vmatpush1.msra.mxu0 %v2861
      %2933 = vmatprep.subr.mxu0 0.0
      %2934 = vmatpush1.msra.mxu0 %v2862
      %2935 = vmatprep.subr.mxu0 0.0
      %2936 = vmatpush1.msra.mxu0 %v2863
      %2937 = vmatprep.subr.mxu0 0.0
      %2938 = vmatpush1.msra.mxu0 %v2864
      %2939 = vmatprep.subr.mxu0 0.0
      %2940 = vmatpush1.msra.mxu0 %v2865
      %2941 = vmatprep.subr.mxu0 0.0
      %2942 = vmatpush1.msra.mxu0 %v2866
      %2943 = vmatprep.subr.mxu0 0.0
      %2944 = vmatpush1.msra.mxu0 %v2867
      %2945 = vmatprep.subr.mxu0 0.0
      %2946 = vmatpush1.msra.mxu0 %v2868
      %2947 = vmatprep.subr.mxu0 0.0
      %2948 = vmatpush1.msra.mxu0 %v2869
      %2949 = vmatprep.subr.mxu0 0.0
      %2950 = vmatpush1.msra.mxu0 %v2870
      %2951 = vmatprep.subr.mxu0 0.0
      %2952 = vmatpush1.msra.mxu0 %v2871
      %2953 = vmatprep.subr.mxu0 0.0
      %2954 = vmatpush1.msra.mxu0 %v2872
      %2955 = vmatprep.subr.mxu0 0.0
      %2956 = vmatpush1.msra.mxu0 %v2873
      %2957 = vmatprep.subr.mxu0 0.0
      %2958 = vmatpush1.msra.mxu0 %v2874
      %2959 = vmatprep.subr.mxu0 0.0
      %2960 = vmatpush1.msra.mxu0 %v2875
      %2961 = vmatprep.subr.mxu0 0.0
      %2962 = vmatpush1.msra.mxu0 %v2876
      %2963 = vmatprep.subr.mxu0 0.0
      %2964 = vmatpush1.msra.mxu0 %v2877
      %2965 = vmatprep.subr.mxu0 0.0
      %2966 = vmatpush1.msra.mxu0 %v2878
      %2967 = vmatprep.subr.mxu0 0.0
      %2968 = vmatpush1.msra.mxu0 %v2879
      %2969 = vmatprep.subr.mxu0 0.0
      %2970 = vmatpush1.msra.mxu0 %v2880
      %2971 = vmatprep.subr.mxu0 0.0
      %2972 = vmatpush1.msra.mxu0 %v2881
      %2973 = vmatprep.subr.mxu0 0.0
      %2974 = vmatpush1.msra.mxu0 %v2882
      %2975 = vmatprep.subr.mxu0 0.0
      %2976 = vmatpush1.msra.mxu0 %v2883
      %2977 = vmatprep.subr.mxu0 0.0
      %2978 = vmatpush1.msra.mxu0 %v2884
      %2979 = vmatprep.subr.mxu0 0.0
      %2980 = vmatpush1.msra.mxu0 %v2885
      %2981 = vmatprep.subr.mxu0 0.0
      %2982 = vmatpush1.msra.mxu0 %v2886
      %2983 = vmatprep.mubr.f32.mxu0 %v2411
      %2984 = vmatmul.mubr.f32.gmra.mrb[0].mxu0 %v2408
      %v2985 = vpop.f32.mrb[0].mxu0
      %v2986 = vadd.f32 0.0, %v2985
      %v2987 = vpop.f32.mrb[0].mxu0
      %2988 = vmatprep.mubr.f32.mxu0 %v2421
      %2989 = vmatmul.mubr.f32.gmra.mrb[0].mxu0 %v2419
      %v2990 = vpop.f32.mrb[0].mxu0
      %v2991 = vadd.f32 0.0, %v2990
      %v2992 = vpop.f32.mrb[0].mxu0
      %2993 = vmatprep.mubr.f32.mxu0 %v2431
      %2994 = vmatmul.mubr.f32.gmra.mrb[0].mxu0 %v2428
      %v2995 = vpop.f32.mrb[0].mxu0
      %v2996 = vadd.f32 0.0, %v2995
      %v2997 = vpop.f32.mrb[0].mxu0
      %2998 = vmatprep.mubr.f32.mxu0 %v2441
      %2999 = vmatmul.mubr.f32.gmra.mrb[0].mxu0 %v2439
      %v3000 = vpop.f32.mrb[0].mxu0
      %v3001 = vadd.f32 0.0, %v3000
      %v3002 = vpop.f32.mrb[0].mxu0
      %3003 = vmatprep.mubr.f32.mxu0 %v2451
      %3004 = vmatmul.mubr.f32.gmra.mrb[0].mxu0 %v2448
      %v3005 = vpop.f32.mrb[0].mxu0
      %v3006 = vadd.f32 0.0, %v3005
      %v3007 = vpop.f32.mrb[0].mxu0
      %3008 = vmatprep.mubr.f32.mxu0 %v2461
      %3009 = vmatmul.mubr.f32.gmra.mrb[0].mxu0 %v2459
      %v3010 = vpop.f32.mrb[0].mxu0
      %v3011 = vadd.f32 0.0, %v3010
      %v3012 = vpop.f32.mrb[0].mxu0
      %3013 = vmatprep.mubr.f32.mxu0 %v2471
      %3014 = vmatmul.mubr.f32.gmra.mrb[0].mxu0 %v2468
      %v3015 = vpop.f32.mrb[0].mxu0
      %v3016 = vadd.f32 0.0, %v3015
      %v3017 = vpop.f32.mrb[0].mxu0
      %3018 = vmatprep.mubr.f32.mxu0 %v2481
      %3019 = vmatmul.mubr.f32.gmra.mrb[0].mxu0 %v2479
      %v3020 = vpop.f32.mrb[0].mxu0
      %v3021 = vadd.f32 0.0, %v3020
      %v3022 = vpop.f32.mrb[0].mxu0
      %3023 = vmatprep.mubr.f32.mxu0 %v2491
      %3024 = vmatmul.mubr.f32.gmra.mrb[0].mxu0 %v2488
      %v3025 = vpop.f32.mrb[0].mxu0
      %v3026 = vadd.f32 0.0, %v3025
      %v3027 = vpop.f32.mrb[0].mxu0
      %3028 = vmatprep.mubr.f32.mxu0 %v2501
      %3029 = vmatmul.mubr.f32.gmra.mrb[0].mxu0 %v2499
      %v3030 = vpop.f32.mrb[0].mxu0
      %v3031 = vadd.f32 0.0, %v3030
      %v3032 = vpop.f32.mrb[0].mxu0
      %3033 = vmatprep.mubr.f32.mxu0 %v2511
      %3034 = vmatmul.mubr.f32.gmra.mrb[0].mxu0 %v2508
      %v3035 = vpop.f32.mrb[0].mxu0
      %v3036 = vadd.f32 0.0, %v3035
      %v3037 = vpop.f32.mrb[0].mxu0
      %3038 = vmatprep.mubr.f32.mxu0 %v2521
      %3039 = vmatmul.mubr.f32.gmra.mrb[0].mxu0 %v2519
      %v3040 = vpop.f32.mrb[0].mxu0
      %v3041 = vadd.f32 0.0, %v3040
      %v3042 = vpop.f32.mrb[0].mxu0
      %3043 = vmatprep.mubr.f32.mxu0 %v2531
      %3044 = vmatmul.mubr.f32.gmra.mrb[0].mxu0 %v2528
      %v3045 = vpop.f32.mrb[0].mxu0
      %v3046 = vadd.f32 0.0, %v3045
      %v3047 = vpop.f32.mrb[0].mxu0
      %3048 = vmatprep.mubr.f32.mxu0 %v2541
      %3049 = vmatmul.mubr.f32.gmra.mrb[0].mxu0 %v2539
      %v3050 = vpop.f32.mrb[0].mxu0
      %v3051 = vadd.f32 0.0, %v3050
      %v3052 = vpop.f32.mrb[0].mxu0
      %3053 = vmatprep.mubr.f32.mxu0 %v2551
      %3054 = vmatmul.mubr.f32.gmra.mrb[0].mxu0 %v2548
      %v3055 = vpop.f32.mrb[0].mxu0
      %v3056 = vadd.f32 0.0, %v3055
      %v3057 = vpop.f32.mrb[0].mxu0
      %3058 = vmatprep.mubr.f32.mxu0 %v2561
      %3059 = vmatmul.mubr.f32.gmra.mrb[0].mxu0 %v2559
      %v3060 = vpop.f32.mrb[0].mxu0
      %v3061 = vadd.f32 0.0, %v3060
      %v3062 = vpop.f32.mrb[0].mxu0
      %3063 = vmatprep.mubr.f32.mxu0 %v2571
      %3064 = vmatmul.mubr.f32.gmra.mrb[0].mxu0 %v2568
      %v3065 = vpop.f32.mrb[0].mxu0
      %v3066 = vadd.f32 0.0, %v3065
      %v3067 = vpop.f32.mrb[0].mxu0
      %3068 = vmatprep.mubr.f32.mxu0 %v2581
      %3069 = vmatmul.mubr.f32.gmra.mrb[0].mxu0 %v2579
      %v3070 = vpop.f32.mrb[0].mxu0
      %v3071 = vadd.f32 0.0, %v3070
      %v3072 = vpop.f32.mrb[0].mxu0
      %3073 = vmatprep.mubr.f32.mxu0 %v2591
      %3074 = vmatmul.mubr.f32.gmra.mrb[0].mxu0 %v2588
      %v3075 = vpop.f32.mrb[0].mxu0
      %v3076 = vadd.f32 0.0, %v3075
      %v3077 = vpop.f32.mrb[0].mxu0
      %3078 = vmatprep.mubr.f32.mxu0 %v2601
      %3079 = vmatmul.mubr.f32.gmra.mrb[0].mxu0 %v2599
      %v3080 = vpop.f32.mrb[0].mxu0
      %v3081 = vadd.f32 0.0, %v3080
      %v3082 = vpop.f32.mrb[0].mxu0
      %3083 = vmatprep.mubr.f32.mxu0 %v2611
      %3084 = vmatmul.mubr.f32.gmra.mrb[0].mxu0 %v2608
      %v3085 = vpop.f32.mrb[0].mxu0
      %v3086 = vadd.f32 0.0, %v3085
      %v3087 = vpop.f32.mrb[0].mxu0
      %3088 = vmatprep.mubr.f32.mxu0 %v2621
      %3089 = vmatmul.mubr.f32.gmra.mrb[0].mxu0 %v2619
      %v3090 = vpop.f32.mrb[0].mxu0
      %v3091 = vadd.f32 0.0, %v3090
      %v3092 = vpop.f32.mrb[0].mxu0
      %3093 = vmatprep.mubr.f32.mxu0 %v2631
      %3094 = vmatmul.mubr.f32.gmra.mrb[0].mxu0 %v2628
      %v3095 = vpop.f32.mrb[0].mxu0
      %v3096 = vadd.f32 0.0, %v3095
      %v3097 = vpop.f32.mrb[0].mxu0
      %3098 = vmatprep.mubr.f32.mxu0 %v2641
      %3099 = vmatmul.mubr.f32.gmra.mrb[0].mxu0 %v2639
      %v3100 = vpop.f32.mrb[0].mxu0
      %v3101 = vadd.f32 0.0, %v3100
      %v3102 = vpop.f32.mrb[0].mxu0
      %3103 = vmatprep.mubr.f32.mxu0 %v2651
      %3104 = vmatmul.mubr.f32.gmra.mrb[0].mxu0 %v2648
      %v3105 = vpop.f32.mrb[0].mxu0
      %v3106 = vadd.f32 0.0, %v3105
      %v3107 = vpop.f32.mrb[0].mxu0
      %3108 = vmatprep.mubr.f32.mxu0 %v2661
      %3109 = vmatmul.mubr.f32.gmra.mrb[0].mxu0 %v2659
      %v3110 = vpop.f32.mrb[0].mxu0
      %v3111 = vadd.f32 0.0, %v3110
      %v3112 = vpop.f32.mrb[0].mxu0
      %3113 = vmatprep.mubr.f32.mxu0 %v2671
      %3114 = vmatmul.mubr.f32.gmra.mrb[0].mxu0 %v2668
      %v3115 = vpop.f32.mrb[0].mxu0
      %v3116 = vadd.f32 0.0, %v3115
      %v3117 = vpop.f32.mrb[0].mxu0
      %3118 = vmatprep.mubr.f32.mxu0 %v2681
      %3119 = vmatmul.mubr.f32.gmra.mrb[0].mxu0 %v2679
      %v3120 = vpop.f32.mrb[0].mxu0
      %v3121 = vadd.f32 0.0, %v3120
      %v3122 = vpop.f32.mrb[0].mxu0
      %3123 = vmatprep.mubr.f32.mxu0 %v2691
      %3124 = vmatmul.mubr.f32.gmra.mrb[0].mxu0 %v2688
      %v3125 = vpop.f32.mrb[0].mxu0
      %v3126 = vadd.f32 0.0, %v3125
      %v3127 = vpop.f32.mrb[0].mxu0
      %3128 = vmatprep.mubr.f32.mxu0 %v2701
      %3129 = vmatmul.mubr.f32.gmra.mrb[0].mxu0 %v2699
      %v3130 = vpop.f32.mrb[0].mxu0
      %v3131 = vadd.f32 0.0, %v3130
      %v3132 = vpop.f32.mrb[0].mxu0
      %3133 = vmatprep.mubr.f32.mxu0 %v2711
      %3134 = vmatmul.mubr.f32.gmra.mrb[0].mxu0 %v2708
      %v3135 = vpop.f32.mrb[0].mxu0
      %v3136 = vadd.f32 0.0, %v3135
      %v3137 = vpop.f32.mrb[0].mxu0
      %3138 = vmatprep.mubr.f32.mxu0 %v2721
      %3139 = vmatmul.mubr.f32.gmra.mrb[0].mxu0 %v2719
      %v3140 = vpop.f32.mrb[0].mxu0
      %v3141 = vadd.f32 0.0, %v3140
      %v3142 = vpop.f32.mrb[0].mxu0
      %3143 = vdwg.mxu0
      %3144 = vmatprep.subr.mxu0 0.0
      %3145 = vmatpush1.msra.mxu0 %v2887
      %3146 = vmatprep.subr.mxu0 0.0
      %3147 = vmatpush1.msra.mxu0 %v2888
      %3148 = vmatprep.subr.mxu0 0.0
      %3149 = vmatpush1.msra.mxu0 %v2889
      %3150 = vmatprep.subr.mxu0 0.0
      %3151 = vmatpush1.msra.mxu0 %v2890
      %3152 = vmatprep.subr.mxu0 0.0
      %3153 = vmatpush1.msra.mxu0 %v2891
      %3154 = vmatprep.subr.mxu0 0.0
      %3155 = vmatpush1.msra.mxu0 %v2892
      %3156 = vmatprep.subr.mxu0 0.0
      %3157 = vmatpush1.msra.mxu0 %v2893
      %3158 = vmatprep.subr.mxu0 0.0
      %3159 = vmatpush1.msra.mxu0 %v2894
      %3160 = vmatprep.subr.mxu0 0.0
      %3161 = vmatpush1.msra.mxu0 %v2895
      %3162 = vmatprep.subr.mxu0 0.0
      %3163 = vmatpush1.msra.mxu0 %v2896
      %3164 = vmatprep.subr.mxu0 0.0
      %3165 = vmatpush1.msra.mxu0 %v2897
      %3166 = vmatprep.subr.mxu0 0.0
      %3167 = vmatpush1.msra.mxu0 %v2898
      %3168 = vmatprep.subr.mxu0 0.0
      %3169 = vmatpush1.msra.mxu0 %v2899
      %3170 = vmatprep.subr.mxu0 0.0
      %3171 = vmatpush1.msra.mxu0 %v2900
      %3172 = vmatprep.subr.mxu0 0.0
      %3173 = vmatpush1.msra.mxu0 %v2901
      %3174 = vmatprep.subr.mxu0 0.0
      %3175 = vmatpush1.msra.mxu0 %v2902
      %3176 = vmatprep.subr.mxu0 0.0
      %3177 = vmatpush1.msra.mxu0 %v2903
      %3178 = vmatprep.subr.mxu0 0.0
      %3179 = vmatpush1.msra.mxu0 %v2904
      %3180 = vmatprep.subr.mxu0 0.0
      %3181 = vmatpush1.msra.mxu0 %v2905
      %3182 = vmatprep.subr.mxu0 0.0
      %3183 = vmatpush1.msra.mxu0 %v2906
      %3184 = vmatprep.subr.mxu0 0.0
      %3185 = vmatpush1.msra.mxu0 %v2907
      %3186 = vmatprep.subr.mxu0 0.0
      %3187 = vmatpush1.msra.mxu0 %v2908
      %3188 = vmatprep.subr.mxu0 0.0
      %3189 = vmatpush1.msra.mxu0 %v2909
      %3190 = vmatprep.subr.mxu0 0.0
      %3191 = vmatpush1.msra.mxu0 %v2910
      %3192 = vmatprep.subr.mxu0 0.0
      %3193 = vmatpush1.msra.mxu0 %v2911
      %3194 = vmatprep.subr.mxu0 0.0
      %3195 = vmatpush1.msra.mxu0 %v2912
      %3196 = vmatprep.subr.mxu0 0.0
      %3197 = vmatpush1.msra.mxu0 %v2913
      %3198 = vmatprep.subr.mxu0 0.0
      %3199 = vmatpush1.msra.mxu0 %v2914
      %3200 = vmatprep.subr.mxu0 0.0
      %3201 = vmatpush1.msra.mxu0 %v2915
      %3202 = vmatprep.subr.mxu0 0.0
      %3203 = vmatpush1.msra.mxu0 %v2916
      %3204 = vmatprep.subr.mxu0 0.0
      %3205 = vmatpush1.msra.mxu0 %v2917
      %3206 = vmatprep.subr.mxu0 0.0
      %3207 = vmatpush1.msra.mxu0 %v2918
      %3208 = vmatprep.mubr.f32.mxu0 %v2417
      %3209 = vmatmul.mubr.f32.gmra.mrb[0].mxu0 %v2414
      %v3210 = vpop.f32.mrb[0].mxu0
      %v3211 = vadd.f32 %v2986, %v3210
      %v3212 = vpop.f32.mrb[0].mxu0
      %3213 = vmatprep.mubr.f32.mxu0 %v2425
      %3214 = vmatmul.mubr.f32.gmra.mrb[0].mxu0 %v2423
      %v3215 = vpop.f32.mrb[0].mxu0
      %v3216 = vadd.f32 %v2991, %v3215
      %v3217 = vpop.f32.mrb[0].mxu0
      %3218 = vmatprep.mubr.f32.mxu0 %v2437
      %3219 = vmatmul.mubr.f32.gmra.mrb[0].mxu0 %v2434
      %v3220 = vpop.f32.mrb[0].mxu0
      %v3221 = vadd.f32 %v2996, %v3220
      %v3222 = vpop.f32.mrb[0].mxu0
      %3223 = vmatprep.mubr.f32.mxu0 %v2445
      %3224 = vmatmul.mubr.f32.gmra.mrb[0].mxu0 %v2443
      %v3225 = vpop.f32.mrb[0].mxu0
      %v3226 = vadd.f32 %v3001, %v3225
      %v3227 = vpop.f32.mrb[0].mxu0
      %3228 = vmatprep.mubr.f32.mxu0 %v2457
      %3229 = vmatmul.mubr.f32.gmra.mrb[0].mxu0 %v2454
      %v3230 = vpop.f32.mrb[0].mxu0
      %v3231 = vadd.f32 %v3006, %v3230
      %v3232 = vpop.f32.mrb[0].mxu0
      %3233 = vmatprep.mubr.f32.mxu0 %v2465
      %3234 = vmatmul.mubr.f32.gmra.mrb[0].mxu0 %v2463
      %v3235 = vpop.f32.mrb[0].mxu0
      %v3236 = vadd.f32 %v3011, %v3235
      %v3237 = vpop.f32.mrb[0].mxu0
      %3238 = vmatprep.mubr.f32.mxu0 %v2477
      %3239 = vmatmul.mubr.f32.gmra.mrb[0].mxu0 %v2474
      %v3240 = vpop.f32.mrb[0].mxu0
      %v3241 = vadd.f32 %v3016, %v3240
      %v3242 = vpop.f32.mrb[0].mxu0
      %3243 = vmatprep.mubr.f32.mxu0 %v2485
      %3244 = vmatmul.mubr.f32.gmra.mrb[0].mxu0 %v2483
      %v3245 = vpop.f32.mrb[0].mxu0
      %v3246 = vadd.f32 %v3021, %v3245
      %v3247 = vpop.f32.mrb[0].mxu0
      %3248 = vmatprep.mubr.f32.mxu0 %v2497
      %3249 = vmatmul.mubr.f32.gmra.mrb[0].mxu0 %v2494
      %v3250 = vpop.f32.mrb[0].mxu0
      %v3251 = vadd.f32 %v3026, %v3250
      %v3252 = vpop.f32.mrb[0].mxu0
      %3253 = vmatprep.mubr.f32.mxu0 %v2505
      %3254 = vmatmul.mubr.f32.gmra.mrb[0].mxu0 %v2503
      %v3255 = vpop.f32.mrb[0].mxu0
      %v3256 = vadd.f32 %v3031, %v3255
      %v3257 = vpop.f32.mrb[0].mxu0
      %3258 = vmatprep.mubr.f32.mxu0 %v2517
      %3259 = vmatmul.mubr.f32.gmra.mrb[0].mxu0 %v2514
      %v3260 = vpop.f32.mrb[0].mxu0
      %v3261 = vadd.f32 %v3036, %v3260
      %v3262 = vpop.f32.mrb[0].mxu0
      %3263 = vmatprep.mubr.f32.mxu0 %v2525
      %3264 = vmatmul.mubr.f32.gmra.mrb[0].mxu0 %v2523
      %v3265 = vpop.f32.mrb[0].mxu0
      %v3266 = vadd.f32 %v3041, %v3265
      %v3267 = vpop.f32.mrb[0].mxu0
      %3268 = vmatprep.mubr.f32.mxu0 %v2537
      %3269 = vmatmul.mubr.f32.gmra.mrb[0].mxu0 %v2534
      %v3270 = vpop.f32.mrb[0].mxu0
      %v3271 = vadd.f32 %v3046, %v3270
      %v3272 = vpop.f32.mrb[0].mxu0
      %3273 = vmatprep.mubr.f32.mxu0 %v2545
      %3274 = vmatmul.mubr.f32.gmra.mrb[0].mxu0 %v2543
      %v3275 = vpop.f32.mrb[0].mxu0
      %v3276 = vadd.f32 %v3051, %v3275
      %v3277 = vpop.f32.mrb[0].mxu0
      %3278 = vmatprep.mubr.f32.mxu0 %v2557
      %3279 = vmatmul.mubr.f32.gmra.mrb[0].mxu0 %v2554
      %v3280 = vpop.f32.mrb[0].mxu0
      %v3281 = vadd.f32 %v3056, %v3280
      %v3282 = vpop.f32.mrb[0].mxu0
      %3283 = vmatprep.mubr.f32.mxu0 %v2565
      %3284 = vmatmul.mubr.f32.gmra.mrb[0].mxu0 %v2563
      %v3285 = vpop.f32.mrb[0].mxu0
      %v3286 = vadd.f32 %v3061, %v3285
      %v3287 = vpop.f32.mrb[0].mxu0
      %3288 = vmatprep.mubr.f32.mxu0 %v2577
      %3289 = vmatmul.mubr.f32.gmra.mrb[0].mxu0 %v2574
      %v3290 = vpop.f32.mrb[0].mxu0
      %v3291 = vadd.f32 %v3066, %v3290
      %v3292 = vpop.f32.mrb[0].mxu0
      %3293 = vmatprep.mubr.f32.mxu0 %v2585
      %3294 = vmatmul.mubr.f32.gmra.mrb[0].mxu0 %v2583
      %v3295 = vpop.f32.mrb[0].mxu0
      %v3296 = vadd.f32 %v3071, %v3295
      %v3297 = vpop.f32.mrb[0].mxu0
      %3298 = vmatprep.mubr.f32.mxu0 %v2597
      %3299 = vmatmul.mubr.f32.gmra.mrb[0].mxu0 %v2594
      %v3300 = vpop.f32.mrb[0].mxu0
      %v3301 = vadd.f32 %v3076, %v3300
      %v3302 = vpop.f32.mrb[0].mxu0
      %3303 = vmatprep.mubr.f32.mxu0 %v2605
      %3304 = vmatmul.mubr.f32.gmra.mrb[0].mxu0 %v2603
      %v3305 = vpop.f32.mrb[0].mxu0
      %v3306 = vadd.f32 %v3081, %v3305
      %v3307 = vpop.f32.mrb[0].mxu0
      %3308 = vmatprep.mubr.f32.mxu0 %v2617
      %3309 = vmatmul.mubr.f32.gmra.mrb[0].mxu0 %v2614
      %v3310 = vpop.f32.mrb[0].mxu0
      %v3311 = vadd.f32 %v3086, %v3310
      %v3312 = vpop.f32.mrb[0].mxu0
      %3313 = vmatprep.mubr.f32.mxu0 %v2625
      %3314 = vmatmul.mubr.f32.gmra.mrb[0].mxu0 %v2623
      %v3315 = vpop.f32.mrb[0].mxu0
      %v3316 = vadd.f32 %v3091, %v3315
      %v3317 = vpop.f32.mrb[0].mxu0
      %3318 = vmatprep.mubr.f32.mxu0 %v2637
      %3319 = vmatmul.mubr.f32.gmra.mrb[0].mxu0 %v2634
      %v3320 = vpop.f32.mrb[0].mxu0
      %v3321 = vadd.f32 %v3096, %v3320
      %v3322 = vpop.f32.mrb[0].mxu0
      %3323 = vmatprep.mubr.f32.mxu0 %v2645
      %3324 = vmatmul.mubr.f32.gmra.mrb[0].mxu0 %v2643
      %v3325 = vpop.f32.mrb[0].mxu0
      %v3326 = vadd.f32 %v3101, %v3325
      %v3327 = vpop.f32.mrb[0].mxu0
      %3328 = vmatprep.mubr.f32.mxu0 %v2657
      %3329 = vmatmul.mubr.f32.gmra.mrb[0].mxu0 %v2654
      %v3330 = vpop.f32.mrb[0].mxu0
      %v3331 = vadd.f32 %v3106, %v3330
      %v3332 = vpop.f32.mrb[0].mxu0
      %3333 = vmatprep.mubr.f32.mxu0 %v2665
      %3334 = vmatmul.mubr.f32.gmra.mrb[0].mxu0 %v2663
      %v3335 = vpop.f32.mrb[0].mxu0
      %v3336 = vadd.f32 %v3111, %v3335
      %v3337 = vpop.f32.mrb[0].mxu0
      %3338 = vmatprep.mubr.f32.mxu0 %v2677
      %3339 = vmatmul.mubr.f32.gmra.mrb[0].mxu0 %v2674
      %v3340 = vpop.f32.mrb[0].mxu0
      %v3341 = vadd.f32 %v3116, %v3340
      %v3342 = vpop.f32.mrb[0].mxu0
      %3343 = vmatprep.mubr.f32.mxu0 %v2685
      %3344 = vmatmul.mubr.f32.gmra.mrb[0].mxu0 %v2683
      %v3345 = vpop.f32.mrb[0].mxu0
      %v3346 = vadd.f32 %v3121, %v3345
      %v3347 = vpop.f32.mrb[0].mxu0
      %3348 = vmatprep.mubr.f32.mxu0 %v2697
      %3349 = vmatmul.mubr.f32.gmra.mrb[0].mxu0 %v2694
      %v3350 = vpop.f32.mrb[0].mxu0
      %v3351 = vadd.f32 %v3126, %v3350
      %v3352 = vpop.f32.mrb[0].mxu0
      %3353 = vmatprep.mubr.f32.mxu0 %v2705
      %3354 = vmatmul.mubr.f32.gmra.mrb[0].mxu0 %v2703
      %v3355 = vpop.f32.mrb[0].mxu0
      %v3356 = vadd.f32 %v3131, %v3355
      %v3357 = vpop.f32.mrb[0].mxu0
      %3358 = vmatprep.mubr.f32.mxu0 %v2717
      %3359 = vmatmul.mubr.f32.gmra.mrb[0].mxu0 %v2714
      %v3360 = vpop.f32.mrb[0].mxu0
      %v3361 = vadd.f32 %v3136, %v3360
      %v3362 = vpop.f32.mrb[0].mxu0
      %3363 = vmatprep.mubr.f32.mxu0 %v2725
      %3364 = vmatmul.mubr.f32.gmra.mrb[0].mxu0 %v2723
      %v3365 = vpop.f32.mrb[0].mxu0
      %v3366 = vadd.f32 %v3141, %v3365
      %v3367 = vpop.f32.mrb[0].mxu0
      %3368 = vdwg.mxu0
      %v3369 = vadd.f32 %v1991, %v3211
      %v3370 = vadd.f32 %v1996, %v3216
      %v3371 = vadd.f32 %v2001, %v3221
      %v3372 = vadd.f32 %v2006, %v3226
      %v3373 = vadd.f32 %v2011, %v3231
      %v3374 = vadd.f32 %v2016, %v3236
      %v3375 = vadd.f32 %v2021, %v3241
      %v3376 = vadd.f32 %v2026, %v3246
      %v3377 = vadd.f32 %v2031, %v3251
      %v3378 = vadd.f32 %v2036, %v3256
      %v3379 = vadd.f32 %v2041, %v3261
      %v3380 = vadd.f32 %v2046, %v3266
      %v3381 = vadd.f32 %v2051, %v3271
      %v3382 = vadd.f32 %v2056, %v3276
      %v3383 = vadd.f32 %v2061, %v3281
      %v3384 = vadd.f32 %v2066, %v3286
      %v3385 = vadd.f32 %v2071, %v3291
      %v3386 = vadd.f32 %v2076, %v3296
      %v3387 = vadd.f32 %v2081, %v3301
      %v3388 = vadd.f32 %v2086, %v3306
      %v3389 = vadd.f32 %v2091, %v3311
      %v3390 = vadd.f32 %v2096, %v3316
      %v3391 = vadd.f32 %v2101, %v3321
      %v3392 = vadd.f32 %v2106, %v3326
      %v3393 = vadd.f32 %v2111, %v3331
      %v3394 = vadd.f32 %v2116, %v3336
      %v3395 = vadd.f32 %v2121, %v3341
      %v3396 = vadd.f32 %v2126, %v3346
      %v3397 = vadd.f32 %v2131, %v3351
      %v3398 = vadd.f32 %v2136, %v3356
      %v3399 = vadd.f32 %v2141, %v3361
      %v3400 = vadd.f32 %v2146, %v3366
      %s3401 = scalar_lea.vmem %s207, 96
      %v3402 = vld [vmem:[%s3401] sm:$0xff]
      %v3403 = vld [vmem:[%s3401 + $0x8] sm:$0xff]
      %v3404 = vld [vmem:[%s3401 + $0x10] sm:$0xff]
      %v3405 = vld [vmem:[%s3401 + $0x18] sm:$0xff]
      %v3406 = vld [vmem:[%s3401 + $0x20] sm:$0xff]
      %v3407 = vld [vmem:[%s3401 + $0x28] sm:$0xff]
      %v3408 = vld [vmem:[%s3401 + $0x30] sm:$0xff]
      %v3409 = vld [vmem:[%s3401 + $0x38] sm:$0xff]
      %v3410 = vld [vmem:[%s3401 + $0x60] sm:$0xff]
      %v3411 = vld [vmem:[%s3401 + $0x68] sm:$0xff]
      %v3412 = vld [vmem:[%s3401 + $0x70] sm:$0xff]
      %v3413 = vld [vmem:[%s3401 + $0x78] sm:$0xff]
      %v3414 = vld [vmem:[%s3401 + $0x80] sm:$0xff]
      %v3415 = vld [vmem:[%s3401 + $0x88] sm:$0xff]
      %v3416 = vld [vmem:[%s3401 + $0x90] sm:$0xff]
      %v3417 = vld [vmem:[%s3401 + $0x98] sm:$0xff]
      %v3418 = vld [vmem:[%s3401 + $0xc0] sm:$0xff]
      %v3419 = vld [vmem:[%s3401 + $0xc8] sm:$0xff]
      %v3420 = vld [vmem:[%s3401 + $0xd0] sm:$0xff]
      %v3421 = vld [vmem:[%s3401 + $0xd8] sm:$0xff]
      %v3422 = vld [vmem:[%s3401 + $0xe0] sm:$0xff]
      %v3423 = vld [vmem:[%s3401 + $0xe8] sm:$0xff]
      %v3424 = vld [vmem:[%s3401 + $0xf0] sm:$0xff]
      %v3425 = vld [vmem:[%s3401 + $0xf8] sm:$0xff]
      %v3426 = vld [vmem:[%s3401 + $0x120] sm:$0xff]
      %v3427 = vld [vmem:[%s3401 + $0x128] sm:$0xff]
      %v3428 = vld [vmem:[%s3401 + $0x130] sm:$0xff]
      %v3429 = vld [vmem:[%s3401 + $0x138] sm:$0xff]
      %v3430 = vld [vmem:[%s3401 + $0x140] sm:$0xff]
      %v3431 = vld [vmem:[%s3401 + $0x148] sm:$0xff]
      %v3432 = vld [vmem:[%s3401 + $0x150] sm:$0xff]
      %v3433 = vld [vmem:[%s3401 + $0x158] sm:$0xff]
      %v3434 = vld [vmem:[%s3401 + $0x180] sm:$0xff]
      %v3435 = vld [vmem:[%s3401 + $0x188] sm:$0xff]
      %v3436 = vld [vmem:[%s3401 + $0x190] sm:$0xff]
      %v3437 = vld [vmem:[%s3401 + $0x198] sm:$0xff]
      %v3438 = vld [vmem:[%s3401 + $0x1a0] sm:$0xff]
      %v3439 = vld [vmem:[%s3401 + $0x1a8] sm:$0xff]
      %v3440 = vld [vmem:[%s3401 + $0x1b0] sm:$0xff]
      %v3441 = vld [vmem:[%s3401 + $0x1b8] sm:$0xff]
      %v3442 = vld [vmem:[%s3401 + $0x1e0] sm:$0xff]
      %v3443 = vld [vmem:[%s3401 + $0x1e8] sm:$0xff]
      %v3444 = vld [vmem:[%s3401 + $0x1f0] sm:$0xff]
      %v3445 = vld [vmem:[%s3401 + $0x1f8] sm:$0xff]
      %v3446 = vld [vmem:[%s3401 + $0x200] sm:$0xff]
      %v3447 = vld [vmem:[%s3401 + $0x208] sm:$0xff]
      %v3448 = vld [vmem:[%s3401 + $0x210] sm:$0xff]
      %v3449 = vld [vmem:[%s3401 + $0x218] sm:$0xff]
      %v3450 = vld [vmem:[%s3401 + $0x240] sm:$0xff]
      %v3451 = vld [vmem:[%s3401 + $0x248] sm:$0xff]
      %v3452 = vld [vmem:[%s3401 + $0x250] sm:$0xff]
      %v3453 = vld [vmem:[%s3401 + $0x258] sm:$0xff]
      %v3454 = vld [vmem:[%s3401 + $0x260] sm:$0xff]
      %v3455 = vld [vmem:[%s3401 + $0x268] sm:$0xff]
      %v3456 = vld [vmem:[%s3401 + $0x270] sm:$0xff]
      %v3457 = vld [vmem:[%s3401 + $0x278] sm:$0xff]
      %v3458 = vld [vmem:[%s3401 + $0x2a0] sm:$0xff]
      %v3459 = vld [vmem:[%s3401 + $0x2a8] sm:$0xff]
      %v3460 = vld [vmem:[%s3401 + $0x2b0] sm:$0xff]
      %v3461 = vld [vmem:[%s3401 + $0x2b8] sm:$0xff]
      %v3462 = vld [vmem:[%s3401 + $0x2c0] sm:$0xff]
      %v3463 = vld [vmem:[%s3401 + $0x2c8] sm:$0xff]
      %v3464 = vld [vmem:[%s3401 + $0x2d0] sm:$0xff]
      %v3465 = vld [vmem:[%s3401 + $0x2d8] sm:$0xff]
      %v3466 = vld [vmem:[%s3401 + $0x300] sm:$0xff]
      %v3467 = vld [vmem:[%s3401 + $0x308] sm:$0xff]
      %v3468 = vld [vmem:[%s3401 + $0x310] sm:$0xff]
      %v3469 = vld [vmem:[%s3401 + $0x318] sm:$0xff]
      %v3470 = vld [vmem:[%s3401 + $0x320] sm:$0xff]
      %v3471 = vld [vmem:[%s3401 + $0x328] sm:$0xff]
      %v3472 = vld [vmem:[%s3401 + $0x330] sm:$0xff]
      %v3473 = vld [vmem:[%s3401 + $0x338] sm:$0xff]
      %v3474 = vld [vmem:[%s3401 + $0x360] sm:$0xff]
      %v3475 = vld [vmem:[%s3401 + $0x368] sm:$0xff]
      %v3476 = vld [vmem:[%s3401 + $0x370] sm:$0xff]
      %v3477 = vld [vmem:[%s3401 + $0x378] sm:$0xff]
      %v3478 = vld [vmem:[%s3401 + $0x380] sm:$0xff]
      %v3479 = vld [vmem:[%s3401 + $0x388] sm:$0xff]
      %v3480 = vld [vmem:[%s3401 + $0x390] sm:$0xff]
      %v3481 = vld [vmem:[%s3401 + $0x398] sm:$0xff]
      %v3482 = vld [vmem:[%s3401 + $0x3c0] sm:$0xff]
      %v3483 = vld [vmem:[%s3401 + $0x3c8] sm:$0xff]
      %v3484 = vld [vmem:[%s3401 + $0x3d0] sm:$0xff]
      %v3485 = vld [vmem:[%s3401 + $0x3d8] sm:$0xff]
      %v3486 = vld [vmem:[%s3401 + $0x3e0] sm:$0xff]
      %v3487 = vld [vmem:[%s3401 + $0x3e8] sm:$0xff]
      %v3488 = vld [vmem:[%s3401 + $0x3f0] sm:$0xff]
      %v3489 = vld [vmem:[%s3401 + $0x3f8] sm:$0xff]
      %v3490 = vld [vmem:[%s3401 + $0x420] sm:$0xff]
      %v3491 = vld [vmem:[%s3401 + $0x428] sm:$0xff]
      %v3492 = vld [vmem:[%s3401 + $0x430] sm:$0xff]
      %v3493 = vld [vmem:[%s3401 + $0x438] sm:$0xff]
      %v3494 = vld [vmem:[%s3401 + $0x440] sm:$0xff]
      %v3495 = vld [vmem:[%s3401 + $0x448] sm:$0xff]
      %v3496 = vld [vmem:[%s3401 + $0x450] sm:$0xff]
      %v3497 = vld [vmem:[%s3401 + $0x458] sm:$0xff]
      %v3498 = vld [vmem:[%s3401 + $0x480] sm:$0xff]
      %v3499 = vld [vmem:[%s3401 + $0x488] sm:$0xff]
      %v3500 = vld [vmem:[%s3401 + $0x490] sm:$0xff]
      %v3501 = vld [vmem:[%s3401 + $0x498] sm:$0xff]
      %v3502 = vld [vmem:[%s3401 + $0x4a0] sm:$0xff]
      %v3503 = vld [vmem:[%s3401 + $0x4a8] sm:$0xff]
      %v3504 = vld [vmem:[%s3401 + $0x4b0] sm:$0xff]
      %v3505 = vld [vmem:[%s3401 + $0x4b8] sm:$0xff]
      %v3506 = vld [vmem:[%s3401 + $0x4e0] sm:$0xff]
      %v3507 = vld [vmem:[%s3401 + $0x4e8] sm:$0xff]
      %v3508 = vld [vmem:[%s3401 + $0x4f0] sm:$0xff]
      %v3509 = vld [vmem:[%s3401 + $0x4f8] sm:$0xff]
      %v3510 = vld [vmem:[%s3401 + $0x500] sm:$0xff]
      %v3511 = vld [vmem:[%s3401 + $0x508] sm:$0xff]
      %v3512 = vld [vmem:[%s3401 + $0x510] sm:$0xff]
      %v3513 = vld [vmem:[%s3401 + $0x518] sm:$0xff]
      %v3514 = vld [vmem:[%s3401 + $0x540] sm:$0xff]
      %v3515 = vld [vmem:[%s3401 + $0x548] sm:$0xff]
      %v3516 = vld [vmem:[%s3401 + $0x550] sm:$0xff]
      %v3517 = vld [vmem:[%s3401 + $0x558] sm:$0xff]
      %v3518 = vld [vmem:[%s3401 + $0x560] sm:$0xff]
      %v3519 = vld [vmem:[%s3401 + $0x568] sm:$0xff]
      %v3520 = vld [vmem:[%s3401 + $0x570] sm:$0xff]
      %v3521 = vld [vmem:[%s3401 + $0x578] sm:$0xff]
      %v3522 = vld [vmem:[%s3401 + $0x5a0] sm:$0xff]
      %v3523 = vld [vmem:[%s3401 + $0x5a8] sm:$0xff]
      %v3524 = vld [vmem:[%s3401 + $0x5b0] sm:$0xff]
      %v3525 = vld [vmem:[%s3401 + $0x5b8] sm:$0xff]
      %v3526 = vld [vmem:[%s3401 + $0x5c0] sm:$0xff]
      %v3527 = vld [vmem:[%s3401 + $0x5c8] sm:$0xff]
      %v3528 = vld [vmem:[%s3401 + $0x5d0] sm:$0xff]
      %v3529 = vld [vmem:[%s3401 + $0x5d8] sm:$0xff]
      %s3530 = scalar_lea.vmem %s1, 1536
      %v3531 = vld [vmem:[%s3530] sm:$0xff]
      %v3532 = vld [vmem:[%s3530 + $0x8] sm:$0xff]
      %v3533 = vld [vmem:[%s3530 + $0x10] sm:$0xff]
      %v3534 = vld [vmem:[%s3530 + $0x18] sm:$0xff]
      %v3535 = vld [vmem:[%s3530 + $0x20] sm:$0xff]
      %v3536 = vld [vmem:[%s3530 + $0x28] sm:$0xff]
      %v3537 = vld [vmem:[%s3530 + $0x30] sm:$0xff]
      %v3538 = vld [vmem:[%s3530 + $0x38] sm:$0xff]
      %v3539 = vld [vmem:[%s3530 + $0x40] sm:$0xff]
      %v3540 = vld [vmem:[%s3530 + $0x48] sm:$0xff]
      %v3541 = vld [vmem:[%s3530 + $0x50] sm:$0xff]
      %v3542 = vld [vmem:[%s3530 + $0x58] sm:$0xff]
      %v3543 = vld [vmem:[%s3530 + $0x60] sm:$0xff]
      %v3544 = vld [vmem:[%s3530 + $0x68] sm:$0xff]
      %v3545 = vld [vmem:[%s3530 + $0x70] sm:$0xff]
      %v3546 = vld [vmem:[%s3530 + $0x78] sm:$0xff]
      %v3547 = vld [vmem:[%s3530 + $0x80] sm:$0xff]
      %v3548 = vld [vmem:[%s3530 + $0x88] sm:$0xff]
      %v3549 = vld [vmem:[%s3530 + $0x90] sm:$0xff]
      %v3550 = vld [vmem:[%s3530 + $0x98] sm:$0xff]
      %v3551 = vld [vmem:[%s3530 + $0xa0] sm:$0xff]
      %v3552 = vld [vmem:[%s3530 + $0xa8] sm:$0xff]
      %v3553 = vld [vmem:[%s3530 + $0xb0] sm:$0xff]
      %v3554 = vld [vmem:[%s3530 + $0xb8] sm:$0xff]
      %v3555 = vld [vmem:[%s3530 + $0xc0] sm:$0xff]
      %v3556 = vld [vmem:[%s3530 + $0xc8] sm:$0xff]
      %v3557 = vld [vmem:[%s3530 + $0xd0] sm:$0xff]
      %v3558 = vld [vmem:[%s3530 + $0xd8] sm:$0xff]
      %v3559 = vld [vmem:[%s3530 + $0xe0] sm:$0xff]
      %v3560 = vld [vmem:[%s3530 + $0xe8] sm:$0xff]
      %v3561 = vld [vmem:[%s3530 + $0xf0] sm:$0xff]
      %v3562 = vld [vmem:[%s3530 + $0xf8] sm:$0xff]
      %v3563 = vld [vmem:[%s3530 + $0x100] sm:$0xff]
      %v3564 = vld [vmem:[%s3530 + $0x108] sm:$0xff]
      %v3565 = vld [vmem:[%s3530 + $0x110] sm:$0xff]
      %v3566 = vld [vmem:[%s3530 + $0x118] sm:$0xff]
      %v3567 = vld [vmem:[%s3530 + $0x120] sm:$0xff]
      %v3568 = vld [vmem:[%s3530 + $0x128] sm:$0xff]
      %v3569 = vld [vmem:[%s3530 + $0x130] sm:$0xff]
      %v3570 = vld [vmem:[%s3530 + $0x138] sm:$0xff]
      %v3571 = vld [vmem:[%s3530 + $0x140] sm:$0xff]
      %v3572 = vld [vmem:[%s3530 + $0x148] sm:$0xff]
      %v3573 = vld [vmem:[%s3530 + $0x150] sm:$0xff]
      %v3574 = vld [vmem:[%s3530 + $0x158] sm:$0xff]
      %v3575 = vld [vmem:[%s3530 + $0x160] sm:$0xff]
      %v3576 = vld [vmem:[%s3530 + $0x168] sm:$0xff]
      %v3577 = vld [vmem:[%s3530 + $0x170] sm:$0xff]
      %v3578 = vld [vmem:[%s3530 + $0x178] sm:$0xff]
      %v3579 = vld [vmem:[%s3530 + $0x180] sm:$0xff]
      %v3580 = vld [vmem:[%s3530 + $0x188] sm:$0xff]
      %v3581 = vld [vmem:[%s3530 + $0x190] sm:$0xff]
      %v3582 = vld [vmem:[%s3530 + $0x198] sm:$0xff]
      %v3583 = vld [vmem:[%s3530 + $0x1a0] sm:$0xff]
      %v3584 = vld [vmem:[%s3530 + $0x1a8] sm:$0xff]
      %v3585 = vld [vmem:[%s3530 + $0x1b0] sm:$0xff]
      %v3586 = vld [vmem:[%s3530 + $0x1b8] sm:$0xff]
      %v3587 = vld [vmem:[%s3530 + $0x1c0] sm:$0xff]
      %v3588 = vld [vmem:[%s3530 + $0x1c8] sm:$0xff]
      %v3589 = vld [vmem:[%s3530 + $0x1d0] sm:$0xff]
      %v3590 = vld [vmem:[%s3530 + $0x1d8] sm:$0xff]
      %v3591 = vld [vmem:[%s3530 + $0x1e0] sm:$0xff]
      %v3592 = vld [vmem:[%s3530 + $0x1e8] sm:$0xff]
      %v3593 = vld [vmem:[%s3530 + $0x1f0] sm:$0xff]
      %v3594 = vld [vmem:[%s3530 + $0x1f8] sm:$0xff]
      %3595 = vmatprep.subr.mxu0 0.0
      %3596 = vmatpush1.msra.mxu0 %v3531
      %3597 = vmatprep.subr.mxu0 0.0
      %3598 = vmatpush1.msra.mxu0 %v3532
      %3599 = vmatprep.subr.mxu0 0.0
      %3600 = vmatpush1.msra.mxu0 %v3533
      %3601 = vmatprep.subr.mxu0 0.0
      %3602 = vmatpush1.msra.mxu0 %v3534
      %3603 = vmatprep.subr.mxu0 0.0
      %3604 = vmatpush1.msra.mxu0 %v3535
      %3605 = vmatprep.subr.mxu0 0.0
      %3606 = vmatpush1.msra.mxu0 %v3536
      %3607 = vmatprep.subr.mxu0 0.0
      %3608 = vmatpush1.msra.mxu0 %v3537
      %3609 = vmatprep.subr.mxu0 0.0
      %3610 = vmatpush1.msra.mxu0 %v3538
      %3611 = vmatprep.subr.mxu0 0.0
      %3612 = vmatpush1.msra.mxu0 %v3539
      %3613 = vmatprep.subr.mxu0 0.0
      %3614 = vmatpush1.msra.mxu0 %v3540
      %3615 = vmatprep.subr.mxu0 0.0
      %3616 = vmatpush1.msra.mxu0 %v3541
      %3617 = vmatprep.subr.mxu0 0.0
      %3618 = vmatpush1.msra.mxu0 %v3542
      %3619 = vmatprep.subr.mxu0 0.0
      %3620 = vmatpush1.msra.mxu0 %v3543
      %3621 = vmatprep.subr.mxu0 0.0
      %3622 = vmatpush1.msra.mxu0 %v3544
      %3623 = vmatprep.subr.mxu0 0.0
      %3624 = vmatpush1.msra.mxu0 %v3545
      %3625 = vmatprep.subr.mxu0 0.0
      %3626 = vmatpush1.msra.mxu0 %v3546
      %3627 = vmatprep.subr.mxu0 0.0
      %3628 = vmatpush1.msra.mxu0 %v3547
      %3629 = vmatprep.subr.mxu0 0.0
      %3630 = vmatpush1.msra.mxu0 %v3548
      %3631 = vmatprep.subr.mxu0 0.0
      %3632 = vmatpush1.msra.mxu0 %v3549
      %3633 = vmatprep.subr.mxu0 0.0
      %3634 = vmatpush1.msra.mxu0 %v3550
      %3635 = vmatprep.subr.mxu0 0.0
      %3636 = vmatpush1.msra.mxu0 %v3551
      %3637 = vmatprep.subr.mxu0 0.0
      %3638 = vmatpush1.msra.mxu0 %v3552
      %3639 = vmatprep.subr.mxu0 0.0
      %3640 = vmatpush1.msra.mxu0 %v3553
      %3641 = vmatprep.subr.mxu0 0.0
      %3642 = vmatpush1.msra.mxu0 %v3554
      %3643 = vmatprep.subr.mxu0 0.0
      %3644 = vmatpush1.msra.mxu0 %v3555
      %3645 = vmatprep.subr.mxu0 0.0
      %3646 = vmatpush1.msra.mxu0 %v3556
      %3647 = vmatprep.subr.mxu0 0.0
      %3648 = vmatpush1.msra.mxu0 %v3557
      %3649 = vmatprep.subr.mxu0 0.0
      %3650 = vmatpush1.msra.mxu0 %v3558
      %3651 = vmatprep.subr.mxu0 0.0
      %3652 = vmatpush1.msra.mxu0 %v3559
      %3653 = vmatprep.subr.mxu0 0.0
      %3654 = vmatpush1.msra.mxu0 %v3560
      %3655 = vmatprep.subr.mxu0 0.0
      %3656 = vmatpush1.msra.mxu0 %v3561
      %3657 = vmatprep.subr.mxu0 0.0
      %3658 = vmatpush1.msra.mxu0 %v3562
      %3659 = vmatprep.mubr.f32.mxu0 %v3403
      %3660 = vmatmul.mubr.f32.gmra.mrb[0].mxu0 %v3402
      %v3661 = vpop.f32.mrb[0].mxu0
      %v3662 = vadd.f32 0.0, %v3661
      %v3663 = vpop.f32.mrb[0].mxu0
      %3664 = vmatprep.mubr.f32.mxu0 %v3407
      %3665 = vmatmul.mubr.f32.gmra.mrb[0].mxu0 %v3406
      %v3666 = vpop.f32.mrb[0].mxu0
      %v3667 = vadd.f32 0.0, %v3666
      %v3668 = vpop.f32.mrb[0].mxu0
      %3669 = vmatprep.mubr.f32.mxu0 %v3411
      %3670 = vmatmul.mubr.f32.gmra.mrb[0].mxu0 %v3410
      %v3671 = vpop.f32.mrb[0].mxu0
      %v3672 = vadd.f32 0.0, %v3671
      %v3673 = vpop.f32.mrb[0].mxu0
      %3674 = vmatprep.mubr.f32.mxu0 %v3415
      %3675 = vmatmul.mubr.f32.gmra.mrb[0].mxu0 %v3414
      %v3676 = vpop.f32.mrb[0].mxu0
      %v3677 = vadd.f32 0.0, %v3676
      %v3678 = vpop.f32.mrb[0].mxu0
      %3679 = vmatprep.mubr.f32.mxu0 %v3419
      %3680 = vmatmul.mubr.f32.gmra.mrb[0].mxu0 %v3418
      %v3681 = vpop.f32.mrb[0].mxu0
      %v3682 = vadd.f32 0.0, %v3681
      %v3683 = vpop.f32.mrb[0].mxu0
      %3684 = vmatprep.mubr.f32.mxu0 %v3423
      %3685 = vmatmul.mubr.f32.gmra.mrb[0].mxu0 %v3422
      %v3686 = vpop.f32.mrb[0].mxu0
      %v3687 = vadd.f32 0.0, %v3686
      %v3688 = vpop.f32.mrb[0].mxu0
      %3689 = vmatprep.mubr.f32.mxu0 %v3427
      %3690 = vmatmul.mubr.f32.gmra.mrb[0].mxu0 %v3426
      %v3691 = vpop.f32.mrb[0].mxu0
      %v3692 = vadd.f32 0.0, %v3691
      %v3693 = vpop.f32.mrb[0].mxu0
      %3694 = vmatprep.mubr.f32.mxu0 %v3431
      %3695 = vmatmul.mubr.f32.gmra.mrb[0].mxu0 %v3430
      %v3696 = vpop.f32.mrb[0].mxu0
      %v3697 = vadd.f32 0.0, %v3696
      %v3698 = vpop.f32.mrb[0].mxu0
      %3699 = vmatprep.mubr.f32.mxu0 %v3435
      %3700 = vmatmul.mubr.f32.gmra.mrb[0].mxu0 %v3434
      %v3701 = vpop.f32.mrb[0].mxu0
      %v3702 = vadd.f32 0.0, %v3701
      %v3703 = vpop.f32.mrb[0].mxu0
      %3704 = vmatprep.mubr.f32.mxu0 %v3439
      %3705 = vmatmul.mubr.f32.gmra.mrb[0].mxu0 %v3438
      %v3706 = vpop.f32.mrb[0].mxu0
      %v3707 = vadd.f32 0.0, %v3706
      %v3708 = vpop.f32.mrb[0].mxu0
      %3709 = vmatprep.mubr.f32.mxu0 %v3443
      %3710 = vmatmul.mubr.f32.gmra.mrb[0].mxu0 %v3442
      %v3711 = vpop.f32.mrb[0].mxu0
      %v3712 = vadd.f32 0.0, %v3711
      %v3713 = vpop.f32.mrb[0].mxu0
      %3714 = vmatprep.mubr.f32.mxu0 %v3447
      %3715 = vmatmul.mubr.f32.gmra.mrb[0].mxu0 %v3446
      %v3716 = vpop.f32.mrb[0].mxu0
      %v3717 = vadd.f32 0.0, %v3716
      %v3718 = vpop.f32.mrb[0].mxu0
      %3719 = vmatprep.mubr.f32.mxu0 %v3451
      %3720 = vmatmul.mubr.f32.gmra.mrb[0].mxu0 %v3450
      %v3721 = vpop.f32.mrb[0].mxu0
      %v3722 = vadd.f32 0.0, %v3721
      %v3723 = vpop.f32.mrb[0].mxu0
      %3724 = vmatprep.mubr.f32.mxu0 %v3455
      %3725 = vmatmul.mubr.f32.gmra.mrb[0].mxu0 %v3454
      %v3726 = vpop.f32.mrb[0].mxu0
      %v3727 = vadd.f32 0.0, %v3726
      %v3728 = vpop.f32.mrb[0].mxu0
      %3729 = vmatprep.mubr.f32.mxu0 %v3459
      %3730 = vmatmul.mubr.f32.gmra.mrb[0].mxu0 %v3458
      %v3731 = vpop.f32.mrb[0].mxu0
      %v3732 = vadd.f32 0.0, %v3731
      %v3733 = vpop.f32.mrb[0].mxu0
      %3734 = vmatprep.mubr.f32.mxu0 %v3463
      %3735 = vmatmul.mubr.f32.gmra.mrb[0].mxu0 %v3462
      %v3736 = vpop.f32.mrb[0].mxu0
      %v3737 = vadd.f32 0.0, %v3736
      %v3738 = vpop.f32.mrb[0].mxu0
      %3739 = vmatprep.mubr.f32.mxu0 %v3467
      %3740 = vmatmul.mubr.f32.gmra.mrb[0].mxu0 %v3466
      %v3741 = vpop.f32.mrb[0].mxu0
      %v3742 = vadd.f32 0.0, %v3741
      %v3743 = vpop.f32.mrb[0].mxu0
      %3744 = vmatprep.mubr.f32.mxu0 %v3471
      %3745 = vmatmul.mubr.f32.gmra.mrb[0].mxu0 %v3470
      %v3746 = vpop.f32.mrb[0].mxu0
      %v3747 = vadd.f32 0.0, %v3746
      %v3748 = vpop.f32.mrb[0].mxu0
      %3749 = vmatprep.mubr.f32.mxu0 %v3475
      %3750 = vmatmul.mubr.f32.gmra.mrb[0].mxu0 %v3474
      %v3751 = vpop.f32.mrb[0].mxu0
      %v3752 = vadd.f32 0.0, %v3751
      %v3753 = vpop.f32.mrb[0].mxu0
      %3754 = vmatprep.mubr.f32.mxu0 %v3479
      %3755 = vmatmul.mubr.f32.gmra.mrb[0].mxu0 %v3478
      %v3756 = vpop.f32.mrb[0].mxu0
      %v3757 = vadd.f32 0.0, %v3756
      %v3758 = vpop.f32.mrb[0].mxu0
      %3759 = vmatprep.mubr.f32.mxu0 %v3483
      %3760 = vmatmul.mubr.f32.gmra.mrb[0].mxu0 %v3482
      %v3761 = vpop.f32.mrb[0].mxu0
      %v3762 = vadd.f32 0.0, %v3761
      %v3763 = vpop.f32.mrb[0].mxu0
      %3764 = vmatprep.mubr.f32.mxu0 %v3487
      %3765 = vmatmul.mubr.f32.gmra.mrb[0].mxu0 %v3486
      %v3766 = vpop.f32.mrb[0].mxu0
      %v3767 = vadd.f32 0.0, %v3766
      %v3768 = vpop.f32.mrb[0].mxu0
      %3769 = vmatprep.mubr.f32.mxu0 %v3491
      %3770 = vmatmul.mubr.f32.gmra.mrb[0].mxu0 %v3490
      %v3771 = vpop.f32.mrb[0].mxu0
      %v3772 = vadd.f32 0.0, %v3771
      %v3773 = vpop.f32.mrb[0].mxu0
      %3774 = vmatprep.mubr.f32.mxu0 %v3495
      %3775 = vmatmul.mubr.f32.gmra.mrb[0].mxu0 %v3494
      %v3776 = vpop.f32.mrb[0].mxu0
      %v3777 = vadd.f32 0.0, %v3776
      %v3778 = vpop.f32.mrb[0].mxu0
      %3779 = vmatprep.mubr.f32.mxu0 %v3499
      %3780 = vmatmul.mubr.f32.gmra.mrb[0].mxu0 %v3498
      %v3781 = vpop.f32.mrb[0].mxu0
      %v3782 = vadd.f32 0.0, %v3781
      %v3783 = vpop.f32.mrb[0].mxu0
      %3784 = vmatprep.mubr.f32.mxu0 %v3503
      %3785 = vmatmul.mubr.f32.gmra.mrb[0].mxu0 %v3502
      %v3786 = vpop.f32.mrb[0].mxu0
      %v3787 = vadd.f32 0.0, %v3786
      %v3788 = vpop.f32.mrb[0].mxu0
      %3789 = vmatprep.mubr.f32.mxu0 %v3507
      %3790 = vmatmul.mubr.f32.gmra.mrb[0].mxu0 %v3506
      %v3791 = vpop.f32.mrb[0].mxu0
      %v3792 = vadd.f32 0.0, %v3791
      %v3793 = vpop.f32.mrb[0].mxu0
      %3794 = vmatprep.mubr.f32.mxu0 %v3511
      %3795 = vmatmul.mubr.f32.gmra.mrb[0].mxu0 %v3510
      %v3796 = vpop.f32.mrb[0].mxu0
      %v3797 = vadd.f32 0.0, %v3796
      %v3798 = vpop.f32.mrb[0].mxu0
      %3799 = vmatprep.mubr.f32.mxu0 %v3515
      %3800 = vmatmul.mubr.f32.gmra.mrb[0].mxu0 %v3514
      %v3801 = vpop.f32.mrb[0].mxu0
      %v3802 = vadd.f32 0.0, %v3801
      %v3803 = vpop.f32.mrb[0].mxu0
      %3804 = vmatprep.mubr.f32.mxu0 %v3519
      %3805 = vmatmul.mubr.f32.gmra.mrb[0].mxu0 %v3518
      %v3806 = vpop.f32.mrb[0].mxu0
      %v3807 = vadd.f32 0.0, %v3806
      %v3808 = vpop.f32.mrb[0].mxu0
      %3809 = vmatprep.mubr.f32.mxu0 %v3523
      %3810 = vmatmul.mubr.f32.gmra.mrb[0].mxu0 %v3522
      %v3811 = vpop.f32.mrb[0].mxu0
      %v3812 = vadd.f32 0.0, %v3811
      %v3813 = vpop.f32.mrb[0].mxu0
      %3814 = vmatprep.mubr.f32.mxu0 %v3527
      %3815 = vmatmul.mubr.f32.gmra.mrb[0].mxu0 %v3526
      %v3816 = vpop.f32.mrb[0].mxu0
      %v3817 = vadd.f32 0.0, %v3816
      %v3818 = vpop.f32.mrb[0].mxu0
      %3819 = vdwg.mxu0
      %3820 = vmatprep.subr.mxu0 0.0
      %3821 = vmatpush1.msra.mxu0 %v3563
      %3822 = vmatprep.subr.mxu0 0.0
      %3823 = vmatpush1.msra.mxu0 %v3564
      %3824 = vmatprep.subr.mxu0 0.0
      %3825 = vmatpush1.msra.mxu0 %v3565
      %3826 = vmatprep.subr.mxu0 0.0
      %3827 = vmatpush1.msra.mxu0 %v3566
      %3828 = vmatprep.subr.mxu0 0.0
      %3829 = vmatpush1.msra.mxu0 %v3567
      %3830 = vmatprep.subr.mxu0 0.0
      %3831 = vmatpush1.msra.mxu0 %v3568
      %3832 = vmatprep.subr.mxu0 0.0
      %3833 = vmatpush1.msra.mxu0 %v3569
      %3834 = vmatprep.subr.mxu0 0.0
      %3835 = vmatpush1.msra.mxu0 %v3570
      %3836 = vmatprep.subr.mxu0 0.0
      %3837 = vmatpush1.msra.mxu0 %v3571
      %3838 = vmatprep.subr.mxu0 0.0
      %3839 = vmatpush1.msra.mxu0 %v3572
      %3840 = vmatprep.subr.mxu0 0.0
      %3841 = vmatpush1.msra.mxu0 %v3573
      %3842 = vmatprep.subr.mxu0 0.0
      %3843 = vmatpush1.msra.mxu0 %v3574
      %3844 = vmatprep.subr.mxu0 0.0
      %3845 = vmatpush1.msra.mxu0 %v3575
      %3846 = vmatprep.subr.mxu0 0.0
      %3847 = vmatpush1.msra.mxu0 %v3576
      %3848 = vmatprep.subr.mxu0 0.0
      %3849 = vmatpush1.msra.mxu0 %v3577
      %3850 = vmatprep.subr.mxu0 0.0
      %3851 = vmatpush1.msra.mxu0 %v3578
      %3852 = vmatprep.subr.mxu0 0.0
      %3853 = vmatpush1.msra.mxu0 %v3579
      %3854 = vmatprep.subr.mxu0 0.0
      %3855 = vmatpush1.msra.mxu0 %v3580
      %3856 = vmatprep.subr.mxu0 0.0
      %3857 = vmatpush1.msra.mxu0 %v3581
      %3858 = vmatprep.subr.mxu0 0.0
      %3859 = vmatpush1.msra.mxu0 %v3582
      %3860 = vmatprep.subr.mxu0 0.0
      %3861 = vmatpush1.msra.mxu0 %v3583
      %3862 = vmatprep.subr.mxu0 0.0
      %3863 = vmatpush1.msra.mxu0 %v3584
      %3864 = vmatprep.subr.mxu0 0.0
      %3865 = vmatpush1.msra.mxu0 %v3585
      %3866 = vmatprep.subr.mxu0 0.0
      %3867 = vmatpush1.msra.mxu0 %v3586
      %3868 = vmatprep.subr.mxu0 0.0
      %3869 = vmatpush1.msra.mxu0 %v3587
      %3870 = vmatprep.subr.mxu0 0.0
      %3871 = vmatpush1.msra.mxu0 %v3588
      %3872 = vmatprep.subr.mxu0 0.0
      %3873 = vmatpush1.msra.mxu0 %v3589
      %3874 = vmatprep.subr.mxu0 0.0
      %3875 = vmatpush1.msra.mxu0 %v3590
      %3876 = vmatprep.subr.mxu0 0.0
      %3877 = vmatpush1.msra.mxu0 %v3591
      %3878 = vmatprep.subr.mxu0 0.0
      %3879 = vmatpush1.msra.mxu0 %v3592
      %3880 = vmatprep.subr.mxu0 0.0
      %3881 = vmatpush1.msra.mxu0 %v3593
      %3882 = vmatprep.subr.mxu0 0.0
      %3883 = vmatpush1.msra.mxu0 %v3594
      %3884 = vmatprep.mubr.f32.mxu0 %v3405
      %3885 = vmatmul.mubr.f32.gmra.mrb[0].mxu0 %v3404
      %v3886 = vpop.f32.mrb[0].mxu0
      %v3887 = vadd.f32 %v3662, %v3886
      %v3888 = vpop.f32.mrb[0].mxu0
      %3889 = vmatprep.mubr.f32.mxu0 %v3409
      %3890 = vmatmul.mubr.f32.gmra.mrb[0].mxu0 %v3408
      %v3891 = vpop.f32.mrb[0].mxu0
      %v3892 = vadd.f32 %v3667, %v3891
      %v3893 = vpop.f32.mrb[0].mxu0
      %3894 = vmatprep.mubr.f32.mxu0 %v3413
      %3895 = vmatmul.mubr.f32.gmra.mrb[0].mxu0 %v3412
      %v3896 = vpop.f32.mrb[0].mxu0
      %v3897 = vadd.f32 %v3672, %v3896
      %v3898 = vpop.f32.mrb[0].mxu0
      %3899 = vmatprep.mubr.f32.mxu0 %v3417
      %3900 = vmatmul.mubr.f32.gmra.mrb[0].mxu0 %v3416
      %v3901 = vpop.f32.mrb[0].mxu0
      %v3902 = vadd.f32 %v3677, %v3901
      %v3903 = vpop.f32.mrb[0].mxu0
      %3904 = vmatprep.mubr.f32.mxu0 %v3421
      %3905 = vmatmul.mubr.f32.gmra.mrb[0].mxu0 %v3420
      %v3906 = vpop.f32.mrb[0].mxu0
      %v3907 = vadd.f32 %v3682, %v3906
      %v3908 = vpop.f32.mrb[0].mxu0
      %3909 = vmatprep.mubr.f32.mxu0 %v3425
      %3910 = vmatmul.mubr.f32.gmra.mrb[0].mxu0 %v3424
      %v3911 = vpop.f32.mrb[0].mxu0
      %v3912 = vadd.f32 %v3687, %v3911
      %v3913 = vpop.f32.mrb[0].mxu0
      %3914 = vmatprep.mubr.f32.mxu0 %v3429
      %3915 = vmatmul.mubr.f32.gmra.mrb[0].mxu0 %v3428
      %v3916 = vpop.f32.mrb[0].mxu0
      %v3917 = vadd.f32 %v3692, %v3916
      %v3918 = vpop.f32.mrb[0].mxu0
      %3919 = vmatprep.mubr.f32.mxu0 %v3433
      %3920 = vmatmul.mubr.f32.gmra.mrb[0].mxu0 %v3432
      %v3921 = vpop.f32.mrb[0].mxu0
      %v3922 = vadd.f32 %v3697, %v3921
      %v3923 = vpop.f32.mrb[0].mxu0
      %3924 = vmatprep.mubr.f32.mxu0 %v3437
      %3925 = vmatmul.mubr.f32.gmra.mrb[0].mxu0 %v3436
      %v3926 = vpop.f32.mrb[0].mxu0
      %v3927 = vadd.f32 %v3702, %v3926
      %v3928 = vpop.f32.mrb[0].mxu0
      %3929 = vmatprep.mubr.f32.mxu0 %v3441
      %3930 = vmatmul.mubr.f32.gmra.mrb[0].mxu0 %v3440
      %v3931 = vpop.f32.mrb[0].mxu0
      %v3932 = vadd.f32 %v3707, %v3931
      %v3933 = vpop.f32.mrb[0].mxu0
      %3934 = vmatprep.mubr.f32.mxu0 %v3445
      %3935 = vmatmul.mubr.f32.gmra.mrb[0].mxu0 %v3444
      %v3936 = vpop.f32.mrb[0].mxu0
      %v3937 = vadd.f32 %v3712, %v3936
      %v3938 = vpop.f32.mrb[0].mxu0
      %3939 = vmatprep.mubr.f32.mxu0 %v3449
      %3940 = vmatmul.mubr.f32.gmra.mrb[0].mxu0 %v3448
      %v3941 = vpop.f32.mrb[0].mxu0
      %v3942 = vadd.f32 %v3717, %v3941
      %v3943 = vpop.f32.mrb[0].mxu0
      %3944 = vmatprep.mubr.f32.mxu0 %v3453
      %3945 = vmatmul.mubr.f32.gmra.mrb[0].mxu0 %v3452
      %v3946 = vpop.f32.mrb[0].mxu0
      %v3947 = vadd.f32 %v3722, %v3946
      %v3948 = vpop.f32.mrb[0].mxu0
      %3949 = vmatprep.mubr.f32.mxu0 %v3457
      %3950 = vmatmul.mubr.f32.gmra.mrb[0].mxu0 %v3456
      %v3951 = vpop.f32.mrb[0].mxu0
      %v3952 = vadd.f32 %v3727, %v3951
      %v3953 = vpop.f32.mrb[0].mxu0
      %3954 = vmatprep.mubr.f32.mxu0 %v3461
      %3955 = vmatmul.mubr.f32.gmra.mrb[0].mxu0 %v3460
      %v3956 = vpop.f32.mrb[0].mxu0
      %v3957 = vadd.f32 %v3732, %v3956
      %v3958 = vpop.f32.mrb[0].mxu0
      %3959 = vmatprep.mubr.f32.mxu0 %v3465
      %3960 = vmatmul.mubr.f32.gmra.mrb[0].mxu0 %v3464
      %v3961 = vpop.f32.mrb[0].mxu0
      %v3962 = vadd.f32 %v3737, %v3961
      %v3963 = vpop.f32.mrb[0].mxu0
      %3964 = vmatprep.mubr.f32.mxu0 %v3469
      %3965 = vmatmul.mubr.f32.gmra.mrb[0].mxu0 %v3468
      %v3966 = vpop.f32.mrb[0].mxu0
      %v3967 = vadd.f32 %v3742, %v3966
      %v3968 = vpop.f32.mrb[0].mxu0
      %3969 = vmatprep.mubr.f32.mxu0 %v3473
      %3970 = vmatmul.mubr.f32.gmra.mrb[0].mxu0 %v3472
      %v3971 = vpop.f32.mrb[0].mxu0
      %v3972 = vadd.f32 %v3747, %v3971
      %v3973 = vpop.f32.mrb[0].mxu0
      %3974 = vmatprep.mubr.f32.mxu0 %v3477
      %3975 = vmatmul.mubr.f32.gmra.mrb[0].mxu0 %v3476
      %v3976 = vpop.f32.mrb[0].mxu0
      %v3977 = vadd.f32 %v3752, %v3976
      %v3978 = vpop.f32.mrb[0].mxu0
      %3979 = vmatprep.mubr.f32.mxu0 %v3481
      %3980 = vmatmul.mubr.f32.gmra.mrb[0].mxu0 %v3480
      %v3981 = vpop.f32.mrb[0].mxu0
      %v3982 = vadd.f32 %v3757, %v3981
      %v3983 = vpop.f32.mrb[0].mxu0
      %3984 = vmatprep.mubr.f32.mxu0 %v3485
      %3985 = vmatmul.mubr.f32.gmra.mrb[0].mxu0 %v3484
      %v3986 = vpop.f32.mrb[0].mxu0
      %v3987 = vadd.f32 %v3762, %v3986
      %v3988 = vpop.f32.mrb[0].mxu0
      %3989 = vmatprep.mubr.f32.mxu0 %v3489
      %3990 = vmatmul.mubr.f32.gmra.mrb[0].mxu0 %v3488
      %v3991 = vpop.f32.mrb[0].mxu0
      %v3992 = vadd.f32 %v3767, %v3991
      %v3993 = vpop.f32.mrb[0].mxu0
      %3994 = vmatprep.mubr.f32.mxu0 %v3493
      %3995 = vmatmul.mubr.f32.gmra.mrb[0].mxu0 %v3492
      %v3996 = vpop.f32.mrb[0].mxu0
      %v3997 = vadd.f32 %v3772, %v3996
      %v3998 = vpop.f32.mrb[0].mxu0
      %3999 = vmatprep.mubr.f32.mxu0 %v3497
      %4000 = vmatmul.mubr.f32.gmra.mrb[0].mxu0 %v3496
      %v4001 = vpop.f32.mrb[0].mxu0
      %v4002 = vadd.f32 %v3777, %v4001
      %v4003 = vpop.f32.mrb[0].mxu0
      %4004 = vmatprep.mubr.f32.mxu0 %v3501
      %4005 = vmatmul.mubr.f32.gmra.mrb[0].mxu0 %v3500
      %v4006 = vpop.f32.mrb[0].mxu0
      %v4007 = vadd.f32 %v3782, %v4006
      %v4008 = vpop.f32.mrb[0].mxu0
      %4009 = vmatprep.mubr.f32.mxu0 %v3505
      %4010 = vmatmul.mubr.f32.gmra.mrb[0].mxu0 %v3504
      %v4011 = vpop.f32.mrb[0].mxu0
      %v4012 = vadd.f32 %v3787, %v4011
      %v4013 = vpop.f32.mrb[0].mxu0
      %4014 = vmatprep.mubr.f32.mxu0 %v3509
      %4015 = vmatmul.mubr.f32.gmra.mrb[0].mxu0 %v3508
      %v4016 = vpop.f32.mrb[0].mxu0
      %v4017 = vadd.f32 %v3792, %v4016
      %v4018 = vpop.f32.mrb[0].mxu0
      %4019 = vmatprep.mubr.f32.mxu0 %v3513
      %4020 = vmatmul.mubr.f32.gmra.mrb[0].mxu0 %v3512
      %v4021 = vpop.f32.mrb[0].mxu0
      %v4022 = vadd.f32 %v3797, %v4021
      %v4023 = vpop.f32.mrb[0].mxu0
      %4024 = vmatprep.mubr.f32.mxu0 %v3517
      %4025 = vmatmul.mubr.f32.gmra.mrb[0].mxu0 %v3516
      %v4026 = vpop.f32.mrb[0].mxu0
      %v4027 = vadd.f32 %v3802, %v4026
      %v4028 = vpop.f32.mrb[0].mxu0
      %4029 = vmatprep.mubr.f32.mxu0 %v3521
      %4030 = vmatmul.mubr.f32.gmra.mrb[0].mxu0 %v3520
      %v4031 = vpop.f32.mrb[0].mxu0
      %v4032 = vadd.f32 %v3807, %v4031
      %v4033 = vpop.f32.mrb[0].mxu0
      %4034 = vmatprep.mubr.f32.mxu0 %v3525
      %4035 = vmatmul.mubr.f32.gmra.mrb[0].mxu0 %v3524
      %v4036 = vpop.f32.mrb[0].mxu0
      %v4037 = vadd.f32 %v3812, %v4036
      %v4038 = vpop.f32.mrb[0].mxu0
      %4039 = vmatprep.mubr.f32.mxu0 %v3529
      %4040 = vmatmul.mubr.f32.gmra.mrb[0].mxu0 %v3528
      %v4041 = vpop.f32.mrb[0].mxu0
      %v4042 = vadd.f32 %v3817, %v4041
      %v4043 = vpop.f32.mrb[0].mxu0
      %4044 = vdwg.mxu0
      %v4045 = vadd.f32 %v3369, %v3887
      %v4046 = vadd.f32 %v3370, %v3892
      %v4047 = vadd.f32 %v3371, %v3897
      %v4048 = vadd.f32 %v3372, %v3902
      %v4049 = vadd.f32 %v3373, %v3907
      %v4050 = vadd.f32 %v3374, %v3912
      %v4051 = vadd.f32 %v3375, %v3917
      %v4052 = vadd.f32 %v3376, %v3922
      %v4053 = vadd.f32 %v3377, %v3927
      %v4054 = vadd.f32 %v3378, %v3932
      %v4055 = vadd.f32 %v3379, %v3937
      %v4056 = vadd.f32 %v3380, %v3942
      %v4057 = vadd.f32 %v3381, %v3947
      %v4058 = vadd.f32 %v3382, %v3952
      %v4059 = vadd.f32 %v3383, %v3957
      %v4060 = vadd.f32 %v3384, %v3962
      %v4061 = vadd.f32 %v3385, %v3967
      %v4062 = vadd.f32 %v3386, %v3972
      %v4063 = vadd.f32 %v3387, %v3977
      %v4064 = vadd.f32 %v3388, %v3982
      %v4065 = vadd.f32 %v3389, %v3987
      %v4066 = vadd.f32 %v3390, %v3992
      %v4067 = vadd.f32 %v3391, %v3997
      %v4068 = vadd.f32 %v3392, %v4002
      %v4069 = vadd.f32 %v3393, %v4007
      %v4070 = vadd.f32 %v3394, %v4012
      %v4071 = vadd.f32 %v3395, %v4017
      %v4072 = vadd.f32 %v3396, %v4022
      %v4073 = vadd.f32 %v3397, %v4027
      %v4074 = vadd.f32 %v3398, %v4032
      %v4075 = vadd.f32 %v3399, %v4037
      %v4076 = vadd.f32 %v3400, %v4042
      %v4077 = vld [vmem:[%s3401] sm:$0xfe]
      %v4078 = vld [vmem:[%s3401 + $0x8] sm:$0xfe]
      %v4079 = vld [vmem:[%s3401 + $0x10] sm:$0xfe]
      %v4080 = vld [vmem:[%s3401 + $0x18] sm:$0xfe]
      %v4081 = vld [vmem:[%s3401 + $0x20] sm:$0xff]
      %v4082 = vld [vmem:[%s3401 + $0x28] sm:$0xff]
      %v4083 = vld [vmem:[%s3401 + $0x30] sm:$0xff]
      %v4084 = vld [vmem:[%s3401 + $0x38] sm:$0xff]
      %v4085 = vld [vmem:[%s3401 + $0x40] sm:$0x1]
      %v4086 = vld [vmem:[%s3401 + $0x48] sm:$0x1]
      %v4087 = vld [vmem:[%s3401 + $0x50] sm:$0x1]
      %v4088 = vld [vmem:[%s3401 + $0x58] sm:$0x1]
      %v4089 = vld [vmem:[%s3401 + $0x60] sm:$0xfe]
      %v4090 = vld [vmem:[%s3401 + $0x68] sm:$0xfe]
      %v4091 = vld [vmem:[%s3401 + $0x70] sm:$0xfe]
      %v4092 = vld [vmem:[%s3401 + $0x78] sm:$0xfe]
      %v4093 = vld [vmem:[%s3401 + $0x80] sm:$0xff]
      %v4094 = vld [vmem:[%s3401 + $0x88] sm:$0xff]
      %v4095 = vld [vmem:[%s3401 + $0x90] sm:$0xff]
      %v4096 = vld [vmem:[%s3401 + $0x98] sm:$0xff]
      %v4097 = vld [vmem:[%s3401 + $0xa0] sm:$0x1]
      %v4098 = vld [vmem:[%s3401 + $0xa8] sm:$0x1]
      %v4099 = vld [vmem:[%s3401 + $0xb0] sm:$0x1]
      %v4100 = vld [vmem:[%s3401 + $0xb8] sm:$0x1]
      %v4101 = vld [vmem:[%s3401 + $0xc0] sm:$0xfe]
      %v4102 = vld [vmem:[%s3401 + $0xc8] sm:$0xfe]
      %v4103 = vld [vmem:[%s3401 + $0xd0] sm:$0xfe]
      %v4104 = vld [vmem:[%s3401 + $0xd8] sm:$0xfe]
      %v4105 = vld [vmem:[%s3401 + $0xe0] sm:$0xff]
      %v4106 = vld [vmem:[%s3401 + $0xe8] sm:$0xff]
      %v4107 = vld [vmem:[%s3401 + $0xf0] sm:$0xff]
      %v4108 = vld [vmem:[%s3401 + $0xf8] sm:$0xff]
      %v4109 = vld [vmem:[%s3401 + $0x100] sm:$0x1]
      %v4110 = vld [vmem:[%s3401 + $0x108] sm:$0x1]
      %v4111 = vld [vmem:[%s3401 + $0x110] sm:$0x1]
      %v4112 = vld [vmem:[%s3401 + $0x118] sm:$0x1]
      %v4113 = vld [vmem:[%s3401 + $0x120] sm:$0xfe]
      %v4114 = vld [vmem:[%s3401 + $0x128] sm:$0xfe]
      %v4115 = vld [vmem:[%s3401 + $0x130] sm:$0xfe]
      %v4116 = vld [vmem:[%s3401 + $0x138] sm:$0xfe]
      %v4117 = vld [vmem:[%s3401 + $0x140] sm:$0xff]
      %v4118 = vld [vmem:[%s3401 + $0x148] sm:$0xff]
      %v4119 = vld [vmem:[%s3401 + $0x150] sm:$0xff]
      %v4120 = vld [vmem:[%s3401 + $0x158] sm:$0xff]
      %v4121 = vld [vmem:[%s3401 + $0x160] sm:$0x1]
      %v4122 = vld [vmem:[%s3401 + $0x168] sm:$0x1]
      %v4123 = vld [vmem:[%s3401 + $0x170] sm:$0x1]
      %v4124 = vld [vmem:[%s3401 + $0x178] sm:$0x1]
      %v4125 = vld [vmem:[%s3401 + $0x180] sm:$0xfe]
      %v4126 = vld [vmem:[%s3401 + $0x188] sm:$0xfe]
      %v4127 = vld [vmem:[%s3401 + $0x190] sm:$0xfe]
      %v4128 = vld [vmem:[%s3401 + $0x198] sm:$0xfe]
      %v4129 = vld [vmem:[%s3401 + $0x1a0] sm:$0xff]
      %v4130 = vld [vmem:[%s3401 + $0x1a8] sm:$0xff]
      %v4131 = vld [vmem:[%s3401 + $0x1b0] sm:$0xff]
      %v4132 = vld [vmem:[%s3401 + $0x1b8] sm:$0xff]
      %v4133 = vld [vmem:[%s3401 + $0x1c0] sm:$0x1]
      %v4134 = vld [vmem:[%s3401 + $0x1c8] sm:$0x1]
      %v4135 = vld [vmem:[%s3401 + $0x1d0] sm:$0x1]
      %v4136 = vld [vmem:[%s3401 + $0x1d8] sm:$0x1]
      %v4137 = vld [vmem:[%s3401 + $0x1e0] sm:$0xfe]
      %v4138 = vld [vmem:[%s3401 + $0x1e8] sm:$0xfe]
      %v4139 = vld [vmem:[%s3401 + $0x1f0] sm:$0xfe]
      %v4140 = vld [vmem:[%s3401 + $0x1f8] sm:$0xfe]
      %v4141 = vld [vmem:[%s3401 + $0x200] sm:$0xff]
      %v4142 = vld [vmem:[%s3401 + $0x208] sm:$0xff]
      %v4143 = vld [vmem:[%s3401 + $0x210] sm:$0xff]
      %v4144 = vld [vmem:[%s3401 + $0x218] sm:$0xff]
      %v4145 = vld [vmem:[%s3401 + $0x220] sm:$0x1]
      %v4146 = vld [vmem:[%s3401 + $0x228] sm:$0x1]
      %v4147 = vld [vmem:[%s3401 + $0x230] sm:$0x1]
      %v4148 = vld [vmem:[%s3401 + $0x238] sm:$0x1]
      %v4149 = vld [vmem:[%s3401 + $0x240] sm:$0xfe]
      %v4150 = vld [vmem:[%s3401 + $0x248] sm:$0xfe]
      %v4151 = vld [vmem:[%s3401 + $0x250] sm:$0xfe]
      %v4152 = vld [vmem:[%s3401 + $0x258] sm:$0xfe]
      %v4153 = vld [vmem:[%s3401 + $0x260] sm:$0xff]
      %v4154 = vld [vmem:[%s3401 + $0x268] sm:$0xff]
      %v4155 = vld [vmem:[%s3401 + $0x270] sm:$0xff]
      %v4156 = vld [vmem:[%s3401 + $0x278] sm:$0xff]
      %v4157 = vld [vmem:[%s3401 + $0x280] sm:$0x1]
      %v4158 = vld [vmem:[%s3401 + $0x288] sm:$0x1]
      %v4159 = vld [vmem:[%s3401 + $0x290] sm:$0x1]
      %v4160 = vld [vmem:[%s3401 + $0x298] sm:$0x1]
      %v4161 = vld [vmem:[%s3401 + $0x2a0] sm:$0xfe]
      %v4162 = vld [vmem:[%s3401 + $0x2a8] sm:$0xfe]
      %v4163 = vld [vmem:[%s3401 + $0x2b0] sm:$0xfe]
      %v4164 = vld [vmem:[%s3401 + $0x2b8] sm:$0xfe]
      %v4165 = vld [vmem:[%s3401 + $0x2c0] sm:$0xff]
      %v4166 = vld [vmem:[%s3401 + $0x2c8] sm:$0xff]
      %v4167 = vld [vmem:[%s3401 + $0x2d0] sm:$0xff]
      %v4168 = vld [vmem:[%s3401 + $0x2d8] sm:$0xff]
      %v4169 = vld [vmem:[%s3401 + $0x2e0] sm:$0x1]
      %v4170 = vld [vmem:[%s3401 + $0x2e8] sm:$0x1]
      %v4171 = vld [vmem:[%s3401 + $0x2f0] sm:$0x1]
      %v4172 = vld [vmem:[%s3401 + $0x2f8] sm:$0x1]
      %v4173 = vld [vmem:[%s3401 + $0x300] sm:$0xfe]
      %v4174 = vld [vmem:[%s3401 + $0x308] sm:$0xfe]
      %v4175 = vld [vmem:[%s3401 + $0x310] sm:$0xfe]
      %v4176 = vld [vmem:[%s3401 + $0x318] sm:$0xfe]
      %v4177 = vld [vmem:[%s3401 + $0x320] sm:$0xff]
      %v4178 = vld [vmem:[%s3401 + $0x328] sm:$0xff]
      %v4179 = vld [vmem:[%s3401 + $0x330] sm:$0xff]
      %v4180 = vld [vmem:[%s3401 + $0x338] sm:$0xff]
      %v4181 = vld [vmem:[%s3401 + $0x340] sm:$0x1]
      %v4182 = vld [vmem:[%s3401 + $0x348] sm:$0x1]
      %v4183 = vld [vmem:[%s3401 + $0x350] sm:$0x1]
      %v4184 = vld [vmem:[%s3401 + $0x358] sm:$0x1]
      %v4185 = vld [vmem:[%s3401 + $0x360] sm:$0xfe]
      %v4186 = vld [vmem:[%s3401 + $0x368] sm:$0xfe]
      %v4187 = vld [vmem:[%s3401 + $0x370] sm:$0xfe]
      %v4188 = vld [vmem:[%s3401 + $0x378] sm:$0xfe]
      %v4189 = vld [vmem:[%s3401 + $0x380] sm:$0xff]
      %v4190 = vld [vmem:[%s3401 + $0x388] sm:$0xff]
      %v4191 = vld [vmem:[%s3401 + $0x390] sm:$0xff]
      %v4192 = vld [vmem:[%s3401 + $0x398] sm:$0xff]
      %v4193 = vld [vmem:[%s3401 + $0x3a0] sm:$0x1]
      %v4194 = vld [vmem:[%s3401 + $0x3a8] sm:$0x1]
      %v4195 = vld [vmem:[%s3401 + $0x3b0] sm:$0x1]
      %v4196 = vld [vmem:[%s3401 + $0x3b8] sm:$0x1]
      %v4197 = vld [vmem:[%s3401 + $0x3c0] sm:$0xfe]
      %v4198 = vld [vmem:[%s3401 + $0x3c8] sm:$0xfe]
      %v4199 = vld [vmem:[%s3401 + $0x3d0] sm:$0xfe]
      %v4200 = vld [vmem:[%s3401 + $0x3d8] sm:$0xfe]
      %v4201 = vld [vmem:[%s3401 + $0x3e0] sm:$0xff]
      %v4202 = vld [vmem:[%s3401 + $0x3e8] sm:$0xff]
      %v4203 = vld [vmem:[%s3401 + $0x3f0] sm:$0xff]
      %v4204 = vld [vmem:[%s3401 + $0x3f8] sm:$0xff]
      %v4205 = vld [vmem:[%s3401 + $0x400] sm:$0x1]
      %v4206 = vld [vmem:[%s3401 + $0x408] sm:$0x1]
      %v4207 = vld [vmem:[%s3401 + $0x410] sm:$0x1]
      %v4208 = vld [vmem:[%s3401 + $0x418] sm:$0x1]
      %v4209 = vld [vmem:[%s3401 + $0x420] sm:$0xfe]
      %v4210 = vld [vmem:[%s3401 + $0x428] sm:$0xfe]
      %v4211 = vld [vmem:[%s3401 + $0x430] sm:$0xfe]
      %v4212 = vld [vmem:[%s3401 + $0x438] sm:$0xfe]
      %v4213 = vld [vmem:[%s3401 + $0x440] sm:$0xff]
      %v4214 = vld [vmem:[%s3401 + $0x448] sm:$0xff]
      %v4215 = vld [vmem:[%s3401 + $0x450] sm:$0xff]
      %v4216 = vld [vmem:[%s3401 + $0x458] sm:$0xff]
      %v4217 = vld [vmem:[%s3401 + $0x460] sm:$0x1]
      %v4218 = vld [vmem:[%s3401 + $0x468] sm:$0x1]
      %v4219 = vld [vmem:[%s3401 + $0x470] sm:$0x1]
      %v4220 = vld [vmem:[%s3401 + $0x478] sm:$0x1]
      %v4221 = vld [vmem:[%s3401 + $0x480] sm:$0xfe]
      %v4222 = vld [vmem:[%s3401 + $0x488] sm:$0xfe]
      %v4223 = vld [vmem:[%s3401 + $0x490] sm:$0xfe]
      %v4224 = vld [vmem:[%s3401 + $0x498] sm:$0xfe]
      %v4225 = vld [vmem:[%s3401 + $0x4a0] sm:$0xff]
      %v4226 = vld [vmem:[%s3401 + $0x4a8] sm:$0xff]
      %v4227 = vld [vmem:[%s3401 + $0x4b0] sm:$0xff]
      %v4228 = vld [vmem:[%s3401 + $0x4b8] sm:$0xff]
      %v4229 = vld [vmem:[%s3401 + $0x4c0] sm:$0x1]
      %v4230 = vld [vmem:[%s3401 + $0x4c8] sm:$0x1]
      %v4231 = vld [vmem:[%s3401 + $0x4d0] sm:$0x1]
      %v4232 = vld [vmem:[%s3401 + $0x4d8] sm:$0x1]
      %v4233 = vld [vmem:[%s3401 + $0x4e0] sm:$0xfe]
      %v4234 = vld [vmem:[%s3401 + $0x4e8] sm:$0xfe]
      %v4235 = vld [vmem:[%s3401 + $0x4f0] sm:$0xfe]
      %v4236 = vld [vmem:[%s3401 + $0x4f8] sm:$0xfe]
      %v4237 = vld [vmem:[%s3401 + $0x500] sm:$0xff]
      %v4238 = vld [vmem:[%s3401 + $0x508] sm:$0xff]
      %v4239 = vld [vmem:[%s3401 + $0x510] sm:$0xff]
      %v4240 = vld [vmem:[%s3401 + $0x518] sm:$0xff]
      %v4241 = vld [vmem:[%s3401 + $0x520] sm:$0x1]
      %v4242 = vld [vmem:[%s3401 + $0x528] sm:$0x1]
      %v4243 = vld [vmem:[%s3401 + $0x530] sm:$0x1]
      %v4244 = vld [vmem:[%s3401 + $0x538] sm:$0x1]
      %v4245 = vld [vmem:[%s3401 + $0x540] sm:$0xfe]
      %v4246 = vld [vmem:[%s3401 + $0x548] sm:$0xfe]
      %v4247 = vld [vmem:[%s3401 + $0x550] sm:$0xfe]
      %v4248 = vld [vmem:[%s3401 + $0x558] sm:$0xfe]
      %v4249 = vld [vmem:[%s3401 + $0x560] sm:$0xff]
      %v4250 = vld [vmem:[%s3401 + $0x568] sm:$0xff]
      %v4251 = vld [vmem:[%s3401 + $0x570] sm:$0xff]
      %v4252 = vld [vmem:[%s3401 + $0x578] sm:$0xff]
      %v4253 = vld [vmem:[%s3401 + $0x580] sm:$0x1]
      %v4254 = vld [vmem:[%s3401 + $0x588] sm:$0x1]
      %v4255 = vld [vmem:[%s3401 + $0x590] sm:$0x1]
      %v4256 = vld [vmem:[%s3401 + $0x598] sm:$0x1]
      %v4257 = vld [vmem:[%s3401 + $0x5a0] sm:$0xfe]
      %v4258 = vld [vmem:[%s3401 + $0x5a8] sm:$0xfe]
      %v4259 = vld [vmem:[%s3401 + $0x5b0] sm:$0xfe]
      %v4260 = vld [vmem:[%s3401 + $0x5b8] sm:$0xfe]
      %v4261 = vld [vmem:[%s3401 + $0x5c0] sm:$0xff]
      %v4262 = vld [vmem:[%s3401 + $0x5c8] sm:$0xff]
      %v4263 = vld [vmem:[%s3401 + $0x5d0] sm:$0xff]
      %v4264 = vld [vmem:[%s3401 + $0x5d8] sm:$0xff]
      %v4265 = vld [vmem:[%s3401 + $0x5e0] sm:$0x1]
      %v4266 = vld [vmem:[%s3401 + $0x5e8] sm:$0x1]
      %v4267 = vld [vmem:[%s3401 + $0x5f0] sm:$0x1]
      %v4268 = vld [vmem:[%s3401 + $0x5f8] sm:$0x1]
      %v4461 = vrot.slane %v4077, 1
      %v4462 = vrot.slane %v4081, 1
      %v4463 = vsel %vm735, %v4461, %v4462
      %v4464 = vrot.slane %v4078, 1
      %v4465 = vrot.slane %v4082, 1
      %v4466 = vsel %vm735, %v4464, %v4465
      %v4467 = vrot.slane %v4079, 1
      %v4468 = vrot.slane %v4083, 1
      %v4469 = vsel %vm735, %v4467, %v4468
      %v4470 = vrot.slane %v4080, 1
      %v4471 = vrot.slane %v4084, 1
      %v4472 = vsel %vm735, %v4470, %v4471
      %v4473 = vrot.slane %v4085, 1
      %v4474 = vsel %vm735, %v4462, %v4473
      %v4475 = vrot.slane %v4086, 1
      %v4476 = vsel %vm735, %v4465, %v4475
      %v4477 = vrot.slane %v4087, 1
      %v4478 = vsel %vm735, %v4468, %v4477
      %v4479 = vrot.slane %v4088, 1
      %v4480 = vsel %vm735, %v4471, %v4479
      %v4481 = vrot.slane %v4089, 1
      %v4482 = vrot.slane %v4093, 1
      %v4483 = vsel %vm735, %v4481, %v4482
      %v4484 = vrot.slane %v4090, 1
      %v4485 = vrot.slane %v4094, 1
      %v4486 = vsel %vm735, %v4484, %v4485
      %v4487 = vrot.slane %v4091, 1
      %v4488 = vrot.slane %v4095, 1
      %v4489 = vsel %vm735, %v4487, %v4488
      %v4490 = vrot.slane %v4092, 1
      %v4491 = vrot.slane %v4096, 1
      %v4492 = vsel %vm735, %v4490, %v4491
      %v4493 = vrot.slane %v4097, 1
      %v4494 = vsel %vm735, %v4482, %v4493
      %v4495 = vrot.slane %v4098, 1
      %v4496 = vsel %vm735, %v4485, %v4495
      %v4497 = vrot.slane %v4099, 1
      %v4498 = vsel %vm735, %v4488, %v4497
      %v4499 = vrot.slane %v4100, 1
      %v4500 = vsel %vm735, %v4491, %v4499
      %v4501 = vrot.slane %v4101, 1
      %v4502 = vrot.slane %v4105, 1
      %v4503 = vsel %vm735, %v4501, %v4502
      %v4504 = vrot.slane %v4102, 1
      %v4505 = vrot.slane %v4106, 1
      %v4506 = vsel %vm735, %v4504, %v4505
      %v4507 = vrot.slane %v4103, 1
      %v4508 = vrot.slane %v4107, 1
      %v4509 = vsel %vm735, %v4507, %v4508
      %v4510 = vrot.slane %v4104, 1
      %v4511 = vrot.slane %v4108, 1
      %v4512 = vsel %vm735, %v4510, %v4511
      %v4513 = vrot.slane %v4109, 1
      %v4514 = vsel %vm735, %v4502, %v4513
      %v4515 = vrot.slane %v4110, 1
      %v4516 = vsel %vm735, %v4505, %v4515
      %v4517 = vrot.slane %v4111, 1
      %v4518 = vsel %vm735, %v4508, %v4517
      %v4519 = vrot.slane %v4112, 1
      %v4520 = vsel %vm735, %v4511, %v4519
      %v4521 = vrot.slane %v4113, 1
      %v4522 = vrot.slane %v4117, 1
      %v4523 = vsel %vm735, %v4521, %v4522
      %v4524 = vrot.slane %v4114, 1
      %v4525 = vrot.slane %v4118, 1
      %v4526 = vsel %vm735, %v4524, %v4525
      %v4527 = vrot.slane %v4115, 1
      %v4528 = vrot.slane %v4119, 1
      %v4529 = vsel %vm735, %v4527, %v4528
      %v4530 = vrot.slane %v4116, 1
      %v4531 = vrot.slane %v4120, 1
      %v4532 = vsel %vm735, %v4530, %v4531
      %v4533 = vrot.slane %v4121, 1
      %v4534 = vsel %vm735, %v4522, %v4533
      %v4535 = vrot.slane %v4122, 1
      %v4536 = vsel %vm735, %v4525, %v4535
      %v4537 = vrot.slane %v4123, 1
      %v4538 = vsel %vm735, %v4528, %v4537
      %v4539 = vrot.slane %v4124, 1
      %v4540 = vsel %vm735, %v4531, %v4539
      %v4541 = vrot.slane %v4125, 1
      %v4542 = vrot.slane %v4129, 1
      %v4543 = vsel %vm735, %v4541, %v4542
      %v4544 = vrot.slane %v4126, 1
      %v4545 = vrot.slane %v4130, 1
      %v4546 = vsel %vm735, %v4544, %v4545
      %v4547 = vrot.slane %v4127, 1
      %v4548 = vrot.slane %v4131, 1
      %v4549 = vsel %vm735, %v4547, %v4548
      %v4550 = vrot.slane %v4128, 1
      %v4551 = vrot.slane %v4132, 1
      %v4552 = vsel %vm735, %v4550, %v4551
      %v4553 = vrot.slane %v4133, 1
      %v4554 = vsel %vm735, %v4542, %v4553
      %v4555 = vrot.slane %v4134, 1
      %v4556 = vsel %vm735, %v4545, %v4555
      %v4557 = vrot.slane %v4135, 1
      %v4558 = vsel %vm735, %v4548, %v4557
      %v4559 = vrot.slane %v4136, 1
      %v4560 = vsel %vm735, %v4551, %v4559
      %v4561 = vrot.slane %v4137, 1
      %v4562 = vrot.slane %v4141, 1
      %v4563 = vsel %vm735, %v4561, %v4562
      %v4564 = vrot.slane %v4138, 1
      %v4565 = vrot.slane %v4142, 1
      %v4566 = vsel %vm735, %v4564, %v4565
      %v4567 = vrot.slane %v4139, 1
      %v4568 = vrot.slane %v4143, 1
      %v4569 = vsel %vm735, %v4567, %v4568
      %v4570 = vrot.slane %v4140, 1
      %v4571 = vrot.slane %v4144, 1
      %v4572 = vsel %vm735, %v4570, %v4571
      %v4573 = vrot.slane %v4145, 1
      %v4574 = vsel %vm735, %v4562, %v4573
      %v4575 = vrot.slane %v4146, 1
      %v4576 = vsel %vm735, %v4565, %v4575
      %v4577 = vrot.slane %v4147, 1
      %v4578 = vsel %vm735, %v4568, %v4577
      %v4579 = vrot.slane %v4148, 1
      %v4580 = vsel %vm735, %v4571, %v4579
      %v4581 = vrot.slane %v4149, 1
      %v4582 = vrot.slane %v4153, 1
      %v4583 = vsel %vm735, %v4581, %v4582
      %v4584 = vrot.slane %v4150, 1
      %v4585 = vrot.slane %v4154, 1
      %v4586 = vsel %vm735, %v4584, %v4585
      %v4587 = vrot.slane %v4151, 1
      %v4588 = vrot.slane %v4155, 1
      %v4589 = vsel %vm735, %v4587, %v4588
      %v4590 = vrot.slane %v4152, 1
      %v4591 = vrot.slane %v4156, 1
      %v4592 = vsel %vm735, %v4590, %v4591
      %v4593 = vrot.slane %v4157, 1
      %v4594 = vsel %vm735, %v4582, %v4593
      %v4595 = vrot.slane %v4158, 1
      %v4596 = vsel %vm735, %v4585, %v4595
      %v4597 = vrot.slane %v4159, 1
      %v4598 = vsel %vm735, %v4588, %v4597
      %v4599 = vrot.slane %v4160, 1
      %v4600 = vsel %vm735, %v4591, %v4599
      %v4601 = vrot.slane %v4161, 1
      %v4602 = vrot.slane %v4165, 1
      %v4603 = vsel %vm735, %v4601, %v4602
      %v4604 = vrot.slane %v4162, 1
      %v4605 = vrot.slane %v4166, 1
      %v4606 = vsel %vm735, %v4604, %v4605
      %v4607 = vrot.slane %v4163, 1
      %v4608 = vrot.slane %v4167, 1
      %v4609 = vsel %vm735, %v4607, %v4608
      %v4610 = vrot.slane %v4164, 1
      %v4611 = vrot.slane %v4168, 1
      %v4612 = vsel %vm735, %v4610, %v4611
      %v4613 = vrot.slane %v4169, 1
      %v4614 = vsel %vm735, %v4602, %v4613
      %v4615 = vrot.slane %v4170, 1
      %v4616 = vsel %vm735, %v4605, %v4615
      %v4617 = vrot.slane %v4171, 1
      %v4618 = vsel %vm735, %v4608, %v4617
      %v4619 = vrot.slane %v4172, 1
      %v4620 = vsel %vm735, %v4611, %v4619
      %v4621 = vrot.slane %v4173, 1
      %v4622 = vrot.slane %v4177, 1
      %v4623 = vsel %vm735, %v4621, %v4622
      %v4624 = vrot.slane %v4174, 1
      %v4625 = vrot.slane %v4178, 1
      %v4626 = vsel %vm735, %v4624, %v4625
      %v4627 = vrot.slane %v4175, 1
      %v4628 = vrot.slane %v4179, 1
      %v4629 = vsel %vm735, %v4627, %v4628
      %v4630 = vrot.slane %v4176, 1
      %v4631 = vrot.slane %v4180, 1
      %v4632 = vsel %vm735, %v4630, %v4631
      %v4633 = vrot.slane %v4181, 1
      %v4634 = vsel %vm735, %v4622, %v4633
      %v4635 = vrot.slane %v4182, 1
      %v4636 = vsel %vm735, %v4625, %v4635
      %v4637 = vrot.slane %v4183, 1
      %v4638 = vsel %vm735, %v4628, %v4637
      %v4639 = vrot.slane %v4184, 1
      %v4640 = vsel %vm735, %v4631, %v4639
      %v4641 = vrot.slane %v4185, 1
      %v4642 = vrot.slane %v4189, 1
      %v4643 = vsel %vm735, %v4641, %v4642
      %v4644 = vrot.slane %v4186, 1
      %v4645 = vrot.slane %v4190, 1
      %v4646 = vsel %vm735, %v4644, %v4645
      %v4647 = vrot.slane %v4187, 1
      %v4648 = vrot.slane %v4191, 1
      %v4649 = vsel %vm735, %v4647, %v4648
      %v4650 = vrot.slane %v4188, 1
      %v4651 = vrot.slane %v4192, 1
      %v4652 = vsel %vm735, %v4650, %v4651
      %v4653 = vrot.slane %v4193, 1
      %v4654 = vsel %vm735, %v4642, %v4653
      %v4655 = vrot.slane %v4194, 1
      %v4656 = vsel %vm735, %v4645, %v4655
      %v4657 = vrot.slane %v4195, 1
      %v4658 = vsel %vm735, %v4648, %v4657
      %v4659 = vrot.slane %v4196, 1
      %v4660 = vsel %vm735, %v4651, %v4659
      %v4661 = vrot.slane %v4197, 1
      %v4662 = vrot.slane %v4201, 1
      %v4663 = vsel %vm735, %v4661, %v4662
      %v4664 = vrot.slane %v4198, 1
      %v4665 = vrot.slane %v4202, 1
      %v4666 = vsel %vm735, %v4664, %v4665
      %v4667 = vrot.slane %v4199, 1
      %v4668 = vrot.slane %v4203, 1
      %v4669 = vsel %vm735, %v4667, %v4668
      %v4670 = vrot.slane %v4200, 1
      %v4671 = vrot.slane %v4204, 1
      %v4672 = vsel %vm735, %v4670, %v4671
      %v4673 = vrot.slane %v4205, 1
      %v4674 = vsel %vm735, %v4662, %v4673
      %v4675 = vrot.slane %v4206, 1
      %v4676 = vsel %vm735, %v4665, %v4675
      %v4677 = vrot.slane %v4207, 1
      %v4678 = vsel %vm735, %v4668, %v4677
      %v4679 = vrot.slane %v4208, 1
      %v4680 = vsel %vm735, %v4671, %v4679
      %v4681 = vrot.slane %v4209, 1
      %v4682 = vrot.slane %v4213, 1
      %v4683 = vsel %vm735, %v4681, %v4682
      %v4684 = vrot.slane %v4210, 1
      %v4685 = vrot.slane %v4214, 1
      %v4686 = vsel %vm735, %v4684, %v4685
      %v4687 = vrot.slane %v4211, 1
      %v4688 = vrot.slane %v4215, 1
      %v4689 = vsel %vm735, %v4687, %v4688
      %v4690 = vrot.slane %v4212, 1
      %v4691 = vrot.slane %v4216, 1
      %v4692 = vsel %vm735, %v4690, %v4691
      %v4693 = vrot.slane %v4217, 1
      %v4694 = vsel %vm735, %v4682, %v4693
      %v4695 = vrot.slane %v4218, 1
      %v4696 = vsel %vm735, %v4685, %v4695
      %v4697 = vrot.slane %v4219, 1
      %v4698 = vsel %vm735, %v4688, %v4697
      %v4699 = vrot.slane %v4220, 1
      %v4700 = vsel %vm735, %v4691, %v4699
      %v4701 = vrot.slane %v4221, 1
      %v4702 = vrot.slane %v4225, 1
      %v4703 = vsel %vm735, %v4701, %v4702
      %v4704 = vrot.slane %v4222, 1
      %v4705 = vrot.slane %v4226, 1
      %v4706 = vsel %vm735, %v4704, %v4705
      %v4707 = vrot.slane %v4223, 1
      %v4708 = vrot.slane %v4227, 1
      %v4709 = vsel %vm735, %v4707, %v4708
      %v4710 = vrot.slane %v4224, 1
      %v4711 = vrot.slane %v4228, 1
      %v4712 = vsel %vm735, %v4710, %v4711
      %v4713 = vrot.slane %v4229, 1
      %v4714 = vsel %vm735, %v4702, %v4713
      %v4715 = vrot.slane %v4230, 1
      %v4716 = vsel %vm735, %v4705, %v4715
      %v4717 = vrot.slane %v4231, 1
      %v4718 = vsel %vm735, %v4708, %v4717
      %v4719 = vrot.slane %v4232, 1
      %v4720 = vsel %vm735, %v4711, %v4719
      %v4721 = vrot.slane %v4233, 1
      %v4722 = vrot.slane %v4237, 1
      %v4723 = vsel %vm735, %v4721, %v4722
      %v4724 = vrot.slane %v4234, 1
      %v4725 = vrot.slane %v4238, 1
      %v4726 = vsel %vm735, %v4724, %v4725
      %v4727 = vrot.slane %v4235, 1
      %v4728 = vrot.slane %v4239, 1
      %v4729 = vsel %vm735, %v4727, %v4728
      %v4730 = vrot.slane %v4236, 1
      %v4731 = vrot.slane %v4240, 1
      %v4732 = vsel %vm735, %v4730, %v4731
      %v4733 = vrot.slane %v4241, 1
      %v4734 = vsel %vm735, %v4722, %v4733
      %v4735 = vrot.slane %v4242, 1
      %v4736 = vsel %vm735, %v4725, %v4735
      %v4737 = vrot.slane %v4243, 1
      %v4738 = vsel %vm735, %v4728, %v4737
      %v4739 = vrot.slane %v4244, 1
      %v4740 = vsel %vm735, %v4731, %v4739
      %v4741 = vrot.slane %v4245, 1
      %v4742 = vrot.slane %v4249, 1
      %v4743 = vsel %vm735, %v4741, %v4742
      %v4744 = vrot.slane %v4246, 1
      %v4745 = vrot.slane %v4250, 1
      %v4746 = vsel %vm735, %v4744, %v4745
      %v4747 = vrot.slane %v4247, 1
      %v4748 = vrot.slane %v4251, 1
      %v4749 = vsel %vm735, %v4747, %v4748
      %v4750 = vrot.slane %v4248, 1
      %v4751 = vrot.slane %v4252, 1
      %v4752 = vsel %vm735, %v4750, %v4751
      %v4753 = vrot.slane %v4253, 1
      %v4754 = vsel %vm735, %v4742, %v4753
      %v4755 = vrot.slane %v4254, 1
      %v4756 = vsel %vm735, %v4745, %v4755
      %v4757 = vrot.slane %v4255, 1
      %v4758 = vsel %vm735, %v4748, %v4757
      %v4759 = vrot.slane %v4256, 1
      %v4760 = vsel %vm735, %v4751, %v4759
      %v4761 = vrot.slane %v4257, 1
      %v4762 = vrot.slane %v4261, 1
      %v4763 = vsel %vm735, %v4761, %v4762
      %v4764 = vrot.slane %v4258, 1
      %v4765 = vrot.slane %v4262, 1
      %v4766 = vsel %vm735, %v4764, %v4765
      %v4767 = vrot.slane %v4259, 1
      %v4768 = vrot.slane %v4263, 1
      %v4769 = vsel %vm735, %v4767, %v4768
      %v4770 = vrot.slane %v4260, 1
      %v4771 = vrot.slane %v4264, 1
      %v4772 = vsel %vm735, %v4770, %v4771
      %v4773 = vrot.slane %v4265, 1
      %v4774 = vsel %vm735, %v4762, %v4773
      %v4775 = vrot.slane %v4266, 1
      %v4776 = vsel %vm735, %v4765, %v4775
      %v4777 = vrot.slane %v4267, 1
      %v4778 = vsel %vm735, %v4768, %v4777
      %v4779 = vrot.slane %v4268, 1
      %v4780 = vsel %vm735, %v4771, %v4779
      %s4909 = scalar_lea.vmem %s1, 2048
      %v4910 = vld [vmem:[%s4909] sm:$0xff]
      %v4911 = vld [vmem:[%s4909 + $0x8] sm:$0xff]
      %v4912 = vld [vmem:[%s4909 + $0x10] sm:$0xff]
      %v4913 = vld [vmem:[%s4909 + $0x18] sm:$0xff]
      %v4914 = vld [vmem:[%s4909 + $0x20] sm:$0xff]
      %v4915 = vld [vmem:[%s4909 + $0x28] sm:$0xff]
      %v4916 = vld [vmem:[%s4909 + $0x30] sm:$0xff]
      %v4917 = vld [vmem:[%s4909 + $0x38] sm:$0xff]
      %v4918 = vld [vmem:[%s4909 + $0x40] sm:$0xff]
      %v4919 = vld [vmem:[%s4909 + $0x48] sm:$0xff]
      %v4920 = vld [vmem:[%s4909 + $0x50] sm:$0xff]
      %v4921 = vld [vmem:[%s4909 + $0x58] sm:$0xff]
      %v4922 = vld [vmem:[%s4909 + $0x60] sm:$0xff]
      %v4923 = vld [vmem:[%s4909 + $0x68] sm:$0xff]
      %v4924 = vld [vmem:[%s4909 + $0x70] sm:$0xff]
      %v4925 = vld [vmem:[%s4909 + $0x78] sm:$0xff]
      %v4926 = vld [vmem:[%s4909 + $0x80] sm:$0xff]
      %v4927 = vld [vmem:[%s4909 + $0x88] sm:$0xff]
      %v4928 = vld [vmem:[%s4909 + $0x90] sm:$0xff]
      %v4929 = vld [vmem:[%s4909 + $0x98] sm:$0xff]
      %v4930 = vld [vmem:[%s4909 + $0xa0] sm:$0xff]
      %v4931 = vld [vmem:[%s4909 + $0xa8] sm:$0xff]
      %v4932 = vld [vmem:[%s4909 + $0xb0] sm:$0xff]
      %v4933 = vld [vmem:[%s4909 + $0xb8] sm:$0xff]
      %v4934 = vld [vmem:[%s4909 + $0xc0] sm:$0xff]
      %v4935 = vld [vmem:[%s4909 + $0xc8] sm:$0xff]
      %v4936 = vld [vmem:[%s4909 + $0xd0] sm:$0xff]
      %v4937 = vld [vmem:[%s4909 + $0xd8] sm:$0xff]
      %v4938 = vld [vmem:[%s4909 + $0xe0] sm:$0xff]
      %v4939 = vld [vmem:[%s4909 + $0xe8] sm:$0xff]
      %v4940 = vld [vmem:[%s4909 + $0xf0] sm:$0xff]
      %v4941 = vld [vmem:[%s4909 + $0xf8] sm:$0xff]
      %v4942 = vld [vmem:[%s4909 + $0x100] sm:$0xff]
      %v4943 = vld [vmem:[%s4909 + $0x108] sm:$0xff]
      %v4944 = vld [vmem:[%s4909 + $0x110] sm:$0xff]
      %v4945 = vld [vmem:[%s4909 + $0x118] sm:$0xff]
      %v4946 = vld [vmem:[%s4909 + $0x120] sm:$0xff]
      %v4947 = vld [vmem:[%s4909 + $0x128] sm:$0xff]
      %v4948 = vld [vmem:[%s4909 + $0x130] sm:$0xff]
      %v4949 = vld [vmem:[%s4909 + $0x138] sm:$0xff]
      %v4950 = vld [vmem:[%s4909 + $0x140] sm:$0xff]
      %v4951 = vld [vmem:[%s4909 + $0x148] sm:$0xff]
      %v4952 = vld [vmem:[%s4909 + $0x150] sm:$0xff]
      %v4953 = vld [vmem:[%s4909 + $0x158] sm:$0xff]
      %v4954 = vld [vmem:[%s4909 + $0x160] sm:$0xff]
      %v4955 = vld [vmem:[%s4909 + $0x168] sm:$0xff]
      %v4956 = vld [vmem:[%s4909 + $0x170] sm:$0xff]
      %v4957 = vld [vmem:[%s4909 + $0x178] sm:$0xff]
      %v4958 = vld [vmem:[%s4909 + $0x180] sm:$0xff]
      %v4959 = vld [vmem:[%s4909 + $0x188] sm:$0xff]
      %v4960 = vld [vmem:[%s4909 + $0x190] sm:$0xff]
      %v4961 = vld [vmem:[%s4909 + $0x198] sm:$0xff]
      %v4962 = vld [vmem:[%s4909 + $0x1a0] sm:$0xff]
      %v4963 = vld [vmem:[%s4909 + $0x1a8] sm:$0xff]
      %v4964 = vld [vmem:[%s4909 + $0x1b0] sm:$0xff]
      %v4965 = vld [vmem:[%s4909 + $0x1b8] sm:$0xff]
      %v4966 = vld [vmem:[%s4909 + $0x1c0] sm:$0xff]
      %v4967 = vld [vmem:[%s4909 + $0x1c8] sm:$0xff]
      %v4968 = vld [vmem:[%s4909 + $0x1d0] sm:$0xff]
      %v4969 = vld [vmem:[%s4909 + $0x1d8] sm:$0xff]
      %v4970 = vld [vmem:[%s4909 + $0x1e0] sm:$0xff]
      %v4971 = vld [vmem:[%s4909 + $0x1e8] sm:$0xff]
      %v4972 = vld [vmem:[%s4909 + $0x1f0] sm:$0xff]
      %v4973 = vld [vmem:[%s4909 + $0x1f8] sm:$0xff]
      %4974 = vmatprep.subr.mxu0 0.0
      %4975 = vmatpush1.msra.mxu0 %v4910
      %4976 = vmatprep.subr.mxu0 0.0
      %4977 = vmatpush1.msra.mxu0 %v4911
      %4978 = vmatprep.subr.mxu0 0.0
      %4979 = vmatpush1.msra.mxu0 %v4912
      %4980 = vmatprep.subr.mxu0 0.0
      %4981 = vmatpush1.msra.mxu0 %v4913
      %4982 = vmatprep.subr.mxu0 0.0
      %4983 = vmatpush1.msra.mxu0 %v4914
      %4984 = vmatprep.subr.mxu0 0.0
      %4985 = vmatpush1.msra.mxu0 %v4915
      %4986 = vmatprep.subr.mxu0 0.0
      %4987 = vmatpush1.msra.mxu0 %v4916
      %4988 = vmatprep.subr.mxu0 0.0
      %4989 = vmatpush1.msra.mxu0 %v4917
      %4990 = vmatprep.subr.mxu0 0.0
      %4991 = vmatpush1.msra.mxu0 %v4918
      %4992 = vmatprep.subr.mxu0 0.0
      %4993 = vmatpush1.msra.mxu0 %v4919
      %4994 = vmatprep.subr.mxu0 0.0
      %4995 = vmatpush1.msra.mxu0 %v4920
      %4996 = vmatprep.subr.mxu0 0.0
      %4997 = vmatpush1.msra.mxu0 %v4921
      %4998 = vmatprep.subr.mxu0 0.0
      %4999 = vmatpush1.msra.mxu0 %v4922
      %5000 = vmatprep.subr.mxu0 0.0
      %5001 = vmatpush1.msra.mxu0 %v4923
      %5002 = vmatprep.subr.mxu0 0.0
      %5003 = vmatpush1.msra.mxu0 %v4924
      %5004 = vmatprep.subr.mxu0 0.0
      %5005 = vmatpush1.msra.mxu0 %v4925
      %5006 = vmatprep.subr.mxu0 0.0
      %5007 = vmatpush1.msra.mxu0 %v4926
      %5008 = vmatprep.subr.mxu0 0.0
      %5009 = vmatpush1.msra.mxu0 %v4927
      %5010 = vmatprep.subr.mxu0 0.0
      %5011 = vmatpush1.msra.mxu0 %v4928
      %5012 = vmatprep.subr.mxu0 0.0
      %5013 = vmatpush1.msra.mxu0 %v4929
      %5014 = vmatprep.subr.mxu0 0.0
      %5015 = vmatpush1.msra.mxu0 %v4930
      %5016 = vmatprep.subr.mxu0 0.0
      %5017 = vmatpush1.msra.mxu0 %v4931
      %5018 = vmatprep.subr.mxu0 0.0
      %5019 = vmatpush1.msra.mxu0 %v4932
      %5020 = vmatprep.subr.mxu0 0.0
      %5021 = vmatpush1.msra.mxu0 %v4933
      %5022 = vmatprep.subr.mxu0 0.0
      %5023 = vmatpush1.msra.mxu0 %v4934
      %5024 = vmatprep.subr.mxu0 0.0
      %5025 = vmatpush1.msra.mxu0 %v4935
      %5026 = vmatprep.subr.mxu0 0.0
      %5027 = vmatpush1.msra.mxu0 %v4936
      %5028 = vmatprep.subr.mxu0 0.0
      %5029 = vmatpush1.msra.mxu0 %v4937
      %5030 = vmatprep.subr.mxu0 0.0
      %5031 = vmatpush1.msra.mxu0 %v4938
      %5032 = vmatprep.subr.mxu0 0.0
      %5033 = vmatpush1.msra.mxu0 %v4939
      %5034 = vmatprep.subr.mxu0 0.0
      %5035 = vmatpush1.msra.mxu0 %v4940
      %5036 = vmatprep.subr.mxu0 0.0
      %5037 = vmatpush1.msra.mxu0 %v4941
      %5038 = vmatprep.mubr.f32.mxu0 %v4466
      %5039 = vmatmul.mubr.f32.gmra.mrb[0].mxu0 %v4463
      %v5040 = vpop.f32.mrb[0].mxu0
      %v5041 = vadd.f32 0.0, %v5040
      %v5042 = vpop.f32.mrb[0].mxu0
      %5043 = vmatprep.mubr.f32.mxu0 %v4476
      %5044 = vmatmul.mubr.f32.gmra.mrb[0].mxu0 %v4474
      %v5045 = vpop.f32.mrb[0].mxu0
      %v5046 = vadd.f32 0.0, %v5045
      %v5047 = vpop.f32.mrb[0].mxu0
      %5048 = vmatprep.mubr.f32.mxu0 %v4486
      %5049 = vmatmul.mubr.f32.gmra.mrb[0].mxu0 %v4483
      %v5050 = vpop.f32.mrb[0].mxu0
      %v5051 = vadd.f32 0.0, %v5050
      %v5052 = vpop.f32.mrb[0].mxu0
      %5053 = vmatprep.mubr.f32.mxu0 %v4496
      %5054 = vmatmul.mubr.f32.gmra.mrb[0].mxu0 %v4494
      %v5055 = vpop.f32.mrb[0].mxu0
      %v5056 = vadd.f32 0.0, %v5055
      %v5057 = vpop.f32.mrb[0].mxu0
      %5058 = vmatprep.mubr.f32.mxu0 %v4506
      %5059 = vmatmul.mubr.f32.gmra.mrb[0].mxu0 %v4503
      %v5060 = vpop.f32.mrb[0].mxu0
      %v5061 = vadd.f32 0.0, %v5060
      %v5062 = vpop.f32.mrb[0].mxu0
      %5063 = vmatprep.mubr.f32.mxu0 %v4516
      %5064 = vmatmul.mubr.f32.gmra.mrb[0].mxu0 %v4514
      %v5065 = vpop.f32.mrb[0].mxu0
      %v5066 = vadd.f32 0.0, %v5065
      %v5067 = vpop.f32.mrb[0].mxu0
      %5068 = vmatprep.mubr.f32.mxu0 %v4526
      %5069 = vmatmul.mubr.f32.gmra.mrb[0].mxu0 %v4523
      %v5070 = vpop.f32.mrb[0].mxu0
      %v5071 = vadd.f32 0.0, %v5070
      %v5072 = vpop.f32.mrb[0].mxu0
      %5073 = vmatprep.mubr.f32.mxu0 %v4536
      %5074 = vmatmul.mubr.f32.gmra.mrb[0].mxu0 %v4534
      %v5075 = vpop.f32.mrb[0].mxu0
      %v5076 = vadd.f32 0.0, %v5075
      %v5077 = vpop.f32.mrb[0].mxu0
      %5078 = vmatprep.mubr.f32.mxu0 %v4546
      %5079 = vmatmul.mubr.f32.gmra.mrb[0].mxu0 %v4543
      %v5080 = vpop.f32.mrb[0].mxu0
      %v5081 = vadd.f32 0.0, %v5080
      %v5082 = vpop.f32.mrb[0].mxu0
      %5083 = vmatprep.mubr.f32.mxu0 %v4556
      %5084 = vmatmul.mubr.f32.gmra.mrb[0].mxu0 %v4554
      %v5085 = vpop.f32.mrb[0].mxu0
      %v5086 = vadd.f32 0.0, %v5085
      %v5087 = vpop.f32.mrb[0].mxu0
      %5088 = vmatprep.mubr.f32.mxu0 %v4566
      %5089 = vmatmul.mubr.f32.gmra.mrb[0].mxu0 %v4563
      %v5090 = vpop.f32.mrb[0].mxu0
      %v5091 = vadd.f32 0.0, %v5090
      %v5092 = vpop.f32.mrb[0].mxu0
      %5093 = vmatprep.mubr.f32.mxu0 %v4576
      %5094 = vmatmul.mubr.f32.gmra.mrb[0].mxu0 %v4574
      %v5095 = vpop.f32.mrb[0].mxu0
      %v5096 = vadd.f32 0.0, %v5095
      %v5097 = vpop.f32.mrb[0].mxu0
      %5098 = vmatprep.mubr.f32.mxu0 %v4586
      %5099 = vmatmul.mubr.f32.gmra.mrb[0].mxu0 %v4583
      %v5100 = vpop.f32.mrb[0].mxu0
      %v5101 = vadd.f32 0.0, %v5100
      %v5102 = vpop.f32.mrb[0].mxu0
      %5103 = vmatprep.mubr.f32.mxu0 %v4596
      %5104 = vmatmul.mubr.f32.gmra.mrb[0].mxu0 %v4594
      %v5105 = vpop.f32.mrb[0].mxu0
      %v5106 = vadd.f32 0.0, %v5105
      %v5107 = vpop.f32.mrb[0].mxu0
      %5108 = vmatprep.mubr.f32.mxu0 %v4606
      %5109 = vmatmul.mubr.f32.gmra.mrb[0].mxu0 %v4603
      %v5110 = vpop.f32.mrb[0].mxu0
      %v5111 = vadd.f32 0.0, %v5110
      %v5112 = vpop.f32.mrb[0].mxu0
      %5113 = vmatprep.mubr.f32.mxu0 %v4616
      %5114 = vmatmul.mubr.f32.gmra.mrb[0].mxu0 %v4614
      %v5115 = vpop.f32.mrb[0].mxu0
      %v5116 = vadd.f32 0.0, %v5115
      %v5117 = vpop.f32.mrb[0].mxu0
      %5118 = vmatprep.mubr.f32.mxu0 %v4626
      %5119 = vmatmul.mubr.f32.gmra.mrb[0].mxu0 %v4623
      %v5120 = vpop.f32.mrb[0].mxu0
      %v5121 = vadd.f32 0.0, %v5120
      %v5122 = vpop.f32.mrb[0].mxu0
      %5123 = vmatprep.mubr.f32.mxu0 %v4636
      %5124 = vmatmul.mubr.f32.gmra.mrb[0].mxu0 %v4634
      %v5125 = vpop.f32.mrb[0].mxu0
      %v5126 = vadd.f32 0.0, %v5125
      %v5127 = vpop.f32.mrb[0].mxu0
      %5128 = vmatprep.mubr.f32.mxu0 %v4646
      %5129 = vmatmul.mubr.f32.gmra.mrb[0].mxu0 %v4643
      %v5130 = vpop.f32.mrb[0].mxu0
      %v5131 = vadd.f32 0.0, %v5130
      %v5132 = vpop.f32.mrb[0].mxu0
      %5133 = vmatprep.mubr.f32.mxu0 %v4656
      %5134 = vmatmul.mubr.f32.gmra.mrb[0].mxu0 %v4654
      %v5135 = vpop.f32.mrb[0].mxu0
      %v5136 = vadd.f32 0.0, %v5135
      %v5137 = vpop.f32.mrb[0].mxu0
      %5138 = vmatprep.mubr.f32.mxu0 %v4666
      %5139 = vmatmul.mubr.f32.gmra.mrb[0].mxu0 %v4663
      %v5140 = vpop.f32.mrb[0].mxu0
      %v5141 = vadd.f32 0.0, %v5140
      %v5142 = vpop.f32.mrb[0].mxu0
      %5143 = vmatprep.mubr.f32.mxu0 %v4676
      %5144 = vmatmul.mubr.f32.gmra.mrb[0].mxu0 %v4674
      %v5145 = vpop.f32.mrb[0].mxu0
      %v5146 = vadd.f32 0.0, %v5145
      %v5147 = vpop.f32.mrb[0].mxu0
      %5148 = vmatprep.mubr.f32.mxu0 %v4686
      %5149 = vmatmul.mubr.f32.gmra.mrb[0].mxu0 %v4683
      %v5150 = vpop.f32.mrb[0].mxu0
      %v5151 = vadd.f32 0.0, %v5150
      %v5152 = vpop.f32.mrb[0].mxu0
      %5153 = vmatprep.mubr.f32.mxu0 %v4696
      %5154 = vmatmul.mubr.f32.gmra.mrb[0].mxu0 %v4694
      %v5155 = vpop.f32.mrb[0].mxu0
      %v5156 = vadd.f32 0.0, %v5155
      %v5157 = vpop.f32.mrb[0].mxu0
      %5158 = vmatprep.mubr.f32.mxu0 %v4706
      %5159 = vmatmul.mubr.f32.gmra.mrb[0].mxu0 %v4703
      %v5160 = vpop.f32.mrb[0].mxu0
      %v5161 = vadd.f32 0.0, %v5160
      %v5162 = vpop.f32.mrb[0].mxu0
      %5163 = vmatprep.mubr.f32.mxu0 %v4716
      %5164 = vmatmul.mubr.f32.gmra.mrb[0].mxu0 %v4714
      %v5165 = vpop.f32.mrb[0].mxu0
      %v5166 = vadd.f32 0.0, %v5165
      %v5167 = vpop.f32.mrb[0].mxu0
      %5168 = vmatprep.mubr.f32.mxu0 %v4726
      %5169 = vmatmul.mubr.f32.gmra.mrb[0].mxu0 %v4723
      %v5170 = vpop.f32.mrb[0].mxu0
      %v5171 = vadd.f32 0.0, %v5170
      %v5172 = vpop.f32.mrb[0].mxu0
      %5173 = vmatprep.mubr.f32.mxu0 %v4736
      %5174 = vmatmul.mubr.f32.gmra.mrb[0].mxu0 %v4734
      %v5175 = vpop.f32.mrb[0].mxu0
      %v5176 = vadd.f32 0.0, %v5175
      %v5177 = vpop.f32.mrb[0].mxu0
      %5178 = vmatprep.mubr.f32.mxu0 %v4746
      %5179 = vmatmul.mubr.f32.gmra.mrb[0].mxu0 %v4743
      %v5180 = vpop.f32.mrb[0].mxu0
      %v5181 = vadd.f32 0.0, %v5180
      %v5182 = vpop.f32.mrb[0].mxu0
      %5183 = vmatprep.mubr.f32.mxu0 %v4756
      %5184 = vmatmul.mubr.f32.gmra.mrb[0].mxu0 %v4754
      %v5185 = vpop.f32.mrb[0].mxu0
      %v5186 = vadd.f32 0.0, %v5185
      %v5187 = vpop.f32.mrb[0].mxu0
      %5188 = vmatprep.mubr.f32.mxu0 %v4766
      %5189 = vmatmul.mubr.f32.gmra.mrb[0].mxu0 %v4763
      %v5190 = vpop.f32.mrb[0].mxu0
      %v5191 = vadd.f32 0.0, %v5190
      %v5192 = vpop.f32.mrb[0].mxu0
      %5193 = vmatprep.mubr.f32.mxu0 %v4776
      %5194 = vmatmul.mubr.f32.gmra.mrb[0].mxu0 %v4774
      %v5195 = vpop.f32.mrb[0].mxu0
      %v5196 = vadd.f32 0.0, %v5195
      %v5197 = vpop.f32.mrb[0].mxu0
      %5198 = vdwg.mxu0
      %5199 = vmatprep.subr.mxu0 0.0
      %5200 = vmatpush1.msra.mxu0 %v4942
      %5201 = vmatprep.subr.mxu0 0.0
      %5202 = vmatpush1.msra.mxu0 %v4943
      %5203 = vmatprep.subr.mxu0 0.0
      %5204 = vmatpush1.msra.mxu0 %v4944
      %5205 = vmatprep.subr.mxu0 0.0
      %5206 = vmatpush1.msra.mxu0 %v4945
      %5207 = vmatprep.subr.mxu0 0.0
      %5208 = vmatpush1.msra.mxu0 %v4946
      %5209 = vmatprep.subr.mxu0 0.0
      %5210 = vmatpush1.msra.mxu0 %v4947
      %5211 = vmatprep.subr.mxu0 0.0
      %5212 = vmatpush1.msra.mxu0 %v4948
      %5213 = vmatprep.subr.mxu0 0.0
      %5214 = vmatpush1.msra.mxu0 %v4949
      %5215 = vmatprep.subr.mxu0 0.0
      %5216 = vmatpush1.msra.mxu0 %v4950
      %5217 = vmatprep.subr.mxu0 0.0
      %5218 = vmatpush1.msra.mxu0 %v4951
      %5219 = vmatprep.subr.mxu0 0.0
      %5220 = vmatpush1.msra.mxu0 %v4952
      %5221 = vmatprep.subr.mxu0 0.0
      %5222 = vmatpush1.msra.mxu0 %v4953
      %5223 = vmatprep.subr.mxu0 0.0
      %5224 = vmatpush1.msra.mxu0 %v4954
      %5225 = vmatprep.subr.mxu0 0.0
      %5226 = vmatpush1.msra.mxu0 %v4955
      %5227 = vmatprep.subr.mxu0 0.0
      %5228 = vmatpush1.msra.mxu0 %v4956
      %5229 = vmatprep.subr.mxu0 0.0
      %5230 = vmatpush1.msra.mxu0 %v4957
      %5231 = vmatprep.subr.mxu0 0.0
      %5232 = vmatpush1.msra.mxu0 %v4958
      %5233 = vmatprep.subr.mxu0 0.0
      %5234 = vmatpush1.msra.mxu0 %v4959
      %5235 = vmatprep.subr.mxu0 0.0
      %5236 = vmatpush1.msra.mxu0 %v4960
      %5237 = vmatprep.subr.mxu0 0.0
      %5238 = vmatpush1.msra.mxu0 %v4961
      %5239 = vmatprep.subr.mxu0 0.0
      %5240 = vmatpush1.msra.mxu0 %v4962
      %5241 = vmatprep.subr.mxu0 0.0
      %5242 = vmatpush1.msra.mxu0 %v4963
      %5243 = vmatprep.subr.mxu0 0.0
      %5244 = vmatpush1.msra.mxu0 %v4964
      %5245 = vmatprep.subr.mxu0 0.0
      %5246 = vmatpush1.msra.mxu0 %v4965
      %5247 = vmatprep.subr.mxu0 0.0
      %5248 = vmatpush1.msra.mxu0 %v4966
      %5249 = vmatprep.subr.mxu0 0.0
      %5250 = vmatpush1.msra.mxu0 %v4967
      %5251 = vmatprep.subr.mxu0 0.0
      %5252 = vmatpush1.msra.mxu0 %v4968
      %5253 = vmatprep.subr.mxu0 0.0
      %5254 = vmatpush1.msra.mxu0 %v4969
      %5255 = vmatprep.subr.mxu0 0.0
      %5256 = vmatpush1.msra.mxu0 %v4970
      %5257 = vmatprep.subr.mxu0 0.0
      %5258 = vmatpush1.msra.mxu0 %v4971
      %5259 = vmatprep.subr.mxu0 0.0
      %5260 = vmatpush1.msra.mxu0 %v4972
      %5261 = vmatprep.subr.mxu0 0.0
      %5262 = vmatpush1.msra.mxu0 %v4973
      %5263 = vmatprep.mubr.f32.mxu0 %v4472
      %5264 = vmatmul.mubr.f32.gmra.mrb[0].mxu0 %v4469
      %v5265 = vpop.f32.mrb[0].mxu0
      %v5266 = vadd.f32 %v5041, %v5265
      %v5267 = vpop.f32.mrb[0].mxu0
      %5268 = vmatprep.mubr.f32.mxu0 %v4480
      %5269 = vmatmul.mubr.f32.gmra.mrb[0].mxu0 %v4478
      %v5270 = vpop.f32.mrb[0].mxu0
      %v5271 = vadd.f32 %v5046, %v5270
      %v5272 = vpop.f32.mrb[0].mxu0
      %5273 = vmatprep.mubr.f32.mxu0 %v4492
      %5274 = vmatmul.mubr.f32.gmra.mrb[0].mxu0 %v4489
      %v5275 = vpop.f32.mrb[0].mxu0
      %v5276 = vadd.f32 %v5051, %v5275
      %v5277 = vpop.f32.mrb[0].mxu0
      %5278 = vmatprep.mubr.f32.mxu0 %v4500
      %5279 = vmatmul.mubr.f32.gmra.mrb[0].mxu0 %v4498
      %v5280 = vpop.f32.mrb[0].mxu0
      %v5281 = vadd.f32 %v5056, %v5280
      %v5282 = vpop.f32.mrb[0].mxu0
      %5283 = vmatprep.mubr.f32.mxu0 %v4512
      %5284 = vmatmul.mubr.f32.gmra.mrb[0].mxu0 %v4509
      %v5285 = vpop.f32.mrb[0].mxu0
      %v5286 = vadd.f32 %v5061, %v5285
      %v5287 = vpop.f32.mrb[0].mxu0
      %5288 = vmatprep.mubr.f32.mxu0 %v4520
      %5289 = vmatmul.mubr.f32.gmra.mrb[0].mxu0 %v4518
      %v5290 = vpop.f32.mrb[0].mxu0
      %v5291 = vadd.f32 %v5066, %v5290
      %v5292 = vpop.f32.mrb[0].mxu0
      %5293 = vmatprep.mubr.f32.mxu0 %v4532
      %5294 = vmatmul.mubr.f32.gmra.mrb[0].mxu0 %v4529
      %v5295 = vpop.f32.mrb[0].mxu0
      %v5296 = vadd.f32 %v5071, %v5295
      %v5297 = vpop.f32.mrb[0].mxu0
      %5298 = vmatprep.mubr.f32.mxu0 %v4540
      %5299 = vmatmul.mubr.f32.gmra.mrb[0].mxu0 %v4538
      %v5300 = vpop.f32.mrb[0].mxu0
      %v5301 = vadd.f32 %v5076, %v5300
      %v5302 = vpop.f32.mrb[0].mxu0
      %5303 = vmatprep.mubr.f32.mxu0 %v4552
      %5304 = vmatmul.mubr.f32.gmra.mrb[0].mxu0 %v4549
      %v5305 = vpop.f32.mrb[0].mxu0
      %v5306 = vadd.f32 %v5081, %v5305
      %v5307 = vpop.f32.mrb[0].mxu0
      %5308 = vmatprep.mubr.f32.mxu0 %v4560
      %5309 = vmatmul.mubr.f32.gmra.mrb[0].mxu0 %v4558
      %v5310 = vpop.f32.mrb[0].mxu0
      %v5311 = vadd.f32 %v5086, %v5310
      %v5312 = vpop.f32.mrb[0].mxu0
      %5313 = vmatprep.mubr.f32.mxu0 %v4572
      %5314 = vmatmul.mubr.f32.gmra.mrb[0].mxu0 %v4569
      %v5315 = vpop.f32.mrb[0].mxu0
      %v5316 = vadd.f32 %v5091, %v5315
      %v5317 = vpop.f32.mrb[0].mxu0
      %5318 = vmatprep.mubr.f32.mxu0 %v4580
      %5319 = vmatmul.mubr.f32.gmra.mrb[0].mxu0 %v4578
      %v5320 = vpop.f32.mrb[0].mxu0
      %v5321 = vadd.f32 %v5096, %v5320
      %v5322 = vpop.f32.mrb[0].mxu0
      %5323 = vmatprep.mubr.f32.mxu0 %v4592
      %5324 = vmatmul.mubr.f32.gmra.mrb[0].mxu0 %v4589
      %v5325 = vpop.f32.mrb[0].mxu0
      %v5326 = vadd.f32 %v5101, %v5325
      %v5327 = vpop.f32.mrb[0].mxu0
      %5328 = vmatprep.mubr.f32.mxu0 %v4600
      %5329 = vmatmul.mubr.f32.gmra.mrb[0].mxu0 %v4598
      %v5330 = vpop.f32.mrb[0].mxu0
      %v5331 = vadd.f32 %v5106, %v5330
      %v5332 = vpop.f32.mrb[0].mxu0
      %5333 = vmatprep.mubr.f32.mxu0 %v4612
      %5334 = vmatmul.mubr.f32.gmra.mrb[0].mxu0 %v4609
      %v5335 = vpop.f32.mrb[0].mxu0
      %v5336 = vadd.f32 %v5111, %v5335
      %v5337 = vpop.f32.mrb[0].mxu0
      %5338 = vmatprep.mubr.f32.mxu0 %v4620
      %5339 = vmatmul.mubr.f32.gmra.mrb[0].mxu0 %v4618
      %v5340 = vpop.f32.mrb[0].mxu0
      %v5341 = vadd.f32 %v5116, %v5340
      %v5342 = vpop.f32.mrb[0].mxu0
      %5343 = vmatprep.mubr.f32.mxu0 %v4632
      %5344 = vmatmul.mubr.f32.gmra.mrb[0].mxu0 %v4629
      %v5345 = vpop.f32.mrb[0].mxu0
      %v5346 = vadd.f32 %v5121, %v5345
      %v5347 = vpop.f32.mrb[0].mxu0
      %5348 = vmatprep.mubr.f32.mxu0 %v4640
      %5349 = vmatmul.mubr.f32.gmra.mrb[0].mxu0 %v4638
      %v5350 = vpop.f32.mrb[0].mxu0
      %v5351 = vadd.f32 %v5126, %v5350
      %v5352 = vpop.f32.mrb[0].mxu0
      %5353 = vmatprep.mubr.f32.mxu0 %v4652
      %5354 = vmatmul.mubr.f32.gmra.mrb[0].mxu0 %v4649
      %v5355 = vpop.f32.mrb[0].mxu0
      %v5356 = vadd.f32 %v5131, %v5355
      %v5357 = vpop.f32.mrb[0].mxu0
      %5358 = vmatprep.mubr.f32.mxu0 %v4660
      %5359 = vmatmul.mubr.f32.gmra.mrb[0].mxu0 %v4658
      %v5360 = vpop.f32.mrb[0].mxu0
      %v5361 = vadd.f32 %v5136, %v5360
      %v5362 = vpop.f32.mrb[0].mxu0
      %5363 = vmatprep.mubr.f32.mxu0 %v4672
      %5364 = vmatmul.mubr.f32.gmra.mrb[0].mxu0 %v4669
      %v5365 = vpop.f32.mrb[0].mxu0
      %v5366 = vadd.f32 %v5141, %v5365
      %v5367 = vpop.f32.mrb[0].mxu0
      %5368 = vmatprep.mubr.f32.mxu0 %v4680
      %5369 = vmatmul.mubr.f32.gmra.mrb[0].mxu0 %v4678
      %v5370 = vpop.f32.mrb[0].mxu0
      %v5371 = vadd.f32 %v5146, %v5370
      %v5372 = vpop.f32.mrb[0].mxu0
      %5373 = vmatprep.mubr.f32.mxu0 %v4692
      %5374 = vmatmul.mubr.f32.gmra.mrb[0].mxu0 %v4689
      %v5375 = vpop.f32.mrb[0].mxu0
      %v5376 = vadd.f32 %v5151, %v5375
      %v5377 = vpop.f32.mrb[0].mxu0
      %5378 = vmatprep.mubr.f32.mxu0 %v4700
      %5379 = vmatmul.mubr.f32.gmra.mrb[0].mxu0 %v4698
      %v5380 = vpop.f32.mrb[0].mxu0
      %v5381 = vadd.f32 %v5156, %v5380
      %v5382 = vpop.f32.mrb[0].mxu0
      %5383 = vmatprep.mubr.f32.mxu0 %v4712
      %5384 = vmatmul.mubr.f32.gmra.mrb[0].mxu0 %v4709
      %v5385 = vpop.f32.mrb[0].mxu0
      %v5386 = vadd.f32 %v5161, %v5385
      %v5387 = vpop.f32.mrb[0].mxu0
      %5388 = vmatprep.mubr.f32.mxu0 %v4720
      %5389 = vmatmul.mubr.f32.gmra.mrb[0].mxu0 %v4718
      %v5390 = vpop.f32.mrb[0].mxu0
      %v5391 = vadd.f32 %v5166, %v5390
      %v5392 = vpop.f32.mrb[0].mxu0
      %5393 = vmatprep.mubr.f32.mxu0 %v4732
      %5394 = vmatmul.mubr.f32.gmra.mrb[0].mxu0 %v4729
      %v5395 = vpop.f32.mrb[0].mxu0
      %v5396 = vadd.f32 %v5171, %v5395
      %v5397 = vpop.f32.mrb[0].mxu0
      %5398 = vmatprep.mubr.f32.mxu0 %v4740
      %5399 = vmatmul.mubr.f32.gmra.mrb[0].mxu0 %v4738
      %v5400 = vpop.f32.mrb[0].mxu0
      %v5401 = vadd.f32 %v5176, %v5400
      %v5402 = vpop.f32.mrb[0].mxu0
      %5403 = vmatprep.mubr.f32.mxu0 %v4752
      %5404 = vmatmul.mubr.f32.gmra.mrb[0].mxu0 %v4749
      %v5405 = vpop.f32.mrb[0].mxu0
      %v5406 = vadd.f32 %v5181, %v5405
      %v5407 = vpop.f32.mrb[0].mxu0
      %5408 = vmatprep.mubr.f32.mxu0 %v4760
      %5409 = vmatmul.mubr.f32.gmra.mrb[0].mxu0 %v4758
      %v5410 = vpop.f32.mrb[0].mxu0
      %v5411 = vadd.f32 %v5186, %v5410
      %v5412 = vpop.f32.mrb[0].mxu0
      %5413 = vmatprep.mubr.f32.mxu0 %v4772
      %5414 = vmatmul.mubr.f32.gmra.mrb[0].mxu0 %v4769
      %v5415 = vpop.f32.mrb[0].mxu0
      %v5416 = vadd.f32 %v5191, %v5415
      %v5417 = vpop.f32.mrb[0].mxu0
      %5418 = vmatprep.mubr.f32.mxu0 %v4780
      %5419 = vmatmul.mubr.f32.gmra.mrb[0].mxu0 %v4778
      %v5420 = vpop.f32.mrb[0].mxu0
      %v5421 = vadd.f32 %v5196, %v5420
      %v5422 = vpop.f32.mrb[0].mxu0
      %5423 = vdwg.mxu0
      %v5424 = vadd.f32 %v4045, %v5266
      %v5425 = vadd.f32 %v4046, %v5271
      %v5426 = vadd.f32 %v4047, %v5276
      %v5427 = vadd.f32 %v4048, %v5281
      %v5428 = vadd.f32 %v4049, %v5286
      %v5429 = vadd.f32 %v4050, %v5291
      %v5430 = vadd.f32 %v4051, %v5296
      %v5431 = vadd.f32 %v4052, %v5301
      %v5432 = vadd.f32 %v4053, %v5306
      %v5433 = vadd.f32 %v4054, %v5311
      %v5434 = vadd.f32 %v4055, %v5316
      %v5435 = vadd.f32 %v4056, %v5321
      %v5436 = vadd.f32 %v4057, %v5326
      %v5437 = vadd.f32 %v4058, %v5331
      %v5438 = vadd.f32 %v4059, %v5336
      %v5439 = vadd.f32 %v4060, %v5341
      %v5440 = vadd.f32 %v4061, %v5346
      %v5441 = vadd.f32 %v4062, %v5351
      %v5442 = vadd.f32 %v4063, %v5356
      %v5443 = vadd.f32 %v4064, %v5361
      %v5444 = vadd.f32 %v4065, %v5366
      %v5445 = vadd.f32 %v4066, %v5371
      %v5446 = vadd.f32 %v4067, %v5376
      %v5447 = vadd.f32 %v4068, %v5381
      %v5448 = vadd.f32 %v4069, %v5386
      %v5449 = vadd.f32 %v4070, %v5391
      %v5450 = vadd.f32 %v4071, %v5396
      %v5451 = vadd.f32 %v4072, %v5401
      %v5452 = vadd.f32 %v4073, %v5406
      %v5453 = vadd.f32 %v4074, %v5411
      %v5454 = vadd.f32 %v4075, %v5416
      %v5455 = vadd.f32 %v4076, %v5421
      %v5456 = vld [vmem:[%s3401] sm:$0xfc]
      %v5457 = vld [vmem:[%s3401 + $0x8] sm:$0xfc]
      %v5458 = vld [vmem:[%s3401 + $0x10] sm:$0xfc]
      %v5459 = vld [vmem:[%s3401 + $0x18] sm:$0xfc]
      %v5460 = vld [vmem:[%s3401 + $0x40] sm:$0x3]
      %v5461 = vld [vmem:[%s3401 + $0x48] sm:$0x3]
      %v5462 = vld [vmem:[%s3401 + $0x50] sm:$0x3]
      %v5463 = vld [vmem:[%s3401 + $0x58] sm:$0x3]
      %v5464 = vld [vmem:[%s3401 + $0x60] sm:$0xfc]
      %v5465 = vld [vmem:[%s3401 + $0x68] sm:$0xfc]
      %v5466 = vld [vmem:[%s3401 + $0x70] sm:$0xfc]
      %v5467 = vld [vmem:[%s3401 + $0x78] sm:$0xfc]
      %v5468 = vld [vmem:[%s3401 + $0xa0] sm:$0x3]
      %v5469 = vld [vmem:[%s3401 + $0xa8] sm:$0x3]
      %v5470 = vld [vmem:[%s3401 + $0xb0] sm:$0x3]
      %v5471 = vld [vmem:[%s3401 + $0xb8] sm:$0x3]
      %v5472 = vld [vmem:[%s3401 + $0xc0] sm:$0xfc]
      %v5473 = vld [vmem:[%s3401 + $0xc8] sm:$0xfc]
      %v5474 = vld [vmem:[%s3401 + $0xd0] sm:$0xfc]
      %v5475 = vld [vmem:[%s3401 + $0xd8] sm:$0xfc]
      %v5476 = vld [vmem:[%s3401 + $0x100] sm:$0x3]
      %v5477 = vld [vmem:[%s3401 + $0x108] sm:$0x3]
      %v5478 = vld [vmem:[%s3401 + $0x110] sm:$0x3]
      %v5479 = vld [vmem:[%s3401 + $0x118] sm:$0x3]
      %v5480 = vld [vmem:[%s3401 + $0x120] sm:$0xfc]
      %v5481 = vld [vmem:[%s3401 + $0x128] sm:$0xfc]
      %v5482 = vld [vmem:[%s3401 + $0x130] sm:$0xfc]
      %v5483 = vld [vmem:[%s3401 + $0x138] sm:$0xfc]
      %v5484 = vld [vmem:[%s3401 + $0x160] sm:$0x3]
      %v5485 = vld [vmem:[%s3401 + $0x168] sm:$0x3]
      %v5486 = vld [vmem:[%s3401 + $0x170] sm:$0x3]
      %v5487 = vld [vmem:[%s3401 + $0x178] sm:$0x3]
      %v5488 = vld [vmem:[%s3401 + $0x180] sm:$0xfc]
      %v5489 = vld [vmem:[%s3401 + $0x188] sm:$0xfc]
      %v5490 = vld [vmem:[%s3401 + $0x190] sm:$0xfc]
      %v5491 = vld [vmem:[%s3401 + $0x198] sm:$0xfc]
      %v5492 = vld [vmem:[%s3401 + $0x1c0] sm:$0x3]
      %v5493 = vld [vmem:[%s3401 + $0x1c8] sm:$0x3]
      %v5494 = vld [vmem:[%s3401 + $0x1d0] sm:$0x3]
      %v5495 = vld [vmem:[%s3401 + $0x1d8] sm:$0x3]
      %v5496 = vld [vmem:[%s3401 + $0x1e0] sm:$0xfc]
      %v5497 = vld [vmem:[%s3401 + $0x1e8] sm:$0xfc]
      %v5498 = vld [vmem:[%s3401 + $0x1f0] sm:$0xfc]
      %v5499 = vld [vmem:[%s3401 + $0x1f8] sm:$0xfc]
      %v5500 = vld [vmem:[%s3401 + $0x220] sm:$0x3]
      %v5501 = vld [vmem:[%s3401 + $0x228] sm:$0x3]
      %v5502 = vld [vmem:[%s3401 + $0x230] sm:$0x3]
      %v5503 = vld [vmem:[%s3401 + $0x238] sm:$0x3]
      %v5504 = vld [vmem:[%s3401 + $0x240] sm:$0xfc]
      %v5505 = vld [vmem:[%s3401 + $0x248] sm:$0xfc]
      %v5506 = vld [vmem:[%s3401 + $0x250] sm:$0xfc]
      %v5507 = vld [vmem:[%s3401 + $0x258] sm:$0xfc]
      %v5508 = vld [vmem:[%s3401 + $0x280] sm:$0x3]
      %v5509 = vld [vmem:[%s3401 + $0x288] sm:$0x3]
      %v5510 = vld [vmem:[%s3401 + $0x290] sm:$0x3]
      %v5511 = vld [vmem:[%s3401 + $0x298] sm:$0x3]
      %v5512 = vld [vmem:[%s3401 + $0x2a0] sm:$0xfc]
      %v5513 = vld [vmem:[%s3401 + $0x2a8] sm:$0xfc]
      %v5514 = vld [vmem:[%s3401 + $0x2b0] sm:$0xfc]
      %v5515 = vld [vmem:[%s3401 + $0x2b8] sm:$0xfc]
      %v5516 = vld [vmem:[%s3401 + $0x2e0] sm:$0x3]
      %v5517 = vld [vmem:[%s3401 + $0x2e8] sm:$0x3]
      %v5518 = vld [vmem:[%s3401 + $0x2f0] sm:$0x3]
      %v5519 = vld [vmem:[%s3401 + $0x2f8] sm:$0x3]
      %v5520 = vld [vmem:[%s3401 + $0x300] sm:$0xfc]
      %v5521 = vld [vmem:[%s3401 + $0x308] sm:$0xfc]
      %v5522 = vld [vmem:[%s3401 + $0x310] sm:$0xfc]
      %v5523 = vld [vmem:[%s3401 + $0x318] sm:$0xfc]
      %v5524 = vld [vmem:[%s3401 + $0x340] sm:$0x3]
      %v5525 = vld [vmem:[%s3401 + $0x348] sm:$0x3]
      %v5526 = vld [vmem:[%s3401 + $0x350] sm:$0x3]
      %v5527 = vld [vmem:[%s3401 + $0x358] sm:$0x3]
      %v5528 = vld [vmem:[%s3401 + $0x360] sm:$0xfc]
      %v5529 = vld [vmem:[%s3401 + $0x368] sm:$0xfc]
      %v5530 = vld [vmem:[%s3401 + $0x370] sm:$0xfc]
      %v5531 = vld [vmem:[%s3401 + $0x378] sm:$0xfc]
      %v5532 = vld [vmem:[%s3401 + $0x3a0] sm:$0x3]
      %v5533 = vld [vmem:[%s3401 + $0x3a8] sm:$0x3]
      %v5534 = vld [vmem:[%s3401 + $0x3b0] sm:$0x3]
      %v5535 = vld [vmem:[%s3401 + $0x3b8] sm:$0x3]
      %v5536 = vld [vmem:[%s3401 + $0x3c0] sm:$0xfc]
      %v5537 = vld [vmem:[%s3401 + $0x3c8] sm:$0xfc]
      %v5538 = vld [vmem:[%s3401 + $0x3d0] sm:$0xfc]
      %v5539 = vld [vmem:[%s3401 + $0x3d8] sm:$0xfc]
      %v5540 = vld [vmem:[%s3401 + $0x400] sm:$0x3]
      %v5541 = vld [vmem:[%s3401 + $0x408] sm:$0x3]
      %v5542 = vld [vmem:[%s3401 + $0x410] sm:$0x3]
      %v5543 = vld [vmem:[%s3401 + $0x418] sm:$0x3]
      %v5544 = vld [vmem:[%s3401 + $0x420] sm:$0xfc]
      %v5545 = vld [vmem:[%s3401 + $0x428] sm:$0xfc]
      %v5546 = vld [vmem:[%s3401 + $0x430] sm:$0xfc]
      %v5547 = vld [vmem:[%s3401 + $0x438] sm:$0xfc]
      %v5548 = vld [vmem:[%s3401 + $0x460] sm:$0x3]
      %v5549 = vld [vmem:[%s3401 + $0x468] sm:$0x3]
      %v5550 = vld [vmem:[%s3401 + $0x470] sm:$0x3]
      %v5551 = vld [vmem:[%s3401 + $0x478] sm:$0x3]
      %v5552 = vld [vmem:[%s3401 + $0x480] sm:$0xfc]
      %v5553 = vld [vmem:[%s3401 + $0x488] sm:$0xfc]
      %v5554 = vld [vmem:[%s3401 + $0x490] sm:$0xfc]
      %v5555 = vld [vmem:[%s3401 + $0x498] sm:$0xfc]
      %v5556 = vld [vmem:[%s3401 + $0x4c0] sm:$0x3]
      %v5557 = vld [vmem:[%s3401 + $0x4c8] sm:$0x3]
      %v5558 = vld [vmem:[%s3401 + $0x4d0] sm:$0x3]
      %v5559 = vld [vmem:[%s3401 + $0x4d8] sm:$0x3]
      %v5560 = vld [vmem:[%s3401 + $0x4e0] sm:$0xfc]
      %v5561 = vld [vmem:[%s3401 + $0x4e8] sm:$0xfc]
      %v5562 = vld [vmem:[%s3401 + $0x4f0] sm:$0xfc]
      %v5563 = vld [vmem:[%s3401 + $0x4f8] sm:$0xfc]
      %v5564 = vld [vmem:[%s3401 + $0x520] sm:$0x3]
      %v5565 = vld [vmem:[%s3401 + $0x528] sm:$0x3]
      %v5566 = vld [vmem:[%s3401 + $0x530] sm:$0x3]
      %v5567 = vld [vmem:[%s3401 + $0x538] sm:$0x3]
      %v5568 = vld [vmem:[%s3401 + $0x540] sm:$0xfc]
      %v5569 = vld [vmem:[%s3401 + $0x548] sm:$0xfc]
      %v5570 = vld [vmem:[%s3401 + $0x550] sm:$0xfc]
      %v5571 = vld [vmem:[%s3401 + $0x558] sm:$0xfc]
      %v5572 = vld [vmem:[%s3401 + $0x580] sm:$0x3]
      %v5573 = vld [vmem:[%s3401 + $0x588] sm:$0x3]
      %v5574 = vld [vmem:[%s3401 + $0x590] sm:$0x3]
      %v5575 = vld [vmem:[%s3401 + $0x598] sm:$0x3]
      %v5576 = vld [vmem:[%s3401 + $0x5a0] sm:$0xfc]
      %v5577 = vld [vmem:[%s3401 + $0x5a8] sm:$0xfc]
      %v5578 = vld [vmem:[%s3401 + $0x5b0] sm:$0xfc]
      %v5579 = vld [vmem:[%s3401 + $0x5b8] sm:$0xfc]
      %v5580 = vld [vmem:[%s3401 + $0x5e0] sm:$0x3]
      %v5581 = vld [vmem:[%s3401 + $0x5e8] sm:$0x3]
      %v5582 = vld [vmem:[%s3401 + $0x5f0] sm:$0x3]
      %v5583 = vld [vmem:[%s3401 + $0x5f8] sm:$0x3]
      %v5712 = vrot.slane %v5456, 2
      %v5713 = vrot.slane %v4081, 2
      %v5714 = vsel %vm2405, %v5712, %v5713
      %v5715 = vrot.slane %v5457, 2
      %v5716 = vrot.slane %v4082, 2
      %v5717 = vsel %vm2405, %v5715, %v5716
      %v5718 = vrot.slane %v5458, 2
      %v5719 = vrot.slane %v4083, 2
      %v5720 = vsel %vm2405, %v5718, %v5719
      %v5721 = vrot.slane %v5459, 2
      %v5722 = vrot.slane %v4084, 2
      %v5723 = vsel %vm2405, %v5721, %v5722
      %v5724 = vrot.slane %v5460, 2
      %v5725 = vsel %vm2405, %v5713, %v5724
      %v5726 = vrot.slane %v5461, 2
      %v5727 = vsel %vm2405, %v5716, %v5726
      %v5728 = vrot.slane %v5462, 2
      %v5729 = vsel %vm2405, %v5719, %v5728
      %v5730 = vrot.slane %v5463, 2
      %v5731 = vsel %vm2405, %v5722, %v5730
      %v5732 = vrot.slane %v5464, 2
      %v5733 = vrot.slane %v4093, 2
      %v5734 = vsel %vm2405, %v5732, %v5733
      %v5735 = vrot.slane %v5465, 2
      %v5736 = vrot.slane %v4094, 2
      %v5737 = vsel %vm2405, %v5735, %v5736
      %v5738 = vrot.slane %v5466, 2
      %v5739 = vrot.slane %v4095, 2
      %v5740 = vsel %vm2405, %v5738, %v5739
      %v5741 = vrot.slane %v5467, 2
      %v5742 = vrot.slane %v4096, 2
      %v5743 = vsel %vm2405, %v5741, %v5742
      %v5744 = vrot.slane %v5468, 2
      %v5745 = vsel %vm2405, %v5733, %v5744
      %v5746 = vrot.slane %v5469, 2
      %v5747 = vsel %vm2405, %v5736, %v5746
      %v5748 = vrot.slane %v5470, 2
      %v5749 = vsel %vm2405, %v5739, %v5748
      %v5750 = vrot.slane %v5471, 2
      %v5751 = vsel %vm2405, %v5742, %v5750
      %v5752 = vrot.slane %v5472, 2
      %v5753 = vrot.slane %v4105, 2
      %v5754 = vsel %vm2405, %v5752, %v5753
      %v5755 = vrot.slane %v5473, 2
      %v5756 = vrot.slane %v4106, 2
      %v5757 = vsel %vm2405, %v5755, %v5756
      %v5758 = vrot.slane %v5474, 2
      %v5759 = vrot.slane %v4107, 2
      %v5760 = vsel %vm2405, %v5758, %v5759
      %v5761 = vrot.slane %v5475, 2
      %v5762 = vrot.slane %v4108, 2
      %v5763 = vsel %vm2405, %v5761, %v5762
      %v5764 = vrot.slane %v5476, 2
      %v5765 = vsel %vm2405, %v5753, %v5764
      %v5766 = vrot.slane %v5477, 2
      %v5767 = vsel %vm2405, %v5756, %v5766
      %v5768 = vrot.slane %v5478, 2
      %v5769 = vsel %vm2405, %v5759, %v5768
      %v5770 = vrot.slane %v5479, 2
      %v5771 = vsel %vm2405, %v5762, %v5770
      %v5772 = vrot.slane %v5480, 2
      %v5773 = vrot.slane %v4117, 2
      %v5774 = vsel %vm2405, %v5772, %v5773
      %v5775 = vrot.slane %v5481, 2
      %v5776 = vrot.slane %v4118, 2
      %v5777 = vsel %vm2405, %v5775, %v5776
      %v5778 = vrot.slane %v5482, 2
      %v5779 = vrot.slane %v4119, 2
      %v5780 = vsel %vm2405, %v5778, %v5779
      %v5781 = vrot.slane %v5483, 2
      %v5782 = vrot.slane %v4120, 2
      %v5783 = vsel %vm2405, %v5781, %v5782
      %v5784 = vrot.slane %v5484, 2
      %v5785 = vsel %vm2405, %v5773, %v5784
      %v5786 = vrot.slane %v5485, 2
      %v5787 = vsel %vm2405, %v5776, %v5786
      %v5788 = vrot.slane %v5486, 2
      %v5789 = vsel %vm2405, %v5779, %v5788
      %v5790 = vrot.slane %v5487, 2
      %v5791 = vsel %vm2405, %v5782, %v5790
      %v5792 = vrot.slane %v5488, 2
      %v5793 = vrot.slane %v4129, 2
      %v5794 = vsel %vm2405, %v5792, %v5793
      %v5795 = vrot.slane %v5489, 2
      %v5796 = vrot.slane %v4130, 2
      %v5797 = vsel %vm2405, %v5795, %v5796
      %v5798 = vrot.slane %v5490, 2
      %v5799 = vrot.slane %v4131, 2
      %v5800 = vsel %vm2405, %v5798, %v5799
      %v5801 = vrot.slane %v5491, 2
      %v5802 = vrot.slane %v4132, 2
      %v5803 = vsel %vm2405, %v5801, %v5802
      %v5804 = vrot.slane %v5492, 2
      %v5805 = vsel %vm2405, %v5793, %v5804
      %v5806 = vrot.slane %v5493, 2
      %v5807 = vsel %vm2405, %v5796, %v5806
      %v5808 = vrot.slane %v5494, 2
      %v5809 = vsel %vm2405, %v5799, %v5808
      %v5810 = vrot.slane %v5495, 2
      %v5811 = vsel %vm2405, %v5802, %v5810
      %v5812 = vrot.slane %v5496, 2
      %v5813 = vrot.slane %v4141, 2
      %v5814 = vsel %vm2405, %v5812, %v5813
      %v5815 = vrot.slane %v5497, 2
      %v5816 = vrot.slane %v4142, 2
      %v5817 = vsel %vm2405, %v5815, %v5816
      %v5818 = vrot.slane %v5498, 2
      %v5819 = vrot.slane %v4143, 2
      %v5820 = vsel %vm2405, %v5818, %v5819
      %v5821 = vrot.slane %v5499, 2
      %v5822 = vrot.slane %v4144, 2
      %v5823 = vsel %vm2405, %v5821, %v5822
      %v5824 = vrot.slane %v5500, 2
      %v5825 = vsel %vm2405, %v5813, %v5824
      %v5826 = vrot.slane %v5501, 2
      %v5827 = vsel %vm2405, %v5816, %v5826
      %v5828 = vrot.slane %v5502, 2
      %v5829 = vsel %vm2405, %v5819, %v5828
      %v5830 = vrot.slane %v5503, 2
      %v5831 = vsel %vm2405, %v5822, %v5830
      %v5832 = vrot.slane %v5504, 2
      %v5833 = vrot.slane %v4153, 2
      %v5834 = vsel %vm2405, %v5832, %v5833
      %v5835 = vrot.slane %v5505, 2
      %v5836 = vrot.slane %v4154, 2
      %v5837 = vsel %vm2405, %v5835, %v5836
      %v5838 = vrot.slane %v5506, 2
      %v5839 = vrot.slane %v4155, 2
      %v5840 = vsel %vm2405, %v5838, %v5839
      %v5841 = vrot.slane %v5507, 2
      %v5842 = vrot.slane %v4156, 2
      %v5843 = vsel %vm2405, %v5841, %v5842
      %v5844 = vrot.slane %v5508, 2
      %v5845 = vsel %vm2405, %v5833, %v5844
      %v5846 = vrot.slane %v5509, 2
      %v5847 = vsel %vm2405, %v5836, %v5846
      %v5848 = vrot.slane %v5510, 2
      %v5849 = vsel %vm2405, %v5839, %v5848
      %v5850 = vrot.slane %v5511, 2
      %v5851 = vsel %vm2405, %v5842, %v5850
      %v5852 = vrot.slane %v5512, 2
      %v5853 = vrot.slane %v4165, 2
      %v5854 = vsel %vm2405, %v5852, %v5853
      %v5855 = vrot.slane %v5513, 2
      %v5856 = vrot.slane %v4166, 2
      %v5857 = vsel %vm2405, %v5855, %v5856
      %v5858 = vrot.slane %v5514, 2
      %v5859 = vrot.slane %v4167, 2
      %v5860 = vsel %vm2405, %v5858, %v5859
      %v5861 = vrot.slane %v5515, 2
      %v5862 = vrot.slane %v4168, 2
      %v5863 = vsel %vm2405, %v5861, %v5862
      %v5864 = vrot.slane %v5516, 2
      %v5865 = vsel %vm2405, %v5853, %v5864
      %v5866 = vrot.slane %v5517, 2
      %v5867 = vsel %vm2405, %v5856, %v5866
      %v5868 = vrot.slane %v5518, 2
      %v5869 = vsel %vm2405, %v5859, %v5868
      %v5870 = vrot.slane %v5519, 2
      %v5871 = vsel %vm2405, %v5862, %v5870
      %v5872 = vrot.slane %v5520, 2
      %v5873 = vrot.slane %v4177, 2
      %v5874 = vsel %vm2405, %v5872, %v5873
      %v5875 = vrot.slane %v5521, 2
      %v5876 = vrot.slane %v4178, 2
      %v5877 = vsel %vm2405, %v5875, %v5876
      %v5878 = vrot.slane %v5522, 2
      %v5879 = vrot.slane %v4179, 2
      %v5880 = vsel %vm2405, %v5878, %v5879
      %v5881 = vrot.slane %v5523, 2
      %v5882 = vrot.slane %v4180, 2
      %v5883 = vsel %vm2405, %v5881, %v5882
      %v5884 = vrot.slane %v5524, 2
      %v5885 = vsel %vm2405, %v5873, %v5884
      %v5886 = vrot.slane %v5525, 2
      %v5887 = vsel %vm2405, %v5876, %v5886
      %v5888 = vrot.slane %v5526, 2
      %v5889 = vsel %vm2405, %v5879, %v5888
      %v5890 = vrot.slane %v5527, 2
      %v5891 = vsel %vm2405, %v5882, %v5890
      %v5892 = vrot.slane %v5528, 2
      %v5893 = vrot.slane %v4189, 2
      %v5894 = vsel %vm2405, %v5892, %v5893
      %v5895 = vrot.slane %v5529, 2
      %v5896 = vrot.slane %v4190, 2
      %v5897 = vsel %vm2405, %v5895, %v5896
      %v5898 = vrot.slane %v5530, 2
      %v5899 = vrot.slane %v4191, 2
      %v5900 = vsel %vm2405, %v5898, %v5899
      %v5901 = vrot.slane %v5531, 2
      %v5902 = vrot.slane %v4192, 2
      %v5903 = vsel %vm2405, %v5901, %v5902
      %v5904 = vrot.slane %v5532, 2
      %v5905 = vsel %vm2405, %v5893, %v5904
      %v5906 = vrot.slane %v5533, 2
      %v5907 = vsel %vm2405, %v5896, %v5906
      %v5908 = vrot.slane %v5534, 2
      %v5909 = vsel %vm2405, %v5899, %v5908
      %v5910 = vrot.slane %v5535, 2
      %v5911 = vsel %vm2405, %v5902, %v5910
      %v5912 = vrot.slane %v5536, 2
      %v5913 = vrot.slane %v4201, 2
      %v5914 = vsel %vm2405, %v5912, %v5913
      %v5915 = vrot.slane %v5537, 2
      %v5916 = vrot.slane %v4202, 2
      %v5917 = vsel %vm2405, %v5915, %v5916
      %v5918 = vrot.slane %v5538, 2
      %v5919 = vrot.slane %v4203, 2
      %v5920 = vsel %vm2405, %v5918, %v5919
      %v5921 = vrot.slane %v5539, 2
      %v5922 = vrot.slane %v4204, 2
      %v5923 = vsel %vm2405, %v5921, %v5922
      %v5924 = vrot.slane %v5540, 2
      %v5925 = vsel %vm2405, %v5913, %v5924
      %v5926 = vrot.slane %v5541, 2
      %v5927 = vsel %vm2405, %v5916, %v5926
      %v5928 = vrot.slane %v5542, 2
      %v5929 = vsel %vm2405, %v5919, %v5928
      %v5930 = vrot.slane %v5543, 2
      %v5931 = vsel %vm2405, %v5922, %v5930
      %v5932 = vrot.slane %v5544, 2
      %v5933 = vrot.slane %v4213, 2
      %v5934 = vsel %vm2405, %v5932, %v5933
      %v5935 = vrot.slane %v5545, 2
      %v5936 = vrot.slane %v4214, 2
      %v5937 = vsel %vm2405, %v5935, %v5936
      %v5938 = vrot.slane %v5546, 2
      %v5939 = vrot.slane %v4215, 2
      %v5940 = vsel %vm2405, %v5938, %v5939
      %v5941 = vrot.slane %v5547, 2
      %v5942 = vrot.slane %v4216, 2
      %v5943 = vsel %vm2405, %v5941, %v5942
      %v5944 = vrot.slane %v5548, 2
      %v5945 = vsel %vm2405, %v5933, %v5944
      %v5946 = vrot.slane %v5549, 2
      %v5947 = vsel %vm2405, %v5936, %v5946
      %v5948 = vrot.slane %v5550, 2
      %v5949 = vsel %vm2405, %v5939, %v5948
      %v5950 = vrot.slane %v5551, 2
      %v5951 = vsel %vm2405, %v5942, %v5950
      %v5952 = vrot.slane %v5552, 2
      %v5953 = vrot.slane %v4225, 2
      %v5954 = vsel %vm2405, %v5952, %v5953
      %v5955 = vrot.slane %v5553, 2
      %v5956 = vrot.slane %v4226, 2
      %v5957 = vsel %vm2405, %v5955, %v5956
      %v5958 = vrot.slane %v5554, 2
      %v5959 = vrot.slane %v4227, 2
      %v5960 = vsel %vm2405, %v5958, %v5959
      %v5961 = vrot.slane %v5555, 2
      %v5962 = vrot.slane %v4228, 2
      %v5963 = vsel %vm2405, %v5961, %v5962
      %v5964 = vrot.slane %v5556, 2
      %v5965 = vsel %vm2405, %v5953, %v5964
      %v5966 = vrot.slane %v5557, 2
      %v5967 = vsel %vm2405, %v5956, %v5966
      %v5968 = vrot.slane %v5558, 2
      %v5969 = vsel %vm2405, %v5959, %v5968
      %v5970 = vrot.slane %v5559, 2
      %v5971 = vsel %vm2405, %v5962, %v5970
      %v5972 = vrot.slane %v5560, 2
      %v5973 = vrot.slane %v4237, 2
      %v5974 = vsel %vm2405, %v5972, %v5973
      %v5975 = vrot.slane %v5561, 2
      %v5976 = vrot.slane %v4238, 2
      %v5977 = vsel %vm2405, %v5975, %v5976
      %v5978 = vrot.slane %v5562, 2
      %v5979 = vrot.slane %v4239, 2
      %v5980 = vsel %vm2405, %v5978, %v5979
      %v5981 = vrot.slane %v5563, 2
      %v5982 = vrot.slane %v4240, 2
      %v5983 = vsel %vm2405, %v5981, %v5982
      %v5984 = vrot.slane %v5564, 2
      %v5985 = vsel %vm2405, %v5973, %v5984
      %v5986 = vrot.slane %v5565, 2
      %v5987 = vsel %vm2405, %v5976, %v5986
      %v5988 = vrot.slane %v5566, 2
      %v5989 = vsel %vm2405, %v5979, %v5988
      %v5990 = vrot.slane %v5567, 2
      %v5991 = vsel %vm2405, %v5982, %v5990
      %v5992 = vrot.slane %v5568, 2
      %v5993 = vrot.slane %v4249, 2
      %v5994 = vsel %vm2405, %v5992, %v5993
      %v5995 = vrot.slane %v5569, 2
      %v5996 = vrot.slane %v4250, 2
      %v5997 = vsel %vm2405, %v5995, %v5996
      %v5998 = vrot.slane %v5570, 2
      %v5999 = vrot.slane %v4251, 2
      %v6000 = vsel %vm2405, %v5998, %v5999
      %v6001 = vrot.slane %v5571, 2
      %v6002 = vrot.slane %v4252, 2
      %v6003 = vsel %vm2405, %v6001, %v6002
      %v6004 = vrot.slane %v5572, 2
      %v6005 = vsel %vm2405, %v5993, %v6004
      %v6006 = vrot.slane %v5573, 2
      %v6007 = vsel %vm2405, %v5996, %v6006
      %v6008 = vrot.slane %v5574, 2
      %v6009 = vsel %vm2405, %v5999, %v6008
      %v6010 = vrot.slane %v5575, 2
      %v6011 = vsel %vm2405, %v6002, %v6010
      %v6012 = vrot.slane %v5576, 2
      %v6013 = vrot.slane %v4261, 2
      %v6014 = vsel %vm2405, %v6012, %v6013
      %v6015 = vrot.slane %v5577, 2
      %v6016 = vrot.slane %v4262, 2
      %v6017 = vsel %vm2405, %v6015, %v6016
      %v6018 = vrot.slane %v5578, 2
      %v6019 = vrot.slane %v4263, 2
      %v6020 = vsel %vm2405, %v6018, %v6019
      %v6021 = vrot.slane %v5579, 2
      %v6022 = vrot.slane %v4264, 2
      %v6023 = vsel %vm2405, %v6021, %v6022
      %v6024 = vrot.slane %v5580, 2
      %v6025 = vsel %vm2405, %v6013, %v6024
      %v6026 = vrot.slane %v5581, 2
      %v6027 = vsel %vm2405, %v6016, %v6026
      %v6028 = vrot.slane %v5582, 2
      %v6029 = vsel %vm2405, %v6019, %v6028
      %v6030 = vrot.slane %v5583, 2
      %v6031 = vsel %vm2405, %v6022, %v6030
      %s6160 = scalar_lea.vmem %s1, 2560
      %v6161 = vld [vmem:[%s6160] sm:$0xff]
      %v6162 = vld [vmem:[%s6160 + $0x8] sm:$0xff]
      %v6163 = vld [vmem:[%s6160 + $0x10] sm:$0xff]
      %v6164 = vld [vmem:[%s6160 + $0x18] sm:$0xff]
      %v6165 = vld [vmem:[%s6160 + $0x20] sm:$0xff]
      %v6166 = vld [vmem:[%s6160 + $0x28] sm:$0xff]
      %v6167 = vld [vmem:[%s6160 + $0x30] sm:$0xff]
      %v6168 = vld [vmem:[%s6160 + $0x38] sm:$0xff]
      %v6169 = vld [vmem:[%s6160 + $0x40] sm:$0xff]
      %v6170 = vld [vmem:[%s6160 + $0x48] sm:$0xff]
      %v6171 = vld [vmem:[%s6160 + $0x50] sm:$0xff]
      %v6172 = vld [vmem:[%s6160 + $0x58] sm:$0xff]
      %v6173 = vld [vmem:[%s6160 + $0x60] sm:$0xff]
      %v6174 = vld [vmem:[%s6160 + $0x68] sm:$0xff]
      %v6175 = vld [vmem:[%s6160 + $0x70] sm:$0xff]
      %v6176 = vld [vmem:[%s6160 + $0x78] sm:$0xff]
      %v6177 = vld [vmem:[%s6160 + $0x80] sm:$0xff]
      %v6178 = vld [vmem:[%s6160 + $0x88] sm:$0xff]
      %v6179 = vld [vmem:[%s6160 + $0x90] sm:$0xff]
      %v6180 = vld [vmem:[%s6160 + $0x98] sm:$0xff]
      %v6181 = vld [vmem:[%s6160 + $0xa0] sm:$0xff]
      %v6182 = vld [vmem:[%s6160 + $0xa8] sm:$0xff]
      %v6183 = vld [vmem:[%s6160 + $0xb0] sm:$0xff]
      %v6184 = vld [vmem:[%s6160 + $0xb8] sm:$0xff]
      %v6185 = vld [vmem:[%s6160 + $0xc0] sm:$0xff]
      %v6186 = vld [vmem:[%s6160 + $0xc8] sm:$0xff]
      %v6187 = vld [vmem:[%s6160 + $0xd0] sm:$0xff]
      %v6188 = vld [vmem:[%s6160 + $0xd8] sm:$0xff]
      %v6189 = vld [vmem:[%s6160 + $0xe0] sm:$0xff]
      %v6190 = vld [vmem:[%s6160 + $0xe8] sm:$0xff]
      %v6191 = vld [vmem:[%s6160 + $0xf0] sm:$0xff]
      %v6192 = vld [vmem:[%s6160 + $0xf8] sm:$0xff]
      %v6193 = vld [vmem:[%s6160 + $0x100] sm:$0xff]
      %v6194 = vld [vmem:[%s6160 + $0x108] sm:$0xff]
      %v6195 = vld [vmem:[%s6160 + $0x110] sm:$0xff]
      %v6196 = vld [vmem:[%s6160 + $0x118] sm:$0xff]
      %v6197 = vld [vmem:[%s6160 + $0x120] sm:$0xff]
      %v6198 = vld [vmem:[%s6160 + $0x128] sm:$0xff]
      %v6199 = vld [vmem:[%s6160 + $0x130] sm:$0xff]
      %v6200 = vld [vmem:[%s6160 + $0x138] sm:$0xff]
      %v6201 = vld [vmem:[%s6160 + $0x140] sm:$0xff]
      %v6202 = vld [vmem:[%s6160 + $0x148] sm:$0xff]
      %v6203 = vld [vmem:[%s6160 + $0x150] sm:$0xff]
      %v6204 = vld [vmem:[%s6160 + $0x158] sm:$0xff]
      %v6205 = vld [vmem:[%s6160 + $0x160] sm:$0xff]
      %v6206 = vld [vmem:[%s6160 + $0x168] sm:$0xff]
      %v6207 = vld [vmem:[%s6160 + $0x170] sm:$0xff]
      %v6208 = vld [vmem:[%s6160 + $0x178] sm:$0xff]
      %v6209 = vld [vmem:[%s6160 + $0x180] sm:$0xff]
      %v6210 = vld [vmem:[%s6160 + $0x188] sm:$0xff]
      %v6211 = vld [vmem:[%s6160 + $0x190] sm:$0xff]
      %v6212 = vld [vmem:[%s6160 + $0x198] sm:$0xff]
      %v6213 = vld [vmem:[%s6160 + $0x1a0] sm:$0xff]
      %v6214 = vld [vmem:[%s6160 + $0x1a8] sm:$0xff]
      %v6215 = vld [vmem:[%s6160 + $0x1b0] sm:$0xff]
      %v6216 = vld [vmem:[%s6160 + $0x1b8] sm:$0xff]
      %v6217 = vld [vmem:[%s6160 + $0x1c0] sm:$0xff]
      %v6218 = vld [vmem:[%s6160 + $0x1c8] sm:$0xff]
      %v6219 = vld [vmem:[%s6160 + $0x1d0] sm:$0xff]
      %v6220 = vld [vmem:[%s6160 + $0x1d8] sm:$0xff]
      %v6221 = vld [vmem:[%s6160 + $0x1e0] sm:$0xff]
      %v6222 = vld [vmem:[%s6160 + $0x1e8] sm:$0xff]
      %v6223 = vld [vmem:[%s6160 + $0x1f0] sm:$0xff]
      %v6224 = vld [vmem:[%s6160 + $0x1f8] sm:$0xff]
      %6225 = vmatprep.subr.mxu0 0.0
      %6226 = vmatpush1.msra.mxu0 %v6161
      %6227 = vmatprep.subr.mxu0 0.0
      %6228 = vmatpush1.msra.mxu0 %v6162
      %6229 = vmatprep.subr.mxu0 0.0
      %6230 = vmatpush1.msra.mxu0 %v6163
      %6231 = vmatprep.subr.mxu0 0.0
      %6232 = vmatpush1.msra.mxu0 %v6164
      %6233 = vmatprep.subr.mxu0 0.0
      %6234 = vmatpush1.msra.mxu0 %v6165
      %6235 = vmatprep.subr.mxu0 0.0
      %6236 = vmatpush1.msra.mxu0 %v6166
      %6237 = vmatprep.subr.mxu0 0.0
      %6238 = vmatpush1.msra.mxu0 %v6167
      %6239 = vmatprep.subr.mxu0 0.0
      %6240 = vmatpush1.msra.mxu0 %v6168
      %6241 = vmatprep.subr.mxu0 0.0
      %6242 = vmatpush1.msra.mxu0 %v6169
      %6243 = vmatprep.subr.mxu0 0.0
      %6244 = vmatpush1.msra.mxu0 %v6170
      %6245 = vmatprep.subr.mxu0 0.0
      %6246 = vmatpush1.msra.mxu0 %v6171
      %6247 = vmatprep.subr.mxu0 0.0
      %6248 = vmatpush1.msra.mxu0 %v6172
      %6249 = vmatprep.subr.mxu0 0.0
      %6250 = vmatpush1.msra.mxu0 %v6173
      %6251 = vmatprep.subr.mxu0 0.0
      %6252 = vmatpush1.msra.mxu0 %v6174
      %6253 = vmatprep.subr.mxu0 0.0
      %6254 = vmatpush1.msra.mxu0 %v6175
      %6255 = vmatprep.subr.mxu0 0.0
      %6256 = vmatpush1.msra.mxu0 %v6176
      %6257 = vmatprep.subr.mxu0 0.0
      %6258 = vmatpush1.msra.mxu0 %v6177
      %6259 = vmatprep.subr.mxu0 0.0
      %6260 = vmatpush1.msra.mxu0 %v6178
      %6261 = vmatprep.subr.mxu0 0.0
      %6262 = vmatpush1.msra.mxu0 %v6179
      %6263 = vmatprep.subr.mxu0 0.0
      %6264 = vmatpush1.msra.mxu0 %v6180
      %6265 = vmatprep.subr.mxu0 0.0
      %6266 = vmatpush1.msra.mxu0 %v6181
      %6267 = vmatprep.subr.mxu0 0.0
      %6268 = vmatpush1.msra.mxu0 %v6182
      %6269 = vmatprep.subr.mxu0 0.0
      %6270 = vmatpush1.msra.mxu0 %v6183
      %6271 = vmatprep.subr.mxu0 0.0
      %6272 = vmatpush1.msra.mxu0 %v6184
      %6273 = vmatprep.subr.mxu0 0.0
      %6274 = vmatpush1.msra.mxu0 %v6185
      %6275 = vmatprep.subr.mxu0 0.0
      %6276 = vmatpush1.msra.mxu0 %v6186
      %6277 = vmatprep.subr.mxu0 0.0
      %6278 = vmatpush1.msra.mxu0 %v6187
      %6279 = vmatprep.subr.mxu0 0.0
      %6280 = vmatpush1.msra.mxu0 %v6188
      %6281 = vmatprep.subr.mxu0 0.0
      %6282 = vmatpush1.msra.mxu0 %v6189
      %6283 = vmatprep.subr.mxu0 0.0
      %6284 = vmatpush1.msra.mxu0 %v6190
      %6285 = vmatprep.subr.mxu0 0.0
      %6286 = vmatpush1.msra.mxu0 %v6191
      %6287 = vmatprep.subr.mxu0 0.0
      %6288 = vmatpush1.msra.mxu0 %v6192
      %6289 = vmatprep.mubr.f32.mxu0 %v5717
      %6290 = vmatmul.mubr.f32.gmra.mrb[0].mxu0 %v5714
      %v6291 = vpop.f32.mrb[0].mxu0
      %v6292 = vadd.f32 0.0, %v6291
      %v6293 = vpop.f32.mrb[0].mxu0
      %6294 = vmatprep.mubr.f32.mxu0 %v5727
      %6295 = vmatmul.mubr.f32.gmra.mrb[0].mxu0 %v5725
      %v6296 = vpop.f32.mrb[0].mxu0
      %v6297 = vadd.f32 0.0, %v6296
      %v6298 = vpop.f32.mrb[0].mxu0
      %6299 = vmatprep.mubr.f32.mxu0 %v5737
      %6300 = vmatmul.mubr.f32.gmra.mrb[0].mxu0 %v5734
      %v6301 = vpop.f32.mrb[0].mxu0
      %v6302 = vadd.f32 0.0, %v6301
      %v6303 = vpop.f32.mrb[0].mxu0
      %6304 = vmatprep.mubr.f32.mxu0 %v5747
      %6305 = vmatmul.mubr.f32.gmra.mrb[0].mxu0 %v5745
      %v6306 = vpop.f32.mrb[0].mxu0
      %v6307 = vadd.f32 0.0, %v6306
      %v6308 = vpop.f32.mrb[0].mxu0
      %6309 = vmatprep.mubr.f32.mxu0 %v5757
      %6310 = vmatmul.mubr.f32.gmra.mrb[0].mxu0 %v5754
      %v6311 = vpop.f32.mrb[0].mxu0
      %v6312 = vadd.f32 0.0, %v6311
      %v6313 = vpop.f32.mrb[0].mxu0
      %6314 = vmatprep.mubr.f32.mxu0 %v5767
      %6315 = vmatmul.mubr.f32.gmra.mrb[0].mxu0 %v5765
      %v6316 = vpop.f32.mrb[0].mxu0
      %v6317 = vadd.f32 0.0, %v6316
      %v6318 = vpop.f32.mrb[0].mxu0
      %6319 = vmatprep.mubr.f32.mxu0 %v5777
      %6320 = vmatmul.mubr.f32.gmra.mrb[0].mxu0 %v5774
      %v6321 = vpop.f32.mrb[0].mxu0
      %v6322 = vadd.f32 0.0, %v6321
      %v6323 = vpop.f32.mrb[0].mxu0
      %6324 = vmatprep.mubr.f32.mxu0 %v5787
      %6325 = vmatmul.mubr.f32.gmra.mrb[0].mxu0 %v5785
      %v6326 = vpop.f32.mrb[0].mxu0
      %v6327 = vadd.f32 0.0, %v6326
      %v6328 = vpop.f32.mrb[0].mxu0
      %6329 = vmatprep.mubr.f32.mxu0 %v5797
      %6330 = vmatmul.mubr.f32.gmra.mrb[0].mxu0 %v5794
      %v6331 = vpop.f32.mrb[0].mxu0
      %v6332 = vadd.f32 0.0, %v6331
      %v6333 = vpop.f32.mrb[0].mxu0
      %6334 = vmatprep.mubr.f32.mxu0 %v5807
      %6335 = vmatmul.mubr.f32.gmra.mrb[0].mxu0 %v5805
      %v6336 = vpop.f32.mrb[0].mxu0
      %v6337 = vadd.f32 0.0, %v6336
      %v6338 = vpop.f32.mrb[0].mxu0
      %6339 = vmatprep.mubr.f32.mxu0 %v5817
      %6340 = vmatmul.mubr.f32.gmra.mrb[0].mxu0 %v5814
      %v6341 = vpop.f32.mrb[0].mxu0
      %v6342 = vadd.f32 0.0, %v6341
      %v6343 = vpop.f32.mrb[0].mxu0
      %6344 = vmatprep.mubr.f32.mxu0 %v5827
      %6345 = vmatmul.mubr.f32.gmra.mrb[0].mxu0 %v5825
      %v6346 = vpop.f32.mrb[0].mxu0
      %v6347 = vadd.f32 0.0, %v6346
      %v6348 = vpop.f32.mrb[0].mxu0
      %6349 = vmatprep.mubr.f32.mxu0 %v5837
      %6350 = vmatmul.mubr.f32.gmra.mrb[0].mxu0 %v5834
      %v6351 = vpop.f32.mrb[0].mxu0
      %v6352 = vadd.f32 0.0, %v6351
      %v6353 = vpop.f32.mrb[0].mxu0
      %6354 = vmatprep.mubr.f32.mxu0 %v5847
      %6355 = vmatmul.mubr.f32.gmra.mrb[0].mxu0 %v5845
      %v6356 = vpop.f32.mrb[0].mxu0
      %v6357 = vadd.f32 0.0, %v6356
      %v6358 = vpop.f32.mrb[0].mxu0
      %6359 = vmatprep.mubr.f32.mxu0 %v5857
      %6360 = vmatmul.mubr.f32.gmra.mrb[0].mxu0 %v5854
      %v6361 = vpop.f32.mrb[0].mxu0
      %v6362 = vadd.f32 0.0, %v6361
      %v6363 = vpop.f32.mrb[0].mxu0
      %6364 = vmatprep.mubr.f32.mxu0 %v5867
      %6365 = vmatmul.mubr.f32.gmra.mrb[0].mxu0 %v5865
      %v6366 = vpop.f32.mrb[0].mxu0
      %v6367 = vadd.f32 0.0, %v6366
      %v6368 = vpop.f32.mrb[0].mxu0
      %6369 = vmatprep.mubr.f32.mxu0 %v5877
      %6370 = vmatmul.mubr.f32.gmra.mrb[0].mxu0 %v5874
      %v6371 = vpop.f32.mrb[0].mxu0
      %v6372 = vadd.f32 0.0, %v6371
      %v6373 = vpop.f32.mrb[0].mxu0
      %6374 = vmatprep.mubr.f32.mxu0 %v5887
      %6375 = vmatmul.mubr.f32.gmra.mrb[0].mxu0 %v5885
      %v6376 = vpop.f32.mrb[0].mxu0
      %v6377 = vadd.f32 0.0, %v6376
      %v6378 = vpop.f32.mrb[0].mxu0
      %6379 = vmatprep.mubr.f32.mxu0 %v5897
      %6380 = vmatmul.mubr.f32.gmra.mrb[0].mxu0 %v5894
      %v6381 = vpop.f32.mrb[0].mxu0
      %v6382 = vadd.f32 0.0, %v6381
      %v6383 = vpop.f32.mrb[0].mxu0
      %6384 = vmatprep.mubr.f32.mxu0 %v5907
      %6385 = vmatmul.mubr.f32.gmra.mrb[0].mxu0 %v5905
      %v6386 = vpop.f32.mrb[0].mxu0
      %v6387 = vadd.f32 0.0, %v6386
      %v6388 = vpop.f32.mrb[0].mxu0
      %6389 = vmatprep.mubr.f32.mxu0 %v5917
      %6390 = vmatmul.mubr.f32.gmra.mrb[0].mxu0 %v5914
      %v6391 = vpop.f32.mrb[0].mxu0
      %v6392 = vadd.f32 0.0, %v6391
      %v6393 = vpop.f32.mrb[0].mxu0
      %6394 = vmatprep.mubr.f32.mxu0 %v5927
      %6395 = vmatmul.mubr.f32.gmra.mrb[0].mxu0 %v5925
      %v6396 = vpop.f32.mrb[0].mxu0
      %v6397 = vadd.f32 0.0, %v6396
      %v6398 = vpop.f32.mrb[0].mxu0
      %6399 = vmatprep.mubr.f32.mxu0 %v5937
      %6400 = vmatmul.mubr.f32.gmra.mrb[0].mxu0 %v5934
      %v6401 = vpop.f32.mrb[0].mxu0
      %v6402 = vadd.f32 0.0, %v6401
      %v6403 = vpop.f32.mrb[0].mxu0
      %6404 = vmatprep.mubr.f32.mxu0 %v5947
      %6405 = vmatmul.mubr.f32.gmra.mrb[0].mxu0 %v5945
      %v6406 = vpop.f32.mrb[0].mxu0
      %v6407 = vadd.f32 0.0, %v6406
      %v6408 = vpop.f32.mrb[0].mxu0
      %6409 = vmatprep.mubr.f32.mxu0 %v5957
      %6410 = vmatmul.mubr.f32.gmra.mrb[0].mxu0 %v5954
      %v6411 = vpop.f32.mrb[0].mxu0
      %v6412 = vadd.f32 0.0, %v6411
      %v6413 = vpop.f32.mrb[0].mxu0
      %6414 = vmatprep.mubr.f32.mxu0 %v5967
      %6415 = vmatmul.mubr.f32.gmra.mrb[0].mxu0 %v5965
      %v6416 = vpop.f32.mrb[0].mxu0
      %v6417 = vadd.f32 0.0, %v6416
      %v6418 = vpop.f32.mrb[0].mxu0
      %6419 = vmatprep.mubr.f32.mxu0 %v5977
      %6420 = vmatmul.mubr.f32.gmra.mrb[0].mxu0 %v5974
      %v6421 = vpop.f32.mrb[0].mxu0
      %v6422 = vadd.f32 0.0, %v6421
      %v6423 = vpop.f32.mrb[0].mxu0
      %6424 = vmatprep.mubr.f32.mxu0 %v5987
      %6425 = vmatmul.mubr.f32.gmra.mrb[0].mxu0 %v5985
      %v6426 = vpop.f32.mrb[0].mxu0
      %v6427 = vadd.f32 0.0, %v6426
      %v6428 = vpop.f32.mrb[0].mxu0
      %6429 = vmatprep.mubr.f32.mxu0 %v5997
      %6430 = vmatmul.mubr.f32.gmra.mrb[0].mxu0 %v5994
      %v6431 = vpop.f32.mrb[0].mxu0
      %v6432 = vadd.f32 0.0, %v6431
      %v6433 = vpop.f32.mrb[0].mxu0
      %6434 = vmatprep.mubr.f32.mxu0 %v6007
      %6435 = vmatmul.mubr.f32.gmra.mrb[0].mxu0 %v6005
      %v6436 = vpop.f32.mrb[0].mxu0
      %v6437 = vadd.f32 0.0, %v6436
      %v6438 = vpop.f32.mrb[0].mxu0
      %6439 = vmatprep.mubr.f32.mxu0 %v6017
      %6440 = vmatmul.mubr.f32.gmra.mrb[0].mxu0 %v6014
      %v6441 = vpop.f32.mrb[0].mxu0
      %v6442 = vadd.f32 0.0, %v6441
      %v6443 = vpop.f32.mrb[0].mxu0
      %6444 = vmatprep.mubr.f32.mxu0 %v6027
      %6445 = vmatmul.mubr.f32.gmra.mrb[0].mxu0 %v6025
      %v6446 = vpop.f32.mrb[0].mxu0
      %v6447 = vadd.f32 0.0, %v6446
      %v6448 = vpop.f32.mrb[0].mxu0
      %6449 = vdwg.mxu0
      %6450 = vmatprep.subr.mxu0 0.0
      %6451 = vmatpush1.msra.mxu0 %v6193
      %6452 = vmatprep.subr.mxu0 0.0
      %6453 = vmatpush1.msra.mxu0 %v6194
      %6454 = vmatprep.subr.mxu0 0.0
      %6455 = vmatpush1.msra.mxu0 %v6195
      %6456 = vmatprep.subr.mxu0 0.0
      %6457 = vmatpush1.msra.mxu0 %v6196
      %6458 = vmatprep.subr.mxu0 0.0
      %6459 = vmatpush1.msra.mxu0 %v6197
      %6460 = vmatprep.subr.mxu0 0.0
      %6461 = vmatpush1.msra.mxu0 %v6198
      %6462 = vmatprep.subr.mxu0 0.0
      %6463 = vmatpush1.msra.mxu0 %v6199
      %6464 = vmatprep.subr.mxu0 0.0
      %6465 = vmatpush1.msra.mxu0 %v6200
      %6466 = vmatprep.subr.mxu0 0.0
      %6467 = vmatpush1.msra.mxu0 %v6201
      %6468 = vmatprep.subr.mxu0 0.0
      %6469 = vmatpush1.msra.mxu0 %v6202
      %6470 = vmatprep.subr.mxu0 0.0
      %6471 = vmatpush1.msra.mxu0 %v6203
      %6472 = vmatprep.subr.mxu0 0.0
      %6473 = vmatpush1.msra.mxu0 %v6204
      %6474 = vmatprep.subr.mxu0 0.0
      %6475 = vmatpush1.msra.mxu0 %v6205
      %6476 = vmatprep.subr.mxu0 0.0
      %6477 = vmatpush1.msra.mxu0 %v6206
      %6478 = vmatprep.subr.mxu0 0.0
      %6479 = vmatpush1.msra.mxu0 %v6207
      %6480 = vmatprep.subr.mxu0 0.0
      %6481 = vmatpush1.msra.mxu0 %v6208
      %6482 = vmatprep.subr.mxu0 0.0
      %6483 = vmatpush1.msra.mxu0 %v6209
      %6484 = vmatprep.subr.mxu0 0.0
      %6485 = vmatpush1.msra.mxu0 %v6210
      %6486 = vmatprep.subr.mxu0 0.0
      %6487 = vmatpush1.msra.mxu0 %v6211
      %6488 = vmatprep.subr.mxu0 0.0
      %6489 = vmatpush1.msra.mxu0 %v6212
      %6490 = vmatprep.subr.mxu0 0.0
      %6491 = vmatpush1.msra.mxu0 %v6213
      %6492 = vmatprep.subr.mxu0 0.0
      %6493 = vmatpush1.msra.mxu0 %v6214
      %6494 = vmatprep.subr.mxu0 0.0
      %6495 = vmatpush1.msra.mxu0 %v6215
      %6496 = vmatprep.subr.mxu0 0.0
      %6497 = vmatpush1.msra.mxu0 %v6216
      %6498 = vmatprep.subr.mxu0 0.0
      %6499 = vmatpush1.msra.mxu0 %v6217
      %6500 = vmatprep.subr.mxu0 0.0
      %6501 = vmatpush1.msra.mxu0 %v6218
      %6502 = vmatprep.subr.mxu0 0.0
      %6503 = vmatpush1.msra.mxu0 %v6219
      %6504 = vmatprep.subr.mxu0 0.0
      %6505 = vmatpush1.msra.mxu0 %v6220
      %6506 = vmatprep.subr.mxu0 0.0
      %6507 = vmatpush1.msra.mxu0 %v6221
      %6508 = vmatprep.subr.mxu0 0.0
      %6509 = vmatpush1.msra.mxu0 %v6222
      %6510 = vmatprep.subr.mxu0 0.0
      %6511 = vmatpush1.msra.mxu0 %v6223
      %6512 = vmatprep.subr.mxu0 0.0
      %6513 = vmatpush1.msra.mxu0 %v6224
      %6514 = vmatprep.mubr.f32.mxu0 %v5723
      %6515 = vmatmul.mubr.f32.gmra.mrb[0].mxu0 %v5720
      %v6516 = vpop.f32.mrb[0].mxu0
      %v6517 = vadd.f32 %v6292, %v6516
      %v6518 = vpop.f32.mrb[0].mxu0
      %6519 = vmatprep.mubr.f32.mxu0 %v5731
      %6520 = vmatmul.mubr.f32.gmra.mrb[0].mxu0 %v5729
      %v6521 = vpop.f32.mrb[0].mxu0
      %v6522 = vadd.f32 %v6297, %v6521
      %v6523 = vpop.f32.mrb[0].mxu0
      %6524 = vmatprep.mubr.f32.mxu0 %v5743
      %6525 = vmatmul.mubr.f32.gmra.mrb[0].mxu0 %v5740
      %v6526 = vpop.f32.mrb[0].mxu0
      %v6527 = vadd.f32 %v6302, %v6526
      %v6528 = vpop.f32.mrb[0].mxu0
      %6529 = vmatprep.mubr.f32.mxu0 %v5751
      %6530 = vmatmul.mubr.f32.gmra.mrb[0].mxu0 %v5749
      %v6531 = vpop.f32.mrb[0].mxu0
      %v6532 = vadd.f32 %v6307, %v6531
      %v6533 = vpop.f32.mrb[0].mxu0
      %6534 = vmatprep.mubr.f32.mxu0 %v5763
      %6535 = vmatmul.mubr.f32.gmra.mrb[0].mxu0 %v5760
      %v6536 = vpop.f32.mrb[0].mxu0
      %v6537 = vadd.f32 %v6312, %v6536
      %v6538 = vpop.f32.mrb[0].mxu0
      %6539 = vmatprep.mubr.f32.mxu0 %v5771
      %6540 = vmatmul.mubr.f32.gmra.mrb[0].mxu0 %v5769
      %v6541 = vpop.f32.mrb[0].mxu0
      %v6542 = vadd.f32 %v6317, %v6541
      %v6543 = vpop.f32.mrb[0].mxu0
      %6544 = vmatprep.mubr.f32.mxu0 %v5783
      %6545 = vmatmul.mubr.f32.gmra.mrb[0].mxu0 %v5780
      %v6546 = vpop.f32.mrb[0].mxu0
      %v6547 = vadd.f32 %v6322, %v6546
      %v6548 = vpop.f32.mrb[0].mxu0
      %6549 = vmatprep.mubr.f32.mxu0 %v5791
      %6550 = vmatmul.mubr.f32.gmra.mrb[0].mxu0 %v5789
      %v6551 = vpop.f32.mrb[0].mxu0
      %v6552 = vadd.f32 %v6327, %v6551
      %v6553 = vpop.f32.mrb[0].mxu0
      %6554 = vmatprep.mubr.f32.mxu0 %v5803
      %6555 = vmatmul.mubr.f32.gmra.mrb[0].mxu0 %v5800
      %v6556 = vpop.f32.mrb[0].mxu0
      %v6557 = vadd.f32 %v6332, %v6556
      %v6558 = vpop.f32.mrb[0].mxu0
      %6559 = vmatprep.mubr.f32.mxu0 %v5811
      %6560 = vmatmul.mubr.f32.gmra.mrb[0].mxu0 %v5809
      %v6561 = vpop.f32.mrb[0].mxu0
      %v6562 = vadd.f32 %v6337, %v6561
      %v6563 = vpop.f32.mrb[0].mxu0
      %6564 = vmatprep.mubr.f32.mxu0 %v5823
      %6565 = vmatmul.mubr.f32.gmra.mrb[0].mxu0 %v5820
      %v6566 = vpop.f32.mrb[0].mxu0
      %v6567 = vadd.f32 %v6342, %v6566
      %v6568 = vpop.f32.mrb[0].mxu0
      %6569 = vmatprep.mubr.f32.mxu0 %v5831
      %6570 = vmatmul.mubr.f32.gmra.mrb[0].mxu0 %v5829
      %v6571 = vpop.f32.mrb[0].mxu0
      %v6572 = vadd.f32 %v6347, %v6571
      %v6573 = vpop.f32.mrb[0].mxu0
      %6574 = vmatprep.mubr.f32.mxu0 %v5843
      %6575 = vmatmul.mubr.f32.gmra.mrb[0].mxu0 %v5840
      %v6576 = vpop.f32.mrb[0].mxu0
      %v6577 = vadd.f32 %v6352, %v6576
      %v6578 = vpop.f32.mrb[0].mxu0
      %6579 = vmatprep.mubr.f32.mxu0 %v5851
      %6580 = vmatmul.mubr.f32.gmra.mrb[0].mxu0 %v5849
      %v6581 = vpop.f32.mrb[0].mxu0
      %v6582 = vadd.f32 %v6357, %v6581
      %v6583 = vpop.f32.mrb[0].mxu0
      %6584 = vmatprep.mubr.f32.mxu0 %v5863
      %6585 = vmatmul.mubr.f32.gmra.mrb[0].mxu0 %v5860
      %v6586 = vpop.f32.mrb[0].mxu0
      %v6587 = vadd.f32 %v6362, %v6586
      %v6588 = vpop.f32.mrb[0].mxu0
      %6589 = vmatprep.mubr.f32.mxu0 %v5871
      %6590 = vmatmul.mubr.f32.gmra.mrb[0].mxu0 %v5869
      %v6591 = vpop.f32.mrb[0].mxu0
      %v6592 = vadd.f32 %v6367, %v6591
      %v6593 = vpop.f32.mrb[0].mxu0
      %6594 = vmatprep.mubr.f32.mxu0 %v5883
      %6595 = vmatmul.mubr.f32.gmra.mrb[0].mxu0 %v5880
      %v6596 = vpop.f32.mrb[0].mxu0
      %v6597 = vadd.f32 %v6372, %v6596
      %v6598 = vpop.f32.mrb[0].mxu0
      %6599 = vmatprep.mubr.f32.mxu0 %v5891
      %6600 = vmatmul.mubr.f32.gmra.mrb[0].mxu0 %v5889
      %v6601 = vpop.f32.mrb[0].mxu0
      %v6602 = vadd.f32 %v6377, %v6601
      %v6603 = vpop.f32.mrb[0].mxu0
      %6604 = vmatprep.mubr.f32.mxu0 %v5903
      %6605 = vmatmul.mubr.f32.gmra.mrb[0].mxu0 %v5900
      %v6606 = vpop.f32.mrb[0].mxu0
      %v6607 = vadd.f32 %v6382, %v6606
      %v6608 = vpop.f32.mrb[0].mxu0
      %6609 = vmatprep.mubr.f32.mxu0 %v5911
      %6610 = vmatmul.mubr.f32.gmra.mrb[0].mxu0 %v5909
      %v6611 = vpop.f32.mrb[0].mxu0
      %v6612 = vadd.f32 %v6387, %v6611
      %v6613 = vpop.f32.mrb[0].mxu0
      %6614 = vmatprep.mubr.f32.mxu0 %v5923
      %6615 = vmatmul.mubr.f32.gmra.mrb[0].mxu0 %v5920
      %v6616 = vpop.f32.mrb[0].mxu0
      %v6617 = vadd.f32 %v6392, %v6616
      %v6618 = vpop.f32.mrb[0].mxu0
      %6619 = vmatprep.mubr.f32.mxu0 %v5931
      %6620 = vmatmul.mubr.f32.gmra.mrb[0].mxu0 %v5929
      %v6621 = vpop.f32.mrb[0].mxu0
      %v6622 = vadd.f32 %v6397, %v6621
      %v6623 = vpop.f32.mrb[0].mxu0
      %6624 = vmatprep.mubr.f32.mxu0 %v5943
      %6625 = vmatmul.mubr.f32.gmra.mrb[0].mxu0 %v5940
      %v6626 = vpop.f32.mrb[0].mxu0
      %v6627 = vadd.f32 %v6402, %v6626
      %v6628 = vpop.f32.mrb[0].mxu0
      %6629 = vmatprep.mubr.f32.mxu0 %v5951
      %6630 = vmatmul.mubr.f32.gmra.mrb[0].mxu0 %v5949
      %v6631 = vpop.f32.mrb[0].mxu0
      %v6632 = vadd.f32 %v6407, %v6631
      %v6633 = vpop.f32.mrb[0].mxu0
      %6634 = vmatprep.mubr.f32.mxu0 %v5963
      %6635 = vmatmul.mubr.f32.gmra.mrb[0].mxu0 %v5960
      %v6636 = vpop.f32.mrb[0].mxu0
      %v6637 = vadd.f32 %v6412, %v6636
      %v6638 = vpop.f32.mrb[0].mxu0
      %6639 = vmatprep.mubr.f32.mxu0 %v5971
      %6640 = vmatmul.mubr.f32.gmra.mrb[0].mxu0 %v5969
      %v6641 = vpop.f32.mrb[0].mxu0
      %v6642 = vadd.f32 %v6417, %v6641
      %v6643 = vpop.f32.mrb[0].mxu0
      %6644 = vmatprep.mubr.f32.mxu0 %v5983
      %6645 = vmatmul.mubr.f32.gmra.mrb[0].mxu0 %v5980
      %v6646 = vpop.f32.mrb[0].mxu0
      %v6647 = vadd.f32 %v6422, %v6646
      %v6648 = vpop.f32.mrb[0].mxu0
      %6649 = vmatprep.mubr.f32.mxu0 %v5991
      %6650 = vmatmul.mubr.f32.gmra.mrb[0].mxu0 %v5989
      %v6651 = vpop.f32.mrb[0].mxu0
      %v6652 = vadd.f32 %v6427, %v6651
      %v6653 = vpop.f32.mrb[0].mxu0
      %6654 = vmatprep.mubr.f32.mxu0 %v6003
      %6655 = vmatmul.mubr.f32.gmra.mrb[0].mxu0 %v6000
      %v6656 = vpop.f32.mrb[0].mxu0
      %v6657 = vadd.f32 %v6432, %v6656
      %v6658 = vpop.f32.mrb[0].mxu0
      %6659 = vmatprep.mubr.f32.mxu0 %v6011
      %6660 = vmatmul.mubr.f32.gmra.mrb[0].mxu0 %v6009
      %v6661 = vpop.f32.mrb[0].mxu0
      %v6662 = vadd.f32 %v6437, %v6661
      %v6663 = vpop.f32.mrb[0].mxu0
      %6664 = vmatprep.mubr.f32.mxu0 %v6023
      %6665 = vmatmul.mubr.f32.gmra.mrb[0].mxu0 %v6020
      %v6666 = vpop.f32.mrb[0].mxu0
      %v6667 = vadd.f32 %v6442, %v6666
      %v6668 = vpop.f32.mrb[0].mxu0
      %6669 = vmatprep.mubr.f32.mxu0 %v6031
      %6670 = vmatmul.mubr.f32.gmra.mrb[0].mxu0 %v6029
      %v6671 = vpop.f32.mrb[0].mxu0
      %v6672 = vadd.f32 %v6447, %v6671
      %v6673 = vpop.f32.mrb[0].mxu0
      %6674 = vdwg.mxu0
      %v6675 = vadd.f32 %v5424, %v6517
      %v6676 = vadd.f32 %v5425, %v6522
      %v6677 = vadd.f32 %v5426, %v6527
      %v6678 = vadd.f32 %v5427, %v6532
      %v6679 = vadd.f32 %v5428, %v6537
      %v6680 = vadd.f32 %v5429, %v6542
      %v6681 = vadd.f32 %v5430, %v6547
      %v6682 = vadd.f32 %v5431, %v6552
      %v6683 = vadd.f32 %v5432, %v6557
      %v6684 = vadd.f32 %v5433, %v6562
      %v6685 = vadd.f32 %v5434, %v6567
      %v6686 = vadd.f32 %v5435, %v6572
      %v6687 = vadd.f32 %v5436, %v6577
      %v6688 = vadd.f32 %v5437, %v6582
      %v6689 = vadd.f32 %v5438, %v6587
      %v6690 = vadd.f32 %v5439, %v6592
      %v6691 = vadd.f32 %v5440, %v6597
      %v6692 = vadd.f32 %v5441, %v6602
      %v6693 = vadd.f32 %v5442, %v6607
      %v6694 = vadd.f32 %v5443, %v6612
      %v6695 = vadd.f32 %v5444, %v6617
      %v6696 = vadd.f32 %v5445, %v6622
      %v6697 = vadd.f32 %v5446, %v6627
      %v6698 = vadd.f32 %v5447, %v6632
      %v6699 = vadd.f32 %v5448, %v6637
      %v6700 = vadd.f32 %v5449, %v6642
      %v6701 = vadd.f32 %v5450, %v6647
      %v6702 = vadd.f32 %v5451, %v6652
      %v6703 = vadd.f32 %v5452, %v6657
      %v6704 = vadd.f32 %v5453, %v6662
      %v6705 = vadd.f32 %v5454, %v6667
      %v6706 = vadd.f32 %v5455, %v6672
      %s6707 = scalar_lea.vmem %s207, 192
      %v6708 = vld [vmem:[%s6707] sm:$0xff]
      %v6709 = vld [vmem:[%s6707 + $0x8] sm:$0xff]
      %v6710 = vld [vmem:[%s6707 + $0x10] sm:$0xff]
      %v6711 = vld [vmem:[%s6707 + $0x18] sm:$0xff]
      %v6712 = vld [vmem:[%s6707 + $0x20] sm:$0xff]
      %v6713 = vld [vmem:[%s6707 + $0x28] sm:$0xff]
      %v6714 = vld [vmem:[%s6707 + $0x30] sm:$0xff]
      %v6715 = vld [vmem:[%s6707 + $0x38] sm:$0xff]
      %v6716 = vld [vmem:[%s6707 + $0x60] sm:$0xff]
      %v6717 = vld [vmem:[%s6707 + $0x68] sm:$0xff]
      %v6718 = vld [vmem:[%s6707 + $0x70] sm:$0xff]
      %v6719 = vld [vmem:[%s6707 + $0x78] sm:$0xff]
      %v6720 = vld [vmem:[%s6707 + $0x80] sm:$0xff]
      %v6721 = vld [vmem:[%s6707 + $0x88] sm:$0xff]
      %v6722 = vld [vmem:[%s6707 + $0x90] sm:$0xff]
      %v6723 = vld [vmem:[%s6707 + $0x98] sm:$0xff]
      %v6724 = vld [vmem:[%s6707 + $0xc0] sm:$0xff]
      %v6725 = vld [vmem:[%s6707 + $0xc8] sm:$0xff]
      %v6726 = vld [vmem:[%s6707 + $0xd0] sm:$0xff]
      %v6727 = vld [vmem:[%s6707 + $0xd8] sm:$0xff]
      %v6728 = vld [vmem:[%s6707 + $0xe0] sm:$0xff]
      %v6729 = vld [vmem:[%s6707 + $0xe8] sm:$0xff]
      %v6730 = vld [vmem:[%s6707 + $0xf0] sm:$0xff]
      %v6731 = vld [vmem:[%s6707 + $0xf8] sm:$0xff]
      %v6732 = vld [vmem:[%s6707 + $0x120] sm:$0xff]
      %v6733 = vld [vmem:[%s6707 + $0x128] sm:$0xff]
      %v6734 = vld [vmem:[%s6707 + $0x130] sm:$0xff]
      %v6735 = vld [vmem:[%s6707 + $0x138] sm:$0xff]
      %v6736 = vld [vmem:[%s6707 + $0x140] sm:$0xff]
      %v6737 = vld [vmem:[%s6707 + $0x148] sm:$0xff]
      %v6738 = vld [vmem:[%s6707 + $0x150] sm:$0xff]
      %v6739 = vld [vmem:[%s6707 + $0x158] sm:$0xff]
      %v6740 = vld [vmem:[%s6707 + $0x180] sm:$0xff]
      %v6741 = vld [vmem:[%s6707 + $0x188] sm:$0xff]
      %v6742 = vld [vmem:[%s6707 + $0x190] sm:$0xff]
      %v6743 = vld [vmem:[%s6707 + $0x198] sm:$0xff]
      %v6744 = vld [vmem:[%s6707 + $0x1a0] sm:$0xff]
      %v6745 = vld [vmem:[%s6707 + $0x1a8] sm:$0xff]
      %v6746 = vld [vmem:[%s6707 + $0x1b0] sm:$0xff]
      %v6747 = vld [vmem:[%s6707 + $0x1b8] sm:$0xff]
      %v6748 = vld [vmem:[%s6707 + $0x1e0] sm:$0xff]
      %v6749 = vld [vmem:[%s6707 + $0x1e8] sm:$0xff]
      %v6750 = vld [vmem:[%s6707 + $0x1f0] sm:$0xff]
      %v6751 = vld [vmem:[%s6707 + $0x1f8] sm:$0xff]
      %v6752 = vld [vmem:[%s6707 + $0x200] sm:$0xff]
      %v6753 = vld [vmem:[%s6707 + $0x208] sm:$0xff]
      %v6754 = vld [vmem:[%s6707 + $0x210] sm:$0xff]
      %v6755 = vld [vmem:[%s6707 + $0x218] sm:$0xff]
      %v6756 = vld [vmem:[%s6707 + $0x240] sm:$0xff]
      %v6757 = vld [vmem:[%s6707 + $0x248] sm:$0xff]
      %v6758 = vld [vmem:[%s6707 + $0x250] sm:$0xff]
      %v6759 = vld [vmem:[%s6707 + $0x258] sm:$0xff]
      %v6760 = vld [vmem:[%s6707 + $0x260] sm:$0xff]
      %v6761 = vld [vmem:[%s6707 + $0x268] sm:$0xff]
      %v6762 = vld [vmem:[%s6707 + $0x270] sm:$0xff]
      %v6763 = vld [vmem:[%s6707 + $0x278] sm:$0xff]
      %v6764 = vld [vmem:[%s6707 + $0x2a0] sm:$0xff]
      %v6765 = vld [vmem:[%s6707 + $0x2a8] sm:$0xff]
      %v6766 = vld [vmem:[%s6707 + $0x2b0] sm:$0xff]
      %v6767 = vld [vmem:[%s6707 + $0x2b8] sm:$0xff]
      %v6768 = vld [vmem:[%s6707 + $0x2c0] sm:$0xff]
      %v6769 = vld [vmem:[%s6707 + $0x2c8] sm:$0xff]
      %v6770 = vld [vmem:[%s6707 + $0x2d0] sm:$0xff]
      %v6771 = vld [vmem:[%s6707 + $0x2d8] sm:$0xff]
      %v6772 = vld [vmem:[%s6707 + $0x300] sm:$0xff]
      %v6773 = vld [vmem:[%s6707 + $0x308] sm:$0xff]
      %v6774 = vld [vmem:[%s6707 + $0x310] sm:$0xff]
      %v6775 = vld [vmem:[%s6707 + $0x318] sm:$0xff]
      %v6776 = vld [vmem:[%s6707 + $0x320] sm:$0xff]
      %v6777 = vld [vmem:[%s6707 + $0x328] sm:$0xff]
      %v6778 = vld [vmem:[%s6707 + $0x330] sm:$0xff]
      %v6779 = vld [vmem:[%s6707 + $0x338] sm:$0xff]
      %v6780 = vld [vmem:[%s6707 + $0x360] sm:$0xff]
      %v6781 = vld [vmem:[%s6707 + $0x368] sm:$0xff]
      %v6782 = vld [vmem:[%s6707 + $0x370] sm:$0xff]
      %v6783 = vld [vmem:[%s6707 + $0x378] sm:$0xff]
      %v6784 = vld [vmem:[%s6707 + $0x380] sm:$0xff]
      %v6785 = vld [vmem:[%s6707 + $0x388] sm:$0xff]
      %v6786 = vld [vmem:[%s6707 + $0x390] sm:$0xff]
      %v6787 = vld [vmem:[%s6707 + $0x398] sm:$0xff]
      %v6788 = vld [vmem:[%s6707 + $0x3c0] sm:$0xff]
      %v6789 = vld [vmem:[%s6707 + $0x3c8] sm:$0xff]
      %v6790 = vld [vmem:[%s6707 + $0x3d0] sm:$0xff]
      %v6791 = vld [vmem:[%s6707 + $0x3d8] sm:$0xff]
      %v6792 = vld [vmem:[%s6707 + $0x3e0] sm:$0xff]
      %v6793 = vld [vmem:[%s6707 + $0x3e8] sm:$0xff]
      %v6794 = vld [vmem:[%s6707 + $0x3f0] sm:$0xff]
      %v6795 = vld [vmem:[%s6707 + $0x3f8] sm:$0xff]
      %v6796 = vld [vmem:[%s6707 + $0x420] sm:$0xff]
      %v6797 = vld [vmem:[%s6707 + $0x428] sm:$0xff]
      %v6798 = vld [vmem:[%s6707 + $0x430] sm:$0xff]
      %v6799 = vld [vmem:[%s6707 + $0x438] sm:$0xff]
      %v6800 = vld [vmem:[%s6707 + $0x440] sm:$0xff]
      %v6801 = vld [vmem:[%s6707 + $0x448] sm:$0xff]
      %v6802 = vld [vmem:[%s6707 + $0x450] sm:$0xff]
      %v6803 = vld [vmem:[%s6707 + $0x458] sm:$0xff]
      %v6804 = vld [vmem:[%s6707 + $0x480] sm:$0xff]
      %v6805 = vld [vmem:[%s6707 + $0x488] sm:$0xff]
      %v6806 = vld [vmem:[%s6707 + $0x490] sm:$0xff]
      %v6807 = vld [vmem:[%s6707 + $0x498] sm:$0xff]
      %v6808 = vld [vmem:[%s6707 + $0x4a0] sm:$0xff]
      %v6809 = vld [vmem:[%s6707 + $0x4a8] sm:$0xff]
      %v6810 = vld [vmem:[%s6707 + $0x4b0] sm:$0xff]
      %v6811 = vld [vmem:[%s6707 + $0x4b8] sm:$0xff]
      %v6812 = vld [vmem:[%s6707 + $0x4e0] sm:$0xff]
      %v6813 = vld [vmem:[%s6707 + $0x4e8] sm:$0xff]
      %v6814 = vld [vmem:[%s6707 + $0x4f0] sm:$0xff]
      %v6815 = vld [vmem:[%s6707 + $0x4f8] sm:$0xff]
      %v6816 = vld [vmem:[%s6707 + $0x500] sm:$0xff]
      %v6817 = vld [vmem:[%s6707 + $0x508] sm:$0xff]
      %v6818 = vld [vmem:[%s6707 + $0x510] sm:$0xff]
      %v6819 = vld [vmem:[%s6707 + $0x518] sm:$0xff]
      %v6820 = vld [vmem:[%s6707 + $0x540] sm:$0xff]
      %v6821 = vld [vmem:[%s6707 + $0x548] sm:$0xff]
      %v6822 = vld [vmem:[%s6707 + $0x550] sm:$0xff]
      %v6823 = vld [vmem:[%s6707 + $0x558] sm:$0xff]
      %v6824 = vld [vmem:[%s6707 + $0x560] sm:$0xff]
      %v6825 = vld [vmem:[%s6707 + $0x568] sm:$0xff]
      %v6826 = vld [vmem:[%s6707 + $0x570] sm:$0xff]
      %v6827 = vld [vmem:[%s6707 + $0x578] sm:$0xff]
      %v6828 = vld [vmem:[%s6707 + $0x5a0] sm:$0xff]
      %v6829 = vld [vmem:[%s6707 + $0x5a8] sm:$0xff]
      %v6830 = vld [vmem:[%s6707 + $0x5b0] sm:$0xff]
      %v6831 = vld [vmem:[%s6707 + $0x5b8] sm:$0xff]
      %v6832 = vld [vmem:[%s6707 + $0x5c0] sm:$0xff]
      %v6833 = vld [vmem:[%s6707 + $0x5c8] sm:$0xff]
      %v6834 = vld [vmem:[%s6707 + $0x5d0] sm:$0xff]
      %v6835 = vld [vmem:[%s6707 + $0x5d8] sm:$0xff]
      %s6836 = scalar_lea.vmem %s1, 3072
      %v6837 = vld [vmem:[%s6836] sm:$0xff]
      %v6838 = vld [vmem:[%s6836 + $0x8] sm:$0xff]
      %v6839 = vld [vmem:[%s6836 + $0x10] sm:$0xff]
      %v6840 = vld [vmem:[%s6836 + $0x18] sm:$0xff]
      %v6841 = vld [vmem:[%s6836 + $0x20] sm:$0xff]
      %v6842 = vld [vmem:[%s6836 + $0x28] sm:$0xff]
      %v6843 = vld [vmem:[%s6836 + $0x30] sm:$0xff]
      %v6844 = vld [vmem:[%s6836 + $0x38] sm:$0xff]
      %v6845 = vld [vmem:[%s6836 + $0x40] sm:$0xff]
      %v6846 = vld [vmem:[%s6836 + $0x48] sm:$0xff]
      %v6847 = vld [vmem:[%s6836 + $0x50] sm:$0xff]
      %v6848 = vld [vmem:[%s6836 + $0x58] sm:$0xff]
      %v6849 = vld [vmem:[%s6836 + $0x60] sm:$0xff]
      %v6850 = vld [vmem:[%s6836 + $0x68] sm:$0xff]
      %v6851 = vld [vmem:[%s6836 + $0x70] sm:$0xff]
      %v6852 = vld [vmem:[%s6836 + $0x78] sm:$0xff]
      %v6853 = vld [vmem:[%s6836 + $0x80] sm:$0xff]
      %v6854 = vld [vmem:[%s6836 + $0x88] sm:$0xff]
      %v6855 = vld [vmem:[%s6836 + $0x90] sm:$0xff]
      %v6856 = vld [vmem:[%s6836 + $0x98] sm:$0xff]
      %v6857 = vld [vmem:[%s6836 + $0xa0] sm:$0xff]
      %v6858 = vld [vmem:[%s6836 + $0xa8] sm:$0xff]
      %v6859 = vld [vmem:[%s6836 + $0xb0] sm:$0xff]
      %v6860 = vld [vmem:[%s6836 + $0xb8] sm:$0xff]
      %v6861 = vld [vmem:[%s6836 + $0xc0] sm:$0xff]
      %v6862 = vld [vmem:[%s6836 + $0xc8] sm:$0xff]
      %v6863 = vld [vmem:[%s6836 + $0xd0] sm:$0xff]
      %v6864 = vld [vmem:[%s6836 + $0xd8] sm:$0xff]
      %v6865 = vld [vmem:[%s6836 + $0xe0] sm:$0xff]
      %v6866 = vld [vmem:[%s6836 + $0xe8] sm:$0xff]
      %v6867 = vld [vmem:[%s6836 + $0xf0] sm:$0xff]
      %v6868 = vld [vmem:[%s6836 + $0xf8] sm:$0xff]
      %v6869 = vld [vmem:[%s6836 + $0x100] sm:$0xff]
      %v6870 = vld [vmem:[%s6836 + $0x108] sm:$0xff]
      %v6871 = vld [vmem:[%s6836 + $0x110] sm:$0xff]
      %v6872 = vld [vmem:[%s6836 + $0x118] sm:$0xff]
      %v6873 = vld [vmem:[%s6836 + $0x120] sm:$0xff]
      %v6874 = vld [vmem:[%s6836 + $0x128] sm:$0xff]
      %v6875 = vld [vmem:[%s6836 + $0x130] sm:$0xff]
      %v6876 = vld [vmem:[%s6836 + $0x138] sm:$0xff]
      %v6877 = vld [vmem:[%s6836 + $0x140] sm:$0xff]
      %v6878 = vld [vmem:[%s6836 + $0x148] sm:$0xff]
      %v6879 = vld [vmem:[%s6836 + $0x150] sm:$0xff]
      %v6880 = vld [vmem:[%s6836 + $0x158] sm:$0xff]
      %v6881 = vld [vmem:[%s6836 + $0x160] sm:$0xff]
      %v6882 = vld [vmem:[%s6836 + $0x168] sm:$0xff]
      %v6883 = vld [vmem:[%s6836 + $0x170] sm:$0xff]
      %v6884 = vld [vmem:[%s6836 + $0x178] sm:$0xff]
      %v6885 = vld [vmem:[%s6836 + $0x180] sm:$0xff]
      %v6886 = vld [vmem:[%s6836 + $0x188] sm:$0xff]
      %v6887 = vld [vmem:[%s6836 + $0x190] sm:$0xff]
      %v6888 = vld [vmem:[%s6836 + $0x198] sm:$0xff]
      %v6889 = vld [vmem:[%s6836 + $0x1a0] sm:$0xff]
      %v6890 = vld [vmem:[%s6836 + $0x1a8] sm:$0xff]
      %v6891 = vld [vmem:[%s6836 + $0x1b0] sm:$0xff]
      %v6892 = vld [vmem:[%s6836 + $0x1b8] sm:$0xff]
      %v6893 = vld [vmem:[%s6836 + $0x1c0] sm:$0xff]
      %v6894 = vld [vmem:[%s6836 + $0x1c8] sm:$0xff]
      %v6895 = vld [vmem:[%s6836 + $0x1d0] sm:$0xff]
      %v6896 = vld [vmem:[%s6836 + $0x1d8] sm:$0xff]
      %v6897 = vld [vmem:[%s6836 + $0x1e0] sm:$0xff]
      %v6898 = vld [vmem:[%s6836 + $0x1e8] sm:$0xff]
      %v6899 = vld [vmem:[%s6836 + $0x1f0] sm:$0xff]
      %v6900 = vld [vmem:[%s6836 + $0x1f8] sm:$0xff]
      %6901 = vmatprep.subr.mxu0 0.0
      %6902 = vmatpush1.msra.mxu0 %v6837
      %6903 = vmatprep.subr.mxu0 0.0
      %6904 = vmatpush1.msra.mxu0 %v6838
      %6905 = vmatprep.subr.mxu0 0.0
      %6906 = vmatpush1.msra.mxu0 %v6839
      %6907 = vmatprep.subr.mxu0 0.0
      %6908 = vmatpush1.msra.mxu0 %v6840
      %6909 = vmatprep.subr.mxu0 0.0
      %6910 = vmatpush1.msra.mxu0 %v6841
      %6911 = vmatprep.subr.mxu0 0.0
      %6912 = vmatpush1.msra.mxu0 %v6842
      %6913 = vmatprep.subr.mxu0 0.0
      %6914 = vmatpush1.msra.mxu0 %v6843
      %6915 = vmatprep.subr.mxu0 0.0
      %6916 = vmatpush1.msra.mxu0 %v6844
      %6917 = vmatprep.subr.mxu0 0.0
      %6918 = vmatpush1.msra.mxu0 %v6845
      %6919 = vmatprep.subr.mxu0 0.0
      %6920 = vmatpush1.msra.mxu0 %v6846
      %6921 = vmatprep.subr.mxu0 0.0
      %6922 = vmatpush1.msra.mxu0 %v6847
      %6923 = vmatprep.subr.mxu0 0.0
      %6924 = vmatpush1.msra.mxu0 %v6848
      %6925 = vmatprep.subr.mxu0 0.0
      %6926 = vmatpush1.msra.mxu0 %v6849
      %6927 = vmatprep.subr.mxu0 0.0
      %6928 = vmatpush1.msra.mxu0 %v6850
      %6929 = vmatprep.subr.mxu0 0.0
      %6930 = vmatpush1.msra.mxu0 %v6851
      %6931 = vmatprep.subr.mxu0 0.0
      %6932 = vmatpush1.msra.mxu0 %v6852
      %6933 = vmatprep.subr.mxu0 0.0
      %6934 = vmatpush1.msra.mxu0 %v6853
      %6935 = vmatprep.subr.mxu0 0.0
      %6936 = vmatpush1.msra.mxu0 %v6854
      %6937 = vmatprep.subr.mxu0 0.0
      %6938 = vmatpush1.msra.mxu0 %v6855
      %6939 = vmatprep.subr.mxu0 0.0
      %6940 = vmatpush1.msra.mxu0 %v6856
      %6941 = vmatprep.subr.mxu0 0.0
      %6942 = vmatpush1.msra.mxu0 %v6857
      %6943 = vmatprep.subr.mxu0 0.0
      %6944 = vmatpush1.msra.mxu0 %v6858
      %6945 = vmatprep.subr.mxu0 0.0
      %6946 = vmatpush1.msra.mxu0 %v6859
      %6947 = vmatprep.subr.mxu0 0.0
      %6948 = vmatpush1.msra.mxu0 %v6860
      %6949 = vmatprep.subr.mxu0 0.0
      %6950 = vmatpush1.msra.mxu0 %v6861
      %6951 = vmatprep.subr.mxu0 0.0
      %6952 = vmatpush1.msra.mxu0 %v6862
      %6953 = vmatprep.subr.mxu0 0.0
      %6954 = vmatpush1.msra.mxu0 %v6863
      %6955 = vmatprep.subr.mxu0 0.0
      %6956 = vmatpush1.msra.mxu0 %v6864
      %6957 = vmatprep.subr.mxu0 0.0
      %6958 = vmatpush1.msra.mxu0 %v6865
      %6959 = vmatprep.subr.mxu0 0.0
      %6960 = vmatpush1.msra.mxu0 %v6866
      %6961 = vmatprep.subr.mxu0 0.0
      %6962 = vmatpush1.msra.mxu0 %v6867
      %6963 = vmatprep.subr.mxu0 0.0
      %6964 = vmatpush1.msra.mxu0 %v6868
      %6965 = vmatprep.mubr.f32.mxu0 %v6709
      %6966 = vmatmul.mubr.f32.gmra.mrb[0].mxu0 %v6708
      %v6967 = vpop.f32.mrb[0].mxu0
      %v6968 = vadd.f32 0.0, %v6967
      %v6969 = vpop.f32.mrb[0].mxu0
      %6970 = vmatprep.mubr.f32.mxu0 %v6713
      %6971 = vmatmul.mubr.f32.gmra.mrb[0].mxu0 %v6712
      %v6972 = vpop.f32.mrb[0].mxu0
      %v6973 = vadd.f32 0.0, %v6972
      %v6974 = vpop.f32.mrb[0].mxu0
      %6975 = vmatprep.mubr.f32.mxu0 %v6717
      %6976 = vmatmul.mubr.f32.gmra.mrb[0].mxu0 %v6716
      %v6977 = vpop.f32.mrb[0].mxu0
      %v6978 = vadd.f32 0.0, %v6977
      %v6979 = vpop.f32.mrb[0].mxu0
      %6980 = vmatprep.mubr.f32.mxu0 %v6721
      %6981 = vmatmul.mubr.f32.gmra.mrb[0].mxu0 %v6720
      %v6982 = vpop.f32.mrb[0].mxu0
      %v6983 = vadd.f32 0.0, %v6982
      %v6984 = vpop.f32.mrb[0].mxu0
      %6985 = vmatprep.mubr.f32.mxu0 %v6725
      %6986 = vmatmul.mubr.f32.gmra.mrb[0].mxu0 %v6724
      %v6987 = vpop.f32.mrb[0].mxu0
      %v6988 = vadd.f32 0.0, %v6987
      %v6989 = vpop.f32.mrb[0].mxu0
      %6990 = vmatprep.mubr.f32.mxu0 %v6729
      %6991 = vmatmul.mubr.f32.gmra.mrb[0].mxu0 %v6728
      %v6992 = vpop.f32.mrb[0].mxu0
      %v6993 = vadd.f32 0.0, %v6992
      %v6994 = vpop.f32.mrb[0].mxu0
      %6995 = vmatprep.mubr.f32.mxu0 %v6733
      %6996 = vmatmul.mubr.f32.gmra.mrb[0].mxu0 %v6732
      %v6997 = vpop.f32.mrb[0].mxu0
      %v6998 = vadd.f32 0.0, %v6997
      %v6999 = vpop.f32.mrb[0].mxu0
      %7000 = vmatprep.mubr.f32.mxu0 %v6737
      %7001 = vmatmul.mubr.f32.gmra.mrb[0].mxu0 %v6736
      %v7002 = vpop.f32.mrb[0].mxu0
      %v7003 = vadd.f32 0.0, %v7002
      %v7004 = vpop.f32.mrb[0].mxu0
      %7005 = vmatprep.mubr.f32.mxu0 %v6741
      %7006 = vmatmul.mubr.f32.gmra.mrb[0].mxu0 %v6740
      %v7007 = vpop.f32.mrb[0].mxu0
      %v7008 = vadd.f32 0.0, %v7007
      %v7009 = vpop.f32.mrb[0].mxu0
      %7010 = vmatprep.mubr.f32.mxu0 %v6745
      %7011 = vmatmul.mubr.f32.gmra.mrb[0].mxu0 %v6744
      %v7012 = vpop.f32.mrb[0].mxu0
      %v7013 = vadd.f32 0.0, %v7012
      %v7014 = vpop.f32.mrb[0].mxu0
      %7015 = vmatprep.mubr.f32.mxu0 %v6749
      %7016 = vmatmul.mubr.f32.gmra.mrb[0].mxu0 %v6748
      %v7017 = vpop.f32.mrb[0].mxu0
      %v7018 = vadd.f32 0.0, %v7017
      %v7019 = vpop.f32.mrb[0].mxu0
      %7020 = vmatprep.mubr.f32.mxu0 %v6753
      %7021 = vmatmul.mubr.f32.gmra.mrb[0].mxu0 %v6752
      %v7022 = vpop.f32.mrb[0].mxu0
      %v7023 = vadd.f32 0.0, %v7022
      %v7024 = vpop.f32.mrb[0].mxu0
      %7025 = vmatprep.mubr.f32.mxu0 %v6757
      %7026 = vmatmul.mubr.f32.gmra.mrb[0].mxu0 %v6756
      %v7027 = vpop.f32.mrb[0].mxu0
      %v7028 = vadd.f32 0.0, %v7027
      %v7029 = vpop.f32.mrb[0].mxu0
      %7030 = vmatprep.mubr.f32.mxu0 %v6761
      %7031 = vmatmul.mubr.f32.gmra.mrb[0].mxu0 %v6760
      %v7032 = vpop.f32.mrb[0].mxu0
      %v7033 = vadd.f32 0.0, %v7032
      %v7034 = vpop.f32.mrb[0].mxu0
      %7035 = vmatprep.mubr.f32.mxu0 %v6765
      %7036 = vmatmul.mubr.f32.gmra.mrb[0].mxu0 %v6764
      %v7037 = vpop.f32.mrb[0].mxu0
      %v7038 = vadd.f32 0.0, %v7037
      %v7039 = vpop.f32.mrb[0].mxu0
      %7040 = vmatprep.mubr.f32.mxu0 %v6769
      %7041 = vmatmul.mubr.f32.gmra.mrb[0].mxu0 %v6768
      %v7042 = vpop.f32.mrb[0].mxu0
      %v7043 = vadd.f32 0.0, %v7042
      %v7044 = vpop.f32.mrb[0].mxu0
      %7045 = vmatprep.mubr.f32.mxu0 %v6773
      %7046 = vmatmul.mubr.f32.gmra.mrb[0].mxu0 %v6772
      %v7047 = vpop.f32.mrb[0].mxu0
      %v7048 = vadd.f32 0.0, %v7047
      %v7049 = vpop.f32.mrb[0].mxu0
      %7050 = vmatprep.mubr.f32.mxu0 %v6777
      %7051 = vmatmul.mubr.f32.gmra.mrb[0].mxu0 %v6776
      %v7052 = vpop.f32.mrb[0].mxu0
      %v7053 = vadd.f32 0.0, %v7052
      %v7054 = vpop.f32.mrb[0].mxu0
      %7055 = vmatprep.mubr.f32.mxu0 %v6781
      %7056 = vmatmul.mubr.f32.gmra.mrb[0].mxu0 %v6780
      %v7057 = vpop.f32.mrb[0].mxu0
      %v7058 = vadd.f32 0.0, %v7057
      %v7059 = vpop.f32.mrb[0].mxu0
      %7060 = vmatprep.mubr.f32.mxu0 %v6785
      %7061 = vmatmul.mubr.f32.gmra.mrb[0].mxu0 %v6784
      %v7062 = vpop.f32.mrb[0].mxu0
      %v7063 = vadd.f32 0.0, %v7062
      %v7064 = vpop.f32.mrb[0].mxu0
      %7065 = vmatprep.mubr.f32.mxu0 %v6789
      %7066 = vmatmul.mubr.f32.gmra.mrb[0].mxu0 %v6788
      %v7067 = vpop.f32.mrb[0].mxu0
      %v7068 = vadd.f32 0.0, %v7067
      %v7069 = vpop.f32.mrb[0].mxu0
      %7070 = vmatprep.mubr.f32.mxu0 %v6793
      %7071 = vmatmul.mubr.f32.gmra.mrb[0].mxu0 %v6792
      %v7072 = vpop.f32.mrb[0].mxu0
      %v7073 = vadd.f32 0.0, %v7072
      %v7074 = vpop.f32.mrb[0].mxu0
      %7075 = vmatprep.mubr.f32.mxu0 %v6797
      %7076 = vmatmul.mubr.f32.gmra.mrb[0].mxu0 %v6796
      %v7077 = vpop.f32.mrb[0].mxu0
      %v7078 = vadd.f32 0.0, %v7077
      %v7079 = vpop.f32.mrb[0].mxu0
      %7080 = vmatprep.mubr.f32.mxu0 %v6801
      %7081 = vmatmul.mubr.f32.gmra.mrb[0].mxu0 %v6800
      %v7082 = vpop.f32.mrb[0].mxu0
      %v7083 = vadd.f32 0.0, %v7082
      %v7084 = vpop.f32.mrb[0].mxu0
      %7085 = vmatprep.mubr.f32.mxu0 %v6805
      %7086 = vmatmul.mubr.f32.gmra.mrb[0].mxu0 %v6804
      %v7087 = vpop.f32.mrb[0].mxu0
      %v7088 = vadd.f32 0.0, %v7087
      %v7089 = vpop.f32.mrb[0].mxu0
      %7090 = vmatprep.mubr.f32.mxu0 %v6809
      %7091 = vmatmul.mubr.f32.gmra.mrb[0].mxu0 %v6808
      %v7092 = vpop.f32.mrb[0].mxu0
      %v7093 = vadd.f32 0.0, %v7092
      %v7094 = vpop.f32.mrb[0].mxu0
      %7095 = vmatprep.mubr.f32.mxu0 %v6813
      %7096 = vmatmul.mubr.f32.gmra.mrb[0].mxu0 %v6812
      %v7097 = vpop.f32.mrb[0].mxu0
      %v7098 = vadd.f32 0.0, %v7097
      %v7099 = vpop.f32.mrb[0].mxu0
      %7100 = vmatprep.mubr.f32.mxu0 %v6817
      %7101 = vmatmul.mubr.f32.gmra.mrb[0].mxu0 %v6816
      %v7102 = vpop.f32.mrb[0].mxu0
      %v7103 = vadd.f32 0.0, %v7102
      %v7104 = vpop.f32.mrb[0].mxu0
      %7105 = vmatprep.mubr.f32.mxu0 %v6821
      %7106 = vmatmul.mubr.f32.gmra.mrb[0].mxu0 %v6820
      %v7107 = vpop.f32.mrb[0].mxu0
      %v7108 = vadd.f32 0.0, %v7107
      %v7109 = vpop.f32.mrb[0].mxu0
      %7110 = vmatprep.mubr.f32.mxu0 %v6825
      %7111 = vmatmul.mubr.f32.gmra.mrb[0].mxu0 %v6824
      %v7112 = vpop.f32.mrb[0].mxu0
      %v7113 = vadd.f32 0.0, %v7112
      %v7114 = vpop.f32.mrb[0].mxu0
      %7115 = vmatprep.mubr.f32.mxu0 %v6829
      %7116 = vmatmul.mubr.f32.gmra.mrb[0].mxu0 %v6828
      %v7117 = vpop.f32.mrb[0].mxu0
      %v7118 = vadd.f32 0.0, %v7117
      %v7119 = vpop.f32.mrb[0].mxu0
      %7120 = vmatprep.mubr.f32.mxu0 %v6833
      %7121 = vmatmul.mubr.f32.gmra.mrb[0].mxu0 %v6832
      %v7122 = vpop.f32.mrb[0].mxu0
      %v7123 = vadd.f32 0.0, %v7122
      %v7124 = vpop.f32.mrb[0].mxu0
      %7125 = vdwg.mxu0
      %7126 = vmatprep.subr.mxu0 0.0
      %7127 = vmatpush1.msra.mxu0 %v6869
      %7128 = vmatprep.subr.mxu0 0.0
      %7129 = vmatpush1.msra.mxu0 %v6870
      %7130 = vmatprep.subr.mxu0 0.0
      %7131 = vmatpush1.msra.mxu0 %v6871
      %7132 = vmatprep.subr.mxu0 0.0
      %7133 = vmatpush1.msra.mxu0 %v6872
      %7134 = vmatprep.subr.mxu0 0.0
      %7135 = vmatpush1.msra.mxu0 %v6873
      %7136 = vmatprep.subr.mxu0 0.0
      %7137 = vmatpush1.msra.mxu0 %v6874
      %7138 = vmatprep.subr.mxu0 0.0
      %7139 = vmatpush1.msra.mxu0 %v6875
      %7140 = vmatprep.subr.mxu0 0.0
      %7141 = vmatpush1.msra.mxu0 %v6876
      %7142 = vmatprep.subr.mxu0 0.0
      %7143 = vmatpush1.msra.mxu0 %v6877
      %7144 = vmatprep.subr.mxu0 0.0
      %7145 = vmatpush1.msra.mxu0 %v6878
      %7146 = vmatprep.subr.mxu0 0.0
      %7147 = vmatpush1.msra.mxu0 %v6879
      %7148 = vmatprep.subr.mxu0 0.0
      %7149 = vmatpush1.msra.mxu0 %v6880
      %7150 = vmatprep.subr.mxu0 0.0
      %7151 = vmatpush1.msra.mxu0 %v6881
      %7152 = vmatprep.subr.mxu0 0.0
      %7153 = vmatpush1.msra.mxu0 %v6882
      %7154 = vmatprep.subr.mxu0 0.0
      %7155 = vmatpush1.msra.mxu0 %v6883
      %7156 = vmatprep.subr.mxu0 0.0
      %7157 = vmatpush1.msra.mxu0 %v6884
      %7158 = vmatprep.subr.mxu0 0.0
      %7159 = vmatpush1.msra.mxu0 %v6885
      %7160 = vmatprep.subr.mxu0 0.0
      %7161 = vmatpush1.msra.mxu0 %v6886
      %7162 = vmatprep.subr.mxu0 0.0
      %7163 = vmatpush1.msra.mxu0 %v6887
      %7164 = vmatprep.subr.mxu0 0.0
      %7165 = vmatpush1.msra.mxu0 %v6888
      %7166 = vmatprep.subr.mxu0 0.0
      %7167 = vmatpush1.msra.mxu0 %v6889
      %7168 = vmatprep.subr.mxu0 0.0
      %7169 = vmatpush1.msra.mxu0 %v6890
      %7170 = vmatprep.subr.mxu0 0.0
      %7171 = vmatpush1.msra.mxu0 %v6891
      %7172 = vmatprep.subr.mxu0 0.0
      %7173 = vmatpush1.msra.mxu0 %v6892
      %7174 = vmatprep.subr.mxu0 0.0
      %7175 = vmatpush1.msra.mxu0 %v6893
      %7176 = vmatprep.subr.mxu0 0.0
      %7177 = vmatpush1.msra.mxu0 %v6894
      %7178 = vmatprep.subr.mxu0 0.0
      %7179 = vmatpush1.msra.mxu0 %v6895
      %7180 = vmatprep.subr.mxu0 0.0
      %7181 = vmatpush1.msra.mxu0 %v6896
      %7182 = vmatprep.subr.mxu0 0.0
      %7183 = vmatpush1.msra.mxu0 %v6897
      %7184 = vmatprep.subr.mxu0 0.0
      %7185 = vmatpush1.msra.mxu0 %v6898
      %7186 = vmatprep.subr.mxu0 0.0
      %7187 = vmatpush1.msra.mxu0 %v6899
      %7188 = vmatprep.subr.mxu0 0.0
      %7189 = vmatpush1.msra.mxu0 %v6900
      %7190 = vmatprep.mubr.f32.mxu0 %v6711
      %7191 = vmatmul.mubr.f32.gmra.mrb[0].mxu0 %v6710
      %v7192 = vpop.f32.mrb[0].mxu0
      %v7193 = vadd.f32 %v6968, %v7192
      %v7194 = vpop.f32.mrb[0].mxu0
      %7195 = vmatprep.mubr.f32.mxu0 %v6715
      %7196 = vmatmul.mubr.f32.gmra.mrb[0].mxu0 %v6714
      %v7197 = vpop.f32.mrb[0].mxu0
      %v7198 = vadd.f32 %v6973, %v7197
      %v7199 = vpop.f32.mrb[0].mxu0
      %7200 = vmatprep.mubr.f32.mxu0 %v6719
      %7201 = vmatmul.mubr.f32.gmra.mrb[0].mxu0 %v6718
      %v7202 = vpop.f32.mrb[0].mxu0
      %v7203 = vadd.f32 %v6978, %v7202
      %v7204 = vpop.f32.mrb[0].mxu0
      %7205 = vmatprep.mubr.f32.mxu0 %v6723
      %7206 = vmatmul.mubr.f32.gmra.mrb[0].mxu0 %v6722
      %v7207 = vpop.f32.mrb[0].mxu0
      %v7208 = vadd.f32 %v6983, %v7207
      %v7209 = vpop.f32.mrb[0].mxu0
      %7210 = vmatprep.mubr.f32.mxu0 %v6727
      %7211 = vmatmul.mubr.f32.gmra.mrb[0].mxu0 %v6726
      %v7212 = vpop.f32.mrb[0].mxu0
      %v7213 = vadd.f32 %v6988, %v7212
      %v7214 = vpop.f32.mrb[0].mxu0
      %7215 = vmatprep.mubr.f32.mxu0 %v6731
      %7216 = vmatmul.mubr.f32.gmra.mrb[0].mxu0 %v6730
      %v7217 = vpop.f32.mrb[0].mxu0
      %v7218 = vadd.f32 %v6993, %v7217
      %v7219 = vpop.f32.mrb[0].mxu0
      %7220 = vmatprep.mubr.f32.mxu0 %v6735
      %7221 = vmatmul.mubr.f32.gmra.mrb[0].mxu0 %v6734
      %v7222 = vpop.f32.mrb[0].mxu0
      %v7223 = vadd.f32 %v6998, %v7222
      %v7224 = vpop.f32.mrb[0].mxu0
      %7225 = vmatprep.mubr.f32.mxu0 %v6739
      %7226 = vmatmul.mubr.f32.gmra.mrb[0].mxu0 %v6738
      %v7227 = vpop.f32.mrb[0].mxu0
      %v7228 = vadd.f32 %v7003, %v7227
      %v7229 = vpop.f32.mrb[0].mxu0
      %7230 = vmatprep.mubr.f32.mxu0 %v6743
      %7231 = vmatmul.mubr.f32.gmra.mrb[0].mxu0 %v6742
      %v7232 = vpop.f32.mrb[0].mxu0
      %v7233 = vadd.f32 %v7008, %v7232
      %v7234 = vpop.f32.mrb[0].mxu0
      %7235 = vmatprep.mubr.f32.mxu0 %v6747
      %7236 = vmatmul.mubr.f32.gmra.mrb[0].mxu0 %v6746
      %v7237 = vpop.f32.mrb[0].mxu0
      %v7238 = vadd.f32 %v7013, %v7237
      %v7239 = vpop.f32.mrb[0].mxu0
      %7240 = vmatprep.mubr.f32.mxu0 %v6751
      %7241 = vmatmul.mubr.f32.gmra.mrb[0].mxu0 %v6750
      %v7242 = vpop.f32.mrb[0].mxu0
      %v7243 = vadd.f32 %v7018, %v7242
      %v7244 = vpop.f32.mrb[0].mxu0
      %7245 = vmatprep.mubr.f32.mxu0 %v6755
      %7246 = vmatmul.mubr.f32.gmra.mrb[0].mxu0 %v6754
      %v7247 = vpop.f32.mrb[0].mxu0
      %v7248 = vadd.f32 %v7023, %v7247
      %v7249 = vpop.f32.mrb[0].mxu0
      %7250 = vmatprep.mubr.f32.mxu0 %v6759
      %7251 = vmatmul.mubr.f32.gmra.mrb[0].mxu0 %v6758
      %v7252 = vpop.f32.mrb[0].mxu0
      %v7253 = vadd.f32 %v7028, %v7252
      %v7254 = vpop.f32.mrb[0].mxu0
      %7255 = vmatprep.mubr.f32.mxu0 %v6763
      %7256 = vmatmul.mubr.f32.gmra.mrb[0].mxu0 %v6762
      %v7257 = vpop.f32.mrb[0].mxu0
      %v7258 = vadd.f32 %v7033, %v7257
      %v7259 = vpop.f32.mrb[0].mxu0
      %7260 = vmatprep.mubr.f32.mxu0 %v6767
      %7261 = vmatmul.mubr.f32.gmra.mrb[0].mxu0 %v6766
      %v7262 = vpop.f32.mrb[0].mxu0
      %v7263 = vadd.f32 %v7038, %v7262
      %v7264 = vpop.f32.mrb[0].mxu0
      %7265 = vmatprep.mubr.f32.mxu0 %v6771
      %7266 = vmatmul.mubr.f32.gmra.mrb[0].mxu0 %v6770
      %v7267 = vpop.f32.mrb[0].mxu0
      %v7268 = vadd.f32 %v7043, %v7267
      %v7269 = vpop.f32.mrb[0].mxu0
      %7270 = vmatprep.mubr.f32.mxu0 %v6775
      %7271 = vmatmul.mubr.f32.gmra.mrb[0].mxu0 %v6774
      %v7272 = vpop.f32.mrb[0].mxu0
      %v7273 = vadd.f32 %v7048, %v7272
      %v7274 = vpop.f32.mrb[0].mxu0
      %7275 = vmatprep.mubr.f32.mxu0 %v6779
      %7276 = vmatmul.mubr.f32.gmra.mrb[0].mxu0 %v6778
      %v7277 = vpop.f32.mrb[0].mxu0
      %v7278 = vadd.f32 %v7053, %v7277
      %v7279 = vpop.f32.mrb[0].mxu0
      %7280 = vmatprep.mubr.f32.mxu0 %v6783
      %7281 = vmatmul.mubr.f32.gmra.mrb[0].mxu0 %v6782
      %v7282 = vpop.f32.mrb[0].mxu0
      %v7283 = vadd.f32 %v7058, %v7282
      %v7284 = vpop.f32.mrb[0].mxu0
      %7285 = vmatprep.mubr.f32.mxu0 %v6787
      %7286 = vmatmul.mubr.f32.gmra.mrb[0].mxu0 %v6786
      %v7287 = vpop.f32.mrb[0].mxu0
      %v7288 = vadd.f32 %v7063, %v7287
      %v7289 = vpop.f32.mrb[0].mxu0
      %7290 = vmatprep.mubr.f32.mxu0 %v6791
      %7291 = vmatmul.mubr.f32.gmra.mrb[0].mxu0 %v6790
      %v7292 = vpop.f32.mrb[0].mxu0
      %v7293 = vadd.f32 %v7068, %v7292
      %v7294 = vpop.f32.mrb[0].mxu0
      %7295 = vmatprep.mubr.f32.mxu0 %v6795
      %7296 = vmatmul.mubr.f32.gmra.mrb[0].mxu0 %v6794
      %v7297 = vpop.f32.mrb[0].mxu0
      %v7298 = vadd.f32 %v7073, %v7297
      %v7299 = vpop.f32.mrb[0].mxu0
      %7300 = vmatprep.mubr.f32.mxu0 %v6799
      %7301 = vmatmul.mubr.f32.gmra.mrb[0].mxu0 %v6798
      %v7302 = vpop.f32.mrb[0].mxu0
      %v7303 = vadd.f32 %v7078, %v7302
      %v7304 = vpop.f32.mrb[0].mxu0
      %7305 = vmatprep.mubr.f32.mxu0 %v6803
      %7306 = vmatmul.mubr.f32.gmra.mrb[0].mxu0 %v6802
      %v7307 = vpop.f32.mrb[0].mxu0
      %v7308 = vadd.f32 %v7083, %v7307
      %v7309 = vpop.f32.mrb[0].mxu0
      %7310 = vmatprep.mubr.f32.mxu0 %v6807
      %7311 = vmatmul.mubr.f32.gmra.mrb[0].mxu0 %v6806
      %v7312 = vpop.f32.mrb[0].mxu0
      %v7313 = vadd.f32 %v7088, %v7312
      %v7314 = vpop.f32.mrb[0].mxu0
      %7315 = vmatprep.mubr.f32.mxu0 %v6811
      %7316 = vmatmul.mubr.f32.gmra.mrb[0].mxu0 %v6810
      %v7317 = vpop.f32.mrb[0].mxu0
      %v7318 = vadd.f32 %v7093, %v7317
      %v7319 = vpop.f32.mrb[0].mxu0
      %7320 = vmatprep.mubr.f32.mxu0 %v6815
      %7321 = vmatmul.mubr.f32.gmra.mrb[0].mxu0 %v6814
      %v7322 = vpop.f32.mrb[0].mxu0
      %v7323 = vadd.f32 %v7098, %v7322
      %v7324 = vpop.f32.mrb[0].mxu0
      %7325 = vmatprep.mubr.f32.mxu0 %v6819
      %7326 = vmatmul.mubr.f32.gmra.mrb[0].mxu0 %v6818
      %v7327 = vpop.f32.mrb[0].mxu0
      %v7328 = vadd.f32 %v7103, %v7327
      %v7329 = vpop.f32.mrb[0].mxu0
      %7330 = vmatprep.mubr.f32.mxu0 %v6823
      %7331 = vmatmul.mubr.f32.gmra.mrb[0].mxu0 %v6822
      %v7332 = vpop.f32.mrb[0].mxu0
      %v7333 = vadd.f32 %v7108, %v7332
      %v7334 = vpop.f32.mrb[0].mxu0
      %7335 = vmatprep.mubr.f32.mxu0 %v6827
      %7336 = vmatmul.mubr.f32.gmra.mrb[0].mxu0 %v6826
      %v7337 = vpop.f32.mrb[0].mxu0
      %v7338 = vadd.f32 %v7113, %v7337
      %v7339 = vpop.f32.mrb[0].mxu0
      %7340 = vmatprep.mubr.f32.mxu0 %v6831
      %7341 = vmatmul.mubr.f32.gmra.mrb[0].mxu0 %v6830
      %v7342 = vpop.f32.mrb[0].mxu0
      %v7343 = vadd.f32 %v7118, %v7342
      %v7344 = vpop.f32.mrb[0].mxu0
      %7345 = vmatprep.mubr.f32.mxu0 %v6835
      %7346 = vmatmul.mubr.f32.gmra.mrb[0].mxu0 %v6834
      %v7347 = vpop.f32.mrb[0].mxu0
      %v7348 = vadd.f32 %v7123, %v7347
      %v7349 = vpop.f32.mrb[0].mxu0
      %7350 = vdwg.mxu0
      %v7351 = vadd.f32 %v6675, %v7193
      %v7352 = vadd.f32 %v6676, %v7198
      %v7353 = vadd.f32 %v6677, %v7203
      %v7354 = vadd.f32 %v6678, %v7208
      %v7355 = vadd.f32 %v6679, %v7213
      %v7356 = vadd.f32 %v6680, %v7218
      %v7357 = vadd.f32 %v6681, %v7223
      %v7358 = vadd.f32 %v6682, %v7228
      %v7359 = vadd.f32 %v6683, %v7233
      %v7360 = vadd.f32 %v6684, %v7238
      %v7361 = vadd.f32 %v6685, %v7243
      %v7362 = vadd.f32 %v6686, %v7248
      %v7363 = vadd.f32 %v6687, %v7253
      %v7364 = vadd.f32 %v6688, %v7258
      %v7365 = vadd.f32 %v6689, %v7263
      %v7366 = vadd.f32 %v6690, %v7268
      %v7367 = vadd.f32 %v6691, %v7273
      %v7368 = vadd.f32 %v6692, %v7278
      %v7369 = vadd.f32 %v6693, %v7283
      %v7370 = vadd.f32 %v6694, %v7288
      %v7371 = vadd.f32 %v6695, %v7293
      %v7372 = vadd.f32 %v6696, %v7298
      %v7373 = vadd.f32 %v6697, %v7303
      %v7374 = vadd.f32 %v6698, %v7308
      %v7375 = vadd.f32 %v6699, %v7313
      %v7376 = vadd.f32 %v6700, %v7318
      %v7377 = vadd.f32 %v6701, %v7323
      %v7378 = vadd.f32 %v6702, %v7328
      %v7379 = vadd.f32 %v6703, %v7333
      %v7380 = vadd.f32 %v6704, %v7338
      %v7381 = vadd.f32 %v6705, %v7343
      %v7382 = vadd.f32 %v6706, %v7348
      %v7383 = vld [vmem:[%s6707] sm:$0xfe]
      %v7384 = vld [vmem:[%s6707 + $0x8] sm:$0xfe]
      %v7385 = vld [vmem:[%s6707 + $0x10] sm:$0xfe]
      %v7386 = vld [vmem:[%s6707 + $0x18] sm:$0xfe]
      %v7387 = vld [vmem:[%s6707 + $0x20] sm:$0xff]
      %v7388 = vld [vmem:[%s6707 + $0x28] sm:$0xff]
      %v7389 = vld [vmem:[%s6707 + $0x30] sm:$0xff]
      %v7390 = vld [vmem:[%s6707 + $0x38] sm:$0xff]
      %v7391 = vld [vmem:[%s6707 + $0x40] sm:$0x1]
      %v7392 = vld [vmem:[%s6707 + $0x48] sm:$0x1]
      %v7393 = vld [vmem:[%s6707 + $0x50] sm:$0x1]
      %v7394 = vld [vmem:[%s6707 + $0x58] sm:$0x1]
      %v7395 = vld [vmem:[%s6707 + $0x60] sm:$0xfe]
      %v7396 = vld [vmem:[%s6707 + $0x68] sm:$0xfe]
      %v7397 = vld [vmem:[%s6707 + $0x70] sm:$0xfe]
      %v7398 = vld [vmem:[%s6707 + $0x78] sm:$0xfe]
      %v7399 = vld [vmem:[%s6707 + $0x80] sm:$0xff]
      %v7400 = vld [vmem:[%s6707 + $0x88] sm:$0xff]
      %v7401 = vld [vmem:[%s6707 + $0x90] sm:$0xff]
      %v7402 = vld [vmem:[%s6707 + $0x98] sm:$0xff]
      %v7403 = vld [vmem:[%s6707 + $0xa0] sm:$0x1]
      %v7404 = vld [vmem:[%s6707 + $0xa8] sm:$0x1]
      %v7405 = vld [vmem:[%s6707 + $0xb0] sm:$0x1]
      %v7406 = vld [vmem:[%s6707 + $0xb8] sm:$0x1]
      %v7407 = vld [vmem:[%s6707 + $0xc0] sm:$0xfe]
      %v7408 = vld [vmem:[%s6707 + $0xc8] sm:$0xfe]
      %v7409 = vld [vmem:[%s6707 + $0xd0] sm:$0xfe]
      %v7410 = vld [vmem:[%s6707 + $0xd8] sm:$0xfe]
      %v7411 = vld [vmem:[%s6707 + $0xe0] sm:$0xff]
      %v7412 = vld [vmem:[%s6707 + $0xe8] sm:$0xff]
      %v7413 = vld [vmem:[%s6707 + $0xf0] sm:$0xff]
      %v7414 = vld [vmem:[%s6707 + $0xf8] sm:$0xff]
      %v7415 = vld [vmem:[%s6707 + $0x100] sm:$0x1]
      %v7416 = vld [vmem:[%s6707 + $0x108] sm:$0x1]
      %v7417 = vld [vmem:[%s6707 + $0x110] sm:$0x1]
      %v7418 = vld [vmem:[%s6707 + $0x118] sm:$0x1]
      %v7419 = vld [vmem:[%s6707 + $0x120] sm:$0xfe]
      %v7420 = vld [vmem:[%s6707 + $0x128] sm:$0xfe]
      %v7421 = vld [vmem:[%s6707 + $0x130] sm:$0xfe]
      %v7422 = vld [vmem:[%s6707 + $0x138] sm:$0xfe]
      %v7423 = vld [vmem:[%s6707 + $0x140] sm:$0xff]
      %v7424 = vld [vmem:[%s6707 + $0x148] sm:$0xff]
      %v7425 = vld [vmem:[%s6707 + $0x150] sm:$0xff]
      %v7426 = vld [vmem:[%s6707 + $0x158] sm:$0xff]
      %v7427 = vld [vmem:[%s6707 + $0x160] sm:$0x1]
      %v7428 = vld [vmem:[%s6707 + $0x168] sm:$0x1]
      %v7429 = vld [vmem:[%s6707 + $0x170] sm:$0x1]
      %v7430 = vld [vmem:[%s6707 + $0x178] sm:$0x1]
      %v7431 = vld [vmem:[%s6707 + $0x180] sm:$0xfe]
      %v7432 = vld [vmem:[%s6707 + $0x188] sm:$0xfe]
      %v7433 = vld [vmem:[%s6707 + $0x190] sm:$0xfe]
      %v7434 = vld [vmem:[%s6707 + $0x198] sm:$0xfe]
      %v7435 = vld [vmem:[%s6707 + $0x1a0] sm:$0xff]
      %v7436 = vld [vmem:[%s6707 + $0x1a8] sm:$0xff]
      %v7437 = vld [vmem:[%s6707 + $0x1b0] sm:$0xff]
      %v7438 = vld [vmem:[%s6707 + $0x1b8] sm:$0xff]
      %v7439 = vld [vmem:[%s6707 + $0x1c0] sm:$0x1]
      %v7440 = vld [vmem:[%s6707 + $0x1c8] sm:$0x1]
      %v7441 = vld [vmem:[%s6707 + $0x1d0] sm:$0x1]
      %v7442 = vld [vmem:[%s6707 + $0x1d8] sm:$0x1]
      %v7443 = vld [vmem:[%s6707 + $0x1e0] sm:$0xfe]
      %v7444 = vld [vmem:[%s6707 + $0x1e8] sm:$0xfe]
      %v7445 = vld [vmem:[%s6707 + $0x1f0] sm:$0xfe]
      %v7446 = vld [vmem:[%s6707 + $0x1f8] sm:$0xfe]
      %v7447 = vld [vmem:[%s6707 + $0x200] sm:$0xff]
      %v7448 = vld [vmem:[%s6707 + $0x208] sm:$0xff]
      %v7449 = vld [vmem:[%s6707 + $0x210] sm:$0xff]
      %v7450 = vld [vmem:[%s6707 + $0x218] sm:$0xff]
      %v7451 = vld [vmem:[%s6707 + $0x220] sm:$0x1]
      %v7452 = vld [vmem:[%s6707 + $0x228] sm:$0x1]
      %v7453 = vld [vmem:[%s6707 + $0x230] sm:$0x1]
      %v7454 = vld [vmem:[%s6707 + $0x238] sm:$0x1]
      %v7455 = vld [vmem:[%s6707 + $0x240] sm:$0xfe]
      %v7456 = vld [vmem:[%s6707 + $0x248] sm:$0xfe]
      %v7457 = vld [vmem:[%s6707 + $0x250] sm:$0xfe]
      %v7458 = vld [vmem:[%s6707 + $0x258] sm:$0xfe]
      %v7459 = vld [vmem:[%s6707 + $0x260] sm:$0xff]
      %v7460 = vld [vmem:[%s6707 + $0x268] sm:$0xff]
      %v7461 = vld [vmem:[%s6707 + $0x270] sm:$0xff]
      %v7462 = vld [vmem:[%s6707 + $0x278] sm:$0xff]
      %v7463 = vld [vmem:[%s6707 + $0x280] sm:$0x1]
      %v7464 = vld [vmem:[%s6707 + $0x288] sm:$0x1]
      %v7465 = vld [vmem:[%s6707 + $0x290] sm:$0x1]
      %v7466 = vld [vmem:[%s6707 + $0x298] sm:$0x1]
      %v7467 = vld [vmem:[%s6707 + $0x2a0] sm:$0xfe]
      %v7468 = vld [vmem:[%s6707 + $0x2a8] sm:$0xfe]
      %v7469 = vld [vmem:[%s6707 + $0x2b0] sm:$0xfe]
      %v7470 = vld [vmem:[%s6707 + $0x2b8] sm:$0xfe]
      %v7471 = vld [vmem:[%s6707 + $0x2c0] sm:$0xff]
      %v7472 = vld [vmem:[%s6707 + $0x2c8] sm:$0xff]
      %v7473 = vld [vmem:[%s6707 + $0x2d0] sm:$0xff]
      %v7474 = vld [vmem:[%s6707 + $0x2d8] sm:$0xff]
      %v7475 = vld [vmem:[%s6707 + $0x2e0] sm:$0x1]
      %v7476 = vld [vmem:[%s6707 + $0x2e8] sm:$0x1]
      %v7477 = vld [vmem:[%s6707 + $0x2f0] sm:$0x1]
      %v7478 = vld [vmem:[%s6707 + $0x2f8] sm:$0x1]
      %v7479 = vld [vmem:[%s6707 + $0x300] sm:$0xfe]
      %v7480 = vld [vmem:[%s6707 + $0x308] sm:$0xfe]
      %v7481 = vld [vmem:[%s6707 + $0x310] sm:$0xfe]
      %v7482 = vld [vmem:[%s6707 + $0x318] sm:$0xfe]
      %v7483 = vld [vmem:[%s6707 + $0x320] sm:$0xff]
      %v7484 = vld [vmem:[%s6707 + $0x328] sm:$0xff]
      %v7485 = vld [vmem:[%s6707 + $0x330] sm:$0xff]
      %v7486 = vld [vmem:[%s6707 + $0x338] sm:$0xff]
      %v7487 = vld [vmem:[%s6707 + $0x340] sm:$0x1]
      %v7488 = vld [vmem:[%s6707 + $0x348] sm:$0x1]
      %v7489 = vld [vmem:[%s6707 + $0x350] sm:$0x1]
      %v7490 = vld [vmem:[%s6707 + $0x358] sm:$0x1]
      %v7491 = vld [vmem:[%s6707 + $0x360] sm:$0xfe]
      %v7492 = vld [vmem:[%s6707 + $0x368] sm:$0xfe]
      %v7493 = vld [vmem:[%s6707 + $0x370] sm:$0xfe]
      %v7494 = vld [vmem:[%s6707 + $0x378] sm:$0xfe]
      %v7495 = vld [vmem:[%s6707 + $0x380] sm:$0xff]
      %v7496 = vld [vmem:[%s6707 + $0x388] sm:$0xff]
      %v7497 = vld [vmem:[%s6707 + $0x390] sm:$0xff]
      %v7498 = vld [vmem:[%s6707 + $0x398] sm:$0xff]
      %v7499 = vld [vmem:[%s6707 + $0x3a0] sm:$0x1]
      %v7500 = vld [vmem:[%s6707 + $0x3a8] sm:$0x1]
      %v7501 = vld [vmem:[%s6707 + $0x3b0] sm:$0x1]
      %v7502 = vld [vmem:[%s6707 + $0x3b8] sm:$0x1]
      %v7503 = vld [vmem:[%s6707 + $0x3c0] sm:$0xfe]
      %v7504 = vld [vmem:[%s6707 + $0x3c8] sm:$0xfe]
      %v7505 = vld [vmem:[%s6707 + $0x3d0] sm:$0xfe]
      %v7506 = vld [vmem:[%s6707 + $0x3d8] sm:$0xfe]
      %v7507 = vld [vmem:[%s6707 + $0x3e0] sm:$0xff]
      %v7508 = vld [vmem:[%s6707 + $0x3e8] sm:$0xff]
      %v7509 = vld [vmem:[%s6707 + $0x3f0] sm:$0xff]
      %v7510 = vld [vmem:[%s6707 + $0x3f8] sm:$0xff]
      %v7511 = vld [vmem:[%s6707 + $0x400] sm:$0x1]
      %v7512 = vld [vmem:[%s6707 + $0x408] sm:$0x1]
      %v7513 = vld [vmem:[%s6707 + $0x410] sm:$0x1]
      %v7514 = vld [vmem:[%s6707 + $0x418] sm:$0x1]
      %v7515 = vld [vmem:[%s6707 + $0x420] sm:$0xfe]
      %v7516 = vld [vmem:[%s6707 + $0x428] sm:$0xfe]
      %v7517 = vld [vmem:[%s6707 + $0x430] sm:$0xfe]
      %v7518 = vld [vmem:[%s6707 + $0x438] sm:$0xfe]
      %v7519 = vld [vmem:[%s6707 + $0x440] sm:$0xff]
      %v7520 = vld [vmem:[%s6707 + $0x448] sm:$0xff]
      %v7521 = vld [vmem:[%s6707 + $0x450] sm:$0xff]
      %v7522 = vld [vmem:[%s6707 + $0x458] sm:$0xff]
      %v7523 = vld [vmem:[%s6707 + $0x460] sm:$0x1]
      %v7524 = vld [vmem:[%s6707 + $0x468] sm:$0x1]
      %v7525 = vld [vmem:[%s6707 + $0x470] sm:$0x1]
      %v7526 = vld [vmem:[%s6707 + $0x478] sm:$0x1]
      %v7527 = vld [vmem:[%s6707 + $0x480] sm:$0xfe]
      %v7528 = vld [vmem:[%s6707 + $0x488] sm:$0xfe]
      %v7529 = vld [vmem:[%s6707 + $0x490] sm:$0xfe]
      %v7530 = vld [vmem:[%s6707 + $0x498] sm:$0xfe]
      %v7531 = vld [vmem:[%s6707 + $0x4a0] sm:$0xff]
      %v7532 = vld [vmem:[%s6707 + $0x4a8] sm:$0xff]
      %v7533 = vld [vmem:[%s6707 + $0x4b0] sm:$0xff]
      %v7534 = vld [vmem:[%s6707 + $0x4b8] sm:$0xff]
      %v7535 = vld [vmem:[%s6707 + $0x4c0] sm:$0x1]
      %v7536 = vld [vmem:[%s6707 + $0x4c8] sm:$0x1]
      %v7537 = vld [vmem:[%s6707 + $0x4d0] sm:$0x1]
      %v7538 = vld [vmem:[%s6707 + $0x4d8] sm:$0x1]
      %v7539 = vld [vmem:[%s6707 + $0x4e0] sm:$0xfe]
      %v7540 = vld [vmem:[%s6707 + $0x4e8] sm:$0xfe]
      %v7541 = vld [vmem:[%s6707 + $0x4f0] sm:$0xfe]
      %v7542 = vld [vmem:[%s6707 + $0x4f8] sm:$0xfe]
      %v7543 = vld [vmem:[%s6707 + $0x500] sm:$0xff]
      %v7544 = vld [vmem:[%s6707 + $0x508] sm:$0xff]
      %v7545 = vld [vmem:[%s6707 + $0x510] sm:$0xff]
      %v7546 = vld [vmem:[%s6707 + $0x518] sm:$0xff]
      %v7547 = vld [vmem:[%s6707 + $0x520] sm:$0x1]
      %v7548 = vld [vmem:[%s6707 + $0x528] sm:$0x1]
      %v7549 = vld [vmem:[%s6707 + $0x530] sm:$0x1]
      %v7550 = vld [vmem:[%s6707 + $0x538] sm:$0x1]
      %v7551 = vld [vmem:[%s6707 + $0x540] sm:$0xfe]
      %v7552 = vld [vmem:[%s6707 + $0x548] sm:$0xfe]
      %v7553 = vld [vmem:[%s6707 + $0x550] sm:$0xfe]
      %v7554 = vld [vmem:[%s6707 + $0x558] sm:$0xfe]
      %v7555 = vld [vmem:[%s6707 + $0x560] sm:$0xff]
      %v7556 = vld [vmem:[%s6707 + $0x568] sm:$0xff]
      %v7557 = vld [vmem:[%s6707 + $0x570] sm:$0xff]
      %v7558 = vld [vmem:[%s6707 + $0x578] sm:$0xff]
      %v7559 = vld [vmem:[%s6707 + $0x580] sm:$0x1]
      %v7560 = vld [vmem:[%s6707 + $0x588] sm:$0x1]
      %v7561 = vld [vmem:[%s6707 + $0x590] sm:$0x1]
      %v7562 = vld [vmem:[%s6707 + $0x598] sm:$0x1]
      %v7563 = vld [vmem:[%s6707 + $0x5a0] sm:$0xfe]
      %v7564 = vld [vmem:[%s6707 + $0x5a8] sm:$0xfe]
      %v7565 = vld [vmem:[%s6707 + $0x5b0] sm:$0xfe]
      %v7566 = vld [vmem:[%s6707 + $0x5b8] sm:$0xfe]
      %v7567 = vld [vmem:[%s6707 + $0x5c0] sm:$0xff]
      %v7568 = vld [vmem:[%s6707 + $0x5c8] sm:$0xff]
      %v7569 = vld [vmem:[%s6707 + $0x5d0] sm:$0xff]
      %v7570 = vld [vmem:[%s6707 + $0x5d8] sm:$0xff]
      %v7571 = vld [vmem:[%s6707 + $0x5e0] sm:$0x1]
      %v7572 = vld [vmem:[%s6707 + $0x5e8] sm:$0x1]
      %v7573 = vld [vmem:[%s6707 + $0x5f0] sm:$0x1]
      %v7574 = vld [vmem:[%s6707 + $0x5f8] sm:$0x1]
      %v7767 = vrot.slane %v7383, 1
      %v7768 = vrot.slane %v7387, 1
      %v7769 = vsel %vm735, %v7767, %v7768
      %v7770 = vrot.slane %v7384, 1
      %v7771 = vrot.slane %v7388, 1
      %v7772 = vsel %vm735, %v7770, %v7771
      %v7773 = vrot.slane %v7385, 1
      %v7774 = vrot.slane %v7389, 1
      %v7775 = vsel %vm735, %v7773, %v7774
      %v7776 = vrot.slane %v7386, 1
      %v7777 = vrot.slane %v7390, 1
      %v7778 = vsel %vm735, %v7776, %v7777
      %v7779 = vrot.slane %v7391, 1
      %v7780 = vsel %vm735, %v7768, %v7779
      %v7781 = vrot.slane %v7392, 1
      %v7782 = vsel %vm735, %v7771, %v7781
      %v7783 = vrot.slane %v7393, 1
      %v7784 = vsel %vm735, %v7774, %v7783
      %v7785 = vrot.slane %v7394, 1
      %v7786 = vsel %vm735, %v7777, %v7785
      %v7787 = vrot.slane %v7395, 1
      %v7788 = vrot.slane %v7399, 1
      %v7789 = vsel %vm735, %v7787, %v7788
      %v7790 = vrot.slane %v7396, 1
      %v7791 = vrot.slane %v7400, 1
      %v7792 = vsel %vm735, %v7790, %v7791
      %v7793 = vrot.slane %v7397, 1
      %v7794 = vrot.slane %v7401, 1
      %v7795 = vsel %vm735, %v7793, %v7794
      %v7796 = vrot.slane %v7398, 1
      %v7797 = vrot.slane %v7402, 1
      %v7798 = vsel %vm735, %v7796, %v7797
      %v7799 = vrot.slane %v7403, 1
      %v7800 = vsel %vm735, %v7788, %v7799
      %v7801 = vrot.slane %v7404, 1
      %v7802 = vsel %vm735, %v7791, %v7801
      %v7803 = vrot.slane %v7405, 1
      %v7804 = vsel %vm735, %v7794, %v7803
      %v7805 = vrot.slane %v7406, 1
      %v7806 = vsel %vm735, %v7797, %v7805
      %v7807 = vrot.slane %v7407, 1
      %v7808 = vrot.slane %v7411, 1
      %v7809 = vsel %vm735, %v7807, %v7808
      %v7810 = vrot.slane %v7408, 1
      %v7811 = vrot.slane %v7412, 1
      %v7812 = vsel %vm735, %v7810, %v7811
      %v7813 = vrot.slane %v7409, 1
      %v7814 = vrot.slane %v7413, 1
      %v7815 = vsel %vm735, %v7813, %v7814
      %v7816 = vrot.slane %v7410, 1
      %v7817 = vrot.slane %v7414, 1
      %v7818 = vsel %vm735, %v7816, %v7817
      %v7819 = vrot.slane %v7415, 1
      %v7820 = vsel %vm735, %v7808, %v7819
      %v7821 = vrot.slane %v7416, 1
      %v7822 = vsel %vm735, %v7811, %v7821
      %v7823 = vrot.slane %v7417, 1
      %v7824 = vsel %vm735, %v7814, %v7823
      %v7825 = vrot.slane %v7418, 1
      %v7826 = vsel %vm735, %v7817, %v7825
      %v7827 = vrot.slane %v7419, 1
      %v7828 = vrot.slane %v7423, 1
      %v7829 = vsel %vm735, %v7827, %v7828
      %v7830 = vrot.slane %v7420, 1
      %v7831 = vrot.slane %v7424, 1
      %v7832 = vsel %vm735, %v7830, %v7831
      %v7833 = vrot.slane %v7421, 1
      %v7834 = vrot.slane %v7425, 1
      %v7835 = vsel %vm735, %v7833, %v7834
      %v7836 = vrot.slane %v7422, 1
      %v7837 = vrot.slane %v7426, 1
      %v7838 = vsel %vm735, %v7836, %v7837
      %v7839 = vrot.slane %v7427, 1
      %v7840 = vsel %vm735, %v7828, %v7839
      %v7841 = vrot.slane %v7428, 1
      %v7842 = vsel %vm735, %v7831, %v7841
      %v7843 = vrot.slane %v7429, 1
      %v7844 = vsel %vm735, %v7834, %v7843
      %v7845 = vrot.slane %v7430, 1
      %v7846 = vsel %vm735, %v7837, %v7845
      %v7847 = vrot.slane %v7431, 1
      %v7848 = vrot.slane %v7435, 1
      %v7849 = vsel %vm735, %v7847, %v7848
      %v7850 = vrot.slane %v7432, 1
      %v7851 = vrot.slane %v7436, 1
      %v7852 = vsel %vm735, %v7850, %v7851
      %v7853 = vrot.slane %v7433, 1
      %v7854 = vrot.slane %v7437, 1
      %v7855 = vsel %vm735, %v7853, %v7854
      %v7856 = vrot.slane %v7434, 1
      %v7857 = vrot.slane %v7438, 1
      %v7858 = vsel %vm735, %v7856, %v7857
      %v7859 = vrot.slane %v7439, 1
      %v7860 = vsel %vm735, %v7848, %v7859
      %v7861 = vrot.slane %v7440, 1
      %v7862 = vsel %vm735, %v7851, %v7861
      %v7863 = vrot.slane %v7441, 1
      %v7864 = vsel %vm735, %v7854, %v7863
      %v7865 = vrot.slane %v7442, 1
      %v7866 = vsel %vm735, %v7857, %v7865
      %v7867 = vrot.slane %v7443, 1
      %v7868 = vrot.slane %v7447, 1
      %v7869 = vsel %vm735, %v7867, %v7868
      %v7870 = vrot.slane %v7444, 1
      %v7871 = vrot.slane %v7448, 1
      %v7872 = vsel %vm735, %v7870, %v7871
      %v7873 = vrot.slane %v7445, 1
      %v7874 = vrot.slane %v7449, 1
      %v7875 = vsel %vm735, %v7873, %v7874
      %v7876 = vrot.slane %v7446, 1
      %v7877 = vrot.slane %v7450, 1
      %v7878 = vsel %vm735, %v7876, %v7877
      %v7879 = vrot.slane %v7451, 1
      %v7880 = vsel %vm735, %v7868, %v7879
      %v7881 = vrot.slane %v7452, 1
      %v7882 = vsel %vm735, %v7871, %v7881
      %v7883 = vrot.slane %v7453, 1
      %v7884 = vsel %vm735, %v7874, %v7883
      %v7885 = vrot.slane %v7454, 1
      %v7886 = vsel %vm735, %v7877, %v7885
      %v7887 = vrot.slane %v7455, 1
      %v7888 = vrot.slane %v7459, 1
      %v7889 = vsel %vm735, %v7887, %v7888
      %v7890 = vrot.slane %v7456, 1
      %v7891 = vrot.slane %v7460, 1
      %v7892 = vsel %vm735, %v7890, %v7891
      %v7893 = vrot.slane %v7457, 1
      %v7894 = vrot.slane %v7461, 1
      %v7895 = vsel %vm735, %v7893, %v7894
      %v7896 = vrot.slane %v7458, 1
      %v7897 = vrot.slane %v7462, 1
      %v7898 = vsel %vm735, %v7896, %v7897
      %v7899 = vrot.slane %v7463, 1
      %v7900 = vsel %vm735, %v7888, %v7899
      %v7901 = vrot.slane %v7464, 1
      %v7902 = vsel %vm735, %v7891, %v7901
      %v7903 = vrot.slane %v7465, 1
      %v7904 = vsel %vm735, %v7894, %v7903
      %v7905 = vrot.slane %v7466, 1
      %v7906 = vsel %vm735, %v7897, %v7905
      %v7907 = vrot.slane %v7467, 1
      %v7908 = vrot.slane %v7471, 1
      %v7909 = vsel %vm735, %v7907, %v7908
      %v7910 = vrot.slane %v7468, 1
      %v7911 = vrot.slane %v7472, 1
      %v7912 = vsel %vm735, %v7910, %v7911
      %v7913 = vrot.slane %v7469, 1
      %v7914 = vrot.slane %v7473, 1
      %v7915 = vsel %vm735, %v7913, %v7914
      %v7916 = vrot.slane %v7470, 1
      %v7917 = vrot.slane %v7474, 1
      %v7918 = vsel %vm735, %v7916, %v7917
      %v7919 = vrot.slane %v7475, 1
      %v7920 = vsel %vm735, %v7908, %v7919
      %v7921 = vrot.slane %v7476, 1
      %v7922 = vsel %vm735, %v7911, %v7921
      %v7923 = vrot.slane %v7477, 1
      %v7924 = vsel %vm735, %v7914, %v7923
      %v7925 = vrot.slane %v7478, 1
      %v7926 = vsel %vm735, %v7917, %v7925
      %v7927 = vrot.slane %v7479, 1
      %v7928 = vrot.slane %v7483, 1
      %v7929 = vsel %vm735, %v7927, %v7928
      %v7930 = vrot.slane %v7480, 1
      %v7931 = vrot.slane %v7484, 1
      %v7932 = vsel %vm735, %v7930, %v7931
      %v7933 = vrot.slane %v7481, 1
      %v7934 = vrot.slane %v7485, 1
      %v7935 = vsel %vm735, %v7933, %v7934
      %v7936 = vrot.slane %v7482, 1
      %v7937 = vrot.slane %v7486, 1
      %v7938 = vsel %vm735, %v7936, %v7937
      %v7939 = vrot.slane %v7487, 1
      %v7940 = vsel %vm735, %v7928, %v7939
      %v7941 = vrot.slane %v7488, 1
      %v7942 = vsel %vm735, %v7931, %v7941
      %v7943 = vrot.slane %v7489, 1
      %v7944 = vsel %vm735, %v7934, %v7943
      %v7945 = vrot.slane %v7490, 1
      %v7946 = vsel %vm735, %v7937, %v7945
      %v7947 = vrot.slane %v7491, 1
      %v7948 = vrot.slane %v7495, 1
      %v7949 = vsel %vm735, %v7947, %v7948
      %v7950 = vrot.slane %v7492, 1
      %v7951 = vrot.slane %v7496, 1
      %v7952 = vsel %vm735, %v7950, %v7951
      %v7953 = vrot.slane %v7493, 1
      %v7954 = vrot.slane %v7497, 1
      %v7955 = vsel %vm735, %v7953, %v7954
      %v7956 = vrot.slane %v7494, 1
      %v7957 = vrot.slane %v7498, 1
      %v7958 = vsel %vm735, %v7956, %v7957
      %v7959 = vrot.slane %v7499, 1
      %v7960 = vsel %vm735, %v7948, %v7959
      %v7961 = vrot.slane %v7500, 1
      %v7962 = vsel %vm735, %v7951, %v7961
      %v7963 = vrot.slane %v7501, 1
      %v7964 = vsel %vm735, %v7954, %v7963
      %v7965 = vrot.slane %v7502, 1
      %v7966 = vsel %vm735, %v7957, %v7965
      %v7967 = vrot.slane %v7503, 1
      %v7968 = vrot.slane %v7507, 1
      %v7969 = vsel %vm735, %v7967, %v7968
      %v7970 = vrot.slane %v7504, 1
      %v7971 = vrot.slane %v7508, 1
      %v7972 = vsel %vm735, %v7970, %v7971
      %v7973 = vrot.slane %v7505, 1
      %v7974 = vrot.slane %v7509, 1
      %v7975 = vsel %vm735, %v7973, %v7974
      %v7976 = vrot.slane %v7506, 1
      %v7977 = vrot.slane %v7510, 1
      %v7978 = vsel %vm735, %v7976, %v7977
      %v7979 = vrot.slane %v7511, 1
      %v7980 = vsel %vm735, %v7968, %v7979
      %v7981 = vrot.slane %v7512, 1
      %v7982 = vsel %vm735, %v7971, %v7981
      %v7983 = vrot.slane %v7513, 1
      %v7984 = vsel %vm735, %v7974, %v7983
      %v7985 = vrot.slane %v7514, 1
      %v7986 = vsel %vm735, %v7977, %v7985
      %v7987 = vrot.slane %v7515, 1
      %v7988 = vrot.slane %v7519, 1
      %v7989 = vsel %vm735, %v7987, %v7988
      %v7990 = vrot.slane %v7516, 1
      %v7991 = vrot.slane %v7520, 1
      %v7992 = vsel %vm735, %v7990, %v7991
      %v7993 = vrot.slane %v7517, 1
      %v7994 = vrot.slane %v7521, 1
      %v7995 = vsel %vm735, %v7993, %v7994
      %v7996 = vrot.slane %v7518, 1
      %v7997 = vrot.slane %v7522, 1
      %v7998 = vsel %vm735, %v7996, %v7997
      %v7999 = vrot.slane %v7523, 1
      %v8000 = vsel %vm735, %v7988, %v7999
      %v8001 = vrot.slane %v7524, 1
      %v8002 = vsel %vm735, %v7991, %v8001
      %v8003 = vrot.slane %v7525, 1
      %v8004 = vsel %vm735, %v7994, %v8003
      %v8005 = vrot.slane %v7526, 1
      %v8006 = vsel %vm735, %v7997, %v8005
      %v8007 = vrot.slane %v7527, 1
      %v8008 = vrot.slane %v7531, 1
      %v8009 = vsel %vm735, %v8007, %v8008
      %v8010 = vrot.slane %v7528, 1
      %v8011 = vrot.slane %v7532, 1
      %v8012 = vsel %vm735, %v8010, %v8011
      %v8013 = vrot.slane %v7529, 1
      %v8014 = vrot.slane %v7533, 1
      %v8015 = vsel %vm735, %v8013, %v8014
      %v8016 = vrot.slane %v7530, 1
      %v8017 = vrot.slane %v7534, 1
      %v8018 = vsel %vm735, %v8016, %v8017
      %v8019 = vrot.slane %v7535, 1
      %v8020 = vsel %vm735, %v8008, %v8019
      %v8021 = vrot.slane %v7536, 1
      %v8022 = vsel %vm735, %v8011, %v8021
      %v8023 = vrot.slane %v7537, 1
      %v8024 = vsel %vm735, %v8014, %v8023
      %v8025 = vrot.slane %v7538, 1
      %v8026 = vsel %vm735, %v8017, %v8025
      %v8027 = vrot.slane %v7539, 1
      %v8028 = vrot.slane %v7543, 1
      %v8029 = vsel %vm735, %v8027, %v8028
      %v8030 = vrot.slane %v7540, 1
      %v8031 = vrot.slane %v7544, 1
      %v8032 = vsel %vm735, %v8030, %v8031
      %v8033 = vrot.slane %v7541, 1
      %v8034 = vrot.slane %v7545, 1
      %v8035 = vsel %vm735, %v8033, %v8034
      %v8036 = vrot.slane %v7542, 1
      %v8037 = vrot.slane %v7546, 1
      %v8038 = vsel %vm735, %v8036, %v8037
      %v8039 = vrot.slane %v7547, 1
      %v8040 = vsel %vm735, %v8028, %v8039
      %v8041 = vrot.slane %v7548, 1
      %v8042 = vsel %vm735, %v8031, %v8041
      %v8043 = vrot.slane %v7549, 1
      %v8044 = vsel %vm735, %v8034, %v8043
      %v8045 = vrot.slane %v7550, 1
      %v8046 = vsel %vm735, %v8037, %v8045
      %v8047 = vrot.slane %v7551, 1
      %v8048 = vrot.slane %v7555, 1
      %v8049 = vsel %vm735, %v8047, %v8048
      %v8050 = vrot.slane %v7552, 1
      %v8051 = vrot.slane %v7556, 1
      %v8052 = vsel %vm735, %v8050, %v8051
      %v8053 = vrot.slane %v7553, 1
      %v8054 = vrot.slane %v7557, 1
      %v8055 = vsel %vm735, %v8053, %v8054
      %v8056 = vrot.slane %v7554, 1
      %v8057 = vrot.slane %v7558, 1
      %v8058 = vsel %vm735, %v8056, %v8057
      %v8059 = vrot.slane %v7559, 1
      %v8060 = vsel %vm735, %v8048, %v8059
      %v8061 = vrot.slane %v7560, 1
      %v8062 = vsel %vm735, %v8051, %v8061
      %v8063 = vrot.slane %v7561, 1
      %v8064 = vsel %vm735, %v8054, %v8063
      %v8065 = vrot.slane %v7562, 1
      %v8066 = vsel %vm735, %v8057, %v8065
      %v8067 = vrot.slane %v7563, 1
      %v8068 = vrot.slane %v7567, 1
      %v8069 = vsel %vm735, %v8067, %v8068
      %v8070 = vrot.slane %v7564, 1
      %v8071 = vrot.slane %v7568, 1
      %v8072 = vsel %vm735, %v8070, %v8071
      %v8073 = vrot.slane %v7565, 1
      %v8074 = vrot.slane %v7569, 1
      %v8075 = vsel %vm735, %v8073, %v8074
      %v8076 = vrot.slane %v7566, 1
      %v8077 = vrot.slane %v7570, 1
      %v8078 = vsel %vm735, %v8076, %v8077
      %v8079 = vrot.slane %v7571, 1
      %v8080 = vsel %vm735, %v8068, %v8079
      %v8081 = vrot.slane %v7572, 1
      %v8082 = vsel %vm735, %v8071, %v8081
      %v8083 = vrot.slane %v7573, 1
      %v8084 = vsel %vm735, %v8074, %v8083
      %v8085 = vrot.slane %v7574, 1
      %v8086 = vsel %vm735, %v8077, %v8085
      %s8215 = scalar_lea.vmem %s1, 3584
      %v8216 = vld [vmem:[%s8215] sm:$0xff]
      %v8217 = vld [vmem:[%s8215 + $0x8] sm:$0xff]
      %v8218 = vld [vmem:[%s8215 + $0x10] sm:$0xff]
      %v8219 = vld [vmem:[%s8215 + $0x18] sm:$0xff]
      %v8220 = vld [vmem:[%s8215 + $0x20] sm:$0xff]
      %v8221 = vld [vmem:[%s8215 + $0x28] sm:$0xff]
      %v8222 = vld [vmem:[%s8215 + $0x30] sm:$0xff]
      %v8223 = vld [vmem:[%s8215 + $0x38] sm:$0xff]
      %v8224 = vld [vmem:[%s8215 + $0x40] sm:$0xff]
      %v8225 = vld [vmem:[%s8215 + $0x48] sm:$0xff]
      %v8226 = vld [vmem:[%s8215 + $0x50] sm:$0xff]
      %v8227 = vld [vmem:[%s8215 + $0x58] sm:$0xff]
      %v8228 = vld [vmem:[%s8215 + $0x60] sm:$0xff]
      %v8229 = vld [vmem:[%s8215 + $0x68] sm:$0xff]
      %v8230 = vld [vmem:[%s8215 + $0x70] sm:$0xff]
      %v8231 = vld [vmem:[%s8215 + $0x78] sm:$0xff]
      %v8232 = vld [vmem:[%s8215 + $0x80] sm:$0xff]
      %v8233 = vld [vmem:[%s8215 + $0x88] sm:$0xff]
      %v8234 = vld [vmem:[%s8215 + $0x90] sm:$0xff]
      %v8235 = vld [vmem:[%s8215 + $0x98] sm:$0xff]
      %v8236 = vld [vmem:[%s8215 + $0xa0] sm:$0xff]
      %v8237 = vld [vmem:[%s8215 + $0xa8] sm:$0xff]
      %v8238 = vld [vmem:[%s8215 + $0xb0] sm:$0xff]
      %v8239 = vld [vmem:[%s8215 + $0xb8] sm:$0xff]
      %v8240 = vld [vmem:[%s8215 + $0xc0] sm:$0xff]
      %v8241 = vld [vmem:[%s8215 + $0xc8] sm:$0xff]
      %v8242 = vld [vmem:[%s8215 + $0xd0] sm:$0xff]
      %v8243 = vld [vmem:[%s8215 + $0xd8] sm:$0xff]
      %v8244 = vld [vmem:[%s8215 + $0xe0] sm:$0xff]
      %v8245 = vld [vmem:[%s8215 + $0xe8] sm:$0xff]
      %v8246 = vld [vmem:[%s8215 + $0xf0] sm:$0xff]
      %v8247 = vld [vmem:[%s8215 + $0xf8] sm:$0xff]
      %v8248 = vld [vmem:[%s8215 + $0x100] sm:$0xff]
      %v8249 = vld [vmem:[%s8215 + $0x108] sm:$0xff]
      %v8250 = vld [vmem:[%s8215 + $0x110] sm:$0xff]
      %v8251 = vld [vmem:[%s8215 + $0x118] sm:$0xff]
      %v8252 = vld [vmem:[%s8215 + $0x120] sm:$0xff]
      %v8253 = vld [vmem:[%s8215 + $0x128] sm:$0xff]
      %v8254 = vld [vmem:[%s8215 + $0x130] sm:$0xff]
      %v8255 = vld [vmem:[%s8215 + $0x138] sm:$0xff]
      %v8256 = vld [vmem:[%s8215 + $0x140] sm:$0xff]
      %v8257 = vld [vmem:[%s8215 + $0x148] sm:$0xff]
      %v8258 = vld [vmem:[%s8215 + $0x150] sm:$0xff]
      %v8259 = vld [vmem:[%s8215 + $0x158] sm:$0xff]
      %v8260 = vld [vmem:[%s8215 + $0x160] sm:$0xff]
      %v8261 = vld [vmem:[%s8215 + $0x168] sm:$0xff]
      %v8262 = vld [vmem:[%s8215 + $0x170] sm:$0xff]
      %v8263 = vld [vmem:[%s8215 + $0x178] sm:$0xff]
      %v8264 = vld [vmem:[%s8215 + $0x180] sm:$0xff]
      %v8265 = vld [vmem:[%s8215 + $0x188] sm:$0xff]
      %v8266 = vld [vmem:[%s8215 + $0x190] sm:$0xff]
      %v8267 = vld [vmem:[%s8215 + $0x198] sm:$0xff]
      %v8268 = vld [vmem:[%s8215 + $0x1a0] sm:$0xff]
      %v8269 = vld [vmem:[%s8215 + $0x1a8] sm:$0xff]
      %v8270 = vld [vmem:[%s8215 + $0x1b0] sm:$0xff]
      %v8271 = vld [vmem:[%s8215 + $0x1b8] sm:$0xff]
      %v8272 = vld [vmem:[%s8215 + $0x1c0] sm:$0xff]
      %v8273 = vld [vmem:[%s8215 + $0x1c8] sm:$0xff]
      %v8274 = vld [vmem:[%s8215 + $0x1d0] sm:$0xff]
      %v8275 = vld [vmem:[%s8215 + $0x1d8] sm:$0xff]
      %v8276 = vld [vmem:[%s8215 + $0x1e0] sm:$0xff]
      %v8277 = vld [vmem:[%s8215 + $0x1e8] sm:$0xff]
      %v8278 = vld [vmem:[%s8215 + $0x1f0] sm:$0xff]
      %v8279 = vld [vmem:[%s8215 + $0x1f8] sm:$0xff]
      %8280 = vmatprep.subr.mxu0 0.0
      %8281 = vmatpush1.msra.mxu0 %v8216
      %8282 = vmatprep.subr.mxu0 0.0
      %8283 = vmatpush1.msra.mxu0 %v8217
      %8284 = vmatprep.subr.mxu0 0.0
      %8285 = vmatpush1.msra.mxu0 %v8218
      %8286 = vmatprep.subr.mxu0 0.0
      %8287 = vmatpush1.msra.mxu0 %v8219
      %8288 = vmatprep.subr.mxu0 0.0
      %8289 = vmatpush1.msra.mxu0 %v8220
      %8290 = vmatprep.subr.mxu0 0.0
      %8291 = vmatpush1.msra.mxu0 %v8221
      %8292 = vmatprep.subr.mxu0 0.0
      %8293 = vmatpush1.msra.mxu0 %v8222
      %8294 = vmatprep.subr.mxu0 0.0
      %8295 = vmatpush1.msra.mxu0 %v8223
      %8296 = vmatprep.subr.mxu0 0.0
      %8297 = vmatpush1.msra.mxu0 %v8224
      %8298 = vmatprep.subr.mxu0 0.0
      %8299 = vmatpush1.msra.mxu0 %v8225
      %8300 = vmatprep.subr.mxu0 0.0
      %8301 = vmatpush1.msra.mxu0 %v8226
      %8302 = vmatprep.subr.mxu0 0.0
      %8303 = vmatpush1.msra.mxu0 %v8227
      %8304 = vmatprep.subr.mxu0 0.0
      %8305 = vmatpush1.msra.mxu0 %v8228
      %8306 = vmatprep.subr.mxu0 0.0
      %8307 = vmatpush1.msra.mxu0 %v8229
      %8308 = vmatprep.subr.mxu0 0.0
      %8309 = vmatpush1.msra.mxu0 %v8230
      %8310 = vmatprep.subr.mxu0 0.0
      %8311 = vmatpush1.msra.mxu0 %v8231
      %8312 = vmatprep.subr.mxu0 0.0
      %8313 = vmatpush1.msra.mxu0 %v8232
      %8314 = vmatprep.subr.mxu0 0.0
      %8315 = vmatpush1.msra.mxu0 %v8233
      %8316 = vmatprep.subr.mxu0 0.0
      %8317 = vmatpush1.msra.mxu0 %v8234
      %8318 = vmatprep.subr.mxu0 0.0
      %8319 = vmatpush1.msra.mxu0 %v8235
      %8320 = vmatprep.subr.mxu0 0.0
      %8321 = vmatpush1.msra.mxu0 %v8236
      %8322 = vmatprep.subr.mxu0 0.0
      %8323 = vmatpush1.msra.mxu0 %v8237
      %8324 = vmatprep.subr.mxu0 0.0
      %8325 = vmatpush1.msra.mxu0 %v8238
      %8326 = vmatprep.subr.mxu0 0.0
      %8327 = vmatpush1.msra.mxu0 %v8239
      %8328 = vmatprep.subr.mxu0 0.0
      %8329 = vmatpush1.msra.mxu0 %v8240
      %8330 = vmatprep.subr.mxu0 0.0
      %8331 = vmatpush1.msra.mxu0 %v8241
      %8332 = vmatprep.subr.mxu0 0.0
      %8333 = vmatpush1.msra.mxu0 %v8242
      %8334 = vmatprep.subr.mxu0 0.0
      %8335 = vmatpush1.msra.mxu0 %v8243
      %8336 = vmatprep.subr.mxu0 0.0
      %8337 = vmatpush1.msra.mxu0 %v8244
      %8338 = vmatprep.subr.mxu0 0.0
      %8339 = vmatpush1.msra.mxu0 %v8245
      %8340 = vmatprep.subr.mxu0 0.0
      %8341 = vmatpush1.msra.mxu0 %v8246
      %8342 = vmatprep.subr.mxu0 0.0
      %8343 = vmatpush1.msra.mxu0 %v8247
      %8344 = vmatprep.mubr.f32.mxu0 %v7772
      %8345 = vmatmul.mubr.f32.gmra.mrb[0].mxu0 %v7769
      %v8346 = vpop.f32.mrb[0].mxu0
      %v8347 = vadd.f32 0.0, %v8346
      %v8348 = vpop.f32.mrb[0].mxu0
      %8349 = vmatprep.mubr.f32.mxu0 %v7782
      %8350 = vmatmul.mubr.f32.gmra.mrb[0].mxu0 %v7780
      %v8351 = vpop.f32.mrb[0].mxu0
      %v8352 = vadd.f32 0.0, %v8351
      %v8353 = vpop.f32.mrb[0].mxu0
      %8354 = vmatprep.mubr.f32.mxu0 %v7792
      %8355 = vmatmul.mubr.f32.gmra.mrb[0].mxu0 %v7789
      %v8356 = vpop.f32.mrb[0].mxu0
      %v8357 = vadd.f32 0.0, %v8356
      %v8358 = vpop.f32.mrb[0].mxu0
      %8359 = vmatprep.mubr.f32.mxu0 %v7802
      %8360 = vmatmul.mubr.f32.gmra.mrb[0].mxu0 %v7800
      %v8361 = vpop.f32.mrb[0].mxu0
      %v8362 = vadd.f32 0.0, %v8361
      %v8363 = vpop.f32.mrb[0].mxu0
      %8364 = vmatprep.mubr.f32.mxu0 %v7812
      %8365 = vmatmul.mubr.f32.gmra.mrb[0].mxu0 %v7809
      %v8366 = vpop.f32.mrb[0].mxu0
      %v8367 = vadd.f32 0.0, %v8366
      %v8368 = vpop.f32.mrb[0].mxu0
      %8369 = vmatprep.mubr.f32.mxu0 %v7822
      %8370 = vmatmul.mubr.f32.gmra.mrb[0].mxu0 %v7820
      %v8371 = vpop.f32.mrb[0].mxu0
      %v8372 = vadd.f32 0.0, %v8371
      %v8373 = vpop.f32.mrb[0].mxu0
      %8374 = vmatprep.mubr.f32.mxu0 %v7832
      %8375 = vmatmul.mubr.f32.gmra.mrb[0].mxu0 %v7829
      %v8376 = vpop.f32.mrb[0].mxu0
      %v8377 = vadd.f32 0.0, %v8376
      %v8378 = vpop.f32.mrb[0].mxu0
      %8379 = vmatprep.mubr.f32.mxu0 %v7842
      %8380 = vmatmul.mubr.f32.gmra.mrb[0].mxu0 %v7840
      %v8381 = vpop.f32.mrb[0].mxu0
      %v8382 = vadd.f32 0.0, %v8381
      %v8383 = vpop.f32.mrb[0].mxu0
      %8384 = vmatprep.mubr.f32.mxu0 %v7852
      %8385 = vmatmul.mubr.f32.gmra.mrb[0].mxu0 %v7849
      %v8386 = vpop.f32.mrb[0].mxu0
      %v8387 = vadd.f32 0.0, %v8386
      %v8388 = vpop.f32.mrb[0].mxu0
      %8389 = vmatprep.mubr.f32.mxu0 %v7862
      %8390 = vmatmul.mubr.f32.gmra.mrb[0].mxu0 %v7860
      %v8391 = vpop.f32.mrb[0].mxu0
      %v8392 = vadd.f32 0.0, %v8391
      %v8393 = vpop.f32.mrb[0].mxu0
      %8394 = vmatprep.mubr.f32.mxu0 %v7872
      %8395 = vmatmul.mubr.f32.gmra.mrb[0].mxu0 %v7869
      %v8396 = vpop.f32.mrb[0].mxu0
      %v8397 = vadd.f32 0.0, %v8396
      %v8398 = vpop.f32.mrb[0].mxu0
      %8399 = vmatprep.mubr.f32.mxu0 %v7882
      %8400 = vmatmul.mubr.f32.gmra.mrb[0].mxu0 %v7880
      %v8401 = vpop.f32.mrb[0].mxu0
      %v8402 = vadd.f32 0.0, %v8401
      %v8403 = vpop.f32.mrb[0].mxu0
      %8404 = vmatprep.mubr.f32.mxu0 %v7892
      %8405 = vmatmul.mubr.f32.gmra.mrb[0].mxu0 %v7889
      %v8406 = vpop.f32.mrb[0].mxu0
      %v8407 = vadd.f32 0.0, %v8406
      %v8408 = vpop.f32.mrb[0].mxu0
      %8409 = vmatprep.mubr.f32.mxu0 %v7902
      %8410 = vmatmul.mubr.f32.gmra.mrb[0].mxu0 %v7900
      %v8411 = vpop.f32.mrb[0].mxu0
      %v8412 = vadd.f32 0.0, %v8411
      %v8413 = vpop.f32.mrb[0].mxu0
      %8414 = vmatprep.mubr.f32.mxu0 %v7912
      %8415 = vmatmul.mubr.f32.gmra.mrb[0].mxu0 %v7909
      %v8416 = vpop.f32.mrb[0].mxu0
      %v8417 = vadd.f32 0.0, %v8416
      %v8418 = vpop.f32.mrb[0].mxu0
      %8419 = vmatprep.mubr.f32.mxu0 %v7922
      %8420 = vmatmul.mubr.f32.gmra.mrb[0].mxu0 %v7920
      %v8421 = vpop.f32.mrb[0].mxu0
      %v8422 = vadd.f32 0.0, %v8421
      %v8423 = vpop.f32.mrb[0].mxu0
      %8424 = vmatprep.mubr.f32.mxu0 %v7932
      %8425 = vmatmul.mubr.f32.gmra.mrb[0].mxu0 %v7929
      %v8426 = vpop.f32.mrb[0].mxu0
      %v8427 = vadd.f32 0.0, %v8426
      %v8428 = vpop.f32.mrb[0].mxu0
      %8429 = vmatprep.mubr.f32.mxu0 %v7942
      %8430 = vmatmul.mubr.f32.gmra.mrb[0].mxu0 %v7940
      %v8431 = vpop.f32.mrb[0].mxu0
      %v8432 = vadd.f32 0.0, %v8431
      %v8433 = vpop.f32.mrb[0].mxu0
      %8434 = vmatprep.mubr.f32.mxu0 %v7952
      %8435 = vmatmul.mubr.f32.gmra.mrb[0].mxu0 %v7949
      %v8436 = vpop.f32.mrb[0].mxu0
      %v8437 = vadd.f32 0.0, %v8436
      %v8438 = vpop.f32.mrb[0].mxu0
      %8439 = vmatprep.mubr.f32.mxu0 %v7962
      %8440 = vmatmul.mubr.f32.gmra.mrb[0].mxu0 %v7960
      %v8441 = vpop.f32.mrb[0].mxu0
      %v8442 = vadd.f32 0.0, %v8441
      %v8443 = vpop.f32.mrb[0].mxu0
      %8444 = vmatprep.mubr.f32.mxu0 %v7972
      %8445 = vmatmul.mubr.f32.gmra.mrb[0].mxu0 %v7969
      %v8446 = vpop.f32.mrb[0].mxu0
      %v8447 = vadd.f32 0.0, %v8446
      %v8448 = vpop.f32.mrb[0].mxu0
      %8449 = vmatprep.mubr.f32.mxu0 %v7982
      %8450 = vmatmul.mubr.f32.gmra.mrb[0].mxu0 %v7980
      %v8451 = vpop.f32.mrb[0].mxu0
      %v8452 = vadd.f32 0.0, %v8451
      %v8453 = vpop.f32.mrb[0].mxu0
      %8454 = vmatprep.mubr.f32.mxu0 %v7992
      %8455 = vmatmul.mubr.f32.gmra.mrb[0].mxu0 %v7989
      %v8456 = vpop.f32.mrb[0].mxu0
      %v8457 = vadd.f32 0.0, %v8456
      %v8458 = vpop.f32.mrb[0].mxu0
      %8459 = vmatprep.mubr.f32.mxu0 %v8002
      %8460 = vmatmul.mubr.f32.gmra.mrb[0].mxu0 %v8000
      %v8461 = vpop.f32.mrb[0].mxu0
      %v8462 = vadd.f32 0.0, %v8461
      %v8463 = vpop.f32.mrb[0].mxu0
      %8464 = vmatprep.mubr.f32.mxu0 %v8012
      %8465 = vmatmul.mubr.f32.gmra.mrb[0].mxu0 %v8009
      %v8466 = vpop.f32.mrb[0].mxu0
      %v8467 = vadd.f32 0.0, %v8466
      %v8468 = vpop.f32.mrb[0].mxu0
      %8469 = vmatprep.mubr.f32.mxu0 %v8022
      %8470 = vmatmul.mubr.f32.gmra.mrb[0].mxu0 %v8020
      %v8471 = vpop.f32.mrb[0].mxu0
      %v8472 = vadd.f32 0.0, %v8471
      %v8473 = vpop.f32.mrb[0].mxu0
      %8474 = vmatprep.mubr.f32.mxu0 %v8032
      %8475 = vmatmul.mubr.f32.gmra.mrb[0].mxu0 %v8029
      %v8476 = vpop.f32.mrb[0].mxu0
      %v8477 = vadd.f32 0.0, %v8476
      %v8478 = vpop.f32.mrb[0].mxu0
      %8479 = vmatprep.mubr.f32.mxu0 %v8042
      %8480 = vmatmul.mubr.f32.gmra.mrb[0].mxu0 %v8040
      %v8481 = vpop.f32.mrb[0].mxu0
      %v8482 = vadd.f32 0.0, %v8481
      %v8483 = vpop.f32.mrb[0].mxu0
      %8484 = vmatprep.mubr.f32.mxu0 %v8052
      %8485 = vmatmul.mubr.f32.gmra.mrb[0].mxu0 %v8049
      %v8486 = vpop.f32.mrb[0].mxu0
      %v8487 = vadd.f32 0.0, %v8486
      %v8488 = vpop.f32.mrb[0].mxu0
      %8489 = vmatprep.mubr.f32.mxu0 %v8062
      %8490 = vmatmul.mubr.f32.gmra.mrb[0].mxu0 %v8060
      %v8491 = vpop.f32.mrb[0].mxu0
      %v8492 = vadd.f32 0.0, %v8491
      %v8493 = vpop.f32.mrb[0].mxu0
      %8494 = vmatprep.mubr.f32.mxu0 %v8072
      %8495 = vmatmul.mubr.f32.gmra.mrb[0].mxu0 %v8069
      %v8496 = vpop.f32.mrb[0].mxu0
      %v8497 = vadd.f32 0.0, %v8496
      %v8498 = vpop.f32.mrb[0].mxu0
      %8499 = vmatprep.mubr.f32.mxu0 %v8082
      %8500 = vmatmul.mubr.f32.gmra.mrb[0].mxu0 %v8080
      %v8501 = vpop.f32.mrb[0].mxu0
      %v8502 = vadd.f32 0.0, %v8501
      %v8503 = vpop.f32.mrb[0].mxu0
      %8504 = vdwg.mxu0
      %8505 = vmatprep.subr.mxu0 0.0
      %8506 = vmatpush1.msra.mxu0 %v8248
      %8507 = vmatprep.subr.mxu0 0.0
      %8508 = vmatpush1.msra.mxu0 %v8249
      %8509 = vmatprep.subr.mxu0 0.0
      %8510 = vmatpush1.msra.mxu0 %v8250
      %8511 = vmatprep.subr.mxu0 0.0
      %8512 = vmatpush1.msra.mxu0 %v8251
      %8513 = vmatprep.subr.mxu0 0.0
      %8514 = vmatpush1.msra.mxu0 %v8252
      %8515 = vmatprep.subr.mxu0 0.0
      %8516 = vmatpush1.msra.mxu0 %v8253
      %8517 = vmatprep.subr.mxu0 0.0
      %8518 = vmatpush1.msra.mxu0 %v8254
      %8519 = vmatprep.subr.mxu0 0.0
      %8520 = vmatpush1.msra.mxu0 %v8255
      %8521 = vmatprep.subr.mxu0 0.0
      %8522 = vmatpush1.msra.mxu0 %v8256
      %8523 = vmatprep.subr.mxu0 0.0
      %8524 = vmatpush1.msra.mxu0 %v8257
      %8525 = vmatprep.subr.mxu0 0.0
      %8526 = vmatpush1.msra.mxu0 %v8258
      %8527 = vmatprep.subr.mxu0 0.0
      %8528 = vmatpush1.msra.mxu0 %v8259
      %8529 = vmatprep.subr.mxu0 0.0
      %8530 = vmatpush1.msra.mxu0 %v8260
      %8531 = vmatprep.subr.mxu0 0.0
      %8532 = vmatpush1.msra.mxu0 %v8261
      %8533 = vmatprep.subr.mxu0 0.0
      %8534 = vmatpush1.msra.mxu0 %v8262
      %8535 = vmatprep.subr.mxu0 0.0
      %8536 = vmatpush1.msra.mxu0 %v8263
      %8537 = vmatprep.subr.mxu0 0.0
      %8538 = vmatpush1.msra.mxu0 %v8264
      %8539 = vmatprep.subr.mxu0 0.0
      %8540 = vmatpush1.msra.mxu0 %v8265
      %8541 = vmatprep.subr.mxu0 0.0
      %8542 = vmatpush1.msra.mxu0 %v8266
      %8543 = vmatprep.subr.mxu0 0.0
      %8544 = vmatpush1.msra.mxu0 %v8267
      %8545 = vmatprep.subr.mxu0 0.0
      %8546 = vmatpush1.msra.mxu0 %v8268
      %8547 = vmatprep.subr.mxu0 0.0
      %8548 = vmatpush1.msra.mxu0 %v8269
      %8549 = vmatprep.subr.mxu0 0.0
      %8550 = vmatpush1.msra.mxu0 %v8270
      %8551 = vmatprep.subr.mxu0 0.0
      %8552 = vmatpush1.msra.mxu0 %v8271
      %8553 = vmatprep.subr.mxu0 0.0
      %8554 = vmatpush1.msra.mxu0 %v8272
      %8555 = vmatprep.subr.mxu0 0.0
      %8556 = vmatpush1.msra.mxu0 %v8273
      %8557 = vmatprep.subr.mxu0 0.0
      %8558 = vmatpush1.msra.mxu0 %v8274
      %8559 = vmatprep.subr.mxu0 0.0
      %8560 = vmatpush1.msra.mxu0 %v8275
      %8561 = vmatprep.subr.mxu0 0.0
      %8562 = vmatpush1.msra.mxu0 %v8276
      %8563 = vmatprep.subr.mxu0 0.0
      %8564 = vmatpush1.msra.mxu0 %v8277
      %8565 = vmatprep.subr.mxu0 0.0
      %8566 = vmatpush1.msra.mxu0 %v8278
      %8567 = vmatprep.subr.mxu0 0.0
      %8568 = vmatpush1.msra.mxu0 %v8279
      %8569 = vmatprep.mubr.f32.mxu0 %v7778
      %8570 = vmatmul.mubr.f32.gmra.mrb[0].mxu0 %v7775
      %v8571 = vpop.f32.mrb[0].mxu0
      %v8572 = vadd.f32 %v8347, %v8571
      %v8573 = vpop.f32.mrb[0].mxu0
      %8574 = vmatprep.mubr.f32.mxu0 %v7786
      %8575 = vmatmul.mubr.f32.gmra.mrb[0].mxu0 %v7784
      %v8576 = vpop.f32.mrb[0].mxu0
      %v8577 = vadd.f32 %v8352, %v8576
      %v8578 = vpop.f32.mrb[0].mxu0
      %8579 = vmatprep.mubr.f32.mxu0 %v7798
      %8580 = vmatmul.mubr.f32.gmra.mrb[0].mxu0 %v7795
      %v8581 = vpop.f32.mrb[0].mxu0
      %v8582 = vadd.f32 %v8357, %v8581
      %v8583 = vpop.f32.mrb[0].mxu0
      %8584 = vmatprep.mubr.f32.mxu0 %v7806
      %8585 = vmatmul.mubr.f32.gmra.mrb[0].mxu0 %v7804
      %v8586 = vpop.f32.mrb[0].mxu0
      %v8587 = vadd.f32 %v8362, %v8586
      %v8588 = vpop.f32.mrb[0].mxu0
      %8589 = vmatprep.mubr.f32.mxu0 %v7818
      %8590 = vmatmul.mubr.f32.gmra.mrb[0].mxu0 %v7815
      %v8591 = vpop.f32.mrb[0].mxu0
      %v8592 = vadd.f32 %v8367, %v8591
      %v8593 = vpop.f32.mrb[0].mxu0
      %8594 = vmatprep.mubr.f32.mxu0 %v7826
      %8595 = vmatmul.mubr.f32.gmra.mrb[0].mxu0 %v7824
      %v8596 = vpop.f32.mrb[0].mxu0
      %v8597 = vadd.f32 %v8372, %v8596
      %v8598 = vpop.f32.mrb[0].mxu0
      %8599 = vmatprep.mubr.f32.mxu0 %v7838
      %8600 = vmatmul.mubr.f32.gmra.mrb[0].mxu0 %v7835
      %v8601 = vpop.f32.mrb[0].mxu0
      %v8602 = vadd.f32 %v8377, %v8601
      %v8603 = vpop.f32.mrb[0].mxu0
      %8604 = vmatprep.mubr.f32.mxu0 %v7846
      %8605 = vmatmul.mubr.f32.gmra.mrb[0].mxu0 %v7844
      %v8606 = vpop.f32.mrb[0].mxu0
      %v8607 = vadd.f32 %v8382, %v8606
      %v8608 = vpop.f32.mrb[0].mxu0
      %8609 = vmatprep.mubr.f32.mxu0 %v7858
      %8610 = vmatmul.mubr.f32.gmra.mrb[0].mxu0 %v7855
      %v8611 = vpop.f32.mrb[0].mxu0
      %v8612 = vadd.f32 %v8387, %v8611
      %v8613 = vpop.f32.mrb[0].mxu0
      %8614 = vmatprep.mubr.f32.mxu0 %v7866
      %8615 = vmatmul.mubr.f32.gmra.mrb[0].mxu0 %v7864
      %v8616 = vpop.f32.mrb[0].mxu0
      %v8617 = vadd.f32 %v8392, %v8616
      %v8618 = vpop.f32.mrb[0].mxu0
      %8619 = vmatprep.mubr.f32.mxu0 %v7878
      %8620 = vmatmul.mubr.f32.gmra.mrb[0].mxu0 %v7875
      %v8621 = vpop.f32.mrb[0].mxu0
      %v8622 = vadd.f32 %v8397, %v8621
      %v8623 = vpop.f32.mrb[0].mxu0
      %8624 = vmatprep.mubr.f32.mxu0 %v7886
      %8625 = vmatmul.mubr.f32.gmra.mrb[0].mxu0 %v7884
      %v8626 = vpop.f32.mrb[0].mxu0
      %v8627 = vadd.f32 %v8402, %v8626
      %v8628 = vpop.f32.mrb[0].mxu0
      %8629 = vmatprep.mubr.f32.mxu0 %v7898
      %8630 = vmatmul.mubr.f32.gmra.mrb[0].mxu0 %v7895
      %v8631 = vpop.f32.mrb[0].mxu0
      %v8632 = vadd.f32 %v8407, %v8631
      %v8633 = vpop.f32.mrb[0].mxu0
      %8634 = vmatprep.mubr.f32.mxu0 %v7906
      %8635 = vmatmul.mubr.f32.gmra.mrb[0].mxu0 %v7904
      %v8636 = vpop.f32.mrb[0].mxu0
      %v8637 = vadd.f32 %v8412, %v8636
      %v8638 = vpop.f32.mrb[0].mxu0
      %8639 = vmatprep.mubr.f32.mxu0 %v7918
      %8640 = vmatmul.mubr.f32.gmra.mrb[0].mxu0 %v7915
      %v8641 = vpop.f32.mrb[0].mxu0
      %v8642 = vadd.f32 %v8417, %v8641
      %v8643 = vpop.f32.mrb[0].mxu0
      %8644 = vmatprep.mubr.f32.mxu0 %v7926
      %8645 = vmatmul.mubr.f32.gmra.mrb[0].mxu0 %v7924
      %v8646 = vpop.f32.mrb[0].mxu0
      %v8647 = vadd.f32 %v8422, %v8646
      %v8648 = vpop.f32.mrb[0].mxu0
      %8649 = vmatprep.mubr.f32.mxu0 %v7938
      %8650 = vmatmul.mubr.f32.gmra.mrb[0].mxu0 %v7935
      %v8651 = vpop.f32.mrb[0].mxu0
      %v8652 = vadd.f32 %v8427, %v8651
      %v8653 = vpop.f32.mrb[0].mxu0
      %8654 = vmatprep.mubr.f32.mxu0 %v7946
      %8655 = vmatmul.mubr.f32.gmra.mrb[0].mxu0 %v7944
      %v8656 = vpop.f32.mrb[0].mxu0
      %v8657 = vadd.f32 %v8432, %v8656
      %v8658 = vpop.f32.mrb[0].mxu0
      %8659 = vmatprep.mubr.f32.mxu0 %v7958
      %8660 = vmatmul.mubr.f32.gmra.mrb[0].mxu0 %v7955
      %v8661 = vpop.f32.mrb[0].mxu0
      %v8662 = vadd.f32 %v8437, %v8661
      %v8663 = vpop.f32.mrb[0].mxu0
      %8664 = vmatprep.mubr.f32.mxu0 %v7966
      %8665 = vmatmul.mubr.f32.gmra.mrb[0].mxu0 %v7964
      %v8666 = vpop.f32.mrb[0].mxu0
      %v8667 = vadd.f32 %v8442, %v8666
      %v8668 = vpop.f32.mrb[0].mxu0
      %8669 = vmatprep.mubr.f32.mxu0 %v7978
      %8670 = vmatmul.mubr.f32.gmra.mrb[0].mxu0 %v7975
      %v8671 = vpop.f32.mrb[0].mxu0
      %v8672 = vadd.f32 %v8447, %v8671
      %v8673 = vpop.f32.mrb[0].mxu0
      %8674 = vmatprep.mubr.f32.mxu0 %v7986
      %8675 = vmatmul.mubr.f32.gmra.mrb[0].mxu0 %v7984
      %v8676 = vpop.f32.mrb[0].mxu0
      %v8677 = vadd.f32 %v8452, %v8676
      %v8678 = vpop.f32.mrb[0].mxu0
      %8679 = vmatprep.mubr.f32.mxu0 %v7998
      %8680 = vmatmul.mubr.f32.gmra.mrb[0].mxu0 %v7995
      %v8681 = vpop.f32.mrb[0].mxu0
      %v8682 = vadd.f32 %v8457, %v8681
      %v8683 = vpop.f32.mrb[0].mxu0
      %8684 = vmatprep.mubr.f32.mxu0 %v8006
      %8685 = vmatmul.mubr.f32.gmra.mrb[0].mxu0 %v8004
      %v8686 = vpop.f32.mrb[0].mxu0
      %v8687 = vadd.f32 %v8462, %v8686
      %v8688 = vpop.f32.mrb[0].mxu0
      %8689 = vmatprep.mubr.f32.mxu0 %v8018
      %8690 = vmatmul.mubr.f32.gmra.mrb[0].mxu0 %v8015
      %v8691 = vpop.f32.mrb[0].mxu0
      %v8692 = vadd.f32 %v8467, %v8691
      %v8693 = vpop.f32.mrb[0].mxu0
      %8694 = vmatprep.mubr.f32.mxu0 %v8026
      %8695 = vmatmul.mubr.f32.gmra.mrb[0].mxu0 %v8024
      %v8696 = vpop.f32.mrb[0].mxu0
      %v8697 = vadd.f32 %v8472, %v8696
      %v8698 = vpop.f32.mrb[0].mxu0
      %8699 = vmatprep.mubr.f32.mxu0 %v8038
      %8700 = vmatmul.mubr.f32.gmra.mrb[0].mxu0 %v8035
      %v8701 = vpop.f32.mrb[0].mxu0
      %v8702 = vadd.f32 %v8477, %v8701
      %v8703 = vpop.f32.mrb[0].mxu0
      %8704 = vmatprep.mubr.f32.mxu0 %v8046
      %8705 = vmatmul.mubr.f32.gmra.mrb[0].mxu0 %v8044
      %v8706 = vpop.f32.mrb[0].mxu0
      %v8707 = vadd.f32 %v8482, %v8706
      %v8708 = vpop.f32.mrb[0].mxu0
      %8709 = vmatprep.mubr.f32.mxu0 %v8058
      %8710 = vmatmul.mubr.f32.gmra.mrb[0].mxu0 %v8055
      %v8711 = vpop.f32.mrb[0].mxu0
      %v8712 = vadd.f32 %v8487, %v8711
      %v8713 = vpop.f32.mrb[0].mxu0
      %8714 = vmatprep.mubr.f32.mxu0 %v8066
      %8715 = vmatmul.mubr.f32.gmra.mrb[0].mxu0 %v8064
      %v8716 = vpop.f32.mrb[0].mxu0
      %v8717 = vadd.f32 %v8492, %v8716
      %v8718 = vpop.f32.mrb[0].mxu0
      %8719 = vmatprep.mubr.f32.mxu0 %v8078
      %8720 = vmatmul.mubr.f32.gmra.mrb[0].mxu0 %v8075
      %v8721 = vpop.f32.mrb[0].mxu0
      %v8722 = vadd.f32 %v8497, %v8721
      %v8723 = vpop.f32.mrb[0].mxu0
      %8724 = vmatprep.mubr.f32.mxu0 %v8086
      %8725 = vmatmul.mubr.f32.gmra.mrb[0].mxu0 %v8084
      %v8726 = vpop.f32.mrb[0].mxu0
      %v8727 = vadd.f32 %v8502, %v8726
      %v8728 = vpop.f32.mrb[0].mxu0
      %8729 = vdwg.mxu0
      %v8730 = vadd.f32 %v7351, %v8572
      %v8731 = vadd.f32 %v7352, %v8577
      %v8732 = vadd.f32 %v7353, %v8582
      %v8733 = vadd.f32 %v7354, %v8587
      %v8734 = vadd.f32 %v7355, %v8592
      %v8735 = vadd.f32 %v7356, %v8597
      %v8736 = vadd.f32 %v7357, %v8602
      %v8737 = vadd.f32 %v7358, %v8607
      %v8738 = vadd.f32 %v7359, %v8612
      %v8739 = vadd.f32 %v7360, %v8617
      %v8740 = vadd.f32 %v7361, %v8622
      %v8741 = vadd.f32 %v7362, %v8627
      %v8742 = vadd.f32 %v7363, %v8632
      %v8743 = vadd.f32 %v7364, %v8637
      %v8744 = vadd.f32 %v7365, %v8642
      %v8745 = vadd.f32 %v7366, %v8647
      %v8746 = vadd.f32 %v7367, %v8652
      %v8747 = vadd.f32 %v7368, %v8657
      %v8748 = vadd.f32 %v7369, %v8662
      %v8749 = vadd.f32 %v7370, %v8667
      %v8750 = vadd.f32 %v7371, %v8672
      %v8751 = vadd.f32 %v7372, %v8677
      %v8752 = vadd.f32 %v7373, %v8682
      %v8753 = vadd.f32 %v7374, %v8687
      %v8754 = vadd.f32 %v7375, %v8692
      %v8755 = vadd.f32 %v7376, %v8697
      %v8756 = vadd.f32 %v7377, %v8702
      %v8757 = vadd.f32 %v7378, %v8707
      %v8758 = vadd.f32 %v7379, %v8712
      %v8759 = vadd.f32 %v7380, %v8717
      %v8760 = vadd.f32 %v7381, %v8722
      %v8761 = vadd.f32 %v7382, %v8727
      %v8762 = vld [vmem:[%s6707] sm:$0xfc]
      %v8763 = vld [vmem:[%s6707 + $0x8] sm:$0xfc]
      %v8764 = vld [vmem:[%s6707 + $0x10] sm:$0xfc]
      %v8765 = vld [vmem:[%s6707 + $0x18] sm:$0xfc]
      %v8766 = vld [vmem:[%s6707 + $0x40] sm:$0x3]
      %v8767 = vld [vmem:[%s6707 + $0x48] sm:$0x3]
      %v8768 = vld [vmem:[%s6707 + $0x50] sm:$0x3]
      %v8769 = vld [vmem:[%s6707 + $0x58] sm:$0x3]
      %v8770 = vld [vmem:[%s6707 + $0x60] sm:$0xfc]
      %v8771 = vld [vmem:[%s6707 + $0x68] sm:$0xfc]
      %v8772 = vld [vmem:[%s6707 + $0x70] sm:$0xfc]
      %v8773 = vld [vmem:[%s6707 + $0x78] sm:$0xfc]
      %v8774 = vld [vmem:[%s6707 + $0xa0] sm:$0x3]
      %v8775 = vld [vmem:[%s6707 + $0xa8] sm:$0x3]
      %v8776 = vld [vmem:[%s6707 + $0xb0] sm:$0x3]
      %v8777 = vld [vmem:[%s6707 + $0xb8] sm:$0x3]
      %v8778 = vld [vmem:[%s6707 + $0xc0] sm:$0xfc]
      %v8779 = vld [vmem:[%s6707 + $0xc8] sm:$0xfc]
      %v8780 = vld [vmem:[%s6707 + $0xd0] sm:$0xfc]
      %v8781 = vld [vmem:[%s6707 + $0xd8] sm:$0xfc]
      %v8782 = vld [vmem:[%s6707 + $0x100] sm:$0x3]
      %v8783 = vld [vmem:[%s6707 + $0x108] sm:$0x3]
      %v8784 = vld [vmem:[%s6707 + $0x110] sm:$0x3]
      %v8785 = vld [vmem:[%s6707 + $0x118] sm:$0x3]
      %v8786 = vld [vmem:[%s6707 + $0x120] sm:$0xfc]
      %v8787 = vld [vmem:[%s6707 + $0x128] sm:$0xfc]
      %v8788 = vld [vmem:[%s6707 + $0x130] sm:$0xfc]
      %v8789 = vld [vmem:[%s6707 + $0x138] sm:$0xfc]
      %v8790 = vld [vmem:[%s6707 + $0x160] sm:$0x3]
      %v8791 = vld [vmem:[%s6707 + $0x168] sm:$0x3]
      %v8792 = vld [vmem:[%s6707 + $0x170] sm:$0x3]
      %v8793 = vld [vmem:[%s6707 + $0x178] sm:$0x3]
      %v8794 = vld [vmem:[%s6707 + $0x180] sm:$0xfc]
      %v8795 = vld [vmem:[%s6707 + $0x188] sm:$0xfc]
      %v8796 = vld [vmem:[%s6707 + $0x190] sm:$0xfc]
      %v8797 = vld [vmem:[%s6707 + $0x198] sm:$0xfc]
      %v8798 = vld [vmem:[%s6707 + $0x1c0] sm:$0x3]
      %v8799 = vld [vmem:[%s6707 + $0x1c8] sm:$0x3]
      %v8800 = vld [vmem:[%s6707 + $0x1d0] sm:$0x3]
      %v8801 = vld [vmem:[%s6707 + $0x1d8] sm:$0x3]
      %v8802 = vld [vmem:[%s6707 + $0x1e0] sm:$0xfc]
      %v8803 = vld [vmem:[%s6707 + $0x1e8] sm:$0xfc]
      %v8804 = vld [vmem:[%s6707 + $0x1f0] sm:$0xfc]
      %v8805 = vld [vmem:[%s6707 + $0x1f8] sm:$0xfc]
      %v8806 = vld [vmem:[%s6707 + $0x220] sm:$0x3]
      %v8807 = vld [vmem:[%s6707 + $0x228] sm:$0x3]
      %v8808 = vld [vmem:[%s6707 + $0x230] sm:$0x3]
      %v8809 = vld [vmem:[%s6707 + $0x238] sm:$0x3]
      %v8810 = vld [vmem:[%s6707 + $0x240] sm:$0xfc]
      %v8811 = vld [vmem:[%s6707 + $0x248] sm:$0xfc]
      %v8812 = vld [vmem:[%s6707 + $0x250] sm:$0xfc]
      %v8813 = vld [vmem:[%s6707 + $0x258] sm:$0xfc]
      %v8814 = vld [vmem:[%s6707 + $0x280] sm:$0x3]
      %v8815 = vld [vmem:[%s6707 + $0x288] sm:$0x3]
      %v8816 = vld [vmem:[%s6707 + $0x290] sm:$0x3]
      %v8817 = vld [vmem:[%s6707 + $0x298] sm:$0x3]
      %v8818 = vld [vmem:[%s6707 + $0x2a0] sm:$0xfc]
      %v8819 = vld [vmem:[%s6707 + $0x2a8] sm:$0xfc]
      %v8820 = vld [vmem:[%s6707 + $0x2b0] sm:$0xfc]
      %v8821 = vld [vmem:[%s6707 + $0x2b8] sm:$0xfc]
      %v8822 = vld [vmem:[%s6707 + $0x2e0] sm:$0x3]
      %v8823 = vld [vmem:[%s6707 + $0x2e8] sm:$0x3]
      %v8824 = vld [vmem:[%s6707 + $0x2f0] sm:$0x3]
      %v8825 = vld [vmem:[%s6707 + $0x2f8] sm:$0x3]
      %v8826 = vld [vmem:[%s6707 + $0x300] sm:$0xfc]
      %v8827 = vld [vmem:[%s6707 + $0x308] sm:$0xfc]
      %v8828 = vld [vmem:[%s6707 + $0x310] sm:$0xfc]
      %v8829 = vld [vmem:[%s6707 + $0x318] sm:$0xfc]
      %v8830 = vld [vmem:[%s6707 + $0x340] sm:$0x3]
      %v8831 = vld [vmem:[%s6707 + $0x348] sm:$0x3]
      %v8832 = vld [vmem:[%s6707 + $0x350] sm:$0x3]
      %v8833 = vld [vmem:[%s6707 + $0x358] sm:$0x3]
      %v8834 = vld [vmem:[%s6707 + $0x360] sm:$0xfc]
      %v8835 = vld [vmem:[%s6707 + $0x368] sm:$0xfc]
      %v8836 = vld [vmem:[%s6707 + $0x370] sm:$0xfc]
      %v8837 = vld [vmem:[%s6707 + $0x378] sm:$0xfc]
      %v8838 = vld [vmem:[%s6707 + $0x3a0] sm:$0x3]
      %v8839 = vld [vmem:[%s6707 + $0x3a8] sm:$0x3]
      %v8840 = vld [vmem:[%s6707 + $0x3b0] sm:$0x3]
      %v8841 = vld [vmem:[%s6707 + $0x3b8] sm:$0x3]
      %v8842 = vld [vmem:[%s6707 + $0x3c0] sm:$0xfc]
      %v8843 = vld [vmem:[%s6707 + $0x3c8] sm:$0xfc]
      %v8844 = vld [vmem:[%s6707 + $0x3d0] sm:$0xfc]
      %v8845 = vld [vmem:[%s6707 + $0x3d8] sm:$0xfc]
      %v8846 = vld [vmem:[%s6707 + $0x400] sm:$0x3]
      %v8847 = vld [vmem:[%s6707 + $0x408] sm:$0x3]
      %v8848 = vld [vmem:[%s6707 + $0x410] sm:$0x3]
      %v8849 = vld [vmem:[%s6707 + $0x418] sm:$0x3]
      %v8850 = vld [vmem:[%s6707 + $0x420] sm:$0xfc]
      %v8851 = vld [vmem:[%s6707 + $0x428] sm:$0xfc]
      %v8852 = vld [vmem:[%s6707 + $0x430] sm:$0xfc]
      %v8853 = vld [vmem:[%s6707 + $0x438] sm:$0xfc]
      %v8854 = vld [vmem:[%s6707 + $0x460] sm:$0x3]
      %v8855 = vld [vmem:[%s6707 + $0x468] sm:$0x3]
      %v8856 = vld [vmem:[%s6707 + $0x470] sm:$0x3]
      %v8857 = vld [vmem:[%s6707 + $0x478] sm:$0x3]
      %v8858 = vld [vmem:[%s6707 + $0x480] sm:$0xfc]
      %v8859 = vld [vmem:[%s6707 + $0x488] sm:$0xfc]
      %v8860 = vld [vmem:[%s6707 + $0x490] sm:$0xfc]
      %v8861 = vld [vmem:[%s6707 + $0x498] sm:$0xfc]
      %v8862 = vld [vmem:[%s6707 + $0x4c0] sm:$0x3]
      %v8863 = vld [vmem:[%s6707 + $0x4c8] sm:$0x3]
      %v8864 = vld [vmem:[%s6707 + $0x4d0] sm:$0x3]
      %v8865 = vld [vmem:[%s6707 + $0x4d8] sm:$0x3]
      %v8866 = vld [vmem:[%s6707 + $0x4e0] sm:$0xfc]
      %v8867 = vld [vmem:[%s6707 + $0x4e8] sm:$0xfc]
      %v8868 = vld [vmem:[%s6707 + $0x4f0] sm:$0xfc]
      %v8869 = vld [vmem:[%s6707 + $0x4f8] sm:$0xfc]
      %v8870 = vld [vmem:[%s6707 + $0x520] sm:$0x3]
      %v8871 = vld [vmem:[%s6707 + $0x528] sm:$0x3]
      %v8872 = vld [vmem:[%s6707 + $0x530] sm:$0x3]
      %v8873 = vld [vmem:[%s6707 + $0x538] sm:$0x3]
      %v8874 = vld [vmem:[%s6707 + $0x540] sm:$0xfc]
      %v8875 = vld [vmem:[%s6707 + $0x548] sm:$0xfc]
      %v8876 = vld [vmem:[%s6707 + $0x550] sm:$0xfc]
      %v8877 = vld [vmem:[%s6707 + $0x558] sm:$0xfc]
      %v8878 = vld [vmem:[%s6707 + $0x580] sm:$0x3]
      %v8879 = vld [vmem:[%s6707 + $0x588] sm:$0x3]
      %v8880 = vld [vmem:[%s6707 + $0x590] sm:$0x3]
      %v8881 = vld [vmem:[%s6707 + $0x598] sm:$0x3]
      %v8882 = vld [vmem:[%s6707 + $0x5a0] sm:$0xfc]
      %v8883 = vld [vmem:[%s6707 + $0x5a8] sm:$0xfc]
      %v8884 = vld [vmem:[%s6707 + $0x5b0] sm:$0xfc]
      %v8885 = vld [vmem:[%s6707 + $0x5b8] sm:$0xfc]
      %v8886 = vld [vmem:[%s6707 + $0x5e0] sm:$0x3]
      %v8887 = vld [vmem:[%s6707 + $0x5e8] sm:$0x3]
      %v8888 = vld [vmem:[%s6707 + $0x5f0] sm:$0x3]
      %v8889 = vld [vmem:[%s6707 + $0x5f8] sm:$0x3]
      %v9018 = vrot.slane %v8762, 2
      %v9019 = vrot.slane %v7387, 2
      %v9020 = vsel %vm2405, %v9018, %v9019
      %v9021 = vrot.slane %v8763, 2
      %v9022 = vrot.slane %v7388, 2
      %v9023 = vsel %vm2405, %v9021, %v9022
      %v9024 = vrot.slane %v8764, 2
      %v9025 = vrot.slane %v7389, 2
      %v9026 = vsel %vm2405, %v9024, %v9025
      %v9027 = vrot.slane %v8765, 2
      %v9028 = vrot.slane %v7390, 2
      %v9029 = vsel %vm2405, %v9027, %v9028
      %v9030 = vrot.slane %v8766, 2
      %v9031 = vsel %vm2405, %v9019, %v9030
      %v9032 = vrot.slane %v8767, 2
      %v9033 = vsel %vm2405, %v9022, %v9032
      %v9034 = vrot.slane %v8768, 2
      %v9035 = vsel %vm2405, %v9025, %v9034
      %v9036 = vrot.slane %v8769, 2
      %v9037 = vsel %vm2405, %v9028, %v9036
      %v9038 = vrot.slane %v8770, 2
      %v9039 = vrot.slane %v7399, 2
      %v9040 = vsel %vm2405, %v9038, %v9039
      %v9041 = vrot.slane %v8771, 2
      %v9042 = vrot.slane %v7400, 2
      %v9043 = vsel %vm2405, %v9041, %v9042
      %v9044 = vrot.slane %v8772, 2
      %v9045 = vrot.slane %v7401, 2
      %v9046 = vsel %vm2405, %v9044, %v9045
      %v9047 = vrot.slane %v8773, 2
      %v9048 = vrot.slane %v7402, 2
      %v9049 = vsel %vm2405, %v9047, %v9048
      %v9050 = vrot.slane %v8774, 2
      %v9051 = vsel %vm2405, %v9039, %v9050
      %v9052 = vrot.slane %v8775, 2
      %v9053 = vsel %vm2405, %v9042, %v9052
      %v9054 = vrot.slane %v8776, 2
      %v9055 = vsel %vm2405, %v9045, %v9054
      %v9056 = vrot.slane %v8777, 2
      %v9057 = vsel %vm2405, %v9048, %v9056
      %v9058 = vrot.slane %v8778, 2
      %v9059 = vrot.slane %v7411, 2
      %v9060 = vsel %vm2405, %v9058, %v9059
      %v9061 = vrot.slane %v8779, 2
      %v9062 = vrot.slane %v7412, 2
      %v9063 = vsel %vm2405, %v9061, %v9062
      %v9064 = vrot.slane %v8780, 2
      %v9065 = vrot.slane %v7413, 2
      %v9066 = vsel %vm2405, %v9064, %v9065
      %v9067 = vrot.slane %v8781, 2
      %v9068 = vrot.slane %v7414, 2
      %v9069 = vsel %vm2405, %v9067, %v9068
      %v9070 = vrot.slane %v8782, 2
      %v9071 = vsel %vm2405, %v9059, %v9070
      %v9072 = vrot.slane %v8783, 2
      %v9073 = vsel %vm2405, %v9062, %v9072
      %v9074 = vrot.slane %v8784, 2
      %v9075 = vsel %vm2405, %v9065, %v9074
      %v9076 = vrot.slane %v8785, 2
      %v9077 = vsel %vm2405, %v9068, %v9076
      %v9078 = vrot.slane %v8786, 2
      %v9079 = vrot.slane %v7423, 2
      %v9080 = vsel %vm2405, %v9078, %v9079
      %v9081 = vrot.slane %v8787, 2
      %v9082 = vrot.slane %v7424, 2
      %v9083 = vsel %vm2405, %v9081, %v9082
      %v9084 = vrot.slane %v8788, 2
      %v9085 = vrot.slane %v7425, 2
      %v9086 = vsel %vm2405, %v9084, %v9085
      %v9087 = vrot.slane %v8789, 2
      %v9088 = vrot.slane %v7426, 2
      %v9089 = vsel %vm2405, %v9087, %v9088
      %v9090 = vrot.slane %v8790, 2
      %v9091 = vsel %vm2405, %v9079, %v9090
      %v9092 = vrot.slane %v8791, 2
      %v9093 = vsel %vm2405, %v9082, %v9092
      %v9094 = vrot.slane %v8792, 2
      %v9095 = vsel %vm2405, %v9085, %v9094
      %v9096 = vrot.slane %v8793, 2
      %v9097 = vsel %vm2405, %v9088, %v9096
      %v9098 = vrot.slane %v8794, 2
      %v9099 = vrot.slane %v7435, 2
      %v9100 = vsel %vm2405, %v9098, %v9099
      %v9101 = vrot.slane %v8795, 2
      %v9102 = vrot.slane %v7436, 2
      %v9103 = vsel %vm2405, %v9101, %v9102
      %v9104 = vrot.slane %v8796, 2
      %v9105 = vrot.slane %v7437, 2
      %v9106 = vsel %vm2405, %v9104, %v9105
      %v9107 = vrot.slane %v8797, 2
      %v9108 = vrot.slane %v7438, 2
      %v9109 = vsel %vm2405, %v9107, %v9108
      %v9110 = vrot.slane %v8798, 2
      %v9111 = vsel %vm2405, %v9099, %v9110
      %v9112 = vrot.slane %v8799, 2
      %v9113 = vsel %vm2405, %v9102, %v9112
      %v9114 = vrot.slane %v8800, 2
      %v9115 = vsel %vm2405, %v9105, %v9114
      %v9116 = vrot.slane %v8801, 2
      %v9117 = vsel %vm2405, %v9108, %v9116
      %v9118 = vrot.slane %v8802, 2
      %v9119 = vrot.slane %v7447, 2
      %v9120 = vsel %vm2405, %v9118, %v9119
      %v9121 = vrot.slane %v8803, 2
      %v9122 = vrot.slane %v7448, 2
      %v9123 = vsel %vm2405, %v9121, %v9122
      %v9124 = vrot.slane %v8804, 2
      %v9125 = vrot.slane %v7449, 2
      %v9126 = vsel %vm2405, %v9124, %v9125
      %v9127 = vrot.slane %v8805, 2
      %v9128 = vrot.slane %v7450, 2
      %v9129 = vsel %vm2405, %v9127, %v9128
      %v9130 = vrot.slane %v8806, 2
      %v9131 = vsel %vm2405, %v9119, %v9130
      %v9132 = vrot.slane %v8807, 2
      %v9133 = vsel %vm2405, %v9122, %v9132
      %v9134 = vrot.slane %v8808, 2
      %v9135 = vsel %vm2405, %v9125, %v9134
      %v9136 = vrot.slane %v8809, 2
      %v9137 = vsel %vm2405, %v9128, %v9136
      %v9138 = vrot.slane %v8810, 2
      %v9139 = vrot.slane %v7459, 2
      %v9140 = vsel %vm2405, %v9138, %v9139
      %v9141 = vrot.slane %v8811, 2
      %v9142 = vrot.slane %v7460, 2
      %v9143 = vsel %vm2405, %v9141, %v9142
      %v9144 = vrot.slane %v8812, 2
      %v9145 = vrot.slane %v7461, 2
      %v9146 = vsel %vm2405, %v9144, %v9145
      %v9147 = vrot.slane %v8813, 2
      %v9148 = vrot.slane %v7462, 2
      %v9149 = vsel %vm2405, %v9147, %v9148
      %v9150 = vrot.slane %v8814, 2
      %v9151 = vsel %vm2405, %v9139, %v9150
      %v9152 = vrot.slane %v8815, 2
      %v9153 = vsel %vm2405, %v9142, %v9152
      %v9154 = vrot.slane %v8816, 2
      %v9155 = vsel %vm2405, %v9145, %v9154
      %v9156 = vrot.slane %v8817, 2
      %v9157 = vsel %vm2405, %v9148, %v9156
      %v9158 = vrot.slane %v8818, 2
      %v9159 = vrot.slane %v7471, 2
      %v9160 = vsel %vm2405, %v9158, %v9159
      %v9161 = vrot.slane %v8819, 2
      %v9162 = vrot.slane %v7472, 2
      %v9163 = vsel %vm2405, %v9161, %v9162
      %v9164 = vrot.slane %v8820, 2
      %v9165 = vrot.slane %v7473, 2
      %v9166 = vsel %vm2405, %v9164, %v9165
      %v9167 = vrot.slane %v8821, 2
      %v9168 = vrot.slane %v7474, 2
      %v9169 = vsel %vm2405, %v9167, %v9168
      %v9170 = vrot.slane %v8822, 2
      %v9171 = vsel %vm2405, %v9159, %v9170
      %v9172 = vrot.slane %v8823, 2
      %v9173 = vsel %vm2405, %v9162, %v9172
      %v9174 = vrot.slane %v8824, 2
      %v9175 = vsel %vm2405, %v9165, %v9174
      %v9176 = vrot.slane %v8825, 2
      %v9177 = vsel %vm2405, %v9168, %v9176
      %v9178 = vrot.slane %v8826, 2
      %v9179 = vrot.slane %v7483, 2
      %v9180 = vsel %vm2405, %v9178, %v9179
      %v9181 = vrot.slane %v8827, 2
      %v9182 = vrot.slane %v7484, 2
      %v9183 = vsel %vm2405, %v9181, %v9182
      %v9184 = vrot.slane %v8828, 2
      %v9185 = vrot.slane %v7485, 2
      %v9186 = vsel %vm2405, %v9184, %v9185
      %v9187 = vrot.slane %v8829, 2
      %v9188 = vrot.slane %v7486, 2
      %v9189 = vsel %vm2405, %v9187, %v9188
      %v9190 = vrot.slane %v8830, 2
      %v9191 = vsel %vm2405, %v9179, %v9190
      %v9192 = vrot.slane %v8831, 2
      %v9193 = vsel %vm2405, %v9182, %v9192
      %v9194 = vrot.slane %v8832, 2
      %v9195 = vsel %vm2405, %v9185, %v9194
      %v9196 = vrot.slane %v8833, 2
      %v9197 = vsel %vm2405, %v9188, %v9196
      %v9198 = vrot.slane %v8834, 2
      %v9199 = vrot.slane %v7495, 2
      %v9200 = vsel %vm2405, %v9198, %v9199
      %v9201 = vrot.slane %v8835, 2
      %v9202 = vrot.slane %v7496, 2
      %v9203 = vsel %vm2405, %v9201, %v9202
      %v9204 = vrot.slane %v8836, 2
      %v9205 = vrot.slane %v7497, 2
      %v9206 = vsel %vm2405, %v9204, %v9205
      %v9207 = vrot.slane %v8837, 2
      %v9208 = vrot.slane %v7498, 2
      %v9209 = vsel %vm2405, %v9207, %v9208
      %v9210 = vrot.slane %v8838, 2
      %v9211 = vsel %vm2405, %v9199, %v9210
      %v9212 = vrot.slane %v8839, 2
      %v9213 = vsel %vm2405, %v9202, %v9212
      %v9214 = vrot.slane %v8840, 2
      %v9215 = vsel %vm2405, %v9205, %v9214
      %v9216 = vrot.slane %v8841, 2
      %v9217 = vsel %vm2405, %v9208, %v9216
      %v9218 = vrot.slane %v8842, 2
      %v9219 = vrot.slane %v7507, 2
      %v9220 = vsel %vm2405, %v9218, %v9219
      %v9221 = vrot.slane %v8843, 2
      %v9222 = vrot.slane %v7508, 2
      %v9223 = vsel %vm2405, %v9221, %v9222
      %v9224 = vrot.slane %v8844, 2
      %v9225 = vrot.slane %v7509, 2
      %v9226 = vsel %vm2405, %v9224, %v9225
      %v9227 = vrot.slane %v8845, 2
      %v9228 = vrot.slane %v7510, 2
      %v9229 = vsel %vm2405, %v9227, %v9228
      %v9230 = vrot.slane %v8846, 2
      %v9231 = vsel %vm2405, %v9219, %v9230
      %v9232 = vrot.slane %v8847, 2
      %v9233 = vsel %vm2405, %v9222, %v9232
      %v9234 = vrot.slane %v8848, 2
      %v9235 = vsel %vm2405, %v9225, %v9234
      %v9236 = vrot.slane %v8849, 2
      %v9237 = vsel %vm2405, %v9228, %v9236
      %v9238 = vrot.slane %v8850, 2
      %v9239 = vrot.slane %v7519, 2
      %v9240 = vsel %vm2405, %v9238, %v9239
      %v9241 = vrot.slane %v8851, 2
      %v9242 = vrot.slane %v7520, 2
      %v9243 = vsel %vm2405, %v9241, %v9242
      %v9244 = vrot.slane %v8852, 2
      %v9245 = vrot.slane %v7521, 2
      %v9246 = vsel %vm2405, %v9244, %v9245
      %v9247 = vrot.slane %v8853, 2
      %v9248 = vrot.slane %v7522, 2
      %v9249 = vsel %vm2405, %v9247, %v9248
      %v9250 = vrot.slane %v8854, 2
      %v9251 = vsel %vm2405, %v9239, %v9250
      %v9252 = vrot.slane %v8855, 2
      %v9253 = vsel %vm2405, %v9242, %v9252
      %v9254 = vrot.slane %v8856, 2
      %v9255 = vsel %vm2405, %v9245, %v9254
      %v9256 = vrot.slane %v8857, 2
      %v9257 = vsel %vm2405, %v9248, %v9256
      %v9258 = vrot.slane %v8858, 2
      %v9259 = vrot.slane %v7531, 2
      %v9260 = vsel %vm2405, %v9258, %v9259
      %v9261 = vrot.slane %v8859, 2
      %v9262 = vrot.slane %v7532, 2
      %v9263 = vsel %vm2405, %v9261, %v9262
      %v9264 = vrot.slane %v8860, 2
      %v9265 = vrot.slane %v7533, 2
      %v9266 = vsel %vm2405, %v9264, %v9265
      %v9267 = vrot.slane %v8861, 2
      %v9268 = vrot.slane %v7534, 2
      %v9269 = vsel %vm2405, %v9267, %v9268
      %v9270 = vrot.slane %v8862, 2
      %v9271 = vsel %vm2405, %v9259, %v9270
      %v9272 = vrot.slane %v8863, 2
      %v9273 = vsel %vm2405, %v9262, %v9272
      %v9274 = vrot.slane %v8864, 2
      %v9275 = vsel %vm2405, %v9265, %v9274
      %v9276 = vrot.slane %v8865, 2
      %v9277 = vsel %vm2405, %v9268, %v9276
      %v9278 = vrot.slane %v8866, 2
      %v9279 = vrot.slane %v7543, 2
      %v9280 = vsel %vm2405, %v9278, %v9279
      %v9281 = vrot.slane %v8867, 2
      %v9282 = vrot.slane %v7544, 2
      %v9283 = vsel %vm2405, %v9281, %v9282
      %v9284 = vrot.slane %v8868, 2
      %v9285 = vrot.slane %v7545, 2
      %v9286 = vsel %vm2405, %v9284, %v9285
      %v9287 = vrot.slane %v8869, 2
      %v9288 = vrot.slane %v7546, 2
      %v9289 = vsel %vm2405, %v9287, %v9288
      %v9290 = vrot.slane %v8870, 2
      %v9291 = vsel %vm2405, %v9279, %v9290
      %v9292 = vrot.slane %v8871, 2
      %v9293 = vsel %vm2405, %v9282, %v9292
      %v9294 = vrot.slane %v8872, 2
      %v9295 = vsel %vm2405, %v9285, %v9294
      %v9296 = vrot.slane %v8873, 2
      %v9297 = vsel %vm2405, %v9288, %v9296
      %v9298 = vrot.slane %v8874, 2
      %v9299 = vrot.slane %v7555, 2
      %v9300 = vsel %vm2405, %v9298, %v9299
      %v9301 = vrot.slane %v8875, 2
      %v9302 = vrot.slane %v7556, 2
      %v9303 = vsel %vm2405, %v9301, %v9302
      %v9304 = vrot.slane %v8876, 2
      %v9305 = vrot.slane %v7557, 2
      %v9306 = vsel %vm2405, %v9304, %v9305
      %v9307 = vrot.slane %v8877, 2
      %v9308 = vrot.slane %v7558, 2
      %v9309 = vsel %vm2405, %v9307, %v9308
      %v9310 = vrot.slane %v8878, 2
      %v9311 = vsel %vm2405, %v9299, %v9310
      %v9312 = vrot.slane %v8879, 2
      %v9313 = vsel %vm2405, %v9302, %v9312
      %v9314 = vrot.slane %v8880, 2
      %v9315 = vsel %vm2405, %v9305, %v9314
      %v9316 = vrot.slane %v8881, 2
      %v9317 = vsel %vm2405, %v9308, %v9316
      %v9318 = vrot.slane %v8882, 2
      %v9319 = vrot.slane %v7567, 2
      %v9320 = vsel %vm2405, %v9318, %v9319
      %v9321 = vrot.slane %v8883, 2
      %v9322 = vrot.slane %v7568, 2
      %v9323 = vsel %vm2405, %v9321, %v9322
      %v9324 = vrot.slane %v8884, 2
      %v9325 = vrot.slane %v7569, 2
      %v9326 = vsel %vm2405, %v9324, %v9325
      %v9327 = vrot.slane %v8885, 2
      %v9328 = vrot.slane %v7570, 2
      %v9329 = vsel %vm2405, %v9327, %v9328
      %v9330 = vrot.slane %v8886, 2
      %v9331 = vsel %vm2405, %v9319, %v9330
      %v9332 = vrot.slane %v8887, 2
      %v9333 = vsel %vm2405, %v9322, %v9332
      %v9334 = vrot.slane %v8888, 2
      %v9335 = vsel %vm2405, %v9325, %v9334
      %v9336 = vrot.slane %v8889, 2
      %v9337 = vsel %vm2405, %v9328, %v9336
      %s9466 = scalar_lea.vmem %s1, 4096
      %v9467 = vld [vmem:[%s9466] sm:$0xff]
      %v9468 = vld [vmem:[%s9466 + $0x8] sm:$0xff]
      %v9469 = vld [vmem:[%s9466 + $0x10] sm:$0xff]
      %v9470 = vld [vmem:[%s9466 + $0x18] sm:$0xff]
      %v9471 = vld [vmem:[%s9466 + $0x20] sm:$0xff]
      %v9472 = vld [vmem:[%s9466 + $0x28] sm:$0xff]
      %v9473 = vld [vmem:[%s9466 + $0x30] sm:$0xff]
      %v9474 = vld [vmem:[%s9466 + $0x38] sm:$0xff]
      %v9475 = vld [vmem:[%s9466 + $0x40] sm:$0xff]
      %v9476 = vld [vmem:[%s9466 + $0x48] sm:$0xff]
      %v9477 = vld [vmem:[%s9466 + $0x50] sm:$0xff]
      %v9478 = vld [vmem:[%s9466 + $0x58] sm:$0xff]
      %v9479 = vld [vmem:[%s9466 + $0x60] sm:$0xff]
      %v9480 = vld [vmem:[%s9466 + $0x68] sm:$0xff]
      %v9481 = vld [vmem:[%s9466 + $0x70] sm:$0xff]
      %v9482 = vld [vmem:[%s9466 + $0x78] sm:$0xff]
      %v9483 = vld [vmem:[%s9466 + $0x80] sm:$0xff]
      %v9484 = vld [vmem:[%s9466 + $0x88] sm:$0xff]
      %v9485 = vld [vmem:[%s9466 + $0x90] sm:$0xff]
      %v9486 = vld [vmem:[%s9466 + $0x98] sm:$0xff]
      %v9487 = vld [vmem:[%s9466 + $0xa0] sm:$0xff]
      %v9488 = vld [vmem:[%s9466 + $0xa8] sm:$0xff]
      %v9489 = vld [vmem:[%s9466 + $0xb0] sm:$0xff]
      %v9490 = vld [vmem:[%s9466 + $0xb8] sm:$0xff]
      %v9491 = vld [vmem:[%s9466 + $0xc0] sm:$0xff]
      %v9492 = vld [vmem:[%s9466 + $0xc8] sm:$0xff]
      %v9493 = vld [vmem:[%s9466 + $0xd0] sm:$0xff]
      %v9494 = vld [vmem:[%s9466 + $0xd8] sm:$0xff]
      %v9495 = vld [vmem:[%s9466 + $0xe0] sm:$0xff]
      %v9496 = vld [vmem:[%s9466 + $0xe8] sm:$0xff]
      %v9497 = vld [vmem:[%s9466 + $0xf0] sm:$0xff]
      %v9498 = vld [vmem:[%s9466 + $0xf8] sm:$0xff]
      %v9499 = vld [vmem:[%s9466 + $0x100] sm:$0xff]
      %v9500 = vld [vmem:[%s9466 + $0x108] sm:$0xff]
      %v9501 = vld [vmem:[%s9466 + $0x110] sm:$0xff]
      %v9502 = vld [vmem:[%s9466 + $0x118] sm:$0xff]
      %v9503 = vld [vmem:[%s9466 + $0x120] sm:$0xff]
      %v9504 = vld [vmem:[%s9466 + $0x128] sm:$0xff]
      %v9505 = vld [vmem:[%s9466 + $0x130] sm:$0xff]
      %v9506 = vld [vmem:[%s9466 + $0x138] sm:$0xff]
      %v9507 = vld [vmem:[%s9466 + $0x140] sm:$0xff]
      %v9508 = vld [vmem:[%s9466 + $0x148] sm:$0xff]
      %v9509 = vld [vmem:[%s9466 + $0x150] sm:$0xff]
      %v9510 = vld [vmem:[%s9466 + $0x158] sm:$0xff]
      %v9511 = vld [vmem:[%s9466 + $0x160] sm:$0xff]
      %v9512 = vld [vmem:[%s9466 + $0x168] sm:$0xff]
      %v9513 = vld [vmem:[%s9466 + $0x170] sm:$0xff]
      %v9514 = vld [vmem:[%s9466 + $0x178] sm:$0xff]
      %v9515 = vld [vmem:[%s9466 + $0x180] sm:$0xff]
      %v9516 = vld [vmem:[%s9466 + $0x188] sm:$0xff]
      %v9517 = vld [vmem:[%s9466 + $0x190] sm:$0xff]
      %v9518 = vld [vmem:[%s9466 + $0x198] sm:$0xff]
      %v9519 = vld [vmem:[%s9466 + $0x1a0] sm:$0xff]
      %v9520 = vld [vmem:[%s9466 + $0x1a8] sm:$0xff]
      %v9521 = vld [vmem:[%s9466 + $0x1b0] sm:$0xff]
      %v9522 = vld [vmem:[%s9466 + $0x1b8] sm:$0xff]
      %v9523 = vld [vmem:[%s9466 + $0x1c0] sm:$0xff]
      %v9524 = vld [vmem:[%s9466 + $0x1c8] sm:$0xff]
      %v9525 = vld [vmem:[%s9466 + $0x1d0] sm:$0xff]
      %v9526 = vld [vmem:[%s9466 + $0x1d8] sm:$0xff]
      %v9527 = vld [vmem:[%s9466 + $0x1e0] sm:$0xff]
      %v9528 = vld [vmem:[%s9466 + $0x1e8] sm:$0xff]
      %v9529 = vld [vmem:[%s9466 + $0x1f0] sm:$0xff]
      %v9530 = vld [vmem:[%s9466 + $0x1f8] sm:$0xff]
      %9531 = vmatprep.subr.mxu0 0.0
      %9532 = vmatpush1.msra.mxu0 %v9467
      %9533 = vmatprep.subr.mxu0 0.0
      %9534 = vmatpush1.msra.mxu0 %v9468
      %9535 = vmatprep.subr.mxu0 0.0
      %9536 = vmatpush1.msra.mxu0 %v9469
      %9537 = vmatprep.subr.mxu0 0.0
      %9538 = vmatpush1.msra.mxu0 %v9470
      %9539 = vmatprep.subr.mxu0 0.0
      %9540 = vmatpush1.msra.mxu0 %v9471
      %9541 = vmatprep.subr.mxu0 0.0
      %9542 = vmatpush1.msra.mxu0 %v9472
      %9543 = vmatprep.subr.mxu0 0.0
      %9544 = vmatpush1.msra.mxu0 %v9473
      %9545 = vmatprep.subr.mxu0 0.0
      %9546 = vmatpush1.msra.mxu0 %v9474
      %9547 = vmatprep.subr.mxu0 0.0
      %9548 = vmatpush1.msra.mxu0 %v9475
      %9549 = vmatprep.subr.mxu0 0.0
      %9550 = vmatpush1.msra.mxu0 %v9476
      %9551 = vmatprep.subr.mxu0 0.0
      %9552 = vmatpush1.msra.mxu0 %v9477
      %9553 = vmatprep.subr.mxu0 0.0
      %9554 = vmatpush1.msra.mxu0 %v9478
      %9555 = vmatprep.subr.mxu0 0.0
      %9556 = vmatpush1.msra.mxu0 %v9479
      %9557 = vmatprep.subr.mxu0 0.0
      %9558 = vmatpush1.msra.mxu0 %v9480
      %9559 = vmatprep.subr.mxu0 0.0
      %9560 = vmatpush1.msra.mxu0 %v9481
      %9561 = vmatprep.subr.mxu0 0.0
      %9562 = vmatpush1.msra.mxu0 %v9482
      %9563 = vmatprep.subr.mxu0 0.0
      %9564 = vmatpush1.msra.mxu0 %v9483
      %9565 = vmatprep.subr.mxu0 0.0
      %9566 = vmatpush1.msra.mxu0 %v9484
      %9567 = vmatprep.subr.mxu0 0.0
      %9568 = vmatpush1.msra.mxu0 %v9485
      %9569 = vmatprep.subr.mxu0 0.0
      %9570 = vmatpush1.msra.mxu0 %v9486
      %9571 = vmatprep.subr.mxu0 0.0
      %9572 = vmatpush1.msra.mxu0 %v9487
      %9573 = vmatprep.subr.mxu0 0.0
      %9574 = vmatpush1.msra.mxu0 %v9488
      %9575 = vmatprep.subr.mxu0 0.0
      %9576 = vmatpush1.msra.mxu0 %v9489
      %9577 = vmatprep.subr.mxu0 0.0
      %9578 = vmatpush1.msra.mxu0 %v9490
      %9579 = vmatprep.subr.mxu0 0.0
      %9580 = vmatpush1.msra.mxu0 %v9491
      %9581 = vmatprep.subr.mxu0 0.0
      %9582 = vmatpush1.msra.mxu0 %v9492
      %9583 = vmatprep.subr.mxu0 0.0
      %9584 = vmatpush1.msra.mxu0 %v9493
      %9585 = vmatprep.subr.mxu0 0.0
      %9586 = vmatpush1.msra.mxu0 %v9494
      %9587 = vmatprep.subr.mxu0 0.0
      %9588 = vmatpush1.msra.mxu0 %v9495
      %9589 = vmatprep.subr.mxu0 0.0
      %9590 = vmatpush1.msra.mxu0 %v9496
      %9591 = vmatprep.subr.mxu0 0.0
      %9592 = vmatpush1.msra.mxu0 %v9497
      %9593 = vmatprep.subr.mxu0 0.0
      %9594 = vmatpush1.msra.mxu0 %v9498
      %9595 = vmatprep.mubr.f32.mxu0 %v9023
      %9596 = vmatmul.mubr.f32.gmra.mrb[0].mxu0 %v9020
      %v9597 = vpop.f32.mrb[0].mxu0
      %v9598 = vadd.f32 0.0, %v9597
      %v9599 = vpop.f32.mrb[0].mxu0
      %9600 = vmatprep.mubr.f32.mxu0 %v9033
      %9601 = vmatmul.mubr.f32.gmra.mrb[0].mxu0 %v9031
      %v9602 = vpop.f32.mrb[0].mxu0
      %v9603 = vadd.f32 0.0, %v9602
      %v9604 = vpop.f32.mrb[0].mxu0
      %9605 = vmatprep.mubr.f32.mxu0 %v9043
      %9606 = vmatmul.mubr.f32.gmra.mrb[0].mxu0 %v9040
      %v9607 = vpop.f32.mrb[0].mxu0
      %v9608 = vadd.f32 0.0, %v9607
      %v9609 = vpop.f32.mrb[0].mxu0
      %9610 = vmatprep.mubr.f32.mxu0 %v9053
      %9611 = vmatmul.mubr.f32.gmra.mrb[0].mxu0 %v9051
      %v9612 = vpop.f32.mrb[0].mxu0
      %v9613 = vadd.f32 0.0, %v9612
      %v9614 = vpop.f32.mrb[0].mxu0
      %9615 = vmatprep.mubr.f32.mxu0 %v9063
      %9616 = vmatmul.mubr.f32.gmra.mrb[0].mxu0 %v9060
      %v9617 = vpop.f32.mrb[0].mxu0
      %v9618 = vadd.f32 0.0, %v9617
      %v9619 = vpop.f32.mrb[0].mxu0
      %9620 = vmatprep.mubr.f32.mxu0 %v9073
      %9621 = vmatmul.mubr.f32.gmra.mrb[0].mxu0 %v9071
      %v9622 = vpop.f32.mrb[0].mxu0
      %v9623 = vadd.f32 0.0, %v9622
      %v9624 = vpop.f32.mrb[0].mxu0
      %9625 = vmatprep.mubr.f32.mxu0 %v9083
      %9626 = vmatmul.mubr.f32.gmra.mrb[0].mxu0 %v9080
      %v9627 = vpop.f32.mrb[0].mxu0
      %v9628 = vadd.f32 0.0, %v9627
      %v9629 = vpop.f32.mrb[0].mxu0
      %9630 = vmatprep.mubr.f32.mxu0 %v9093
      %9631 = vmatmul.mubr.f32.gmra.mrb[0].mxu0 %v9091
      %v9632 = vpop.f32.mrb[0].mxu0
      %v9633 = vadd.f32 0.0, %v9632
      %v9634 = vpop.f32.mrb[0].mxu0
      %9635 = vmatprep.mubr.f32.mxu0 %v9103
      %9636 = vmatmul.mubr.f32.gmra.mrb[0].mxu0 %v9100
      %v9637 = vpop.f32.mrb[0].mxu0
      %v9638 = vadd.f32 0.0, %v9637
      %v9639 = vpop.f32.mrb[0].mxu0
      %9640 = vmatprep.mubr.f32.mxu0 %v9113
      %9641 = vmatmul.mubr.f32.gmra.mrb[0].mxu0 %v9111
      %v9642 = vpop.f32.mrb[0].mxu0
      %v9643 = vadd.f32 0.0, %v9642
      %v9644 = vpop.f32.mrb[0].mxu0
      %9645 = vmatprep.mubr.f32.mxu0 %v9123
      %9646 = vmatmul.mubr.f32.gmra.mrb[0].mxu0 %v9120
      %v9647 = vpop.f32.mrb[0].mxu0
      %v9648 = vadd.f32 0.0, %v9647
      %v9649 = vpop.f32.mrb[0].mxu0
      %9650 = vmatprep.mubr.f32.mxu0 %v9133
      %9651 = vmatmul.mubr.f32.gmra.mrb[0].mxu0 %v9131
      %v9652 = vpop.f32.mrb[0].mxu0
      %v9653 = vadd.f32 0.0, %v9652
      %v9654 = vpop.f32.mrb[0].mxu0
      %9655 = vmatprep.mubr.f32.mxu0 %v9143
      %9656 = vmatmul.mubr.f32.gmra.mrb[0].mxu0 %v9140
      %v9657 = vpop.f32.mrb[0].mxu0
      %v9658 = vadd.f32 0.0, %v9657
      %v9659 = vpop.f32.mrb[0].mxu0
      %9660 = vmatprep.mubr.f32.mxu0 %v9153
      %9661 = vmatmul.mubr.f32.gmra.mrb[0].mxu0 %v9151
      %v9662 = vpop.f32.mrb[0].mxu0
      %v9663 = vadd.f32 0.0, %v9662
      %v9664 = vpop.f32.mrb[0].mxu0
      %9665 = vmatprep.mubr.f32.mxu0 %v9163
      %9666 = vmatmul.mubr.f32.gmra.mrb[0].mxu0 %v9160
      %v9667 = vpop.f32.mrb[0].mxu0
      %v9668 = vadd.f32 0.0, %v9667
      %v9669 = vpop.f32.mrb[0].mxu0
      %9670 = vmatprep.mubr.f32.mxu0 %v9173
      %9671 = vmatmul.mubr.f32.gmra.mrb[0].mxu0 %v9171
      %v9672 = vpop.f32.mrb[0].mxu0
      %v9673 = vadd.f32 0.0, %v9672
      %v9674 = vpop.f32.mrb[0].mxu0
      %9675 = vmatprep.mubr.f32.mxu0 %v9183
      %9676 = vmatmul.mubr.f32.gmra.mrb[0].mxu0 %v9180
      %v9677 = vpop.f32.mrb[0].mxu0
      %v9678 = vadd.f32 0.0, %v9677
      %v9679 = vpop.f32.mrb[0].mxu0
      %9680 = vmatprep.mubr.f32.mxu0 %v9193
      %9681 = vmatmul.mubr.f32.gmra.mrb[0].mxu0 %v9191
      %v9682 = vpop.f32.mrb[0].mxu0
      %v9683 = vadd.f32 0.0, %v9682
      %v9684 = vpop.f32.mrb[0].mxu0
      %9685 = vmatprep.mubr.f32.mxu0 %v9203
      %9686 = vmatmul.mubr.f32.gmra.mrb[0].mxu0 %v9200
      %v9687 = vpop.f32.mrb[0].mxu0
      %v9688 = vadd.f32 0.0, %v9687
      %v9689 = vpop.f32.mrb[0].mxu0
      %9690 = vmatprep.mubr.f32.mxu0 %v9213
      %9691 = vmatmul.mubr.f32.gmra.mrb[0].mxu0 %v9211
      %v9692 = vpop.f32.mrb[0].mxu0
      %v9693 = vadd.f32 0.0, %v9692
      %v9694 = vpop.f32.mrb[0].mxu0
      %9695 = vmatprep.mubr.f32.mxu0 %v9223
      %9696 = vmatmul.mubr.f32.gmra.mrb[0].mxu0 %v9220
      %v9697 = vpop.f32.mrb[0].mxu0
      %v9698 = vadd.f32 0.0, %v9697
      %v9699 = vpop.f32.mrb[0].mxu0
      %9700 = vmatprep.mubr.f32.mxu0 %v9233
      %9701 = vmatmul.mubr.f32.gmra.mrb[0].mxu0 %v9231
      %v9702 = vpop.f32.mrb[0].mxu0
      %v9703 = vadd.f32 0.0, %v9702
      %v9704 = vpop.f32.mrb[0].mxu0
      %9705 = vmatprep.mubr.f32.mxu0 %v9243
      %9706 = vmatmul.mubr.f32.gmra.mrb[0].mxu0 %v9240
      %v9707 = vpop.f32.mrb[0].mxu0
      %v9708 = vadd.f32 0.0, %v9707
      %v9709 = vpop.f32.mrb[0].mxu0
      %9710 = vmatprep.mubr.f32.mxu0 %v9253
      %9711 = vmatmul.mubr.f32.gmra.mrb[0].mxu0 %v9251
      %v9712 = vpop.f32.mrb[0].mxu0
      %v9713 = vadd.f32 0.0, %v9712
      %v9714 = vpop.f32.mrb[0].mxu0
      %9715 = vmatprep.mubr.f32.mxu0 %v9263
      %9716 = vmatmul.mubr.f32.gmra.mrb[0].mxu0 %v9260
      %v9717 = vpop.f32.mrb[0].mxu0
      %v9718 = vadd.f32 0.0, %v9717
      %v9719 = vpop.f32.mrb[0].mxu0
      %9720 = vmatprep.mubr.f32.mxu0 %v9273
      %9721 = vmatmul.mubr.f32.gmra.mrb[0].mxu0 %v9271
      %v9722 = vpop.f32.mrb[0].mxu0
      %v9723 = vadd.f32 0.0, %v9722
      %v9724 = vpop.f32.mrb[0].mxu0
      %9725 = vmatprep.mubr.f32.mxu0 %v9283
      %9726 = vmatmul.mubr.f32.gmra.mrb[0].mxu0 %v9280
      %v9727 = vpop.f32.mrb[0].mxu0
      %v9728 = vadd.f32 0.0, %v9727
      %v9729 = vpop.f32.mrb[0].mxu0
      %9730 = vmatprep.mubr.f32.mxu0 %v9293
      %9731 = vmatmul.mubr.f32.gmra.mrb[0].mxu0 %v9291
      %v9732 = vpop.f32.mrb[0].mxu0
      %v9733 = vadd.f32 0.0, %v9732
      %v9734 = vpop.f32.mrb[0].mxu0
      %9735 = vmatprep.mubr.f32.mxu0 %v9303
      %9736 = vmatmul.mubr.f32.gmra.mrb[0].mxu0 %v9300
      %v9737 = vpop.f32.mrb[0].mxu0
      %v9738 = vadd.f32 0.0, %v9737
      %v9739 = vpop.f32.mrb[0].mxu0
      %9740 = vmatprep.mubr.f32.mxu0 %v9313
      %9741 = vmatmul.mubr.f32.gmra.mrb[0].mxu0 %v9311
      %v9742 = vpop.f32.mrb[0].mxu0
      %v9743 = vadd.f32 0.0, %v9742
      %v9744 = vpop.f32.mrb[0].mxu0
      %9745 = vmatprep.mubr.f32.mxu0 %v9323
      %9746 = vmatmul.mubr.f32.gmra.mrb[0].mxu0 %v9320
      %v9747 = vpop.f32.mrb[0].mxu0
      %v9748 = vadd.f32 0.0, %v9747
      %v9749 = vpop.f32.mrb[0].mxu0
      %9750 = vmatprep.mubr.f32.mxu0 %v9333
      %9751 = vmatmul.mubr.f32.gmra.mrb[0].mxu0 %v9331
      %v9752 = vpop.f32.mrb[0].mxu0
      %v9753 = vadd.f32 0.0, %v9752
      %v9754 = vpop.f32.mrb[0].mxu0
      %9755 = vdwg.mxu0
      %9756 = vmatprep.subr.mxu0 0.0
      %9757 = vmatpush1.msra.mxu0 %v9499
      %9758 = vmatprep.subr.mxu0 0.0
      %9759 = vmatpush1.msra.mxu0 %v9500
      %9760 = vmatprep.subr.mxu0 0.0
      %9761 = vmatpush1.msra.mxu0 %v9501
      %9762 = vmatprep.subr.mxu0 0.0
      %9763 = vmatpush1.msra.mxu0 %v9502
      %9764 = vmatprep.subr.mxu0 0.0
      %9765 = vmatpush1.msra.mxu0 %v9503
      %9766 = vmatprep.subr.mxu0 0.0
      %9767 = vmatpush1.msra.mxu0 %v9504
      %9768 = vmatprep.subr.mxu0 0.0
      %9769 = vmatpush1.msra.mxu0 %v9505
      %9770 = vmatprep.subr.mxu0 0.0
      %9771 = vmatpush1.msra.mxu0 %v9506
      %9772 = vmatprep.subr.mxu0 0.0
      %9773 = vmatpush1.msra.mxu0 %v9507
      %9774 = vmatprep.subr.mxu0 0.0
      %9775 = vmatpush1.msra.mxu0 %v9508
      %9776 = vmatprep.subr.mxu0 0.0
      %9777 = vmatpush1.msra.mxu0 %v9509
      %9778 = vmatprep.subr.mxu0 0.0
      %9779 = vmatpush1.msra.mxu0 %v9510
      %9780 = vmatprep.subr.mxu0 0.0
      %9781 = vmatpush1.msra.mxu0 %v9511
      %9782 = vmatprep.subr.mxu0 0.0
      %9783 = vmatpush1.msra.mxu0 %v9512
      %9784 = vmatprep.subr.mxu0 0.0
      %9785 = vmatpush1.msra.mxu0 %v9513
      %9786 = vmatprep.subr.mxu0 0.0
      %9787 = vmatpush1.msra.mxu0 %v9514
      %9788 = vmatprep.subr.mxu0 0.0
      %9789 = vmatpush1.msra.mxu0 %v9515
      %9790 = vmatprep.subr.mxu0 0.0
      %9791 = vmatpush1.msra.mxu0 %v9516
      %9792 = vmatprep.subr.mxu0 0.0
      %9793 = vmatpush1.msra.mxu0 %v9517
      %9794 = vmatprep.subr.mxu0 0.0
      %9795 = vmatpush1.msra.mxu0 %v9518
      %9796 = vmatprep.subr.mxu0 0.0
      %9797 = vmatpush1.msra.mxu0 %v9519
      %9798 = vmatprep.subr.mxu0 0.0
      %9799 = vmatpush1.msra.mxu0 %v9520
      %9800 = vmatprep.subr.mxu0 0.0
      %9801 = vmatpush1.msra.mxu0 %v9521
      %9802 = vmatprep.subr.mxu0 0.0
      %9803 = vmatpush1.msra.mxu0 %v9522
      %9804 = vmatprep.subr.mxu0 0.0
      %9805 = vmatpush1.msra.mxu0 %v9523
      %9806 = vmatprep.subr.mxu0 0.0
      %9807 = vmatpush1.msra.mxu0 %v9524
      %9808 = vmatprep.subr.mxu0 0.0
      %9809 = vmatpush1.msra.mxu0 %v9525
      %9810 = vmatprep.subr.mxu0 0.0
      %9811 = vmatpush1.msra.mxu0 %v9526
      %9812 = vmatprep.subr.mxu0 0.0
      %9813 = vmatpush1.msra.mxu0 %v9527
      %9814 = vmatprep.subr.mxu0 0.0
      %9815 = vmatpush1.msra.mxu0 %v9528
      %9816 = vmatprep.subr.mxu0 0.0
      %9817 = vmatpush1.msra.mxu0 %v9529
      %9818 = vmatprep.subr.mxu0 0.0
      %9819 = vmatpush1.msra.mxu0 %v9530
      %9820 = vmatprep.mubr.f32.mxu0 %v9029
      %9821 = vmatmul.mubr.f32.gmra.mrb[0].mxu0 %v9026
      %v9822 = vpop.f32.mrb[0].mxu0
      %v9823 = vadd.f32 %v9598, %v9822
      %v9824 = vpop.f32.mrb[0].mxu0
      %9825 = vmatprep.mubr.f32.mxu0 %v9037
      %9826 = vmatmul.mubr.f32.gmra.mrb[0].mxu0 %v9035
      %v9827 = vpop.f32.mrb[0].mxu0
      %v9828 = vadd.f32 %v9603, %v9827
      %v9829 = vpop.f32.mrb[0].mxu0
      %9830 = vmatprep.mubr.f32.mxu0 %v9049
      %9831 = vmatmul.mubr.f32.gmra.mrb[0].mxu0 %v9046
      %v9832 = vpop.f32.mrb[0].mxu0
      %v9833 = vadd.f32 %v9608, %v9832
      %v9834 = vpop.f32.mrb[0].mxu0
      %9835 = vmatprep.mubr.f32.mxu0 %v9057
      %9836 = vmatmul.mubr.f32.gmra.mrb[0].mxu0 %v9055
      %v9837 = vpop.f32.mrb[0].mxu0
      %v9838 = vadd.f32 %v9613, %v9837
      %v9839 = vpop.f32.mrb[0].mxu0
      %9840 = vmatprep.mubr.f32.mxu0 %v9069
      %9841 = vmatmul.mubr.f32.gmra.mrb[0].mxu0 %v9066
      %v9842 = vpop.f32.mrb[0].mxu0
      %v9843 = vadd.f32 %v9618, %v9842
      %v9844 = vpop.f32.mrb[0].mxu0
      %9845 = vmatprep.mubr.f32.mxu0 %v9077
      %9846 = vmatmul.mubr.f32.gmra.mrb[0].mxu0 %v9075
      %v9847 = vpop.f32.mrb[0].mxu0
      %v9848 = vadd.f32 %v9623, %v9847
      %v9849 = vpop.f32.mrb[0].mxu0
      %9850 = vmatprep.mubr.f32.mxu0 %v9089
      %9851 = vmatmul.mubr.f32.gmra.mrb[0].mxu0 %v9086
      %v9852 = vpop.f32.mrb[0].mxu0
      %v9853 = vadd.f32 %v9628, %v9852
      %v9854 = vpop.f32.mrb[0].mxu0
      %9855 = vmatprep.mubr.f32.mxu0 %v9097
      %9856 = vmatmul.mubr.f32.gmra.mrb[0].mxu0 %v9095
      %v9857 = vpop.f32.mrb[0].mxu0
      %v9858 = vadd.f32 %v9633, %v9857
      %v9859 = vpop.f32.mrb[0].mxu0
      %9860 = vmatprep.mubr.f32.mxu0 %v9109
      %9861 = vmatmul.mubr.f32.gmra.mrb[0].mxu0 %v9106
      %v9862 = vpop.f32.mrb[0].mxu0
      %v9863 = vadd.f32 %v9638, %v9862
      %v9864 = vpop.f32.mrb[0].mxu0
      %9865 = vmatprep.mubr.f32.mxu0 %v9117
      %9866 = vmatmul.mubr.f32.gmra.mrb[0].mxu0 %v9115
      %v9867 = vpop.f32.mrb[0].mxu0
      %v9868 = vadd.f32 %v9643, %v9867
      %v9869 = vpop.f32.mrb[0].mxu0
      %9870 = vmatprep.mubr.f32.mxu0 %v9129
      %9871 = vmatmul.mubr.f32.gmra.mrb[0].mxu0 %v9126
      %v9872 = vpop.f32.mrb[0].mxu0
      %v9873 = vadd.f32 %v9648, %v9872
      %v9874 = vpop.f32.mrb[0].mxu0
      %9875 = vmatprep.mubr.f32.mxu0 %v9137
      %9876 = vmatmul.mubr.f32.gmra.mrb[0].mxu0 %v9135
      %v9877 = vpop.f32.mrb[0].mxu0
      %v9878 = vadd.f32 %v9653, %v9877
      %v9879 = vpop.f32.mrb[0].mxu0
      %9880 = vmatprep.mubr.f32.mxu0 %v9149
      %9881 = vmatmul.mubr.f32.gmra.mrb[0].mxu0 %v9146
      %v9882 = vpop.f32.mrb[0].mxu0
      %v9883 = vadd.f32 %v9658, %v9882
      %v9884 = vpop.f32.mrb[0].mxu0
      %9885 = vmatprep.mubr.f32.mxu0 %v9157
      %9886 = vmatmul.mubr.f32.gmra.mrb[0].mxu0 %v9155
      %v9887 = vpop.f32.mrb[0].mxu0
      %v9888 = vadd.f32 %v9663, %v9887
      %v9889 = vpop.f32.mrb[0].mxu0
      %9890 = vmatprep.mubr.f32.mxu0 %v9169
      %9891 = vmatmul.mubr.f32.gmra.mrb[0].mxu0 %v9166
      %v9892 = vpop.f32.mrb[0].mxu0
      %v9893 = vadd.f32 %v9668, %v9892
      %v9894 = vpop.f32.mrb[0].mxu0
      %9895 = vmatprep.mubr.f32.mxu0 %v9177
      %9896 = vmatmul.mubr.f32.gmra.mrb[0].mxu0 %v9175
      %v9897 = vpop.f32.mrb[0].mxu0
      %v9898 = vadd.f32 %v9673, %v9897
      %v9899 = vpop.f32.mrb[0].mxu0
      %9900 = vmatprep.mubr.f32.mxu0 %v9189
      %9901 = vmatmul.mubr.f32.gmra.mrb[0].mxu0 %v9186
      %v9902 = vpop.f32.mrb[0].mxu0
      %v9903 = vadd.f32 %v9678, %v9902
      %v9904 = vpop.f32.mrb[0].mxu0
      %9905 = vmatprep.mubr.f32.mxu0 %v9197
      %9906 = vmatmul.mubr.f32.gmra.mrb[0].mxu0 %v9195
      %v9907 = vpop.f32.mrb[0].mxu0
      %v9908 = vadd.f32 %v9683, %v9907
      %v9909 = vpop.f32.mrb[0].mxu0
      %9910 = vmatprep.mubr.f32.mxu0 %v9209
      %9911 = vmatmul.mubr.f32.gmra.mrb[0].mxu0 %v9206
      %v9912 = vpop.f32.mrb[0].mxu0
      %v9913 = vadd.f32 %v9688, %v9912
      %v9914 = vpop.f32.mrb[0].mxu0
      %9915 = vmatprep.mubr.f32.mxu0 %v9217
      %9916 = vmatmul.mubr.f32.gmra.mrb[0].mxu0 %v9215
      %v9917 = vpop.f32.mrb[0].mxu0
      %v9918 = vadd.f32 %v9693, %v9917
      %v9919 = vpop.f32.mrb[0].mxu0
      %9920 = vmatprep.mubr.f32.mxu0 %v9229
      %9921 = vmatmul.mubr.f32.gmra.mrb[0].mxu0 %v9226
      %v9922 = vpop.f32.mrb[0].mxu0
      %v9923 = vadd.f32 %v9698, %v9922
      %v9924 = vpop.f32.mrb[0].mxu0
      %9925 = vmatprep.mubr.f32.mxu0 %v9237
      %9926 = vmatmul.mubr.f32.gmra.mrb[0].mxu0 %v9235
      %v9927 = vpop.f32.mrb[0].mxu0
      %v9928 = vadd.f32 %v9703, %v9927
      %v9929 = vpop.f32.mrb[0].mxu0
      %9930 = vmatprep.mubr.f32.mxu0 %v9249
      %9931 = vmatmul.mubr.f32.gmra.mrb[0].mxu0 %v9246
      %v9932 = vpop.f32.mrb[0].mxu0
      %v9933 = vadd.f32 %v9708, %v9932
      %v9934 = vpop.f32.mrb[0].mxu0
      %9935 = vmatprep.mubr.f32.mxu0 %v9257
      %9936 = vmatmul.mubr.f32.gmra.mrb[0].mxu0 %v9255
      %v9937 = vpop.f32.mrb[0].mxu0
      %v9938 = vadd.f32 %v9713, %v9937
      %v9939 = vpop.f32.mrb[0].mxu0
      %9940 = vmatprep.mubr.f32.mxu0 %v9269
      %9941 = vmatmul.mubr.f32.gmra.mrb[0].mxu0 %v9266
      %v9942 = vpop.f32.mrb[0].mxu0
      %v9943 = vadd.f32 %v9718, %v9942
      %v9944 = vpop.f32.mrb[0].mxu0
      %9945 = vmatprep.mubr.f32.mxu0 %v9277
      %9946 = vmatmul.mubr.f32.gmra.mrb[0].mxu0 %v9275
      %v9947 = vpop.f32.mrb[0].mxu0
      %v9948 = vadd.f32 %v9723, %v9947
      %v9949 = vpop.f32.mrb[0].mxu0
      %9950 = vmatprep.mubr.f32.mxu0 %v9289
      %9951 = vmatmul.mubr.f32.gmra.mrb[0].mxu0 %v9286
      %v9952 = vpop.f32.mrb[0].mxu0
      %v9953 = vadd.f32 %v9728, %v9952
      %v9954 = vpop.f32.mrb[0].mxu0
      %9955 = vmatprep.mubr.f32.mxu0 %v9297
      %9956 = vmatmul.mubr.f32.gmra.mrb[0].mxu0 %v9295
      %v9957 = vpop.f32.mrb[0].mxu0
      %v9958 = vadd.f32 %v9733, %v9957
      %v9959 = vpop.f32.mrb[0].mxu0
      %9960 = vmatprep.mubr.f32.mxu0 %v9309
      %9961 = vmatmul.mubr.f32.gmra.mrb[0].mxu0 %v9306
      %v9962 = vpop.f32.mrb[0].mxu0
      %v9963 = vadd.f32 %v9738, %v9962
      %v9964 = vpop.f32.mrb[0].mxu0
      %9965 = vmatprep.mubr.f32.mxu0 %v9317
      %9966 = vmatmul.mubr.f32.gmra.mrb[0].mxu0 %v9315
      %v9967 = vpop.f32.mrb[0].mxu0
      %v9968 = vadd.f32 %v9743, %v9967
      %v9969 = vpop.f32.mrb[0].mxu0
      %9970 = vmatprep.mubr.f32.mxu0 %v9329
      %9971 = vmatmul.mubr.f32.gmra.mrb[0].mxu0 %v9326
      %v9972 = vpop.f32.mrb[0].mxu0
      %v9973 = vadd.f32 %v9748, %v9972
      %v9974 = vpop.f32.mrb[0].mxu0
      %9975 = vmatprep.mubr.f32.mxu0 %v9337
      %9976 = vmatmul.mubr.f32.gmra.mrb[0].mxu0 %v9335
      %v9977 = vpop.f32.mrb[0].mxu0
      %v9978 = vadd.f32 %v9753, %v9977
      %v9979 = vpop.f32.mrb[0].mxu0
      %9980 = vdwg.mxu0
      %v9981 = vadd.f32 %v8730, %v9823
      %v9982 = vadd.f32 %v8731, %v9828
      %v9983 = vadd.f32 %v8732, %v9833
      %v9984 = vadd.f32 %v8733, %v9838
      %v9985 = vadd.f32 %v8734, %v9843
      %v9986 = vadd.f32 %v8735, %v9848
      %v9987 = vadd.f32 %v8736, %v9853
      %v9988 = vadd.f32 %v8737, %v9858
      %v9989 = vadd.f32 %v8738, %v9863
      %v9990 = vadd.f32 %v8739, %v9868
      %v9991 = vadd.f32 %v8740, %v9873
      %v9992 = vadd.f32 %v8741, %v9878
      %v9993 = vadd.f32 %v8742, %v9883
      %v9994 = vadd.f32 %v8743, %v9888
      %v9995 = vadd.f32 %v8744, %v9893
      %v9996 = vadd.f32 %v8745, %v9898
      %v9997 = vadd.f32 %v8746, %v9903
      %v9998 = vadd.f32 %v8747, %v9908
      %v9999 = vadd.f32 %v8748, %v9913
      %v10000 = vadd.f32 %v8749, %v9918
      %v10001 = vadd.f32 %v8750, %v9923
      %v10002 = vadd.f32 %v8751, %v9928
      %v10003 = vadd.f32 %v8752, %v9933
      %v10004 = vadd.f32 %v8753, %v9938
      %v10005 = vadd.f32 %v8754, %v9943
      %v10006 = vadd.f32 %v8755, %v9948
      %v10007 = vadd.f32 %v8756, %v9953
      %v10008 = vadd.f32 %v8757, %v9958
      %v10009 = vadd.f32 %v8758, %v9963
      %v10010 = vadd.f32 %v8759, %v9968
      %v10011 = vadd.f32 %v8760, %v9973
      %v10012 = vadd.f32 %v8761, %v9978
      %10013 = vxpose.xlu0.b32.start [1/16] %v9981, 128
      %10014 = vxpose.xlu0.b32.cont [2/16] %v9982, 128
      %10015 = vxpose.xlu0.b32.cont [3/16] %v9983, 128
      %10016 = vxpose.xlu0.b32.cont [4/16] %v9984, 128
      %10017 = vxpose.xlu0.b32.cont [5/16] %v9985, 128
      %10018 = vxpose.xlu0.b32.cont [6/16] %v9986, 128
      %10019 = vxpose.xlu0.b32.cont [7/16] %v9987, 128
      %10020 = vxpose.xlu0.b32.cont [8/16] %v9988, 128
      %10021 = vxpose.xlu0.b32.cont [9/16] %v9989, 128
      %10022 = vxpose.xlu0.b32.cont [10/16] %v9990, 128
      %10023 = vxpose.xlu0.b32.cont [11/16] %v9991, 128
      %10024 = vxpose.xlu0.b32.cont [12/16] %v9992, 128
      %10025 = vxpose.xlu0.b32.cont [13/16] %v9993, 128
      %10026 = vxpose.xlu0.b32.cont [14/16] %v9994, 128
      %10027 = vxpose.xlu0.b32.cont [15/16] %v9995, 128
      %10028 = vxpose.xlu0.b32.end [16/16] %v9996, 128
      %v10029 = vpop.trf.xlu0
      %v10030 = vpop.trf.xlu0
      %v10031 = vpop.trf.xlu0
      %v10032 = vpop.trf.xlu0
      %v10033 = vpop.trf.xlu0
      %v10034 = vpop.trf.xlu0
      %v10035 = vpop.trf.xlu0
      %v10036 = vpop.trf.xlu0
      %v10037 = vpop.trf.xlu0
      %v10038 = vpop.trf.xlu0
      %v10039 = vpop.trf.xlu0
      %v10040 = vpop.trf.xlu0
      %v10041 = vpop.trf.xlu0
      %v10042 = vpop.trf.xlu0
      %v10043 = vpop.trf.xlu0
      %v10044 = vpop.trf.xlu0
      %10045 = vxpose.xlu0.b32.start [1/16] %v9997, 128
      %10046 = vxpose.xlu0.b32.cont [2/16] %v9998, 128
      %10047 = vxpose.xlu0.b32.cont [3/16] %v9999, 128
      %10048 = vxpose.xlu0.b32.cont [4/16] %v10000, 128
      %10049 = vxpose.xlu0.b32.cont [5/16] %v10001, 128
      %10050 = vxpose.xlu0.b32.cont [6/16] %v10002, 128
      %10051 = vxpose.xlu0.b32.cont [7/16] %v10003, 128
      %10052 = vxpose.xlu0.b32.cont [8/16] %v10004, 128
      %10053 = vxpose.xlu0.b32.cont [9/16] %v10005, 128
      %10054 = vxpose.xlu0.b32.cont [10/16] %v10006, 128
      %10055 = vxpose.xlu0.b32.cont [11/16] %v10007, 128
      %10056 = vxpose.xlu0.b32.cont [12/16] %v10008, 128
      %10057 = vxpose.xlu0.b32.cont [13/16] %v10009, 128
      %10058 = vxpose.xlu0.b32.cont [14/16] %v10010, 128
      %10059 = vxpose.xlu0.b32.cont [15/16] %v10011, 128
      %10060 = vxpose.xlu0.b32.end [16/16] %v10012, 128
      %v10061 = vpop.trf.xlu0
      %v10062 = vpop.trf.xlu0
      %v10063 = vpop.trf.xlu0
      %v10064 = vpop.trf.xlu0
      %v10065 = vpop.trf.xlu0
      %v10066 = vpop.trf.xlu0
      %v10067 = vpop.trf.xlu0
      %v10068 = vpop.trf.xlu0
      %v10069 = vpop.trf.xlu0
      %v10070 = vpop.trf.xlu0
      %v10071 = vpop.trf.xlu0
      %v10072 = vpop.trf.xlu0
      %v10073 = vpop.trf.xlu0
      %v10074 = vpop.trf.xlu0
      %v10075 = vpop.trf.xlu0
      %v10076 = vpop.trf.xlu0
      %10077 = vst [vmem:[%s212] sm:$0xff] %v10029
      %10078 = vst [vmem:[%s212 + $0x8] sm:$0xff] %v10061
      %10079 = vst [vmem:[%s212 + $0x10] sm:$0xff] %v10030
      %10080 = vst [vmem:[%s212 + $0x18] sm:$0xff] %v10062
      %v10081 = vadd.f32 %v10029, %v10061
      %10082 = vadd.xlane.f32.xlu0 %v10081
      %v10083 = vpop.xlane.xlu0 %10082
      %v10084 = vadd.f32 %v10030, %v10062
      %10085 = vadd.xlane.f32.xlu0 %v10084
      %v10086 = vpop.xlane.xlu0 %10085
      %vm10087 = vcmask 7168
      %10088 = vst.msk [vmem:[%s217] sm:$0xff] %vm10087, %v10083
      %10089 = vst.msk [vmem:[%s217 + $0x8] sm:$0xff] %vm10087, %v10086
      %v10090 = vmul.f32 %v10029, %v10029
      %v10091 = vmul.f32 %v10061, %v10061
      %v10092 = vmul.f32 %v10030, %v10030
      %v10093 = vmul.f32 %v10062, %v10062
      %v10094 = vadd.f32 %v10090, %v10091
      %10095 = vadd.xlane.f32.xlu0 %v10094
      %v10096 = vpop.xlane.xlu0 %10095
      %v10097 = vadd.f32 %v10092, %v10093
      %10098 = vadd.xlane.f32.xlu0 %v10097
      %v10099 = vpop.xlane.xlu0 %10098
      %10100 = vst.msk [vmem:[%s222] sm:$0xff] %vm10087, %v10096
      %10101 = vst.msk [vmem:[%s222 + $0x8] sm:$0xff] %vm10087, %v10099
      %p10102 = scmp.lt.s32.totalorder %s16, 1
      %s10103 = scalar_select %p10102, %s16, 1
      %s10104 = smul.addr %s10103, 4
      %s10105 = smul.addr %s10104, 8
      %s10106 = scalar_lea.vmem %s2, %s10105
      %p10107 = scmp.lt.s32.totalorder %s16, 1
      %s10108 = scalar_select %p10107, %s16, 1
      %s10109 = smul.addr %s10108, 2
      %s10110 = smul.addr %s10109, 8
      %s10111 = scalar_lea.vmem %s3, %s10110
      %p10112 = scmp.lt.s32.totalorder %s16, 1
      %s10113 = scalar_select %p10112, %s16, 1
      %s10114 = smul.addr %s10113, 2
      %s10115 = smul.addr %s10114, 8
      %s10116 = scalar_lea.vmem %s4, %s10115
      // Predicated region
      $region29: #{pred_ratios_forward.2} parent=27 // pred_check
        %p10117 = pneg %p81
      $region30: #{pred_ratios_forward.2} parent=27 // pred_check_branch
        %10119 = sbr.rel (%p10117) target = $region32
      $region31: #{pred_ratios_forward.2} parent=27 // pred_region
        _
      $region32: #{pred_ratios_forward.2} parent=27 // pred_fallthru
        _
      // Predicated region
      $region33: #{pred_ratios_forward.2} parent=27 // pred_check
        %p10120 = pneg %p107
      $region34: #{pred_ratios_forward.2} parent=27 // pred_check_branch
        %10122 = sbr.rel (%p10120) target = $region36
      $region35: #{pred_ratios_forward.2} parent=27 // pred_region
        _
      $region36: #{pred_ratios_forward.2} parent=27 // pred_fallthru
        _
      // Predicated region
      $region37: #{pred_ratios_forward.2} parent=27 // pred_check
        %p10123 = pneg %p133
      $region38: #{pred_ratios_forward.2} parent=27 // pred_check_branch
        %10125 = sbr.rel (%p10123) target = $region40
      $region39: #{pred_ratios_forward.2} parent=27 // pred_region
        _
      $region40: #{pred_ratios_forward.2} parent=27 // pred_fallthru
        _
    $region28: #{pred_ratios_forward.2} parent=5 // pred_fallthru
      _
    %p10126 = scmp.le.s32.totalorder 2, %s11
    // Predicated region
    $region41: #{pred_ratios_forward.2} parent=5 // pred_check
      %p10127 = pneg %p10126
    $region42: #{pred_ratios_forward.2} parent=5 // pred_check_branch
      %10129 = sbr.rel (%p10127) target = $region44
    $region43: #{pred_ratios_forward.2} parent=5 // pred_region
      %s10130 = ssub.s32 %s11, 2
      // Predicated region
      $region45: #{pred_ratios_forward.2} parent=43 // pred_check
        %p10131 = pneg %p87
      $region46: #{pred_ratios_forward.2} parent=43 // pred_check_branch
        %10133 = sbr.rel (%p10131) target = $region48
      $region47: #{pred_ratios_forward.2} parent=43 // pred_region
        %p10134 = scmp.lt.s32.totalorder %s17, 1
        %s10135 = scalar_select %p10134, %s17, 1
        %s10136 = smul.addr %s10135, 4
        %s10137 = smul.addr %s10136, 8
        %s10138 = scalar_lea.vmem %s2, %s10137
      $region48: #{pred_ratios_forward.2} parent=43 // pred_fallthru
        _
      // Predicated region
      $region49: #{pred_ratios_forward.2} parent=43 // pred_check
        %p10139 = pneg %p113
      $region50: #{pred_ratios_forward.2} parent=43 // pred_check_branch
        %10141 = sbr.rel (%p10139) target = $region52
      $region51: #{pred_ratios_forward.2} parent=43 // pred_region
        %p10142 = scmp.lt.s32.totalorder %s17, 1
        %s10143 = scalar_select %p10142, %s17, 1
        %s10144 = smul.addr %s10143, 2
        %s10145 = smul.addr %s10144, 8
        %s10146 = scalar_lea.vmem %s3, %s10145
      $region52: #{pred_ratios_forward.2} parent=43 // pred_fallthru
        _
      // Predicated region
      $region53: #{pred_ratios_forward.2} parent=43 // pred_check
        %p10147 = pneg %p139
      $region54: #{pred_ratios_forward.2} parent=43 // pred_check_branch
        %10149 = sbr.rel (%p10147) target = $region56
      $region55: #{pred_ratios_forward.2} parent=43 // pred_region
        %p10150 = scmp.lt.s32.totalorder %s17, 1
        %s10151 = scalar_select %p10150, %s17, 1
        %s10152 = smul.addr %s10151, 2
        %s10153 = smul.addr %s10152, 8
        %s10154 = scalar_lea.vmem %s4, %s10153
      $region56: #{pred_ratios_forward.2} parent=43 // pred_fallthru
        _
    $region44: #{pred_ratios_forward.2} parent=5 // pred_fallthru
      _
  $region6: #{pred_ratios_forward.2} parent=0 // loop_footer
    %s15 = sadd.s32 1, %s11
  $region7: #{pred_ratios_forward.2} parent=0 // loop_footer_branch
    %10 = sbr.rel target = $region3
  $region8: #{pred_ratios_forward.2} parent=0 // loop_exit
    _

</llo_original>
